<compile_context>
chip_gen: v7x
topology: tpu7x:2x2x1
jax: 0.10.0
libtpu: 0.0.40
codegen_flags: <defaults>
</compile_context>

<pallas_src>
import math
from functools import partial

import jax
import jax.numpy as jnp
from jax import lax
from jax.experimental import pallas as pl
from jax.experimental.pallas import tpu as pltpu

D_K_CONST = 128  # module-level d_k = d_v = 128 used for the 1/sqrt(d_k) scale

_DN_QK = (((2,), (2,)), ((0,), (0,)))  # [G,TQ,dk] x [G,Lk,dk] -> [G,TQ,Lk]
_DN_PV = (((2,), (1,)), ((0,), (0,)))  # [G,TQ,Lk] x [G,Lk,dv] -> [G,TQ,dv]


def _bf16_parts(x):
    """Split x into bf16 (hi, lo) parts; lo is None when x is already bf16."""
    if x.dtype == jnp.bfloat16:
        return x, None
    x = x.astype(jnp.float32)
    hi = x.astype(jnp.bfloat16)
    lo = (x - hi.astype(jnp.float32)).astype(jnp.bfloat16)
    return hi, lo


def _mxu_dot(a, b, dims):
    """dot_general with bf16 MXU operands and f32 accumulation.

    f32 operands are split into bf16 hi/lo parts (3 MXU passes) so the result
    is ~f32-accurate while every pass stays on the fast bf16 MXU path (required
    on v5e, faster on v6e/v7x).  Native bf16 operands take a single pass.
    """
    def dot(x, y):
        return lax.dot_general(x, y, dims, preferred_element_type=jnp.float32)

    a_hi, a_lo = _bf16_parts(a)
    b_hi, b_lo = _bf16_parts(b)
    out = dot(a_hi, b_hi)
    if b_lo is not None:
        out = out + dot(a_hi, b_lo)
    if a_lo is not None:
        out = out + dot(a_lo, b_hi)
    return out


def _sdpa_kernel(*refs, has_mask, return_attn):
    if has_mask:
        q_ref, k_ref, v_ref, m_ref = refs[:4]
        out_refs = refs[4:]
    else:
        q_ref, k_ref, v_ref = refs[:3]
        m_ref = None
        out_refs = refs[3:]
    if return_attn:
        ctx_ref, attn_ref = out_refs
    else:
        (ctx_ref,) = out_refs
        attn_ref = None

    # Fold 1/sqrt(d_k) into Q (touches TQ*dk elements instead of TQ*Lk).
    scale = 1.0 / math.sqrt(float(D_K_CONST))
    q = q_ref[...]                                  # [GB, TQ, dk]
    if q.dtype == jnp.bfloat16:
        q = q * jnp.asarray(scale, jnp.bfloat16)
    else:
        q = q.astype(jnp.float32) * scale

    # scores[g, q, l] = sum_d q[g, q, d] * k[g, l, d]  (transpose-free)
    scores = _mxu_dot(q, k_ref[...], _DN_QK)        # [GB, TQ, Lk] f32

    if has_mask:
        mask = m_ref[...].astype(jnp.int32)         # int8 block, nonzero=masked
        scores = jnp.where(mask != 0, jnp.float32(-1000000000.0), scores)

    # Numerically-stable softmax along the key axis (exact normalization).
    s_max = jnp.max(scores, axis=-1, keepdims=True)
    e = jnp.exp(scores - s_max)
    denom = jnp.sum(e, axis=-1, keepdims=True)
    attn = e * (1.0 / denom)                        # [GB, TQ, Lk] f32

    ctx = _mxu_dot(attn, v_ref[...], _DN_PV)        # [GB, TQ, dv] f32

    ctx_ref[...] = ctx.astype(ctx_ref.dtype)
    if return_attn:
        attn_ref[...] = attn.astype(attn_ref.dtype)


def _round_up(x, m):
    return (x + m - 1) // m * m


def _vmem_params():
    """(per-step working-set budget, vmem_limit_bytes), per TPU generation."""
    try:
        cap = int(pltpu.get_tpu_info().vmem_capacity_bytes)
    except Exception:  # CPU backend / interpret mode / old runtime
        cap = 64 * 1024 * 1024
    budget = max(8 * 1024 * 1024, cap // 6)   # ~21 MiB on v5e/v6e, ~10 MiB on v7x
    limit = int(min(max(cap // 2, 32 * 1024 * 1024), 64 * 1024 * 1024))
    return budget, limit


def _step_bytes(gb, tq, Lk, dk, dv, in_isz, attn_isz, mask_isz, return_attn):
    """Per-step VMEM: double-buffered DMA blocks + in-kernel temporaries."""
    q_b = gb * tq * dk * in_isz
    kv_b = gb * Lk * (dk + dv) * in_isz
    m_b = gb * tq * Lk * mask_isz
    ctx_b = gb * tq * dv * in_isz
    attn_b = gb * tq * Lk * attn_isz if return_attn else 0
    blocks = 2 * (q_b + kv_b + m_b + ctx_b + attn_b)
    # f32 scores / exp / attn temporaries + bf16 hi/lo operand splits.
    inter = 4 * gb * tq * Lk * 4 + 4 * gb * Lk * max(dk, dv) * 2
    return blocks + inter


def _choose_tiles(G, Lq, Lk, dk, dv, in_isz, attn_isz, mask_isz, return_attn,
                  budget):
    """Pick (fused-groups-per-step GB, query tile TQ) under the VMEM budget."""
    def fits(gb, tq):
        return _step_bytes(gb, tq, Lk, dk, dv, in_isz, attn_isz, mask_isz,
                           return_attn) <= budget

    full = _round_up(Lq, 32)     # x32 keeps int8-mask / bf16 sublane tiling clean
    cands = []
    for c in (full, 512, 256, 128, 64, 32):
        if c <= full and c not in cands:
            cands.append(c)
    tq = cands[-1]
    for c in cands:
        if fits(1, c):
            tq = c
            break

    gb = 1
    for cand in range(min(G, 64), 0, -1):
        if G % cand == 0 and fits(cand, tq):
            gb = cand
            break
    return gb, tq


def scaled_dot_product_attention(Q, K, V, attn_mask=None, *, return_attn=True):
    """Q: [B,H,Lq,dk], K: [B,H,Lk,dk], V: [B,H,Lk,dv]; mask nonzero => masked."""
    B, H, Lq, dk = Q.shape
    Lk = K.shape[2]
    dv = V.shape[3]
    G = B * H
    in_isz = jnp.dtype(Q.dtype).itemsize
    attn_dtype = Q.dtype                      # follow input dtype (torch-like)
    attn_isz = jnp.dtype(attn_dtype).itemsize

    has_mask = attn_mask is not None
    if has_mask:
        if attn_mask.ndim == 3:
            attn_mask = jnp.broadcast_to(attn_mask[:, None], (B, H, Lq, Lk))
        mask_g = attn_mask.astype(jnp.int8).reshape(G, Lq, Lk)
        mask_isz = 1
    else:
        mask_g = None
        mask_isz = 0

    budget, vmem_limit = _vmem_params()
    GB, TQ = _choose_tiles(G, Lq, Lk, dk, dv, in_isz, attn_isz, mask_isz,
                           return_attn, budget)
    Lq_p = _round_up(Lq, TQ)
    pad = Lq_p - Lq

    # Fold batch+heads into one fused axis: a single step processes GB*TQ
    # query rows (>=128 even for the module's tiny 8-token sequences).
    q_g = Q.reshape(G, Lq, dk)
    k_g = K.reshape(G, Lk, dk)
    v_g = V.reshape(G, Lk, dv)
    if pad:
        q_g = jnp.pad(q_g, ((0, 0), (0, pad), (0, 0)))
        if has_mask:
            mask_g = jnp.pad(mask_g, ((0, 0), (0, pad), (0, 0)))

    grid = (G // GB, Lq_p // TQ)
    q_map = lambda g, q: (g, q, 0)     # query-tiled blocks
    kv_map = lambda g, q: (g, 0, 0)    # full-Lk K/V block per fused group

    in_specs = [
        pl.BlockSpec((GB, TQ, dk), q_map),
        pl.BlockSpec((GB, Lk, dk), kv_map),
        pl.BlockSpec((GB, Lk, dv), kv_map),
    ]
    inputs = [q_g, k_g, v_g]
    if has_mask:
        in_specs.append(pl.BlockSpec((GB, TQ, Lk), q_map))
        inputs.append(mask_g)

    ctx_spec = pl.BlockSpec((GB, TQ, dv), q_map)
    ctx_shape = jax.ShapeDtypeStruct((G, Lq_p, dv), Q.dtype)
    if return_attn:
        out_specs = (ctx_spec, pl.BlockSpec((GB, TQ, Lk), q_map))
        out_shape = (ctx_shape, jax.ShapeDtypeStruct((G, Lq_p, Lk), attn_dtype))
    else:
        out_specs = ctx_spec
        out_shape = ctx_shape

    mask_bytes = mask_g.size if has_mask else 0
    attn_out_bytes = G * Lq * Lk * attn_isz if return_attn else 0
    cost = pl.CostEstimate(
        flops=2 * G * Lq_p * Lk * (dk + dv),
        transcendentals=G * Lq_p * Lk,
        bytes_accessed=(Q.nbytes + K.nbytes + V.nbytes + mask_bytes
                        + G * Lq * dv * in_isz + attn_out_bytes),
    )

    out = pl.pallas_call(
        partial(_sdpa_kernel, has_mask=has_mask, return_attn=return_attn),
        out_shape=out_shape,
        grid_spec=pltpu.PrefetchScalarGridSpec(
            num_scalar_prefetch=0,
            grid=grid,
            in_specs=in_specs,
            out_specs=out_specs,
        ),
        compiler_params=pltpu.CompilerParams(
            dimension_semantics=("parallel", "parallel"),
            vmem_limit_bytes=vmem_limit,
        ),
        cost_estimate=cost,
    )(*inputs)

    if return_attn:
        ctx_g, attn_g = out
        ctx = ctx_g[:, :Lq].reshape(B, H, Lq, dv)
        attn = attn_g[:, :Lq].reshape(B, H, Lq, Lk)
        return ctx, attn
    return out[:, :Lq].reshape(B, H, Lq, dv)


def _reference(Q, K, V, attn_mask):
    scores = jnp.einsum("bhqd,bhkd->bhqk", Q, K,
                        precision="highest") / math.sqrt(float(D_K_CONST))
    if attn_mask is not None:
        scores = jnp.where(attn_mask, -1000000000.0, scores)
    attn = jax.nn.softmax(scores, axis=-1)
    ctx = jnp.einsum("bhqk,bhkd->bhqd", attn, V, precision="highest")
    return ctx, attn


if __name__ == "__main__":
    key = jax.random.PRNGKey(0)
    kq, kk, kv, km = jax.random.split(key, 4)

    # Small shapes consistent with the module: seq=8, head dims d_k=d_v=128.
    B, H, L, dk, dv = 2, 8, 8, 128, 128
    Q = jax.random.normal(kq, (B, H, L, dk), dtype=jnp.float32)
    K = jax.random.normal(kk, (B, H, L, dk), dtype=jnp.float32)
    V = jax.random.normal(kv, (B, H, L, dv), dtype=jnp.float32)
    # Boolean mask (True => masked); keep at least one unmasked key per row.
    attn_mask = jax.random.bernoulli(km, p=0.3, shape=(B, H, L, L))
    attn_mask = attn_mask.at[..., 0].set(False)

    # Masked path (generic ScaledDotProductAttention).
    ctx, attn = scaled_dot_product_attention(Q, K, V, attn_mask)
    # Unmasked path (FT_BAM_Fuse_FuseEncoder passes enc_self_attn_mask=None).
    ctx_nm, attn_nm = scaled_dot_product_attention(Q, K, V, None)
    # Fast path that skips the attention-matrix writeback.
    ctx_only = scaled_dot_product_attention(Q, K, V, None, return_attn=False)
    jax.block_until_ready((ctx, attn, ctx_nm, attn_nm, ctx_only))

    ctx_ref, attn_ref = _reference(Q, K, V, attn_mask)
    ctx_ref_nm, attn_ref_nm = _reference(Q, K, V, None)

    assert jnp.allclose(ctx, ctx_ref, atol=2e-3, rtol=2e-3)
    assert jnp.allclose(attn, attn_ref, atol=2e-3, rtol=2e-3)
    assert jnp.allclose(ctx_nm, ctx_ref_nm, atol=2e-3, rtol=2e-3)
    assert jnp.allclose(attn_nm, attn_ref_nm, atol=2e-3, rtol=2e-3)
    assert jnp.allclose(ctx_only, ctx_ref_nm, atol=2e-3, rtol=2e-3)

    print("KERNEL_OK")
</pallas_src>

<mosaic_0001>
module attributes {stable_mosaic.version = 11 : i64} {
  func.func @_sdpa_kernel(%arg0: i32, %arg1: i32, %arg2: memref<16x32x128xf32, #tpu.memory_space<vmem>>, %arg3: memref<16x8x128xf32, #tpu.memory_space<vmem>>, %arg4: memref<16x8x128xf32, #tpu.memory_space<vmem>>, %arg5: memref<16x32x8xi8, #tpu.memory_space<vmem>>, %arg6: memref<16x32x128xf32, #tpu.memory_space<vmem>>, %arg7: memref<16x32x8xf32, #tpu.memory_space<vmem>>) attributes {dimension_semantics = [#tpu.dimension_semantics<parallel>, #tpu.dimension_semantics<parallel>], iteration_bounds = array<i64: 1, 1>, scalar_prefetch = 0 : i64, scratch_operands = 0 : i64, tpu.core_type = #tpu.core_type<tc>, window_params = [{transform_indices = @transform_0, window_bounds = array<i64: 16, 32, 128>}, {transform_indices = @transform_1, window_bounds = array<i64: 16, 8, 128>}, {transform_indices = @transform_2, window_bounds = array<i64: 16, 8, 128>}, {transform_indices = @transform_3, window_bounds = array<i64: 16, 32, 8>}, {transform_indices = @transform_4, window_bounds = array<i64: 16, 32, 128>}, {transform_indices = @transform_5, window_bounds = array<i64: 16, 32, 8>}]} {
    %c0 = arith.constant 0 : index
    %c0_0 = arith.constant 0 : index
    %c0_1 = arith.constant 0 : index
    %0 = vector.load %arg2[%c0, %c0_0, %c0_1] : memref<16x32x128xf32, #tpu.memory_space<vmem>>, vector<16x32x128xf32>
    %cst = arith.constant 0.0883883461 : f32
    %1 = vector.broadcast %cst : f32 to vector<16x32x128xf32>
    %2 = arith.mulf %0, %1 : vector<16x32x128xf32>
    %c0_2 = arith.constant 0 : index
    %c0_3 = arith.constant 0 : index
    %c0_4 = arith.constant 0 : index
    %3 = vector.load %arg3[%c0_2, %c0_3, %c0_4] : memref<16x8x128xf32, #tpu.memory_space<vmem>>, vector<16x8x128xf32>
    %4 = arith.truncf %2 : vector<16x32x128xf32> to vector<16x32x128xbf16>
    %5 = arith.extf %4 : vector<16x32x128xbf16> to vector<16x32x128xf32>
    %6 = arith.subf %2, %5 : vector<16x32x128xf32>
    %7 = arith.truncf %6 : vector<16x32x128xf32> to vector<16x32x128xbf16>
    %8 = arith.truncf %3 : vector<16x8x128xf32> to vector<16x8x128xbf16>
    %9 = arith.extf %8 : vector<16x8x128xbf16> to vector<16x8x128xf32>
    %10 = arith.subf %3, %9 : vector<16x8x128xf32>
    %11 = arith.truncf %10 : vector<16x8x128xf32> to vector<16x8x128xbf16>
    %cst_5 = arith.constant dense<0.000000e+00> : vector<16x32x8xf32>
    %12 = tpu.matmul %4, %8, %cst_5 {dimension_numbers = #tpu.dot_dimension_numbers<[2], [2], [1], [1], [0, 0, 0, 1, 1, 1], [0], [0]>} : vector<16x32x128xbf16>, vector<16x8x128xbf16>, vector<16x32x8xf32> -> vector<16x32x8xf32>
    %cst_6 = arith.constant dense<0.000000e+00> : vector<16x32x8xf32>
    %13 = tpu.matmul %4, %11, %cst_6 {dimension_numbers = #tpu.dot_dimension_numbers<[2], [2], [1], [1], [0, 0, 0, 1, 1, 1], [0], [0]>} : vector<16x32x128xbf16>, vector<16x8x128xbf16>, vector<16x32x8xf32> -> vector<16x32x8xf32>
    %14 = arith.addf %12, %13 : vector<16x32x8xf32>
    %cst_7 = arith.constant dense<0.000000e+00> : vector<16x32x8xf32>
    %15 = tpu.matmul %7, %8, %cst_7 {dimension_numbers = #tpu.dot_dimension_numbers<[2], [2], [1], [1], [0, 0, 0, 1, 1, 1], [0], [0]>} : vector<16x32x128xbf16>, vector<16x8x128xbf16>, vector<16x32x8xf32> -> vector<16x32x8xf32>
    %16 = arith.addf %14, %15 : vector<16x32x8xf32>
    %c0_8 = arith.constant 0 : index
    %c0_9 = arith.constant 0 : index
    %c0_10 = arith.constant 0 : index
    %17 = vector.load %arg5[%c0_8, %c0_9, %c0_10] : memref<16x32x8xi8, #tpu.memory_space<vmem>>, vector<16x32x8xi8>
    %18 = arith.extsi %17 : vector<16x32x8xi8> to vector<16x32x8xi32>
    %c0_i32 = arith.constant 0 : i32
    %19 = vector.broadcast %c0_i32 : i32 to vector<16x32x8xi32>
    %20 = arith.cmpi ne, %18, %19 : vector<16x32x8xi32>
    %cst_11 = arith.constant -1.000000e+09 : f32
    %21 = vector.broadcast %cst_11 : f32 to vector<16x32x8xf32>
    %22 = arith.select %20, %21, %16 : vector<16x32x8xi1>, vector<16x32x8xf32>
    %cst_12 = arith.constant dense<0xFF800000> : vector<16x32xf32>
    %23 = vector.multi_reduction <maximumf>, %22, %cst_12 [2] : vector<16x32x8xf32> to vector<16x32xf32>
    %24 = vector.shape_cast %23 : vector<16x32xf32> to vector<16x32x1xf32>
    %25 = vector.broadcast %24 : vector<16x32x1xf32> to vector<16x32x8xf32>
    %26 = arith.subf %22, %25 : vector<16x32x8xf32>
    %27 = math.exp %26 : vector<16x32x8xf32>
    %cst_13 = arith.constant dense<0.000000e+00> : vector<16x32xf32>
    %28 = vector.multi_reduction <add>, %27, %cst_13 [2] : vector<16x32x8xf32> to vector<16x32xf32>
    %29 = vector.shape_cast %28 : vector<16x32xf32> to vector<16x32x1xf32>
    %cst_14 = arith.constant 1.000000e+00 : f32
    %30 = vector.broadcast %cst_14 : f32 to vector<16x32x1xf32>
    %31 = arith.divf %30, %29 : vector<16x32x1xf32>
    %32 = vector.broadcast %31 : vector<16x32x1xf32> to vector<16x32x8xf32>
    %33 = arith.mulf %27, %32 : vector<16x32x8xf32>
    %c0_15 = arith.constant 0 : index
    %c0_16 = arith.constant 0 : index
    %c0_17 = arith.constant 0 : index
    %34 = vector.load %arg4[%c0_15, %c0_16, %c0_17] : memref<16x8x128xf32, #tpu.memory_space<vmem>>, vector<16x8x128xf32>
    %35 = arith.truncf %33 : vector<16x32x8xf32> to vector<16x32x8xbf16>
    %36 = arith.extf %35 : vector<16x32x8xbf16> to vector<16x32x8xf32>
    %37 = arith.subf %33, %36 : vector<16x32x8xf32>
    %38 = arith.truncf %37 : vector<16x32x8xf32> to vector<16x32x8xbf16>
    %39 = arith.truncf %34 : vector<16x8x128xf32> to vector<16x8x128xbf16>
    %40 = arith.extf %39 : vector<16x8x128xbf16> to vector<16x8x128xf32>
    %41 = arith.subf %34, %40 : vector<16x8x128xf32>
    %42 = arith.truncf %41 : vector<16x8x128xf32> to vector<16x8x128xbf16>
    %cst_18 = arith.constant dense<0.000000e+00> : vector<16x32x128xf32>
    %43 = tpu.matmul %35, %39, %cst_18 {dimension_numbers = #tpu.dot_dimension_numbers<[2], [1], [1], [2], [0, 0, 0, 1, 1, 2], [0], [0]>} : vector<16x32x8xbf16>, vector<16x8x128xbf16>, vector<16x32x128xf32> -> vector<16x32x128xf32>
    %cst_19 = arith.constant dense<0.000000e+00> : vector<16x32x128xf32>
    %44 = tpu.matmul %35, %42, %cst_19 {dimension_numbers = #tpu.dot_dimension_numbers<[2], [1], [1], [2], [0, 0, 0, 1, 1, 2], [0], [0]>} : vector<16x32x8xbf16>, vector<16x8x128xbf16>, vector<16x32x128xf32> -> vector<16x32x128xf32>
    %45 = arith.addf %43, %44 : vector<16x32x128xf32>
    %cst_20 = arith.constant dense<0.000000e+00> : vector<16x32x128xf32>
    %46 = tpu.matmul %38, %39, %cst_20 {dimension_numbers = #tpu.dot_dimension_numbers<[2], [1], [1], [2], [0, 0, 0, 1, 1, 2], [0], [0]>} : vector<16x32x8xbf16>, vector<16x8x128xbf16>, vector<16x32x128xf32> -> vector<16x32x128xf32>
    %47 = arith.addf %45, %46 : vector<16x32x128xf32>
    %c0_21 = arith.constant 0 : index
    %c0_22 = arith.constant 0 : index
    %c0_23 = arith.constant 0 : index
    %48 = vector.load %arg6[%c0_21, %c0_22, %c0_23] : memref<16x32x128xf32, #tpu.memory_space<vmem>>, vector<16x32x128xf32>
    tpu.vector_store %arg6[%c0_21, %c0_22, %c0_23], %47 {strides = array<i32>} : memref<16x32x128xf32, #tpu.memory_space<vmem>>, vector<16x32x128xf32>,
    %c0_24 = arith.constant 0 : index
    %c0_25 = arith.constant 0 : index
    %c0_26 = arith.constant 0 : index
    %49 = vector.load %arg7[%c0_24, %c0_25, %c0_26] : memref<16x32x8xf32, #tpu.memory_space<vmem>>, vector<16x32x8xf32>
    tpu.vector_store %arg7[%c0_24, %c0_25, %c0_26], %33 {strides = array<i32>} : memref<16x32x8xf32, #tpu.memory_space<vmem>>, vector<16x32x8xf32>,
    return
  }
  func.func @transform_0(%arg0: i32, %arg1: i32) -> (i32, i32, i32) {
    %c0_i32 = arith.constant 0 : i32
    %c0_i32_0 = arith.constant 0 : i32
    return %arg0, %arg1, %c0_i32 : i32, i32, i32
  }
  func.func @transform_1(%arg0: i32, %arg1: i32) -> (i32, i32, i32) {
    %c0_i32 = arith.constant 0 : i32
    %c0_i32_0 = arith.constant 0 : i32
    %c0_i32_1 = arith.constant 0 : i32
    return %arg0, %c0_i32, %c0_i32_0 : i32, i32, i32
  }
  func.func @transform_2(%arg0: i32, %arg1: i32) -> (i32, i32, i32) {
    %c0_i32 = arith.constant 0 : i32
    %c0_i32_0 = arith.constant 0 : i32
    %c0_i32_1 = arith.constant 0 : i32
    return %arg0, %c0_i32, %c0_i32_0 : i32, i32, i32
  }
  func.func @transform_3(%arg0: i32, %arg1: i32) -> (i32, i32, i32) {
    %c0_i32 = arith.constant 0 : i32
    %c0_i32_0 = arith.constant 0 : i32
    return %arg0, %arg1, %c0_i32 : i32, i32, i32
  }
  func.func @transform_4(%arg0: i32, %arg1: i32) -> (i32, i32, i32) {
    %c0_i32 = arith.constant 0 : i32
    %c0_i32_0 = arith.constant 0 : i32
    return %arg0, %arg1, %c0_i32 : i32, i32, i32
  }
  func.func @transform_5(%arg0: i32, %arg1: i32) -> (i32, i32, i32) {
    %c0_i32 = arith.constant 0 : i32
    %c0_i32_0 = arith.constant 0 : i32
    return %arg0, %arg1, %c0_i32 : i32, i32, i32
  }
}

</mosaic_0001>

<llo_original>
// kernel: tpu_custom_call.1
$region0: #{tpu_custom_call.1}
  #allocation0 [shape = 'u32[]', space=smem, size = 0x4, offset = 0x4, fixed_abs, tag = 'smem constant byte address 0x4 - core index']
  #allocation1 [shape = 'u32[144,128]{1,0:T(1,128)}', space=vmem, size = 0x12000, scoped, tag = 'internal scratch']
  %s0 = inlined_call_operand.hbm [shape: f32[16,32,128], index: 0, kind: input, shape index: {}]
  %s1 = inlined_call_operand.vmem [shape: f32[16,8,128], index: 1, kind: input, shape index: {}]
  %s2 = inlined_call_operand.hbm [shape: f32[16,8,128], index: 2, kind: input, shape index: {}]
  %s3 = inlined_call_operand.vmem [shape: s8[16,32,8], index: 3, kind: input, shape index: {}]
  %s4 = inlined_call_operand.hbm [shape: f32[16,32,128], index: 4, kind: output, shape index: {0}]
  %s5 = inlined_call_operand.vmem [shape: f32[16,32,8], index: 5, kind: output, shape index: {1}]
  %6 = xla_tuple %s4, %s5
  %s7 = sld [smem:[#allocation0]]
  $region42: #{tpu_custom_call.1} parent=0
    _
  %s9 = ssub.s32 1, %s7
  %s10 = scalar_select 0, %s9, %s7
  $region1: #{tpu_custom_call.1} parent=0
    #allocation2 [shape = 'u8[262144]{0}', space=vmem, size = 0x40000, scoped, tag = 'input window, operand 0, single buffered']
    #allocation3 [shape = 's32[1]{0}', space=sflag, size = 0x4, scoped, tag = 'scoped memory for tpu_custom_call.1']
    #allocation4 [shape = 's32[1]{0}', space=sflag, size = 0x4, scoped, tag = 'scoped memory for tpu_custom_call.1']
    #allocation5 [shape = 'u8[65536]{0}', space=vmem, size = 0x10000, scoped, tag = 'input window, operand 2, single buffered']
    #allocation6 [shape = 's32[1]{0}', space=sflag, size = 0x4, scoped, tag = 'scoped memory for tpu_custom_call.1']
    #allocation7 [shape = 'u8[262144]{0}', space=vmem, size = 0x40000, scoped, tag = 'output window, operand 0, single buffered']
    %11 = vsyncpa [#allocation3], 0
    %12 = vsyncpa [#allocation6], 0
    %13 = vsyncpa [#allocation4], 0
    // Predicated region
    $region2: #{tpu_custom_call.1} parent=1 // pred_check
      _
    $region3: #{tpu_custom_call.1} parent=1 // pred_check_branch
      %15 = sbr.rel (0) target = $region5
    $region4: #{tpu_custom_call.1} parent=1 // pred_region
      %s17 = ssub.s32 8192, 8192
      %18 = vsyncadd [#allocation3], %s17
      %s19 = sshll.u32 [#allocation2], 4
      %s20 = int_to_ptr.vmem [resolvable:$true] %s19
      %25 = dma.hbm_to_vmem [thread:$0]  %s0, 8192, %s20, [#allocation3], 128, 128, 8
    $region5: #{tpu_custom_call.1} parent=1 // pred_fallthru
      _
    // Predicated region
    $region6: #{tpu_custom_call.1} parent=1 // pred_check
      _
    $region7: #{tpu_custom_call.1} parent=1 // pred_check_branch
      %27 = sbr.rel (0) target = $region9
    $region8: #{tpu_custom_call.1} parent=1 // pred_region
      _
    $region9: #{tpu_custom_call.1} parent=1 // pred_fallthru
      _
    // Predicated region
    $region10: #{tpu_custom_call.1} parent=1 // pred_check
      _
    $region11: #{tpu_custom_call.1} parent=1 // pred_check_branch
      %29 = sbr.rel (0) target = $region13
    $region12: #{tpu_custom_call.1} parent=1 // pred_region
      %s31 = ssub.s32 2048, 2048
      %32 = vsyncadd [#allocation6], %s31
      %s33 = sshll.u32 [#allocation5], 4
      %s34 = int_to_ptr.vmem [resolvable:$true] %s33
      %39 = dma.hbm_to_vmem [thread:$0]  %s2, 2048, %s34, [#allocation6], 128, 128, 8
    $region13: #{tpu_custom_call.1} parent=1 // pred_fallthru
      _
    // Predicated region
    $region14: #{tpu_custom_call.1} parent=1 // pred_check
      _
    $region15: #{tpu_custom_call.1} parent=1 // pred_check_branch
      %41 = sbr.rel (0) target = $region17
    $region16: #{tpu_custom_call.1} parent=1 // pred_region
      _
    $region17: #{tpu_custom_call.1} parent=1 // pred_fallthru
      _
    // Predicated region
    $region18: #{tpu_custom_call.1} parent=1 // pred_check
      _
    $region19: #{tpu_custom_call.1} parent=1 // pred_check_branch
      %43 = sbr.rel (0) target = $region21
    $region20: #{tpu_custom_call.1} parent=1 // pred_region
      %44 = dma.done [#allocation3], 8192
    $region21: #{tpu_custom_call.1} parent=1 // pred_fallthru
      _
    // Predicated region
    $region22: #{tpu_custom_call.1} parent=1 // pred_check
      _
    $region23: #{tpu_custom_call.1} parent=1 // pred_check_branch
      %46 = sbr.rel (0) target = $region25
    $region24: #{tpu_custom_call.1} parent=1 // pred_region
      %47 = dma.done [#allocation6], 2048
    $region25: #{tpu_custom_call.1} parent=1 // pred_fallthru
      _
    %v49 = vld [vmem:[#allocation2] sm:$0xff]
    %v50 = vld [vmem:[#allocation2 + $0x8] sm:$0xff]
    %v51 = vld [vmem:[#allocation2 + $0x10] sm:$0xff]
    %v52 = vld [vmem:[#allocation2 + $0x18] sm:$0xff]
    %v53 = vld [vmem:[#allocation2 + $0x20] sm:$0xff]
    %v54 = vld [vmem:[#allocation2 + $0x28] sm:$0xff]
    %v55 = vld [vmem:[#allocation2 + $0x30] sm:$0xff]
    %v56 = vld [vmem:[#allocation2 + $0x38] sm:$0xff]
    %v57 = vld [vmem:[#allocation2 + $0x40] sm:$0xff]
    %v58 = vld [vmem:[#allocation2 + $0x48] sm:$0xff]
    %v59 = vld [vmem:[#allocation2 + $0x50] sm:$0xff]
    %v60 = vld [vmem:[#allocation2 + $0x58] sm:$0xff]
    %v61 = vld [vmem:[#allocation2 + $0x60] sm:$0xff]
    %v62 = vld [vmem:[#allocation2 + $0x68] sm:$0xff]
    %v63 = vld [vmem:[#allocation2 + $0x70] sm:$0xff]
    %v64 = vld [vmem:[#allocation2 + $0x78] sm:$0xff]
    %v65 = vld [vmem:[#allocation2 + $0x80] sm:$0xff]
    %v66 = vld [vmem:[#allocation2 + $0x88] sm:$0xff]
    %v67 = vld [vmem:[#allocation2 + $0x90] sm:$0xff]
    %v68 = vld [vmem:[#allocation2 + $0x98] sm:$0xff]
    %v69 = vld [vmem:[#allocation2 + $0xa0] sm:$0xff]
    %v70 = vld [vmem:[#allocation2 + $0xa8] sm:$0xff]
    %v71 = vld [vmem:[#allocation2 + $0xb0] sm:$0xff]
    %v72 = vld [vmem:[#allocation2 + $0xb8] sm:$0xff]
    %v73 = vld [vmem:[#allocation2 + $0xc0] sm:$0xff]
    %v74 = vld [vmem:[#allocation2 + $0xc8] sm:$0xff]
    %v75 = vld [vmem:[#allocation2 + $0xd0] sm:$0xff]
    %v76 = vld [vmem:[#allocation2 + $0xd8] sm:$0xff]
    %v77 = vld [vmem:[#allocation2 + $0xe0] sm:$0xff]
    %v78 = vld [vmem:[#allocation2 + $0xe8] sm:$0xff]
    %v79 = vld [vmem:[#allocation2 + $0xf0] sm:$0xff]
    %v80 = vld [vmem:[#allocation2 + $0xf8] sm:$0xff]
    %v81 = vld [vmem:[#allocation2 + $0x100] sm:$0xff]
    %v82 = vld [vmem:[#allocation2 + $0x108] sm:$0xff]
    %v83 = vld [vmem:[#allocation2 + $0x110] sm:$0xff]
    %v84 = vld [vmem:[#allocation2 + $0x118] sm:$0xff]
    %v85 = vld [vmem:[#allocation2 + $0x120] sm:$0xff]
    %v86 = vld [vmem:[#allocation2 + $0x128] sm:$0xff]
    %v87 = vld [vmem:[#allocation2 + $0x130] sm:$0xff]
    %v88 = vld [vmem:[#allocation2 + $0x138] sm:$0xff]
    %v89 = vld [vmem:[#allocation2 + $0x140] sm:$0xff]
    %v90 = vld [vmem:[#allocation2 + $0x148] sm:$0xff]
    %v91 = vld [vmem:[#allocation2 + $0x150] sm:$0xff]
    %v92 = vld [vmem:[#allocation2 + $0x158] sm:$0xff]
    %v93 = vld [vmem:[#allocation2 + $0x160] sm:$0xff]
    %v94 = vld [vmem:[#allocation2 + $0x168] sm:$0xff]
    %v95 = vld [vmem:[#allocation2 + $0x170] sm:$0xff]
    %v96 = vld [vmem:[#allocation2 + $0x178] sm:$0xff]
    %v97 = vld [vmem:[#allocation2 + $0x180] sm:$0xff]
    %v98 = vld [vmem:[#allocation2 + $0x188] sm:$0xff]
    %v99 = vld [vmem:[#allocation2 + $0x190] sm:$0xff]
    %v100 = vld [vmem:[#allocation2 + $0x198] sm:$0xff]
    %v101 = vld [vmem:[#allocation2 + $0x1a0] sm:$0xff]
    %v102 = vld [vmem:[#allocation2 + $0x1a8] sm:$0xff]
    %v103 = vld [vmem:[#allocation2 + $0x1b0] sm:$0xff]
    %v104 = vld [vmem:[#allocation2 + $0x1b8] sm:$0xff]
    %v105 = vld [vmem:[#allocation2 + $0x1c0] sm:$0xff]
    %v106 = vld [vmem:[#allocation2 + $0x1c8] sm:$0xff]
    %v107 = vld [vmem:[#allocation2 + $0x1d0] sm:$0xff]
    %v108 = vld [vmem:[#allocation2 + $0x1d8] sm:$0xff]
    %v109 = vld [vmem:[#allocation2 + $0x1e0] sm:$0xff]
    %v110 = vld [vmem:[#allocation2 + $0x1e8] sm:$0xff]
    %v111 = vld [vmem:[#allocation2 + $0x1f0] sm:$0xff]
    %v112 = vld [vmem:[#allocation2 + $0x1f8] sm:$0xff]
    %v113 = vmul.f32 %v49, 0.088388346
    %v114 = vmul.f32 %v50, 0.088388346
    %v115 = vmul.f32 %v51, 0.088388346
    %v116 = vmul.f32 %v52, 0.088388346
    %v117 = vmul.f32 %v53, 0.088388346
    %v118 = vmul.f32 %v54, 0.088388346
    %v119 = vmul.f32 %v55, 0.088388346
    %v120 = vmul.f32 %v56, 0.088388346
    %v121 = vmul.f32 %v57, 0.088388346
    %v122 = vmul.f32 %v58, 0.088388346
    %v123 = vmul.f32 %v59, 0.088388346
    %v124 = vmul.f32 %v60, 0.088388346
    %v125 = vmul.f32 %v61, 0.088388346
    %v126 = vmul.f32 %v62, 0.088388346
    %v127 = vmul.f32 %v63, 0.088388346
    %v128 = vmul.f32 %v64, 0.088388346
    %v129 = vmul.f32 %v65, 0.088388346
    %v130 = vmul.f32 %v66, 0.088388346
    %v131 = vmul.f32 %v67, 0.088388346
    %v132 = vmul.f32 %v68, 0.088388346
    %v133 = vmul.f32 %v69, 0.088388346
    %v134 = vmul.f32 %v70, 0.088388346
    %v135 = vmul.f32 %v71, 0.088388346
    %v136 = vmul.f32 %v72, 0.088388346
    %v137 = vmul.f32 %v73, 0.088388346
    %v138 = vmul.f32 %v74, 0.088388346
    %v139 = vmul.f32 %v75, 0.088388346
    %v140 = vmul.f32 %v76, 0.088388346
    %v141 = vmul.f32 %v77, 0.088388346
    %v142 = vmul.f32 %v78, 0.088388346
    %v143 = vmul.f32 %v79, 0.088388346
    %v144 = vmul.f32 %v80, 0.088388346
    %v145 = vmul.f32 %v81, 0.088388346
    %v146 = vmul.f32 %v82, 0.088388346
    %v147 = vmul.f32 %v83, 0.088388346
    %v148 = vmul.f32 %v84, 0.088388346
    %v149 = vmul.f32 %v85, 0.088388346
    %v150 = vmul.f32 %v86, 0.088388346
    %v151 = vmul.f32 %v87, 0.088388346
    %v152 = vmul.f32 %v88, 0.088388346
    %v153 = vmul.f32 %v89, 0.088388346
    %v154 = vmul.f32 %v90, 0.088388346
    %v155 = vmul.f32 %v91, 0.088388346
    %v156 = vmul.f32 %v92, 0.088388346
    %v157 = vmul.f32 %v93, 0.088388346
    %v158 = vmul.f32 %v94, 0.088388346
    %v159 = vmul.f32 %v95, 0.088388346
    %v160 = vmul.f32 %v96, 0.088388346
    %v161 = vmul.f32 %v97, 0.088388346
    %v162 = vmul.f32 %v98, 0.088388346
    %v163 = vmul.f32 %v99, 0.088388346
    %v164 = vmul.f32 %v100, 0.088388346
    %v165 = vmul.f32 %v101, 0.088388346
    %v166 = vmul.f32 %v102, 0.088388346
    %v167 = vmul.f32 %v103, 0.088388346
    %v168 = vmul.f32 %v104, 0.088388346
    %v169 = vmul.f32 %v105, 0.088388346
    %v170 = vmul.f32 %v106, 0.088388346
    %v171 = vmul.f32 %v107, 0.088388346
    %v172 = vmul.f32 %v108, 0.088388346
    %v173 = vmul.f32 %v109, 0.088388346
    %v174 = vmul.f32 %v110, 0.088388346
    %v175 = vmul.f32 %v111, 0.088388346
    %v176 = vmul.f32 %v112, 0.088388346
    %v177 = vld [vmem:[%s1] sm:$0xff]
    %v178 = vld [vmem:[%s1 + $0x8] sm:$0xff]
    %v179 = vld [vmem:[%s1 + $0x10] sm:$0xff]
    %v180 = vld [vmem:[%s1 + $0x18] sm:$0xff]
    %v181 = vld [vmem:[%s1 + $0x20] sm:$0xff]
    %v182 = vld [vmem:[%s1 + $0x28] sm:$0xff]
    %v183 = vld [vmem:[%s1 + $0x30] sm:$0xff]
    %v184 = vld [vmem:[%s1 + $0x38] sm:$0xff]
    %v185 = vld [vmem:[%s1 + $0x40] sm:$0xff]
    %v186 = vld [vmem:[%s1 + $0x48] sm:$0xff]
    %v187 = vld [vmem:[%s1 + $0x50] sm:$0xff]
    %v188 = vld [vmem:[%s1 + $0x58] sm:$0xff]
    %v189 = vld [vmem:[%s1 + $0x60] sm:$0xff]
    %v190 = vld [vmem:[%s1 + $0x68] sm:$0xff]
    %v191 = vld [vmem:[%s1 + $0x70] sm:$0xff]
    %v192 = vld [vmem:[%s1 + $0x78] sm:$0xff]
    %v193 = vpack.c.bf16 %v114, %v113
    %v194 = vpack.c.bf16 %v116, %v115
    %v195 = vpack.c.bf16 %v118, %v117
    %v196 = vpack.c.bf16 %v120, %v119
    %v197 = vpack.c.bf16 %v122, %v121
    %v198 = vpack.c.bf16 %v124, %v123
    %v199 = vpack.c.bf16 %v126, %v125
    %v200 = vpack.c.bf16 %v128, %v127
    %v201 = vpack.c.bf16 %v130, %v129
    %v202 = vpack.c.bf16 %v132, %v131
    %v203 = vpack.c.bf16 %v134, %v133
    %v204 = vpack.c.bf16 %v136, %v135
    %v205 = vpack.c.bf16 %v138, %v137
    %v206 = vpack.c.bf16 %v140, %v139
    %v207 = vpack.c.bf16 %v142, %v141
    %v208 = vpack.c.bf16 %v144, %v143
    %v209 = vpack.c.bf16 %v146, %v145
    %v210 = vpack.c.bf16 %v148, %v147
    %v211 = vpack.c.bf16 %v150, %v149
    %v212 = vpack.c.bf16 %v152, %v151
    %v213 = vpack.c.bf16 %v154, %v153
    %v214 = vpack.c.bf16 %v156, %v155
    %v215 = vpack.c.bf16 %v158, %v157
    %v216 = vpack.c.bf16 %v160, %v159
    %v217 = vpack.c.bf16 %v162, %v161
    %v218 = vpack.c.bf16 %v164, %v163
    %v219 = vpack.c.bf16 %v166, %v165
    %v220 = vpack.c.bf16 %v168, %v167
    %v221 = vpack.c.bf16 %v170, %v169
    %v222 = vpack.c.bf16 %v172, %v171
    %v223 = vpack.c.bf16 %v174, %v173
    %v224 = vpack.c.bf16 %v176, %v175
    %v225 = vunpack.c.l.bf16 %v193
    %v226 = vunpack.c.h.bf16 %v193
    %v227 = vunpack.c.l.bf16 %v194
    %v228 = vunpack.c.h.bf16 %v194
    %v229 = vunpack.c.l.bf16 %v195
    %v230 = vunpack.c.h.bf16 %v195
    %v231 = vunpack.c.l.bf16 %v196
    %v232 = vunpack.c.h.bf16 %v196
    %v233 = vunpack.c.l.bf16 %v197
    %v234 = vunpack.c.h.bf16 %v197
    %v235 = vunpack.c.l.bf16 %v198
    %v236 = vunpack.c.h.bf16 %v198
    %v237 = vunpack.c.l.bf16 %v199
    %v238 = vunpack.c.h.bf16 %v199
    %v239 = vunpack.c.l.bf16 %v200
    %v240 = vunpack.c.h.bf16 %v200
    %v241 = vunpack.c.l.bf16 %v201
    %v242 = vunpack.c.h.bf16 %v201
    %v243 = vunpack.c.l.bf16 %v202
    %v244 = vunpack.c.h.bf16 %v202
    %v245 = vunpack.c.l.bf16 %v203
    %v246 = vunpack.c.h.bf16 %v203
    %v247 = vunpack.c.l.bf16 %v204
    %v248 = vunpack.c.h.bf16 %v204
    %v249 = vunpack.c.l.bf16 %v205
    %v250 = vunpack.c.h.bf16 %v205
    %v251 = vunpack.c.l.bf16 %v206
    %v252 = vunpack.c.h.bf16 %v206
    %v253 = vunpack.c.l.bf16 %v207
    %v254 = vunpack.c.h.bf16 %v207
    %v255 = vunpack.c.l.bf16 %v208
    %v256 = vunpack.c.h.bf16 %v208
    %v257 = vunpack.c.l.bf16 %v209
    %v258 = vunpack.c.h.bf16 %v209
    %v259 = vunpack.c.l.bf16 %v210
    %v260 = vunpack.c.h.bf16 %v210
    %v261 = vunpack.c.l.bf16 %v211
    %v262 = vunpack.c.h.bf16 %v211
    %v263 = vunpack.c.l.bf16 %v212
    %v264 = vunpack.c.h.bf16 %v212
    %v265 = vunpack.c.l.bf16 %v213
    %v266 = vunpack.c.h.bf16 %v213
    %v267 = vunpack.c.l.bf16 %v214
    %v268 = vunpack.c.h.bf16 %v214
    %v269 = vunpack.c.l.bf16 %v215
    %v270 = vunpack.c.h.bf16 %v215
    %v271 = vunpack.c.l.bf16 %v216
    %v272 = vunpack.c.h.bf16 %v216
    %v273 = vunpack.c.l.bf16 %v217
    %v274 = vunpack.c.h.bf16 %v217
    %v275 = vunpack.c.l.bf16 %v218
    %v276 = vunpack.c.h.bf16 %v218
    %v277 = vunpack.c.l.bf16 %v219
    %v278 = vunpack.c.h.bf16 %v219
    %v279 = vunpack.c.l.bf16 %v220
    %v280 = vunpack.c.h.bf16 %v220
    %v281 = vunpack.c.l.bf16 %v221
    %v282 = vunpack.c.h.bf16 %v221
    %v283 = vunpack.c.l.bf16 %v222
    %v284 = vunpack.c.h.bf16 %v222
    %v285 = vunpack.c.l.bf16 %v223
    %v286 = vunpack.c.h.bf16 %v223
    %v287 = vunpack.c.l.bf16 %v224
    %v288 = vunpack.c.h.bf16 %v224
    %v289 = vsub.f32 %v113, %v225
    %v290 = vsub.f32 %v114, %v226
    %v291 = vsub.f32 %v115, %v227
    %v292 = vsub.f32 %v116, %v228
    %v293 = vsub.f32 %v117, %v229
    %v294 = vsub.f32 %v118, %v230
    %v295 = vsub.f32 %v119, %v231
    %v296 = vsub.f32 %v120, %v232
    %v297 = vsub.f32 %v121, %v233
    %v298 = vsub.f32 %v122, %v234
    %v299 = vsub.f32 %v123, %v235
    %v300 = vsub.f32 %v124, %v236
    %v301 = vsub.f32 %v125, %v237
    %v302 = vsub.f32 %v126, %v238
    %v303 = vsub.f32 %v127, %v239
    %v304 = vsub.f32 %v128, %v240
    %v305 = vsub.f32 %v129, %v241
    %v306 = vsub.f32 %v130, %v242
    %v307 = vsub.f32 %v131, %v243
    %v308 = vsub.f32 %v132, %v244
    %v309 = vsub.f32 %v133, %v245
    %v310 = vsub.f32 %v134, %v246
    %v311 = vsub.f32 %v135, %v247
    %v312 = vsub.f32 %v136, %v248
    %v313 = vsub.f32 %v137, %v249
    %v314 = vsub.f32 %v138, %v250
    %v315 = vsub.f32 %v139, %v251
    %v316 = vsub.f32 %v140, %v252
    %v317 = vsub.f32 %v141, %v253
    %v318 = vsub.f32 %v142, %v254
    %v319 = vsub.f32 %v143, %v255
    %v320 = vsub.f32 %v144, %v256
    %v321 = vsub.f32 %v145, %v257
    %v322 = vsub.f32 %v146, %v258
    %v323 = vsub.f32 %v147, %v259
    %v324 = vsub.f32 %v148, %v260
    %v325 = vsub.f32 %v149, %v261
    %v326 = vsub.f32 %v150, %v262
    %v327 = vsub.f32 %v151, %v263
    %v328 = vsub.f32 %v152, %v264
    %v329 = vsub.f32 %v153, %v265
    %v330 = vsub.f32 %v154, %v266
    %v331 = vsub.f32 %v155, %v267
    %v332 = vsub.f32 %v156, %v268
    %v333 = vsub.f32 %v157, %v269
    %v334 = vsub.f32 %v158, %v270
    %v335 = vsub.f32 %v159, %v271
    %v336 = vsub.f32 %v160, %v272
    %v337 = vsub.f32 %v161, %v273
    %v338 = vsub.f32 %v162, %v274
    %v339 = vsub.f32 %v163, %v275
    %v340 = vsub.f32 %v164, %v276
    %v341 = vsub.f32 %v165, %v277
    %v342 = vsub.f32 %v166, %v278
    %v343 = vsub.f32 %v167, %v279
    %v344 = vsub.f32 %v168, %v280
    %v345 = vsub.f32 %v169, %v281
    %v346 = vsub.f32 %v170, %v282
    %v347 = vsub.f32 %v171, %v283
    %v348 = vsub.f32 %v172, %v284
    %v349 = vsub.f32 %v173, %v285
    %v350 = vsub.f32 %v174, %v286
    %v351 = vsub.f32 %v175, %v287
    %v352 = vsub.f32 %v176, %v288
    %v353 = vpack.c.bf16 %v290, %v289
    %v354 = vpack.c.bf16 %v292, %v291
    %v355 = vpack.c.bf16 %v294, %v293
    %v356 = vpack.c.bf16 %v296, %v295
    %v357 = vpack.c.bf16 %v298, %v297
    %v358 = vpack.c.bf16 %v300, %v299
    %v359 = vpack.c.bf16 %v302, %v301
    %v360 = vpack.c.bf16 %v304, %v303
    %v361 = vpack.c.bf16 %v306, %v305
    %v362 = vpack.c.bf16 %v308, %v307
    %v363 = vpack.c.bf16 %v310, %v309
    %v364 = vpack.c.bf16 %v312, %v311
    %v365 = vpack.c.bf16 %v314, %v313
    %v366 = vpack.c.bf16 %v316, %v315
    %v367 = vpack.c.bf16 %v318, %v317
    %v368 = vpack.c.bf16 %v320, %v319
    %v369 = vpack.c.bf16 %v322, %v321
    %v370 = vpack.c.bf16 %v324, %v323
    %v371 = vpack.c.bf16 %v326, %v325
    %v372 = vpack.c.bf16 %v328, %v327
    %v373 = vpack.c.bf16 %v330, %v329
    %v374 = vpack.c.bf16 %v332, %v331
    %v375 = vpack.c.bf16 %v334, %v333
    %v376 = vpack.c.bf16 %v336, %v335
    %v377 = vpack.c.bf16 %v338, %v337
    %v378 = vpack.c.bf16 %v340, %v339
    %v379 = vpack.c.bf16 %v342, %v341
    %v380 = vpack.c.bf16 %v344, %v343
    %v381 = vpack.c.bf16 %v346, %v345
    %v382 = vpack.c.bf16 %v348, %v347
    %v383 = vpack.c.bf16 %v350, %v349
    %v384 = vpack.c.bf16 %v352, %v351
    %v385 = vpack.c.bf16 %v177, %v177
    %v386 = vpack.c.bf16 %v178, %v178
    %v387 = vpack.c.bf16 %v179, %v179
    %v388 = vpack.c.bf16 %v180, %v180
    %v389 = vpack.c.bf16 %v181, %v181
    %v390 = vpack.c.bf16 %v182, %v182
    %v391 = vpack.c.bf16 %v183, %v183
    %v392 = vpack.c.bf16 %v184, %v184
    %v393 = vpack.c.bf16 %v185, %v185
    %v394 = vpack.c.bf16 %v186, %v186
    %v395 = vpack.c.bf16 %v187, %v187
    %v396 = vpack.c.bf16 %v188, %v188
    %v397 = vpack.c.bf16 %v189, %v189
    %v398 = vpack.c.bf16 %v190, %v190
    %v399 = vpack.c.bf16 %v191, %v191
    %v400 = vpack.c.bf16 %v192, %v192
    %v401 = vunpack.c.l.bf16 %v385
    %v402 = vunpack.c.l.bf16 %v386
    %v403 = vunpack.c.l.bf16 %v387
    %v404 = vunpack.c.l.bf16 %v388
    %v405 = vunpack.c.l.bf16 %v389
    %v406 = vunpack.c.l.bf16 %v390
    %v407 = vunpack.c.l.bf16 %v391
    %v408 = vunpack.c.l.bf16 %v392
    %v409 = vunpack.c.l.bf16 %v393
    %v410 = vunpack.c.l.bf16 %v394
    %v411 = vunpack.c.l.bf16 %v395
    %v412 = vunpack.c.l.bf16 %v396
    %v413 = vunpack.c.l.bf16 %v397
    %v414 = vunpack.c.l.bf16 %v398
    %v415 = vunpack.c.l.bf16 %v399
    %v416 = vunpack.c.l.bf16 %v400
    %v417 = vsub.f32 %v177, %v401
    %v418 = vsub.f32 %v178, %v402
    %v419 = vsub.f32 %v179, %v403
    %v420 = vsub.f32 %v180, %v404
    %v421 = vsub.f32 %v181, %v405
    %v422 = vsub.f32 %v182, %v406
    %v423 = vsub.f32 %v183, %v407
    %v424 = vsub.f32 %v184, %v408
    %v425 = vsub.f32 %v185, %v409
    %v426 = vsub.f32 %v186, %v410
    %v427 = vsub.f32 %v187, %v411
    %v428 = vsub.f32 %v188, %v412
    %v429 = vsub.f32 %v189, %v413
    %v430 = vsub.f32 %v190, %v414
    %v431 = vsub.f32 %v191, %v415
    %v432 = vsub.f32 %v192, %v416
    %v433 = vpack.c.bf16 %v417, %v417
    %v434 = vpack.c.bf16 %v418, %v418
    %v435 = vpack.c.bf16 %v419, %v419
    %v436 = vpack.c.bf16 %v420, %v420
    %v437 = vpack.c.bf16 %v421, %v421
    %v438 = vpack.c.bf16 %v422, %v422
    %v439 = vpack.c.bf16 %v423, %v423
    %v440 = vpack.c.bf16 %v424, %v424
    %v441 = vpack.c.bf16 %v425, %v425
    %v442 = vpack.c.bf16 %v426, %v426
    %v443 = vpack.c.bf16 %v427, %v427
    %v444 = vpack.c.bf16 %v428, %v428
    %v445 = vpack.c.bf16 %v429, %v429
    %v446 = vpack.c.bf16 %v430, %v430
    %v447 = vpack.c.bf16 %v431, %v431
    %v448 = vpack.c.bf16 %v432, %v432
    %449 = vmatprep.subr.bf16.mxu0 0
    %450 = vmatpush1.bf16.xpose.msra.mxu0 %v433
    %451 = vmatprep.subr.bf16.mxu0 0
    %452 = vmatpush1.bf16.xpose.msra.mxu0 0
    %453 = vmatprep.subr.bf16.mxu0 0
    %454 = vmatpush1.bf16.xpose.msra.mxu0 0
    %455 = vmatprep.subr.bf16.mxu0 0
    %456 = vmatpush1.bf16.xpose.msra.mxu0 0
    %457 = vmatprep.subr.bf16.mxu0 0
    %458 = vmatpush1.bf16.xpose.msra.mxu0 0
    %459 = vmatprep.subr.bf16.mxu0 0
    %460 = vmatpush1.bf16.xpose.msra.mxu0 0
    %461 = vmatprep.subr.bf16.mxu0 0
    %462 = vmatpush1.bf16.xpose.msra.mxu0 0
    %463 = vmatprep.subr.bf16.mxu0 0
    %464 = vmatpush1.bf16.xpose.msra.mxu0 0
    %465 = vmatprep.subr.bf16.mxu0 0
    %466 = vmatpush1.bf16.xpose.msra.mxu0 0
    %467 = vmatprep.subr.bf16.mxu0 0
    %468 = vmatpush1.bf16.xpose.msra.mxu0 0
    %469 = vmatprep.subr.bf16.mxu0 0
    %470 = vmatpush1.bf16.xpose.msra.mxu0 0
    %471 = vmatprep.subr.bf16.mxu0 0
    %472 = vmatpush1.bf16.xpose.msra.mxu0 0
    %473 = vmatprep.subr.bf16.mxu0 0
    %474 = vmatpush1.bf16.xpose.msra.mxu0 0
    %475 = vmatprep.subr.bf16.mxu0 0
    %476 = vmatpush1.bf16.xpose.msra.mxu0 0
    %477 = vmatprep.subr.bf16.mxu0 0
    %478 = vmatpush1.bf16.xpose.msra.mxu0 0
    %479 = vmatprep.subr.bf16.mxu0 0
    %480 = vmatpush1.bf16.xpose.msra.mxu0 0
    %481 = vmatprep.mubr.bf16.mxu0 0
    %482 = vmatmul.mubr.bf16.gmra.mrb[0].mxu0 %v193
    %v483 = vpop.f32.mrb[0].mxu0
    %v484 = vadd.f32 0.0, %v483
    %v485 = vpop.f32.mrb[0].mxu0
    %v486 = vpop.f32.mrb[0].mxu0
    %v487 = vadd.f32 0.0, %v486
    %v488 = vpop.f32.mrb[0].mxu0
    %489 = vmatprep.mubr.bf16.mxu0 0
    %490 = vmatmul.mubr.bf16.gmra.mrb[0].mxu0 %v194
    %v491 = vpop.f32.mrb[0].mxu0
    %v492 = vadd.f32 0.0, %v491
    %v493 = vpop.f32.mrb[0].mxu0
    %v494 = vpop.f32.mrb[0].mxu0
    %v495 = vadd.f32 0.0, %v494
    %v496 = vpop.f32.mrb[0].mxu0
    %497 = vdwg.mxu0
    %498 = vmatprep.subr.bf16.mxu0 0
    %499 = vmatpush1.bf16.xpose.msra.mxu0 %v434
    %500 = vmatprep.subr.bf16.mxu0 0
    %501 = vmatpush1.bf16.xpose.msra.mxu0 0
    %502 = vmatprep.subr.bf16.mxu0 0
    %503 = vmatpush1.bf16.xpose.msra.mxu0 0
    %504 = vmatprep.subr.bf16.mxu0 0
    %505 = vmatpush1.bf16.xpose.msra.mxu0 0
    %506 = vmatprep.subr.bf16.mxu0 0
    %507 = vmatpush1.bf16.xpose.msra.mxu0 0
    %508 = vmatprep.subr.bf16.mxu0 0
    %509 = vmatpush1.bf16.xpose.msra.mxu0 0
    %510 = vmatprep.subr.bf16.mxu0 0
    %511 = vmatpush1.bf16.xpose.msra.mxu0 0
    %512 = vmatprep.subr.bf16.mxu0 0
    %513 = vmatpush1.bf16.xpose.msra.mxu0 0
    %514 = vmatprep.subr.bf16.mxu0 0
    %515 = vmatpush1.bf16.xpose.msra.mxu0 0
    %516 = vmatprep.subr.bf16.mxu0 0
    %517 = vmatpush1.bf16.xpose.msra.mxu0 0
    %518 = vmatprep.subr.bf16.mxu0 0
    %519 = vmatpush1.bf16.xpose.msra.mxu0 0
    %520 = vmatprep.subr.bf16.mxu0 0
    %521 = vmatpush1.bf16.xpose.msra.mxu0 0
    %522 = vmatprep.subr.bf16.mxu0 0
    %523 = vmatpush1.bf16.xpose.msra.mxu0 0
    %524 = vmatprep.subr.bf16.mxu0 0
    %525 = vmatpush1.bf16.xpose.msra.mxu0 0
    %526 = vmatprep.subr.bf16.mxu0 0
    %527 = vmatpush1.bf16.xpose.msra.mxu0 0
    %528 = vmatprep.subr.bf16.mxu0 0
    %529 = vmatpush1.bf16.xpose.msra.mxu0 0
    %530 = vmatprep.mubr.bf16.mxu0 0
    %531 = vmatmul.mubr.bf16.gmra.mrb[0].mxu0 %v195
    %v532 = vpop.f32.mrb[0].mxu0
    %v533 = vadd.f32 0.0, %v532
    %v534 = vpop.f32.mrb[0].mxu0
    %v535 = vpop.f32.mrb[0].mxu0
    %v536 = vadd.f32 0.0, %v535
    %v537 = vpop.f32.mrb[0].mxu0
    %538 = vmatprep.mubr.bf16.mxu0 0
    %539 = vmatmul.mubr.bf16.gmra.mrb[0].mxu0 %v196
    %v540 = vpop.f32.mrb[0].mxu0
    %v541 = vadd.f32 0.0, %v540
    %v542 = vpop.f32.mrb[0].mxu0
    %v543 = vpop.f32.mrb[0].mxu0
    %v544 = vadd.f32 0.0, %v543
    %v545 = vpop.f32.mrb[0].mxu0
    %546 = vdwg.mxu0
    %547 = vmatprep.subr.bf16.mxu0 0
    %548 = vmatpush1.bf16.xpose.msra.mxu0 %v435
    %549 = vmatprep.subr.bf16.mxu0 0
    %550 = vmatpush1.bf16.xpose.msra.mxu0 0
    %551 = vmatprep.subr.bf16.mxu0 0
    %552 = vmatpush1.bf16.xpose.msra.mxu0 0
    %553 = vmatprep.subr.bf16.mxu0 0
    %554 = vmatpush1.bf16.xpose.msra.mxu0 0
    %555 = vmatprep.subr.bf16.mxu0 0
    %556 = vmatpush1.bf16.xpose.msra.mxu0 0
    %557 = vmatprep.subr.bf16.mxu0 0
    %558 = vmatpush1.bf16.xpose.msra.mxu0 0
    %559 = vmatprep.subr.bf16.mxu0 0
    %560 = vmatpush1.bf16.xpose.msra.mxu0 0
    %561 = vmatprep.subr.bf16.mxu0 0
    %562 = vmatpush1.bf16.xpose.msra.mxu0 0
    %563 = vmatprep.subr.bf16.mxu0 0
    %564 = vmatpush1.bf16.xpose.msra.mxu0 0
    %565 = vmatprep.subr.bf16.mxu0 0
    %566 = vmatpush1.bf16.xpose.msra.mxu0 0
    %567 = vmatprep.subr.bf16.mxu0 0
    %568 = vmatpush1.bf16.xpose.msra.mxu0 0
    %569 = vmatprep.subr.bf16.mxu0 0
    %570 = vmatpush1.bf16.xpose.msra.mxu0 0
    %571 = vmatprep.subr.bf16.mxu0 0
    %572 = vmatpush1.bf16.xpose.msra.mxu0 0
    %573 = vmatprep.subr.bf16.mxu0 0
    %574 = vmatpush1.bf16.xpose.msra.mxu0 0
    %575 = vmatprep.subr.bf16.mxu0 0
    %576 = vmatpush1.bf16.xpose.msra.mxu0 0
    %577 = vmatprep.subr.bf16.mxu0 0
    %578 = vmatpush1.bf16.xpose.msra.mxu0 0
    %579 = vmatprep.mubr.bf16.mxu0 0
    %580 = vmatmul.mubr.bf16.gmra.mrb[0].mxu0 %v197
    %v581 = vpop.f32.mrb[0].mxu0
    %v582 = vadd.f32 0.0, %v581
    %v583 = vpop.f32.mrb[0].mxu0
    %v584 = vpop.f32.mrb[0].mxu0
    %v585 = vadd.f32 0.0, %v584
    %v586 = vpop.f32.mrb[0].mxu0
    %587 = vmatprep.mubr.bf16.mxu0 0
    %588 = vmatmul.mubr.bf16.gmra.mrb[0].mxu0 %v198
    %v589 = vpop.f32.mrb[0].mxu0
    %v590 = vadd.f32 0.0, %v589
    %v591 = vpop.f32.mrb[0].mxu0
    %v592 = vpop.f32.mrb[0].mxu0
    %v593 = vadd.f32 0.0, %v592
    %v594 = vpop.f32.mrb[0].mxu0
    %595 = vdwg.mxu0
    %596 = vmatprep.subr.bf16.mxu0 0
    %597 = vmatpush1.bf16.xpose.msra.mxu0 %v436
    %598 = vmatprep.subr.bf16.mxu0 0
    %599 = vmatpush1.bf16.xpose.msra.mxu0 0
    %600 = vmatprep.subr.bf16.mxu0 0
    %601 = vmatpush1.bf16.xpose.msra.mxu0 0
    %602 = vmatprep.subr.bf16.mxu0 0
    %603 = vmatpush1.bf16.xpose.msra.mxu0 0
    %604 = vmatprep.subr.bf16.mxu0 0
    %605 = vmatpush1.bf16.xpose.msra.mxu0 0
    %606 = vmatprep.subr.bf16.mxu0 0
    %607 = vmatpush1.bf16.xpose.msra.mxu0 0
    %608 = vmatprep.subr.bf16.mxu0 0
    %609 = vmatpush1.bf16.xpose.msra.mxu0 0
    %610 = vmatprep.subr.bf16.mxu0 0
    %611 = vmatpush1.bf16.xpose.msra.mxu0 0
    %612 = vmatprep.subr.bf16.mxu0 0
    %613 = vmatpush1.bf16.xpose.msra.mxu0 0
    %614 = vmatprep.subr.bf16.mxu0 0
    %615 = vmatpush1.bf16.xpose.msra.mxu0 0
    %616 = vmatprep.subr.bf16.mxu0 0
    %617 = vmatpush1.bf16.xpose.msra.mxu0 0
    %618 = vmatprep.subr.bf16.mxu0 0
    %619 = vmatpush1.bf16.xpose.msra.mxu0 0
    %620 = vmatprep.subr.bf16.mxu0 0
    %621 = vmatpush1.bf16.xpose.msra.mxu0 0
    %622 = vmatprep.subr.bf16.mxu0 0
    %623 = vmatpush1.bf16.xpose.msra.mxu0 0
    %624 = vmatprep.subr.bf16.mxu0 0
    %625 = vmatpush1.bf16.xpose.msra.mxu0 0
    %626 = vmatprep.subr.bf16.mxu0 0
    %627 = vmatpush1.bf16.xpose.msra.mxu0 0
    %628 = vmatprep.mubr.bf16.mxu0 0
    %629 = vmatmul.mubr.bf16.gmra.mrb[0].mxu0 %v199
    %v630 = vpop.f32.mrb[0].mxu0
    %v631 = vadd.f32 0.0, %v630
    %v632 = vpop.f32.mrb[0].mxu0
    %v633 = vpop.f32.mrb[0].mxu0
    %v634 = vadd.f32 0.0, %v633
    %v635 = vpop.f32.mrb[0].mxu0
    %636 = vmatprep.mubr.bf16.mxu0 0
    %637 = vmatmul.mubr.bf16.gmra.mrb[0].mxu0 %v200
    %v638 = vpop.f32.mrb[0].mxu0
    %v639 = vadd.f32 0.0, %v638
    %v640 = vpop.f32.mrb[0].mxu0
    %v641 = vpop.f32.mrb[0].mxu0
    %v642 = vadd.f32 0.0, %v641
    %v643 = vpop.f32.mrb[0].mxu0
    %644 = vdwg.mxu0
    %645 = vmatprep.subr.bf16.mxu0 0
    %646 = vmatpush1.bf16.xpose.msra.mxu0 %v437
    %647 = vmatprep.subr.bf16.mxu0 0
    %648 = vmatpush1.bf16.xpose.msra.mxu0 0
    %649 = vmatprep.subr.bf16.mxu0 0
    %650 = vmatpush1.bf16.xpose.msra.mxu0 0
    %651 = vmatprep.subr.bf16.mxu0 0
    %652 = vmatpush1.bf16.xpose.msra.mxu0 0
    %653 = vmatprep.subr.bf16.mxu0 0
    %654 = vmatpush1.bf16.xpose.msra.mxu0 0
    %655 = vmatprep.subr.bf16.mxu0 0
    %656 = vmatpush1.bf16.xpose.msra.mxu0 0
    %657 = vmatprep.subr.bf16.mxu0 0
    %658 = vmatpush1.bf16.xpose.msra.mxu0 0
    %659 = vmatprep.subr.bf16.mxu0 0
    %660 = vmatpush1.bf16.xpose.msra.mxu0 0
    %661 = vmatprep.subr.bf16.mxu0 0
    %662 = vmatpush1.bf16.xpose.msra.mxu0 0
    %663 = vmatprep.subr.bf16.mxu0 0
    %664 = vmatpush1.bf16.xpose.msra.mxu0 0
    %665 = vmatprep.subr.bf16.mxu0 0
    %666 = vmatpush1.bf16.xpose.msra.mxu0 0
    %667 = vmatprep.subr.bf16.mxu0 0
    %668 = vmatpush1.bf16.xpose.msra.mxu0 0
    %669 = vmatprep.subr.bf16.mxu0 0
    %670 = vmatpush1.bf16.xpose.msra.mxu0 0
    %671 = vmatprep.subr.bf16.mxu0 0
    %672 = vmatpush1.bf16.xpose.msra.mxu0 0
    %673 = vmatprep.subr.bf16.mxu0 0
    %674 = vmatpush1.bf16.xpose.msra.mxu0 0
    %675 = vmatprep.subr.bf16.mxu0 0
    %676 = vmatpush1.bf16.xpose.msra.mxu0 0
    %677 = vmatprep.mubr.bf16.mxu0 0
    %678 = vmatmul.mubr.bf16.gmra.mrb[0].mxu0 %v201
    %v679 = vpop.f32.mrb[0].mxu0
    %v680 = vadd.f32 0.0, %v679
    %v681 = vpop.f32.mrb[0].mxu0
    %v682 = vpop.f32.mrb[0].mxu0
    %v683 = vadd.f32 0.0, %v682
    %v684 = vpop.f32.mrb[0].mxu0
    %685 = vmatprep.mubr.bf16.mxu0 0
    %686 = vmatmul.mubr.bf16.gmra.mrb[0].mxu0 %v202
    %v687 = vpop.f32.mrb[0].mxu0
    %v688 = vadd.f32 0.0, %v687
    %v689 = vpop.f32.mrb[0].mxu0
    %v690 = vpop.f32.mrb[0].mxu0
    %v691 = vadd.f32 0.0, %v690
    %v692 = vpop.f32.mrb[0].mxu0
    %693 = vdwg.mxu0
    %694 = vmatprep.subr.bf16.mxu0 0
    %695 = vmatpush1.bf16.xpose.msra.mxu0 %v438
    %696 = vmatprep.subr.bf16.mxu0 0
    %697 = vmatpush1.bf16.xpose.msra.mxu0 0
    %698 = vmatprep.subr.bf16.mxu0 0
    %699 = vmatpush1.bf16.xpose.msra.mxu0 0
    %700 = vmatprep.subr.bf16.mxu0 0
    %701 = vmatpush1.bf16.xpose.msra.mxu0 0
    %702 = vmatprep.subr.bf16.mxu0 0
    %703 = vmatpush1.bf16.xpose.msra.mxu0 0
    %704 = vmatprep.subr.bf16.mxu0 0
    %705 = vmatpush1.bf16.xpose.msra.mxu0 0
    %706 = vmatprep.subr.bf16.mxu0 0
    %707 = vmatpush1.bf16.xpose.msra.mxu0 0
    %708 = vmatprep.subr.bf16.mxu0 0
    %709 = vmatpush1.bf16.xpose.msra.mxu0 0
    %710 = vmatprep.subr.bf16.mxu0 0
    %711 = vmatpush1.bf16.xpose.msra.mxu0 0
    %712 = vmatprep.subr.bf16.mxu0 0
    %713 = vmatpush1.bf16.xpose.msra.mxu0 0
    %714 = vmatprep.subr.bf16.mxu0 0
    %715 = vmatpush1.bf16.xpose.msra.mxu0 0
    %716 = vmatprep.subr.bf16.mxu0 0
    %717 = vmatpush1.bf16.xpose.msra.mxu0 0
    %718 = vmatprep.subr.bf16.mxu0 0
    %719 = vmatpush1.bf16.xpose.msra.mxu0 0
    %720 = vmatprep.subr.bf16.mxu0 0
    %721 = vmatpush1.bf16.xpose.msra.mxu0 0
    %722 = vmatprep.subr.bf16.mxu0 0
    %723 = vmatpush1.bf16.xpose.msra.mxu0 0
    %724 = vmatprep.subr.bf16.mxu0 0
    %725 = vmatpush1.bf16.xpose.msra.mxu0 0
    %726 = vmatprep.mubr.bf16.mxu0 0
    %727 = vmatmul.mubr.bf16.gmra.mrb[0].mxu0 %v203
    %v728 = vpop.f32.mrb[0].mxu0
    %v729 = vadd.f32 0.0, %v728
    %v730 = vpop.f32.mrb[0].mxu0
    %v731 = vpop.f32.mrb[0].mxu0
    %v732 = vadd.f32 0.0, %v731
    %v733 = vpop.f32.mrb[0].mxu0
    %734 = vmatprep.mubr.bf16.mxu0 0
    %735 = vmatmul.mubr.bf16.gmra.mrb[0].mxu0 %v204
    %v736 = vpop.f32.mrb[0].mxu0
    %v737 = vadd.f32 0.0, %v736
    %v738 = vpop.f32.mrb[0].mxu0
    %v739 = vpop.f32.mrb[0].mxu0
    %v740 = vadd.f32 0.0, %v739
    %v741 = vpop.f32.mrb[0].mxu0
    %742 = vdwg.mxu0
    %743 = vmatprep.subr.bf16.mxu0 0
    %744 = vmatpush1.bf16.xpose.msra.mxu0 %v439
    %745 = vmatprep.subr.bf16.mxu0 0
    %746 = vmatpush1.bf16.xpose.msra.mxu0 0
    %747 = vmatprep.subr.bf16.mxu0 0
    %748 = vmatpush1.bf16.xpose.msra.mxu0 0
    %749 = vmatprep.subr.bf16.mxu0 0
    %750 = vmatpush1.bf16.xpose.msra.mxu0 0
    %751 = vmatprep.subr.bf16.mxu0 0
    %752 = vmatpush1.bf16.xpose.msra.mxu0 0
    %753 = vmatprep.subr.bf16.mxu0 0
    %754 = vmatpush1.bf16.xpose.msra.mxu0 0
    %755 = vmatprep.subr.bf16.mxu0 0
    %756 = vmatpush1.bf16.xpose.msra.mxu0 0
    %757 = vmatprep.subr.bf16.mxu0 0
    %758 = vmatpush1.bf16.xpose.msra.mxu0 0
    %759 = vmatprep.subr.bf16.mxu0 0
    %760 = vmatpush1.bf16.xpose.msra.mxu0 0
    %761 = vmatprep.subr.bf16.mxu0 0
    %762 = vmatpush1.bf16.xpose.msra.mxu0 0
    %763 = vmatprep.subr.bf16.mxu0 0
    %764 = vmatpush1.bf16.xpose.msra.mxu0 0
    %765 = vmatprep.subr.bf16.mxu0 0
    %766 = vmatpush1.bf16.xpose.msra.mxu0 0
    %767 = vmatprep.subr.bf16.mxu0 0
    %768 = vmatpush1.bf16.xpose.msra.mxu0 0
    %769 = vmatprep.subr.bf16.mxu0 0
    %770 = vmatpush1.bf16.xpose.msra.mxu0 0
    %771 = vmatprep.subr.bf16.mxu0 0
    %772 = vmatpush1.bf16.xpose.msra.mxu0 0
    %773 = vmatprep.subr.bf16.mxu0 0
    %774 = vmatpush1.bf16.xpose.msra.mxu0 0
    %775 = vmatprep.mubr.bf16.mxu0 0
    %776 = vmatmul.mubr.bf16.gmra.mrb[0].mxu0 %v205
    %v777 = vpop.f32.mrb[0].mxu0
    %v778 = vadd.f32 0.0, %v777
    %v779 = vpop.f32.mrb[0].mxu0
    %v780 = vpop.f32.mrb[0].mxu0
    %v781 = vadd.f32 0.0, %v780
    %v782 = vpop.f32.mrb[0].mxu0
    %783 = vmatprep.mubr.bf16.mxu0 0
    %784 = vmatmul.mubr.bf16.gmra.mrb[0].mxu0 %v206
    %v785 = vpop.f32.mrb[0].mxu0
    %v786 = vadd.f32 0.0, %v785
    %v787 = vpop.f32.mrb[0].mxu0
    %v788 = vpop.f32.mrb[0].mxu0
    %v789 = vadd.f32 0.0, %v788
    %v790 = vpop.f32.mrb[0].mxu0
    %791 = vdwg.mxu0
    %792 = vmatprep.subr.bf16.mxu0 0
    %793 = vmatpush1.bf16.xpose.msra.mxu0 %v440
    %794 = vmatprep.subr.bf16.mxu0 0
    %795 = vmatpush1.bf16.xpose.msra.mxu0 0
    %796 = vmatprep.subr.bf16.mxu0 0
    %797 = vmatpush1.bf16.xpose.msra.mxu0 0
    %798 = vmatprep.subr.bf16.mxu0 0
    %799 = vmatpush1.bf16.xpose.msra.mxu0 0
    %800 = vmatprep.subr.bf16.mxu0 0
    %801 = vmatpush1.bf16.xpose.msra.mxu0 0
    %802 = vmatprep.subr.bf16.mxu0 0
    %803 = vmatpush1.bf16.xpose.msra.mxu0 0
    %804 = vmatprep.subr.bf16.mxu0 0
    %805 = vmatpush1.bf16.xpose.msra.mxu0 0
    %806 = vmatprep.subr.bf16.mxu0 0
    %807 = vmatpush1.bf16.xpose.msra.mxu0 0
    %808 = vmatprep.subr.bf16.mxu0 0
    %809 = vmatpush1.bf16.xpose.msra.mxu0 0
    %810 = vmatprep.subr.bf16.mxu0 0
    %811 = vmatpush1.bf16.xpose.msra.mxu0 0
    %812 = vmatprep.subr.bf16.mxu0 0
    %813 = vmatpush1.bf16.xpose.msra.mxu0 0
    %814 = vmatprep.subr.bf16.mxu0 0
    %815 = vmatpush1.bf16.xpose.msra.mxu0 0
    %816 = vmatprep.subr.bf16.mxu0 0
    %817 = vmatpush1.bf16.xpose.msra.mxu0 0
    %818 = vmatprep.subr.bf16.mxu0 0
    %819 = vmatpush1.bf16.xpose.msra.mxu0 0
    %820 = vmatprep.subr.bf16.mxu0 0
    %821 = vmatpush1.bf16.xpose.msra.mxu0 0
    %822 = vmatprep.subr.bf16.mxu0 0
    %823 = vmatpush1.bf16.xpose.msra.mxu0 0
    %824 = vmatprep.mubr.bf16.mxu0 0
    %825 = vmatmul.mubr.bf16.gmra.mrb[0].mxu0 %v207
    %v826 = vpop.f32.mrb[0].mxu0
    %v827 = vadd.f32 0.0, %v826
    %v828 = vpop.f32.mrb[0].mxu0
    %v829 = vpop.f32.mrb[0].mxu0
    %v830 = vadd.f32 0.0, %v829
    %v831 = vpop.f32.mrb[0].mxu0
    %832 = vmatprep.mubr.bf16.mxu0 0
    %833 = vmatmul.mubr.bf16.gmra.mrb[0].mxu0 %v208
    %v834 = vpop.f32.mrb[0].mxu0
    %v835 = vadd.f32 0.0, %v834
    %v836 = vpop.f32.mrb[0].mxu0
    %v837 = vpop.f32.mrb[0].mxu0
    %v838 = vadd.f32 0.0, %v837
    %v839 = vpop.f32.mrb[0].mxu0
    %840 = vdwg.mxu0
    %841 = vmatprep.subr.bf16.mxu0 0
    %842 = vmatpush1.bf16.xpose.msra.mxu0 %v441
    %843 = vmatprep.subr.bf16.mxu0 0
    %844 = vmatpush1.bf16.xpose.msra.mxu0 0
    %845 = vmatprep.subr.bf16.mxu0 0
    %846 = vmatpush1.bf16.xpose.msra.mxu0 0
    %847 = vmatprep.subr.bf16.mxu0 0
    %848 = vmatpush1.bf16.xpose.msra.mxu0 0
    %849 = vmatprep.subr.bf16.mxu0 0
    %850 = vmatpush1.bf16.xpose.msra.mxu0 0
    %851 = vmatprep.subr.bf16.mxu0 0
    %852 = vmatpush1.bf16.xpose.msra.mxu0 0
    %853 = vmatprep.subr.bf16.mxu0 0
    %854 = vmatpush1.bf16.xpose.msra.mxu0 0
    %855 = vmatprep.subr.bf16.mxu0 0
    %856 = vmatpush1.bf16.xpose.msra.mxu0 0
    %857 = vmatprep.subr.bf16.mxu0 0
    %858 = vmatpush1.bf16.xpose.msra.mxu0 0
    %859 = vmatprep.subr.bf16.mxu0 0
    %860 = vmatpush1.bf16.xpose.msra.mxu0 0
    %861 = vmatprep.subr.bf16.mxu0 0
    %862 = vmatpush1.bf16.xpose.msra.mxu0 0
    %863 = vmatprep.subr.bf16.mxu0 0
    %864 = vmatpush1.bf16.xpose.msra.mxu0 0
    %865 = vmatprep.subr.bf16.mxu0 0
    %866 = vmatpush1.bf16.xpose.msra.mxu0 0
    %867 = vmatprep.subr.bf16.mxu0 0
    %868 = vmatpush1.bf16.xpose.msra.mxu0 0
    %869 = vmatprep.subr.bf16.mxu0 0
    %870 = vmatpush1.bf16.xpose.msra.mxu0 0
    %871 = vmatprep.subr.bf16.mxu0 0
    %872 = vmatpush1.bf16.xpose.msra.mxu0 0
    %873 = vmatprep.mubr.bf16.mxu0 0
    %874 = vmatmul.mubr.bf16.gmra.mrb[0].mxu0 %v209
    %v875 = vpop.f32.mrb[0].mxu0
    %v876 = vadd.f32 0.0, %v875
    %v877 = vpop.f32.mrb[0].mxu0
    %v878 = vpop.f32.mrb[0].mxu0
    %v879 = vadd.f32 0.0, %v878
    %v880 = vpop.f32.mrb[0].mxu0
    %881 = vmatprep.mubr.bf16.mxu0 0
    %882 = vmatmul.mubr.bf16.gmra.mrb[0].mxu0 %v210
    %v883 = vpop.f32.mrb[0].mxu0
    %v884 = vadd.f32 0.0, %v883
    %v885 = vpop.f32.mrb[0].mxu0
    %v886 = vpop.f32.mrb[0].mxu0
    %v887 = vadd.f32 0.0, %v886
    %v888 = vpop.f32.mrb[0].mxu0
    %889 = vdwg.mxu0
    %890 = vmatprep.subr.bf16.mxu0 0
    %891 = vmatpush1.bf16.xpose.msra.mxu0 %v442
    %892 = vmatprep.subr.bf16.mxu0 0
    %893 = vmatpush1.bf16.xpose.msra.mxu0 0
    %894 = vmatprep.subr.bf16.mxu0 0
    %895 = vmatpush1.bf16.xpose.msra.mxu0 0
    %896 = vmatprep.subr.bf16.mxu0 0
    %897 = vmatpush1.bf16.xpose.msra.mxu0 0
    %898 = vmatprep.subr.bf16.mxu0 0
    %899 = vmatpush1.bf16.xpose.msra.mxu0 0
    %900 = vmatprep.subr.bf16.mxu0 0
    %901 = vmatpush1.bf16.xpose.msra.mxu0 0
    %902 = vmatprep.subr.bf16.mxu0 0
    %903 = vmatpush1.bf16.xpose.msra.mxu0 0
    %904 = vmatprep.subr.bf16.mxu0 0
    %905 = vmatpush1.bf16.xpose.msra.mxu0 0
    %906 = vmatprep.subr.bf16.mxu0 0
    %907 = vmatpush1.bf16.xpose.msra.mxu0 0
    %908 = vmatprep.subr.bf16.mxu0 0
    %909 = vmatpush1.bf16.xpose.msra.mxu0 0
    %910 = vmatprep.subr.bf16.mxu0 0
    %911 = vmatpush1.bf16.xpose.msra.mxu0 0
    %912 = vmatprep.subr.bf16.mxu0 0
    %913 = vmatpush1.bf16.xpose.msra.mxu0 0
    %914 = vmatprep.subr.bf16.mxu0 0
    %915 = vmatpush1.bf16.xpose.msra.mxu0 0
    %916 = vmatprep.subr.bf16.mxu0 0
    %917 = vmatpush1.bf16.xpose.msra.mxu0 0
    %918 = vmatprep.subr.bf16.mxu0 0
    %919 = vmatpush1.bf16.xpose.msra.mxu0 0
    %920 = vmatprep.subr.bf16.mxu0 0
    %921 = vmatpush1.bf16.xpose.msra.mxu0 0
    %922 = vmatprep.mubr.bf16.mxu0 0
    %923 = vmatmul.mubr.bf16.gmra.mrb[0].mxu0 %v211
    %v924 = vpop.f32.mrb[0].mxu0
    %v925 = vadd.f32 0.0, %v924
    %v926 = vpop.f32.mrb[0].mxu0
    %v927 = vpop.f32.mrb[0].mxu0
    %v928 = vadd.f32 0.0, %v927
    %v929 = vpop.f32.mrb[0].mxu0
    %930 = vmatprep.mubr.bf16.mxu0 0
    %931 = vmatmul.mubr.bf16.gmra.mrb[0].mxu0 %v212
    %v932 = vpop.f32.mrb[0].mxu0
    %v933 = vadd.f32 0.0, %v932
    %v934 = vpop.f32.mrb[0].mxu0
    %v935 = vpop.f32.mrb[0].mxu0
    %v936 = vadd.f32 0.0, %v935
    %v937 = vpop.f32.mrb[0].mxu0
    %938 = vdwg.mxu0
    %939 = vmatprep.subr.bf16.mxu0 0
    %940 = vmatpush1.bf16.xpose.msra.mxu0 %v443
    %941 = vmatprep.subr.bf16.mxu0 0
    %942 = vmatpush1.bf16.xpose.msra.mxu0 0
    %943 = vmatprep.subr.bf16.mxu0 0
    %944 = vmatpush1.bf16.xpose.msra.mxu0 0
    %945 = vmatprep.subr.bf16.mxu0 0
    %946 = vmatpush1.bf16.xpose.msra.mxu0 0
    %947 = vmatprep.subr.bf16.mxu0 0
    %948 = vmatpush1.bf16.xpose.msra.mxu0 0
    %949 = vmatprep.subr.bf16.mxu0 0
    %950 = vmatpush1.bf16.xpose.msra.mxu0 0
    %951 = vmatprep.subr.bf16.mxu0 0
    %952 = vmatpush1.bf16.xpose.msra.mxu0 0
    %953 = vmatprep.subr.bf16.mxu0 0
    %954 = vmatpush1.bf16.xpose.msra.mxu0 0
    %955 = vmatprep.subr.bf16.mxu0 0
    %956 = vmatpush1.bf16.xpose.msra.mxu0 0
    %957 = vmatprep.subr.bf16.mxu0 0
    %958 = vmatpush1.bf16.xpose.msra.mxu0 0
    %959 = vmatprep.subr.bf16.mxu0 0
    %960 = vmatpush1.bf16.xpose.msra.mxu0 0
    %961 = vmatprep.subr.bf16.mxu0 0
    %962 = vmatpush1.bf16.xpose.msra.mxu0 0
    %963 = vmatprep.subr.bf16.mxu0 0
    %964 = vmatpush1.bf16.xpose.msra.mxu0 0
    %965 = vmatprep.subr.bf16.mxu0 0
    %966 = vmatpush1.bf16.xpose.msra.mxu0 0
    %967 = vmatprep.subr.bf16.mxu0 0
    %968 = vmatpush1.bf16.xpose.msra.mxu0 0
    %969 = vmatprep.subr.bf16.mxu0 0
    %970 = vmatpush1.bf16.xpose.msra.mxu0 0
    %971 = vmatprep.mubr.bf16.mxu0 0
    %972 = vmatmul.mubr.bf16.gmra.mrb[0].mxu0 %v213
    %v973 = vpop.f32.mrb[0].mxu0
    %v974 = vadd.f32 0.0, %v973
    %v975 = vpop.f32.mrb[0].mxu0
    %v976 = vpop.f32.mrb[0].mxu0
    %v977 = vadd.f32 0.0, %v976
    %v978 = vpop.f32.mrb[0].mxu0
    %979 = vmatprep.mubr.bf16.mxu0 0
    %980 = vmatmul.mubr.bf16.gmra.mrb[0].mxu0 %v214
    %v981 = vpop.f32.mrb[0].mxu0
    %v982 = vadd.f32 0.0, %v981
    %v983 = vpop.f32.mrb[0].mxu0
    %v984 = vpop.f32.mrb[0].mxu0
    %v985 = vadd.f32 0.0, %v984
    %v986 = vpop.f32.mrb[0].mxu0
    %987 = vdwg.mxu0
    %988 = vmatprep.subr.bf16.mxu0 0
    %989 = vmatpush1.bf16.xpose.msra.mxu0 %v444
    %990 = vmatprep.subr.bf16.mxu0 0
    %991 = vmatpush1.bf16.xpose.msra.mxu0 0
    %992 = vmatprep.subr.bf16.mxu0 0
    %993 = vmatpush1.bf16.xpose.msra.mxu0 0
    %994 = vmatprep.subr.bf16.mxu0 0
    %995 = vmatpush1.bf16.xpose.msra.mxu0 0
    %996 = vmatprep.subr.bf16.mxu0 0
    %997 = vmatpush1.bf16.xpose.msra.mxu0 0
    %998 = vmatprep.subr.bf16.mxu0 0
    %999 = vmatpush1.bf16.xpose.msra.mxu0 0
    %1000 = vmatprep.subr.bf16.mxu0 0
    %1001 = vmatpush1.bf16.xpose.msra.mxu0 0
    %1002 = vmatprep.subr.bf16.mxu0 0
    %1003 = vmatpush1.bf16.xpose.msra.mxu0 0
    %1004 = vmatprep.subr.bf16.mxu0 0
    %1005 = vmatpush1.bf16.xpose.msra.mxu0 0
    %1006 = vmatprep.subr.bf16.mxu0 0
    %1007 = vmatpush1.bf16.xpose.msra.mxu0 0
    %1008 = vmatprep.subr.bf16.mxu0 0
    %1009 = vmatpush1.bf16.xpose.msra.mxu0 0
    %1010 = vmatprep.subr.bf16.mxu0 0
    %1011 = vmatpush1.bf16.xpose.msra.mxu0 0
    %1012 = vmatprep.subr.bf16.mxu0 0
    %1013 = vmatpush1.bf16.xpose.msra.mxu0 0
    %1014 = vmatprep.subr.bf16.mxu0 0
    %1015 = vmatpush1.bf16.xpose.msra.mxu0 0
    %1016 = vmatprep.subr.bf16.mxu0 0
    %1017 = vmatpush1.bf16.xpose.msra.mxu0 0
    %1018 = vmatprep.subr.bf16.mxu0 0
    %1019 = vmatpush1.bf16.xpose.msra.mxu0 0
    %1020 = vmatprep.mubr.bf16.mxu0 0
    %1021 = vmatmul.mubr.bf16.gmra.mrb[0].mxu0 %v215
    %v1022 = vpop.f32.mrb[0].mxu0
    %v1023 = vadd.f32 0.0, %v1022
    %v1024 = vpop.f32.mrb[0].mxu0
    %v1025 = vpop.f32.mrb[0].mxu0
    %v1026 = vadd.f32 0.0, %v1025
    %v1027 = vpop.f32.mrb[0].mxu0
    %1028 = vmatprep.mubr.bf16.mxu0 0
    %1029 = vmatmul.mubr.bf16.gmra.mrb[0].mxu0 %v216
    %v1030 = vpop.f32.mrb[0].mxu0
    %v1031 = vadd.f32 0.0, %v1030
    %v1032 = vpop.f32.mrb[0].mxu0
    %v1033 = vpop.f32.mrb[0].mxu0
    %v1034 = vadd.f32 0.0, %v1033
    %v1035 = vpop.f32.mrb[0].mxu0
    %1036 = vdwg.mxu0
    %1037 = vmatprep.subr.bf16.mxu0 0
    %1038 = vmatpush1.bf16.xpose.msra.mxu0 %v445
    %1039 = vmatprep.subr.bf16.mxu0 0
    %1040 = vmatpush1.bf16.xpose.msra.mxu0 0
    %1041 = vmatprep.subr.bf16.mxu0 0
    %1042 = vmatpush1.bf16.xpose.msra.mxu0 0
    %1043 = vmatprep.subr.bf16.mxu0 0
    %1044 = vmatpush1.bf16.xpose.msra.mxu0 0
    %1045 = vmatprep.subr.bf16.mxu0 0
    %1046 = vmatpush1.bf16.xpose.msra.mxu0 0
    %1047 = vmatprep.subr.bf16.mxu0 0
    %1048 = vmatpush1.bf16.xpose.msra.mxu0 0
    %1049 = vmatprep.subr.bf16.mxu0 0
    %1050 = vmatpush1.bf16.xpose.msra.mxu0 0
    %1051 = vmatprep.subr.bf16.mxu0 0
    %1052 = vmatpush1.bf16.xpose.msra.mxu0 0
    %1053 = vmatprep.subr.bf16.mxu0 0
    %1054 = vmatpush1.bf16.xpose.msra.mxu0 0
    %1055 = vmatprep.subr.bf16.mxu0 0
    %1056 = vmatpush1.bf16.xpose.msra.mxu0 0
    %1057 = vmatprep.subr.bf16.mxu0 0
    %1058 = vmatpush1.bf16.xpose.msra.mxu0 0
    %1059 = vmatprep.subr.bf16.mxu0 0
    %1060 = vmatpush1.bf16.xpose.msra.mxu0 0
    %1061 = vmatprep.subr.bf16.mxu0 0
    %1062 = vmatpush1.bf16.xpose.msra.mxu0 0
    %1063 = vmatprep.subr.bf16.mxu0 0
    %1064 = vmatpush1.bf16.xpose.msra.mxu0 0
    %1065 = vmatprep.subr.bf16.mxu0 0
    %1066 = vmatpush1.bf16.xpose.msra.mxu0 0
    %1067 = vmatprep.subr.bf16.mxu0 0
    %1068 = vmatpush1.bf16.xpose.msra.mxu0 0
    %1069 = vmatprep.mubr.bf16.mxu0 0
    %1070 = vmatmul.mubr.bf16.gmra.mrb[0].mxu0 %v217
    %v1071 = vpop.f32.mrb[0].mxu0
    %v1072 = vadd.f32 0.0, %v1071
    %v1073 = vpop.f32.mrb[0].mxu0
    %v1074 = vpop.f32.mrb[0].mxu0
    %v1075 = vadd.f32 0.0, %v1074
    %v1076 = vpop.f32.mrb[0].mxu0
    %1077 = vmatprep.mubr.bf16.mxu0 0
    %1078 = vmatmul.mubr.bf16.gmra.mrb[0].mxu0 %v218
    %v1079 = vpop.f32.mrb[0].mxu0
    %v1080 = vadd.f32 0.0, %v1079
    %v1081 = vpop.f32.mrb[0].mxu0
    %v1082 = vpop.f32.mrb[0].mxu0
    %v1083 = vadd.f32 0.0, %v1082
    %v1084 = vpop.f32.mrb[0].mxu0
    %1085 = vdwg.mxu0
    %1086 = vmatprep.subr.bf16.mxu0 0
    %1087 = vmatpush1.bf16.xpose.msra.mxu0 %v446
    %1088 = vmatprep.subr.bf16.mxu0 0
    %1089 = vmatpush1.bf16.xpose.msra.mxu0 0
    %1090 = vmatprep.subr.bf16.mxu0 0
    %1091 = vmatpush1.bf16.xpose.msra.mxu0 0
    %1092 = vmatprep.subr.bf16.mxu0 0
    %1093 = vmatpush1.bf16.xpose.msra.mxu0 0
    %1094 = vmatprep.subr.bf16.mxu0 0
    %1095 = vmatpush1.bf16.xpose.msra.mxu0 0
    %1096 = vmatprep.subr.bf16.mxu0 0
    %1097 = vmatpush1.bf16.xpose.msra.mxu0 0
    %1098 = vmatprep.subr.bf16.mxu0 0
    %1099 = vmatpush1.bf16.xpose.msra.mxu0 0
    %1100 = vmatprep.subr.bf16.mxu0 0
    %1101 = vmatpush1.bf16.xpose.msra.mxu0 0
    %1102 = vmatprep.subr.bf16.mxu0 0
    %1103 = vmatpush1.bf16.xpose.msra.mxu0 0
    %1104 = vmatprep.subr.bf16.mxu0 0
    %1105 = vmatpush1.bf16.xpose.msra.mxu0 0
    %1106 = vmatprep.subr.bf16.mxu0 0
    %1107 = vmatpush1.bf16.xpose.msra.mxu0 0
    %1108 = vmatprep.subr.bf16.mxu0 0
    %1109 = vmatpush1.bf16.xpose.msra.mxu0 0
    %1110 = vmatprep.subr.bf16.mxu0 0
    %1111 = vmatpush1.bf16.xpose.msra.mxu0 0
    %1112 = vmatprep.subr.bf16.mxu0 0
    %1113 = vmatpush1.bf16.xpose.msra.mxu0 0
    %1114 = vmatprep.subr.bf16.mxu0 0
    %1115 = vmatpush1.bf16.xpose.msra.mxu0 0
    %1116 = vmatprep.subr.bf16.mxu0 0
    %1117 = vmatpush1.bf16.xpose.msra.mxu0 0
    %1118 = vmatprep.mubr.bf16.mxu0 0
    %1119 = vmatmul.mubr.bf16.gmra.mrb[0].mxu0 %v219
    %v1120 = vpop.f32.mrb[0].mxu0
    %v1121 = vadd.f32 0.0, %v1120
    %v1122 = vpop.f32.mrb[0].mxu0
    %v1123 = vpop.f32.mrb[0].mxu0
    %v1124 = vadd.f32 0.0, %v1123
    %v1125 = vpop.f32.mrb[0].mxu0
    %1126 = vmatprep.mubr.bf16.mxu0 0
    %1127 = vmatmul.mubr.bf16.gmra.mrb[0].mxu0 %v220
    %v1128 = vpop.f32.mrb[0].mxu0
    %v1129 = vadd.f32 0.0, %v1128
    %v1130 = vpop.f32.mrb[0].mxu0
    %v1131 = vpop.f32.mrb[0].mxu0
    %v1132 = vadd.f32 0.0, %v1131
    %v1133 = vpop.f32.mrb[0].mxu0
    %1134 = vdwg.mxu0
    %1135 = vmatprep.subr.bf16.mxu0 0
    %1136 = vmatpush1.bf16.xpose.msra.mxu0 %v447
    %1137 = vmatprep.subr.bf16.mxu0 0
    %1138 = vmatpush1.bf16.xpose.msra.mxu0 0
    %1139 = vmatprep.subr.bf16.mxu0 0
    %1140 = vmatpush1.bf16.xpose.msra.mxu0 0
    %1141 = vmatprep.subr.bf16.mxu0 0
    %1142 = vmatpush1.bf16.xpose.msra.mxu0 0
    %1143 = vmatprep.subr.bf16.mxu0 0
    %1144 = vmatpush1.bf16.xpose.msra.mxu0 0
    %1145 = vmatprep.subr.bf16.mxu0 0
    %1146 = vmatpush1.bf16.xpose.msra.mxu0 0
    %1147 = vmatprep.subr.bf16.mxu0 0
    %1148 = vmatpush1.bf16.xpose.msra.mxu0 0
    %1149 = vmatprep.subr.bf16.mxu0 0
    %1150 = vmatpush1.bf16.xpose.msra.mxu0 0
    %1151 = vmatprep.subr.bf16.mxu0 0
    %1152 = vmatpush1.bf16.xpose.msra.mxu0 0
    %1153 = vmatprep.subr.bf16.mxu0 0
    %1154 = vmatpush1.bf16.xpose.msra.mxu0 0
    %1155 = vmatprep.subr.bf16.mxu0 0
    %1156 = vmatpush1.bf16.xpose.msra.mxu0 0
    %1157 = vmatprep.subr.bf16.mxu0 0
    %1158 = vmatpush1.bf16.xpose.msra.mxu0 0
    %1159 = vmatprep.subr.bf16.mxu0 0
    %1160 = vmatpush1.bf16.xpose.msra.mxu0 0
    %1161 = vmatprep.subr.bf16.mxu0 0
    %1162 = vmatpush1.bf16.xpose.msra.mxu0 0
    %1163 = vmatprep.subr.bf16.mxu0 0
    %1164 = vmatpush1.bf16.xpose.msra.mxu0 0
    %1165 = vmatprep.subr.bf16.mxu0 0
    %1166 = vmatpush1.bf16.xpose.msra.mxu0 0
    %1167 = vmatprep.mubr.bf16.mxu0 0
    %1168 = vmatmul.mubr.bf16.gmra.mrb[0].mxu0 %v221
    %v1169 = vpop.f32.mrb[0].mxu0
    %v1170 = vadd.f32 0.0, %v1169
    %v1171 = vpop.f32.mrb[0].mxu0
    %v1172 = vpop.f32.mrb[0].mxu0
    %v1173 = vadd.f32 0.0, %v1172
    %v1174 = vpop.f32.mrb[0].mxu0
    %1175 = vmatprep.mubr.bf16.mxu0 0
    %1176 = vmatmul.mubr.bf16.gmra.mrb[0].mxu0 %v222
    %v1177 = vpop.f32.mrb[0].mxu0
    %v1178 = vadd.f32 0.0, %v1177
    %v1179 = vpop.f32.mrb[0].mxu0
    %v1180 = vpop.f32.mrb[0].mxu0
    %v1181 = vadd.f32 0.0, %v1180
    %v1182 = vpop.f32.mrb[0].mxu0
    %1183 = vdwg.mxu0
    %1184 = vmatprep.subr.bf16.mxu0 0
    %1185 = vmatpush1.bf16.xpose.msra.mxu0 %v448
    %1186 = vmatprep.subr.bf16.mxu0 0
    %1187 = vmatpush1.bf16.xpose.msra.mxu0 0
    %1188 = vmatprep.subr.bf16.mxu0 0
    %1189 = vmatpush1.bf16.xpose.msra.mxu0 0
    %1190 = vmatprep.subr.bf16.mxu0 0
    %1191 = vmatpush1.bf16.xpose.msra.mxu0 0
    %1192 = vmatprep.subr.bf16.mxu0 0
    %1193 = vmatpush1.bf16.xpose.msra.mxu0 0
    %1194 = vmatprep.subr.bf16.mxu0 0
    %1195 = vmatpush1.bf16.xpose.msra.mxu0 0
    %1196 = vmatprep.subr.bf16.mxu0 0
    %1197 = vmatpush1.bf16.xpose.msra.mxu0 0
    %1198 = vmatprep.subr.bf16.mxu0 0
    %1199 = vmatpush1.bf16.xpose.msra.mxu0 0
    %1200 = vmatprep.subr.bf16.mxu0 0
    %1201 = vmatpush1.bf16.xpose.msra.mxu0 0
    %1202 = vmatprep.subr.bf16.mxu0 0
    %1203 = vmatpush1.bf16.xpose.msra.mxu0 0
    %1204 = vmatprep.subr.bf16.mxu0 0
    %1205 = vmatpush1.bf16.xpose.msra.mxu0 0
    %1206 = vmatprep.subr.bf16.mxu0 0
    %1207 = vmatpush1.bf16.xpose.msra.mxu0 0
    %1208 = vmatprep.subr.bf16.mxu0 0
    %1209 = vmatpush1.bf16.xpose.msra.mxu0 0
    %1210 = vmatprep.subr.bf16.mxu0 0
    %1211 = vmatpush1.bf16.xpose.msra.mxu0 0
    %1212 = vmatprep.subr.bf16.mxu0 0
    %1213 = vmatpush1.bf16.xpose.msra.mxu0 0
    %1214 = vmatprep.subr.bf16.mxu0 0
    %1215 = vmatpush1.bf16.xpose.msra.mxu0 0
    %1216 = vmatprep.mubr.bf16.mxu0 0
    %1217 = vmatmul.mubr.bf16.gmra.mrb[0].mxu0 %v223
    %v1218 = vpop.f32.mrb[0].mxu0
    %v1219 = vadd.f32 0.0, %v1218
    %v1220 = vpop.f32.mrb[0].mxu0
    %v1221 = vpop.f32.mrb[0].mxu0
    %v1222 = vadd.f32 0.0, %v1221
    %v1223 = vpop.f32.mrb[0].mxu0
    %1224 = vmatprep.mubr.bf16.mxu0 0
    %1225 = vmatmul.mubr.bf16.gmra.mrb[0].mxu0 %v224
    %v1226 = vpop.f32.mrb[0].mxu0
    %v1227 = vadd.f32 0.0, %v1226
    %v1228 = vpop.f32.mrb[0].mxu0
    %v1229 = vpop.f32.mrb[0].mxu0
    %v1230 = vadd.f32 0.0, %v1229
    %v1231 = vpop.f32.mrb[0].mxu0
    %1232 = vdwg.mxu0
    %1233 = vmatprep.subr.bf16.mxu0 0
    %1234 = vmatpush1.bf16.xpose.msra.mxu0 %v385
    %1235 = vmatprep.subr.bf16.mxu0 0
    %1236 = vmatpush1.bf16.xpose.msra.mxu0 0
    %1237 = vmatprep.subr.bf16.mxu0 0
    %1238 = vmatpush1.bf16.xpose.msra.mxu0 0
    %1239 = vmatprep.subr.bf16.mxu0 0
    %1240 = vmatpush1.bf16.xpose.msra.mxu0 0
    %1241 = vmatprep.subr.bf16.mxu0 0
    %1242 = vmatpush1.bf16.xpose.msra.mxu0 0
    %1243 = vmatprep.subr.bf16.mxu0 0
    %1244 = vmatpush1.bf16.xpose.msra.mxu0 0
    %1245 = vmatprep.subr.bf16.mxu0 0
    %1246 = vmatpush1.bf16.xpose.msra.mxu0 0
    %1247 = vmatprep.subr.bf16.mxu0 0
    %1248 = vmatpush1.bf16.xpose.msra.mxu0 0
    %1249 = vmatprep.subr.bf16.mxu0 0
    %1250 = vmatpush1.bf16.xpose.msra.mxu0 0
    %1251 = vmatprep.subr.bf16.mxu0 0
    %1252 = vmatpush1.bf16.xpose.msra.mxu0 0
    %1253 = vmatprep.subr.bf16.mxu0 0
    %1254 = vmatpush1.bf16.xpose.msra.mxu0 0
    %1255 = vmatprep.subr.bf16.mxu0 0
    %1256 = vmatpush1.bf16.xpose.msra.mxu0 0
    %1257 = vmatprep.subr.bf16.mxu0 0
    %1258 = vmatpush1.bf16.xpose.msra.mxu0 0
    %1259 = vmatprep.subr.bf16.mxu0 0
    %1260 = vmatpush1.bf16.xpose.msra.mxu0 0
    %1261 = vmatprep.subr.bf16.mxu0 0
    %1262 = vmatpush1.bf16.xpose.msra.mxu0 0
    %1263 = vmatprep.subr.bf16.mxu0 0
    %1264 = vmatpush1.bf16.xpose.msra.mxu0 0
    %1265 = vmatprep.mubr.bf16.mxu0 0
    %1266 = vmatmul.mubr.bf16.gmra.mrb[0].mxu0 %v193
    %v1267 = vpop.f32.mrb[0].mxu0
    %v1268 = vadd.f32 %v484, %v1267
    %v1269 = vpop.f32.mrb[0].mxu0
    %v1270 = vpop.f32.mrb[0].mxu0
    %v1271 = vadd.f32 %v487, %v1270
    %v1272 = vpop.f32.mrb[0].mxu0
    %1273 = vmatprep.mubr.bf16.mxu0 0
    %1274 = vmatmul.mubr.bf16.gmra.mrb[0].mxu0 %v194
    %v1275 = vpop.f32.mrb[0].mxu0
    %v1276 = vadd.f32 %v492, %v1275
    %v1277 = vpop.f32.mrb[0].mxu0
    %v1278 = vpop.f32.mrb[0].mxu0
    %v1279 = vadd.f32 %v495, %v1278
    %v1280 = vpop.f32.mrb[0].mxu0
    %1281 = vdwg.mxu0
    %1282 = vmatprep.subr.bf16.mxu0 0
    %1283 = vmatpush1.bf16.xpose.msra.mxu0 %v386
    %1284 = vmatprep.subr.bf16.mxu0 0
    %1285 = vmatpush1.bf16.xpose.msra.mxu0 0
    %1286 = vmatprep.subr.bf16.mxu0 0
    %1287 = vmatpush1.bf16.xpose.msra.mxu0 0
    %1288 = vmatprep.subr.bf16.mxu0 0
    %1289 = vmatpush1.bf16.xpose.msra.mxu0 0
    %1290 = vmatprep.subr.bf16.mxu0 0
    %1291 = vmatpush1.bf16.xpose.msra.mxu0 0
    %1292 = vmatprep.subr.bf16.mxu0 0
    %1293 = vmatpush1.bf16.xpose.msra.mxu0 0
    %1294 = vmatprep.subr.bf16.mxu0 0
    %1295 = vmatpush1.bf16.xpose.msra.mxu0 0
    %1296 = vmatprep.subr.bf16.mxu0 0
    %1297 = vmatpush1.bf16.xpose.msra.mxu0 0
    %1298 = vmatprep.subr.bf16.mxu0 0
    %1299 = vmatpush1.bf16.xpose.msra.mxu0 0
    %1300 = vmatprep.subr.bf16.mxu0 0
    %1301 = vmatpush1.bf16.xpose.msra.mxu0 0
    %1302 = vmatprep.subr.bf16.mxu0 0
    %1303 = vmatpush1.bf16.xpose.msra.mxu0 0
    %1304 = vmatprep.subr.bf16.mxu0 0
    %1305 = vmatpush1.bf16.xpose.msra.mxu0 0
    %1306 = vmatprep.subr.bf16.mxu0 0
    %1307 = vmatpush1.bf16.xpose.msra.mxu0 0
    %1308 = vmatprep.subr.bf16.mxu0 0
    %1309 = vmatpush1.bf16.xpose.msra.mxu0 0
    %1310 = vmatprep.subr.bf16.mxu0 0
    %1311 = vmatpush1.bf16.xpose.msra.mxu0 0
    %1312 = vmatprep.subr.bf16.mxu0 0
    %1313 = vmatpush1.bf16.xpose.msra.mxu0 0
    %1314 = vmatprep.mubr.bf16.mxu0 0
    %1315 = vmatmul.mubr.bf16.gmra.mrb[0].mxu0 %v195
    %v1316 = vpop.f32.mrb[0].mxu0
    %v1317 = vadd.f32 %v533, %v1316
    %v1318 = vpop.f32.mrb[0].mxu0
    %v1319 = vpop.f32.mrb[0].mxu0
    %v1320 = vadd.f32 %v536, %v1319
    %v1321 = vpop.f32.mrb[0].mxu0
    %1322 = vmatprep.mubr.bf16.mxu0 0
    %1323 = vmatmul.mubr.bf16.gmra.mrb[0].mxu0 %v196
    %v1324 = vpop.f32.mrb[0].mxu0
    %v1325 = vadd.f32 %v541, %v1324
    %v1326 = vpop.f32.mrb[0].mxu0
    %v1327 = vpop.f32.mrb[0].mxu0
    %v1328 = vadd.f32 %v544, %v1327
    %v1329 = vpop.f32.mrb[0].mxu0
    %1330 = vdwg.mxu0
    %1331 = vmatprep.subr.bf16.mxu0 0
    %1332 = vmatpush1.bf16.xpose.msra.mxu0 %v387
    %1333 = vmatprep.subr.bf16.mxu0 0
    %1334 = vmatpush1.bf16.xpose.msra.mxu0 0
    %1335 = vmatprep.subr.bf16.mxu0 0
    %1336 = vmatpush1.bf16.xpose.msra.mxu0 0
    %1337 = vmatprep.subr.bf16.mxu0 0
    %1338 = vmatpush1.bf16.xpose.msra.mxu0 0
    %1339 = vmatprep.subr.bf16.mxu0 0
    %1340 = vmatpush1.bf16.xpose.msra.mxu0 0
    %1341 = vmatprep.subr.bf16.mxu0 0
    %1342 = vmatpush1.bf16.xpose.msra.mxu0 0
    %1343 = vmatprep.subr.bf16.mxu0 0
    %1344 = vmatpush1.bf16.xpose.msra.mxu0 0
    %1345 = vmatprep.subr.bf16.mxu0 0
    %1346 = vmatpush1.bf16.xpose.msra.mxu0 0
    %1347 = vmatprep.subr.bf16.mxu0 0
    %1348 = vmatpush1.bf16.xpose.msra.mxu0 0
    %1349 = vmatprep.subr.bf16.mxu0 0
    %1350 = vmatpush1.bf16.xpose.msra.mxu0 0
    %1351 = vmatprep.subr.bf16.mxu0 0
    %1352 = vmatpush1.bf16.xpose.msra.mxu0 0
    %1353 = vmatprep.subr.bf16.mxu0 0
    %1354 = vmatpush1.bf16.xpose.msra.mxu0 0
    %1355 = vmatprep.subr.bf16.mxu0 0
    %1356 = vmatpush1.bf16.xpose.msra.mxu0 0
    %1357 = vmatprep.subr.bf16.mxu0 0
    %1358 = vmatpush1.bf16.xpose.msra.mxu0 0
    %1359 = vmatprep.subr.bf16.mxu0 0
    %1360 = vmatpush1.bf16.xpose.msra.mxu0 0
    %1361 = vmatprep.subr.bf16.mxu0 0
    %1362 = vmatpush1.bf16.xpose.msra.mxu0 0
    %1363 = vmatprep.mubr.bf16.mxu0 0
    %1364 = vmatmul.mubr.bf16.gmra.mrb[0].mxu0 %v197
    %v1365 = vpop.f32.mrb[0].mxu0
    %v1366 = vadd.f32 %v582, %v1365
    %v1367 = vpop.f32.mrb[0].mxu0
    %v1368 = vpop.f32.mrb[0].mxu0
    %v1369 = vadd.f32 %v585, %v1368
    %v1370 = vpop.f32.mrb[0].mxu0
    %1371 = vmatprep.mubr.bf16.mxu0 0
    %1372 = vmatmul.mubr.bf16.gmra.mrb[0].mxu0 %v198
    %v1373 = vpop.f32.mrb[0].mxu0
    %v1374 = vadd.f32 %v590, %v1373
    %v1375 = vpop.f32.mrb[0].mxu0
    %v1376 = vpop.f32.mrb[0].mxu0
    %v1377 = vadd.f32 %v593, %v1376
    %v1378 = vpop.f32.mrb[0].mxu0
    %1379 = vdwg.mxu0
    %1380 = vmatprep.subr.bf16.mxu0 0
    %1381 = vmatpush1.bf16.xpose.msra.mxu0 %v388
    %1382 = vmatprep.subr.bf16.mxu0 0
    %1383 = vmatpush1.bf16.xpose.msra.mxu0 0
    %1384 = vmatprep.subr.bf16.mxu0 0
    %1385 = vmatpush1.bf16.xpose.msra.mxu0 0
    %1386 = vmatprep.subr.bf16.mxu0 0
    %1387 = vmatpush1.bf16.xpose.msra.mxu0 0
    %1388 = vmatprep.subr.bf16.mxu0 0
    %1389 = vmatpush1.bf16.xpose.msra.mxu0 0
    %1390 = vmatprep.subr.bf16.mxu0 0
    %1391 = vmatpush1.bf16.xpose.msra.mxu0 0
    %1392 = vmatprep.subr.bf16.mxu0 0
    %1393 = vmatpush1.bf16.xpose.msra.mxu0 0
    %1394 = vmatprep.subr.bf16.mxu0 0
    %1395 = vmatpush1.bf16.xpose.msra.mxu0 0
    %1396 = vmatprep.subr.bf16.mxu0 0
    %1397 = vmatpush1.bf16.xpose.msra.mxu0 0
    %1398 = vmatprep.subr.bf16.mxu0 0
    %1399 = vmatpush1.bf16.xpose.msra.mxu0 0
    %1400 = vmatprep.subr.bf16.mxu0 0
    %1401 = vmatpush1.bf16.xpose.msra.mxu0 0
    %1402 = vmatprep.subr.bf16.mxu0 0
    %1403 = vmatpush1.bf16.xpose.msra.mxu0 0
    %1404 = vmatprep.subr.bf16.mxu0 0
    %1405 = vmatpush1.bf16.xpose.msra.mxu0 0
    %1406 = vmatprep.subr.bf16.mxu0 0
    %1407 = vmatpush1.bf16.xpose.msra.mxu0 0
    %1408 = vmatprep.subr.bf16.mxu0 0
    %1409 = vmatpush1.bf16.xpose.msra.mxu0 0
    %1410 = vmatprep.subr.bf16.mxu0 0
    %1411 = vmatpush1.bf16.xpose.msra.mxu0 0
    %1412 = vmatprep.mubr.bf16.mxu0 0
    %1413 = vmatmul.mubr.bf16.gmra.mrb[0].mxu0 %v199
    %v1414 = vpop.f32.mrb[0].mxu0
    %v1415 = vadd.f32 %v631, %v1414
    %v1416 = vpop.f32.mrb[0].mxu0
    %v1417 = vpop.f32.mrb[0].mxu0
    %v1418 = vadd.f32 %v634, %v1417
    %v1419 = vpop.f32.mrb[0].mxu0
    %1420 = vmatprep.mubr.bf16.mxu0 0
    %1421 = vmatmul.mubr.bf16.gmra.mrb[0].mxu0 %v200
    %v1422 = vpop.f32.mrb[0].mxu0
    %v1423 = vadd.f32 %v639, %v1422
    %v1424 = vpop.f32.mrb[0].mxu0
    %v1425 = vpop.f32.mrb[0].mxu0
    %v1426 = vadd.f32 %v642, %v1425
    %v1427 = vpop.f32.mrb[0].mxu0
    %1428 = vdwg.mxu0
    %1429 = vmatprep.subr.bf16.mxu0 0
    %1430 = vmatpush1.bf16.xpose.msra.mxu0 %v389
    %1431 = vmatprep.subr.bf16.mxu0 0
    %1432 = vmatpush1.bf16.xpose.msra.mxu0 0
    %1433 = vmatprep.subr.bf16.mxu0 0
    %1434 = vmatpush1.bf16.xpose.msra.mxu0 0
    %1435 = vmatprep.subr.bf16.mxu0 0
    %1436 = vmatpush1.bf16.xpose.msra.mxu0 0
    %1437 = vmatprep.subr.bf16.mxu0 0
    %1438 = vmatpush1.bf16.xpose.msra.mxu0 0
    %1439 = vmatprep.subr.bf16.mxu0 0
    %1440 = vmatpush1.bf16.xpose.msra.mxu0 0
    %1441 = vmatprep.subr.bf16.mxu0 0
    %1442 = vmatpush1.bf16.xpose.msra.mxu0 0
    %1443 = vmatprep.subr.bf16.mxu0 0
    %1444 = vmatpush1.bf16.xpose.msra.mxu0 0
    %1445 = vmatprep.subr.bf16.mxu0 0
    %1446 = vmatpush1.bf16.xpose.msra.mxu0 0
    %1447 = vmatprep.subr.bf16.mxu0 0
    %1448 = vmatpush1.bf16.xpose.msra.mxu0 0
    %1449 = vmatprep.subr.bf16.mxu0 0
    %1450 = vmatpush1.bf16.xpose.msra.mxu0 0
    %1451 = vmatprep.subr.bf16.mxu0 0
    %1452 = vmatpush1.bf16.xpose.msra.mxu0 0
    %1453 = vmatprep.subr.bf16.mxu0 0
    %1454 = vmatpush1.bf16.xpose.msra.mxu0 0
    %1455 = vmatprep.subr.bf16.mxu0 0
    %1456 = vmatpush1.bf16.xpose.msra.mxu0 0
    %1457 = vmatprep.subr.bf16.mxu0 0
    %1458 = vmatpush1.bf16.xpose.msra.mxu0 0
    %1459 = vmatprep.subr.bf16.mxu0 0
    %1460 = vmatpush1.bf16.xpose.msra.mxu0 0
    %1461 = vmatprep.mubr.bf16.mxu0 0
    %1462 = vmatmul.mubr.bf16.gmra.mrb[0].mxu0 %v201
    %v1463 = vpop.f32.mrb[0].mxu0
    %v1464 = vadd.f32 %v680, %v1463
    %v1465 = vpop.f32.mrb[0].mxu0
    %v1466 = vpop.f32.mrb[0].mxu0
    %v1467 = vadd.f32 %v683, %v1466
    %v1468 = vpop.f32.mrb[0].mxu0
    %1469 = vmatprep.mubr.bf16.mxu0 0
    %1470 = vmatmul.mubr.bf16.gmra.mrb[0].mxu0 %v202
    %v1471 = vpop.f32.mrb[0].mxu0
    %v1472 = vadd.f32 %v688, %v1471
    %v1473 = vpop.f32.mrb[0].mxu0
    %v1474 = vpop.f32.mrb[0].mxu0
    %v1475 = vadd.f32 %v691, %v1474
    %v1476 = vpop.f32.mrb[0].mxu0
    %1477 = vdwg.mxu0
    %1478 = vmatprep.subr.bf16.mxu0 0
    %1479 = vmatpush1.bf16.xpose.msra.mxu0 %v390
    %1480 = vmatprep.subr.bf16.mxu0 0
    %1481 = vmatpush1.bf16.xpose.msra.mxu0 0
    %1482 = vmatprep.subr.bf16.mxu0 0
    %1483 = vmatpush1.bf16.xpose.msra.mxu0 0
    %1484 = vmatprep.subr.bf16.mxu0 0
    %1485 = vmatpush1.bf16.xpose.msra.mxu0 0
    %1486 = vmatprep.subr.bf16.mxu0 0
    %1487 = vmatpush1.bf16.xpose.msra.mxu0 0
    %1488 = vmatprep.subr.bf16.mxu0 0
    %1489 = vmatpush1.bf16.xpose.msra.mxu0 0
    %1490 = vmatprep.subr.bf16.mxu0 0
    %1491 = vmatpush1.bf16.xpose.msra.mxu0 0
    %1492 = vmatprep.subr.bf16.mxu0 0
    %1493 = vmatpush1.bf16.xpose.msra.mxu0 0
    %1494 = vmatprep.subr.bf16.mxu0 0
    %1495 = vmatpush1.bf16.xpose.msra.mxu0 0
    %1496 = vmatprep.subr.bf16.mxu0 0
    %1497 = vmatpush1.bf16.xpose.msra.mxu0 0
    %1498 = vmatprep.subr.bf16.mxu0 0
    %1499 = vmatpush1.bf16.xpose.msra.mxu0 0
    %1500 = vmatprep.subr.bf16.mxu0 0
    %1501 = vmatpush1.bf16.xpose.msra.mxu0 0
    %1502 = vmatprep.subr.bf16.mxu0 0
    %1503 = vmatpush1.bf16.xpose.msra.mxu0 0
    %1504 = vmatprep.subr.bf16.mxu0 0
    %1505 = vmatpush1.bf16.xpose.msra.mxu0 0
    %1506 = vmatprep.subr.bf16.mxu0 0
    %1507 = vmatpush1.bf16.xpose.msra.mxu0 0
    %1508 = vmatprep.subr.bf16.mxu0 0
    %1509 = vmatpush1.bf16.xpose.msra.mxu0 0
    %1510 = vmatprep.mubr.bf16.mxu0 0
    %1511 = vmatmul.mubr.bf16.gmra.mrb[0].mxu0 %v203
    %v1512 = vpop.f32.mrb[0].mxu0
    %v1513 = vadd.f32 %v729, %v1512
    %v1514 = vpop.f32.mrb[0].mxu0
    %v1515 = vpop.f32.mrb[0].mxu0
    %v1516 = vadd.f32 %v732, %v1515
    %v1517 = vpop.f32.mrb[0].mxu0
    %1518 = vmatprep.mubr.bf16.mxu0 0
    %1519 = vmatmul.mubr.bf16.gmra.mrb[0].mxu0 %v204
    %v1520 = vpop.f32.mrb[0].mxu0
    %v1521 = vadd.f32 %v737, %v1520
    %v1522 = vpop.f32.mrb[0].mxu0
    %v1523 = vpop.f32.mrb[0].mxu0
    %v1524 = vadd.f32 %v740, %v1523
    %v1525 = vpop.f32.mrb[0].mxu0
    %1526 = vdwg.mxu0
    %1527 = vmatprep.subr.bf16.mxu0 0
    %1528 = vmatpush1.bf16.xpose.msra.mxu0 %v391
    %1529 = vmatprep.subr.bf16.mxu0 0
    %1530 = vmatpush1.bf16.xpose.msra.mxu0 0
    %1531 = vmatprep.subr.bf16.mxu0 0
    %1532 = vmatpush1.bf16.xpose.msra.mxu0 0
    %1533 = vmatprep.subr.bf16.mxu0 0
    %1534 = vmatpush1.bf16.xpose.msra.mxu0 0
    %1535 = vmatprep.subr.bf16.mxu0 0
    %1536 = vmatpush1.bf16.xpose.msra.mxu0 0
    %1537 = vmatprep.subr.bf16.mxu0 0
    %1538 = vmatpush1.bf16.xpose.msra.mxu0 0
    %1539 = vmatprep.subr.bf16.mxu0 0
    %1540 = vmatpush1.bf16.xpose.msra.mxu0 0
    %1541 = vmatprep.subr.bf16.mxu0 0
    %1542 = vmatpush1.bf16.xpose.msra.mxu0 0
    %1543 = vmatprep.subr.bf16.mxu0 0
    %1544 = vmatpush1.bf16.xpose.msra.mxu0 0
    %1545 = vmatprep.subr.bf16.mxu0 0
    %1546 = vmatpush1.bf16.xpose.msra.mxu0 0
    %1547 = vmatprep.subr.bf16.mxu0 0
    %1548 = vmatpush1.bf16.xpose.msra.mxu0 0
    %1549 = vmatprep.subr.bf16.mxu0 0
    %1550 = vmatpush1.bf16.xpose.msra.mxu0 0
    %1551 = vmatprep.subr.bf16.mxu0 0
    %1552 = vmatpush1.bf16.xpose.msra.mxu0 0
    %1553 = vmatprep.subr.bf16.mxu0 0
    %1554 = vmatpush1.bf16.xpose.msra.mxu0 0
    %1555 = vmatprep.subr.bf16.mxu0 0
    %1556 = vmatpush1.bf16.xpose.msra.mxu0 0
    %1557 = vmatprep.subr.bf16.mxu0 0
    %1558 = vmatpush1.bf16.xpose.msra.mxu0 0
    %1559 = vmatprep.mubr.bf16.mxu0 0
    %1560 = vmatmul.mubr.bf16.gmra.mrb[0].mxu0 %v205
    %v1561 = vpop.f32.mrb[0].mxu0
    %v1562 = vadd.f32 %v778, %v1561
    %v1563 = vpop.f32.mrb[0].mxu0
    %v1564 = vpop.f32.mrb[0].mxu0
    %v1565 = vadd.f32 %v781, %v1564
    %v1566 = vpop.f32.mrb[0].mxu0
    %1567 = vmatprep.mubr.bf16.mxu0 0
    %1568 = vmatmul.mubr.bf16.gmra.mrb[0].mxu0 %v206
    %v1569 = vpop.f32.mrb[0].mxu0
    %v1570 = vadd.f32 %v786, %v1569
    %v1571 = vpop.f32.mrb[0].mxu0
    %v1572 = vpop.f32.mrb[0].mxu0
    %v1573 = vadd.f32 %v789, %v1572
    %v1574 = vpop.f32.mrb[0].mxu0
    %1575 = vdwg.mxu0
    %1576 = vmatprep.subr.bf16.mxu0 0
    %1577 = vmatpush1.bf16.xpose.msra.mxu0 %v392
    %1578 = vmatprep.subr.bf16.mxu0 0
    %1579 = vmatpush1.bf16.xpose.msra.mxu0 0
    %1580 = vmatprep.subr.bf16.mxu0 0
    %1581 = vmatpush1.bf16.xpose.msra.mxu0 0
    %1582 = vmatprep.subr.bf16.mxu0 0
    %1583 = vmatpush1.bf16.xpose.msra.mxu0 0
    %1584 = vmatprep.subr.bf16.mxu0 0
    %1585 = vmatpush1.bf16.xpose.msra.mxu0 0
    %1586 = vmatprep.subr.bf16.mxu0 0
    %1587 = vmatpush1.bf16.xpose.msra.mxu0 0
    %1588 = vmatprep.subr.bf16.mxu0 0
    %1589 = vmatpush1.bf16.xpose.msra.mxu0 0
    %1590 = vmatprep.subr.bf16.mxu0 0
    %1591 = vmatpush1.bf16.xpose.msra.mxu0 0
    %1592 = vmatprep.subr.bf16.mxu0 0
    %1593 = vmatpush1.bf16.xpose.msra.mxu0 0
    %1594 = vmatprep.subr.bf16.mxu0 0
    %1595 = vmatpush1.bf16.xpose.msra.mxu0 0
    %1596 = vmatprep.subr.bf16.mxu0 0
    %1597 = vmatpush1.bf16.xpose.msra.mxu0 0
    %1598 = vmatprep.subr.bf16.mxu0 0
    %1599 = vmatpush1.bf16.xpose.msra.mxu0 0
    %1600 = vmatprep.subr.bf16.mxu0 0
    %1601 = vmatpush1.bf16.xpose.msra.mxu0 0
    %1602 = vmatprep.subr.bf16.mxu0 0
    %1603 = vmatpush1.bf16.xpose.msra.mxu0 0
    %1604 = vmatprep.subr.bf16.mxu0 0
    %1605 = vmatpush1.bf16.xpose.msra.mxu0 0
    %1606 = vmatprep.subr.bf16.mxu0 0
    %1607 = vmatpush1.bf16.xpose.msra.mxu0 0
    %1608 = vmatprep.mubr.bf16.mxu0 0
    %1609 = vmatmul.mubr.bf16.gmra.mrb[0].mxu0 %v207
    %v1610 = vpop.f32.mrb[0].mxu0
    %v1611 = vadd.f32 %v827, %v1610
    %v1612 = vpop.f32.mrb[0].mxu0
    %v1613 = vpop.f32.mrb[0].mxu0
    %v1614 = vadd.f32 %v830, %v1613
    %v1615 = vpop.f32.mrb[0].mxu0
    %1616 = vmatprep.mubr.bf16.mxu0 0
    %1617 = vmatmul.mubr.bf16.gmra.mrb[0].mxu0 %v208
    %v1618 = vpop.f32.mrb[0].mxu0
    %v1619 = vadd.f32 %v835, %v1618
    %v1620 = vpop.f32.mrb[0].mxu0
    %v1621 = vpop.f32.mrb[0].mxu0
    %v1622 = vadd.f32 %v838, %v1621
    %v1623 = vpop.f32.mrb[0].mxu0
    %1624 = vdwg.mxu0
    %1625 = vmatprep.subr.bf16.mxu0 0
    %1626 = vmatpush1.bf16.xpose.msra.mxu0 %v393
    %1627 = vmatprep.subr.bf16.mxu0 0
    %1628 = vmatpush1.bf16.xpose.msra.mxu0 0
    %1629 = vmatprep.subr.bf16.mxu0 0
    %1630 = vmatpush1.bf16.xpose.msra.mxu0 0
    %1631 = vmatprep.subr.bf16.mxu0 0
    %1632 = vmatpush1.bf16.xpose.msra.mxu0 0
    %1633 = vmatprep.subr.bf16.mxu0 0
    %1634 = vmatpush1.bf16.xpose.msra.mxu0 0
    %1635 = vmatprep.subr.bf16.mxu0 0
    %1636 = vmatpush1.bf16.xpose.msra.mxu0 0
    %1637 = vmatprep.subr.bf16.mxu0 0
    %1638 = vmatpush1.bf16.xpose.msra.mxu0 0
    %1639 = vmatprep.subr.bf16.mxu0 0
    %1640 = vmatpush1.bf16.xpose.msra.mxu0 0
    %1641 = vmatprep.subr.bf16.mxu0 0
    %1642 = vmatpush1.bf16.xpose.msra.mxu0 0
    %1643 = vmatprep.subr.bf16.mxu0 0
    %1644 = vmatpush1.bf16.xpose.msra.mxu0 0
    %1645 = vmatprep.subr.bf16.mxu0 0
    %1646 = vmatpush1.bf16.xpose.msra.mxu0 0
    %1647 = vmatprep.subr.bf16.mxu0 0
    %1648 = vmatpush1.bf16.xpose.msra.mxu0 0
    %1649 = vmatprep.subr.bf16.mxu0 0
    %1650 = vmatpush1.bf16.xpose.msra.mxu0 0
    %1651 = vmatprep.subr.bf16.mxu0 0
    %1652 = vmatpush1.bf16.xpose.msra.mxu0 0
    %1653 = vmatprep.subr.bf16.mxu0 0
    %1654 = vmatpush1.bf16.xpose.msra.mxu0 0
    %1655 = vmatprep.subr.bf16.mxu0 0
    %1656 = vmatpush1.bf16.xpose.msra.mxu0 0
    %1657 = vmatprep.mubr.bf16.mxu0 0
    %1658 = vmatmul.mubr.bf16.gmra.mrb[0].mxu0 %v209
    %v1659 = vpop.f32.mrb[0].mxu0
    %v1660 = vadd.f32 %v876, %v1659
    %v1661 = vpop.f32.mrb[0].mxu0
    %v1662 = vpop.f32.mrb[0].mxu0
    %v1663 = vadd.f32 %v879, %v1662
    %v1664 = vpop.f32.mrb[0].mxu0
    %1665 = vmatprep.mubr.bf16.mxu0 0
    %1666 = vmatmul.mubr.bf16.gmra.mrb[0].mxu0 %v210
    %v1667 = vpop.f32.mrb[0].mxu0
    %v1668 = vadd.f32 %v884, %v1667
    %v1669 = vpop.f32.mrb[0].mxu0
    %v1670 = vpop.f32.mrb[0].mxu0
    %v1671 = vadd.f32 %v887, %v1670
    %v1672 = vpop.f32.mrb[0].mxu0
    %1673 = vdwg.mxu0
    %1674 = vmatprep.subr.bf16.mxu0 0
    %1675 = vmatpush1.bf16.xpose.msra.mxu0 %v394
    %1676 = vmatprep.subr.bf16.mxu0 0
    %1677 = vmatpush1.bf16.xpose.msra.mxu0 0
    %1678 = vmatprep.subr.bf16.mxu0 0
    %1679 = vmatpush1.bf16.xpose.msra.mxu0 0
    %1680 = vmatprep.subr.bf16.mxu0 0
    %1681 = vmatpush1.bf16.xpose.msra.mxu0 0
    %1682 = vmatprep.subr.bf16.mxu0 0
    %1683 = vmatpush1.bf16.xpose.msra.mxu0 0
    %1684 = vmatprep.subr.bf16.mxu0 0
    %1685 = vmatpush1.bf16.xpose.msra.mxu0 0
    %1686 = vmatprep.subr.bf16.mxu0 0
    %1687 = vmatpush1.bf16.xpose.msra.mxu0 0
    %1688 = vmatprep.subr.bf16.mxu0 0
    %1689 = vmatpush1.bf16.xpose.msra.mxu0 0
    %1690 = vmatprep.subr.bf16.mxu0 0
    %1691 = vmatpush1.bf16.xpose.msra.mxu0 0
    %1692 = vmatprep.subr.bf16.mxu0 0
    %1693 = vmatpush1.bf16.xpose.msra.mxu0 0
    %1694 = vmatprep.subr.bf16.mxu0 0
    %1695 = vmatpush1.bf16.xpose.msra.mxu0 0
    %1696 = vmatprep.subr.bf16.mxu0 0
    %1697 = vmatpush1.bf16.xpose.msra.mxu0 0
    %1698 = vmatprep.subr.bf16.mxu0 0
    %1699 = vmatpush1.bf16.xpose.msra.mxu0 0
    %1700 = vmatprep.subr.bf16.mxu0 0
    %1701 = vmatpush1.bf16.xpose.msra.mxu0 0
    %1702 = vmatprep.subr.bf16.mxu0 0
    %1703 = vmatpush1.bf16.xpose.msra.mxu0 0
    %1704 = vmatprep.subr.bf16.mxu0 0
    %1705 = vmatpush1.bf16.xpose.msra.mxu0 0
    %1706 = vmatprep.mubr.bf16.mxu0 0
    %1707 = vmatmul.mubr.bf16.gmra.mrb[0].mxu0 %v211
    %v1708 = vpop.f32.mrb[0].mxu0
    %v1709 = vadd.f32 %v925, %v1708
    %v1710 = vpop.f32.mrb[0].mxu0
    %v1711 = vpop.f32.mrb[0].mxu0
    %v1712 = vadd.f32 %v928, %v1711
    %v1713 = vpop.f32.mrb[0].mxu0
    %1714 = vmatprep.mubr.bf16.mxu0 0
    %1715 = vmatmul.mubr.bf16.gmra.mrb[0].mxu0 %v212
    %v1716 = vpop.f32.mrb[0].mxu0
    %v1717 = vadd.f32 %v933, %v1716
    %v1718 = vpop.f32.mrb[0].mxu0
    %v1719 = vpop.f32.mrb[0].mxu0
    %v1720 = vadd.f32 %v936, %v1719
    %v1721 = vpop.f32.mrb[0].mxu0
    %1722 = vdwg.mxu0
    %1723 = vmatprep.subr.bf16.mxu0 0
    %1724 = vmatpush1.bf16.xpose.msra.mxu0 %v395
    %1725 = vmatprep.subr.bf16.mxu0 0
    %1726 = vmatpush1.bf16.xpose.msra.mxu0 0
    %1727 = vmatprep.subr.bf16.mxu0 0
    %1728 = vmatpush1.bf16.xpose.msra.mxu0 0
    %1729 = vmatprep.subr.bf16.mxu0 0
    %1730 = vmatpush1.bf16.xpose.msra.mxu0 0
    %1731 = vmatprep.subr.bf16.mxu0 0
    %1732 = vmatpush1.bf16.xpose.msra.mxu0 0
    %1733 = vmatprep.subr.bf16.mxu0 0
    %1734 = vmatpush1.bf16.xpose.msra.mxu0 0
    %1735 = vmatprep.subr.bf16.mxu0 0
    %1736 = vmatpush1.bf16.xpose.msra.mxu0 0
    %1737 = vmatprep.subr.bf16.mxu0 0
    %1738 = vmatpush1.bf16.xpose.msra.mxu0 0
    %1739 = vmatprep.subr.bf16.mxu0 0
    %1740 = vmatpush1.bf16.xpose.msra.mxu0 0
    %1741 = vmatprep.subr.bf16.mxu0 0
    %1742 = vmatpush1.bf16.xpose.msra.mxu0 0
    %1743 = vmatprep.subr.bf16.mxu0 0
    %1744 = vmatpush1.bf16.xpose.msra.mxu0 0
    %1745 = vmatprep.subr.bf16.mxu0 0
    %1746 = vmatpush1.bf16.xpose.msra.mxu0 0
    %1747 = vmatprep.subr.bf16.mxu0 0
    %1748 = vmatpush1.bf16.xpose.msra.mxu0 0
    %1749 = vmatprep.subr.bf16.mxu0 0
    %1750 = vmatpush1.bf16.xpose.msra.mxu0 0
    %1751 = vmatprep.subr.bf16.mxu0 0
    %1752 = vmatpush1.bf16.xpose.msra.mxu0 0
    %1753 = vmatprep.subr.bf16.mxu0 0
    %1754 = vmatpush1.bf16.xpose.msra.mxu0 0
    %1755 = vmatprep.mubr.bf16.mxu0 0
    %1756 = vmatmul.mubr.bf16.gmra.mrb[0].mxu0 %v213
    %v1757 = vpop.f32.mrb[0].mxu0
    %v1758 = vadd.f32 %v974, %v1757
    %v1759 = vpop.f32.mrb[0].mxu0
    %v1760 = vpop.f32.mrb[0].mxu0
    %v1761 = vadd.f32 %v977, %v1760
    %v1762 = vpop.f32.mrb[0].mxu0
    %1763 = vmatprep.mubr.bf16.mxu0 0
    %1764 = vmatmul.mubr.bf16.gmra.mrb[0].mxu0 %v214
    %v1765 = vpop.f32.mrb[0].mxu0
    %v1766 = vadd.f32 %v982, %v1765
    %v1767 = vpop.f32.mrb[0].mxu0
    %v1768 = vpop.f32.mrb[0].mxu0
    %v1769 = vadd.f32 %v985, %v1768
    %v1770 = vpop.f32.mrb[0].mxu0
    %1771 = vdwg.mxu0
    %1772 = vmatprep.subr.bf16.mxu0 0
    %1773 = vmatpush1.bf16.xpose.msra.mxu0 %v396
    %1774 = vmatprep.subr.bf16.mxu0 0
    %1775 = vmatpush1.bf16.xpose.msra.mxu0 0
    %1776 = vmatprep.subr.bf16.mxu0 0
    %1777 = vmatpush1.bf16.xpose.msra.mxu0 0
    %1778 = vmatprep.subr.bf16.mxu0 0
    %1779 = vmatpush1.bf16.xpose.msra.mxu0 0
    %1780 = vmatprep.subr.bf16.mxu0 0
    %1781 = vmatpush1.bf16.xpose.msra.mxu0 0
    %1782 = vmatprep.subr.bf16.mxu0 0
    %1783 = vmatpush1.bf16.xpose.msra.mxu0 0
    %1784 = vmatprep.subr.bf16.mxu0 0
    %1785 = vmatpush1.bf16.xpose.msra.mxu0 0
    %1786 = vmatprep.subr.bf16.mxu0 0
    %1787 = vmatpush1.bf16.xpose.msra.mxu0 0
    %1788 = vmatprep.subr.bf16.mxu0 0
    %1789 = vmatpush1.bf16.xpose.msra.mxu0 0
    %1790 = vmatprep.subr.bf16.mxu0 0
    %1791 = vmatpush1.bf16.xpose.msra.mxu0 0
    %1792 = vmatprep.subr.bf16.mxu0 0
    %1793 = vmatpush1.bf16.xpose.msra.mxu0 0
    %1794 = vmatprep.subr.bf16.mxu0 0
    %1795 = vmatpush1.bf16.xpose.msra.mxu0 0
    %1796 = vmatprep.subr.bf16.mxu0 0
    %1797 = vmatpush1.bf16.xpose.msra.mxu0 0
    %1798 = vmatprep.subr.bf16.mxu0 0
    %1799 = vmatpush1.bf16.xpose.msra.mxu0 0
    %1800 = vmatprep.subr.bf16.mxu0 0
    %1801 = vmatpush1.bf16.xpose.msra.mxu0 0
    %1802 = vmatprep.subr.bf16.mxu0 0
    %1803 = vmatpush1.bf16.xpose.msra.mxu0 0
    %1804 = vmatprep.mubr.bf16.mxu0 0
    %1805 = vmatmul.mubr.bf16.gmra.mrb[0].mxu0 %v215
    %v1806 = vpop.f32.mrb[0].mxu0
    %v1807 = vadd.f32 %v1023, %v1806
    %v1808 = vpop.f32.mrb[0].mxu0
    %v1809 = vpop.f32.mrb[0].mxu0
    %v1810 = vadd.f32 %v1026, %v1809
    %v1811 = vpop.f32.mrb[0].mxu0
    %1812 = vmatprep.mubr.bf16.mxu0 0
    %1813 = vmatmul.mubr.bf16.gmra.mrb[0].mxu0 %v216
    %v1814 = vpop.f32.mrb[0].mxu0
    %v1815 = vadd.f32 %v1031, %v1814
    %v1816 = vpop.f32.mrb[0].mxu0
    %v1817 = vpop.f32.mrb[0].mxu0
    %v1818 = vadd.f32 %v1034, %v1817
    %v1819 = vpop.f32.mrb[0].mxu0
    %1820 = vdwg.mxu0
    %1821 = vmatprep.subr.bf16.mxu0 0
    %1822 = vmatpush1.bf16.xpose.msra.mxu0 %v397
    %1823 = vmatprep.subr.bf16.mxu0 0
    %1824 = vmatpush1.bf16.xpose.msra.mxu0 0
    %1825 = vmatprep.subr.bf16.mxu0 0
    %1826 = vmatpush1.bf16.xpose.msra.mxu0 0
    %1827 = vmatprep.subr.bf16.mxu0 0
    %1828 = vmatpush1.bf16.xpose.msra.mxu0 0
    %1829 = vmatprep.subr.bf16.mxu0 0
    %1830 = vmatpush1.bf16.xpose.msra.mxu0 0
    %1831 = vmatprep.subr.bf16.mxu0 0
    %1832 = vmatpush1.bf16.xpose.msra.mxu0 0
    %1833 = vmatprep.subr.bf16.mxu0 0
    %1834 = vmatpush1.bf16.xpose.msra.mxu0 0
    %1835 = vmatprep.subr.bf16.mxu0 0
    %1836 = vmatpush1.bf16.xpose.msra.mxu0 0
    %1837 = vmatprep.subr.bf16.mxu0 0
    %1838 = vmatpush1.bf16.xpose.msra.mxu0 0
    %1839 = vmatprep.subr.bf16.mxu0 0
    %1840 = vmatpush1.bf16.xpose.msra.mxu0 0
    %1841 = vmatprep.subr.bf16.mxu0 0
    %1842 = vmatpush1.bf16.xpose.msra.mxu0 0
    %1843 = vmatprep.subr.bf16.mxu0 0
    %1844 = vmatpush1.bf16.xpose.msra.mxu0 0
    %1845 = vmatprep.subr.bf16.mxu0 0
    %1846 = vmatpush1.bf16.xpose.msra.mxu0 0
    %1847 = vmatprep.subr.bf16.mxu0 0
    %1848 = vmatpush1.bf16.xpose.msra.mxu0 0
    %1849 = vmatprep.subr.bf16.mxu0 0
    %1850 = vmatpush1.bf16.xpose.msra.mxu0 0
    %1851 = vmatprep.subr.bf16.mxu0 0
    %1852 = vmatpush1.bf16.xpose.msra.mxu0 0
    %1853 = vmatprep.mubr.bf16.mxu0 0
    %1854 = vmatmul.mubr.bf16.gmra.mrb[0].mxu0 %v217
    %v1855 = vpop.f32.mrb[0].mxu0
    %v1856 = vadd.f32 %v1072, %v1855
    %v1857 = vpop.f32.mrb[0].mxu0
    %v1858 = vpop.f32.mrb[0].mxu0
    %v1859 = vadd.f32 %v1075, %v1858
    %v1860 = vpop.f32.mrb[0].mxu0
    %1861 = vmatprep.mubr.bf16.mxu0 0
    %1862 = vmatmul.mubr.bf16.gmra.mrb[0].mxu0 %v218
    %v1863 = vpop.f32.mrb[0].mxu0
    %v1864 = vadd.f32 %v1080, %v1863
    %v1865 = vpop.f32.mrb[0].mxu0
    %v1866 = vpop.f32.mrb[0].mxu0
    %v1867 = vadd.f32 %v1083, %v1866
    %v1868 = vpop.f32.mrb[0].mxu0
    %1869 = vdwg.mxu0
    %1870 = vmatprep.subr.bf16.mxu0 0
    %1871 = vmatpush1.bf16.xpose.msra.mxu0 %v398
    %1872 = vmatprep.subr.bf16.mxu0 0
    %1873 = vmatpush1.bf16.xpose.msra.mxu0 0
    %1874 = vmatprep.subr.bf16.mxu0 0
    %1875 = vmatpush1.bf16.xpose.msra.mxu0 0
    %1876 = vmatprep.subr.bf16.mxu0 0
    %1877 = vmatpush1.bf16.xpose.msra.mxu0 0
    %1878 = vmatprep.subr.bf16.mxu0 0
    %1879 = vmatpush1.bf16.xpose.msra.mxu0 0
    %1880 = vmatprep.subr.bf16.mxu0 0
    %1881 = vmatpush1.bf16.xpose.msra.mxu0 0
    %1882 = vmatprep.subr.bf16.mxu0 0
    %1883 = vmatpush1.bf16.xpose.msra.mxu0 0
    %1884 = vmatprep.subr.bf16.mxu0 0
    %1885 = vmatpush1.bf16.xpose.msra.mxu0 0
    %1886 = vmatprep.subr.bf16.mxu0 0
    %1887 = vmatpush1.bf16.xpose.msra.mxu0 0
    %1888 = vmatprep.subr.bf16.mxu0 0
    %1889 = vmatpush1.bf16.xpose.msra.mxu0 0
    %1890 = vmatprep.subr.bf16.mxu0 0
    %1891 = vmatpush1.bf16.xpose.msra.mxu0 0
    %1892 = vmatprep.subr.bf16.mxu0 0
    %1893 = vmatpush1.bf16.xpose.msra.mxu0 0
    %1894 = vmatprep.subr.bf16.mxu0 0
    %1895 = vmatpush1.bf16.xpose.msra.mxu0 0
    %1896 = vmatprep.subr.bf16.mxu0 0
    %1897 = vmatpush1.bf16.xpose.msra.mxu0 0
    %1898 = vmatprep.subr.bf16.mxu0 0
    %1899 = vmatpush1.bf16.xpose.msra.mxu0 0
    %1900 = vmatprep.subr.bf16.mxu0 0
    %1901 = vmatpush1.bf16.xpose.msra.mxu0 0
    %1902 = vmatprep.mubr.bf16.mxu0 0
    %1903 = vmatmul.mubr.bf16.gmra.mrb[0].mxu0 %v219
    %v1904 = vpop.f32.mrb[0].mxu0
    %v1905 = vadd.f32 %v1121, %v1904
    %v1906 = vpop.f32.mrb[0].mxu0
    %v1907 = vpop.f32.mrb[0].mxu0
    %v1908 = vadd.f32 %v1124, %v1907
    %v1909 = vpop.f32.mrb[0].mxu0
    %1910 = vmatprep.mubr.bf16.mxu0 0
    %1911 = vmatmul.mubr.bf16.gmra.mrb[0].mxu0 %v220
    %v1912 = vpop.f32.mrb[0].mxu0
    %v1913 = vadd.f32 %v1129, %v1912
    %v1914 = vpop.f32.mrb[0].mxu0
    %v1915 = vpop.f32.mrb[0].mxu0
    %v1916 = vadd.f32 %v1132, %v1915
    %v1917 = vpop.f32.mrb[0].mxu0
    %1918 = vdwg.mxu0
    %1919 = vmatprep.subr.bf16.mxu0 0
    %1920 = vmatpush1.bf16.xpose.msra.mxu0 %v399
    %1921 = vmatprep.subr.bf16.mxu0 0
    %1922 = vmatpush1.bf16.xpose.msra.mxu0 0
    %1923 = vmatprep.subr.bf16.mxu0 0
    %1924 = vmatpush1.bf16.xpose.msra.mxu0 0
    %1925 = vmatprep.subr.bf16.mxu0 0
    %1926 = vmatpush1.bf16.xpose.msra.mxu0 0
    %1927 = vmatprep.subr.bf16.mxu0 0
    %1928 = vmatpush1.bf16.xpose.msra.mxu0 0
    %1929 = vmatprep.subr.bf16.mxu0 0
    %1930 = vmatpush1.bf16.xpose.msra.mxu0 0
    %1931 = vmatprep.subr.bf16.mxu0 0
    %1932 = vmatpush1.bf16.xpose.msra.mxu0 0
    %1933 = vmatprep.subr.bf16.mxu0 0
    %1934 = vmatpush1.bf16.xpose.msra.mxu0 0
    %1935 = vmatprep.subr.bf16.mxu0 0
    %1936 = vmatpush1.bf16.xpose.msra.mxu0 0
    %1937 = vmatprep.subr.bf16.mxu0 0
    %1938 = vmatpush1.bf16.xpose.msra.mxu0 0
    %1939 = vmatprep.subr.bf16.mxu0 0
    %1940 = vmatpush1.bf16.xpose.msra.mxu0 0
    %1941 = vmatprep.subr.bf16.mxu0 0
    %1942 = vmatpush1.bf16.xpose.msra.mxu0 0
    %1943 = vmatprep.subr.bf16.mxu0 0
    %1944 = vmatpush1.bf16.xpose.msra.mxu0 0
    %1945 = vmatprep.subr.bf16.mxu0 0
    %1946 = vmatpush1.bf16.xpose.msra.mxu0 0
    %1947 = vmatprep.subr.bf16.mxu0 0
    %1948 = vmatpush1.bf16.xpose.msra.mxu0 0
    %1949 = vmatprep.subr.bf16.mxu0 0
    %1950 = vmatpush1.bf16.xpose.msra.mxu0 0
    %1951 = vmatprep.mubr.bf16.mxu0 0
    %1952 = vmatmul.mubr.bf16.gmra.mrb[0].mxu0 %v221
    %v1953 = vpop.f32.mrb[0].mxu0
    %v1954 = vadd.f32 %v1170, %v1953
    %v1955 = vpop.f32.mrb[0].mxu0
    %v1956 = vpop.f32.mrb[0].mxu0
    %v1957 = vadd.f32 %v1173, %v1956
    %v1958 = vpop.f32.mrb[0].mxu0
    %1959 = vmatprep.mubr.bf16.mxu0 0
    %1960 = vmatmul.mubr.bf16.gmra.mrb[0].mxu0 %v222
    %v1961 = vpop.f32.mrb[0].mxu0
    %v1962 = vadd.f32 %v1178, %v1961
    %v1963 = vpop.f32.mrb[0].mxu0
    %v1964 = vpop.f32.mrb[0].mxu0
    %v1965 = vadd.f32 %v1181, %v1964
    %v1966 = vpop.f32.mrb[0].mxu0
    %1967 = vdwg.mxu0
    %1968 = vmatprep.subr.bf16.mxu0 0
    %1969 = vmatpush1.bf16.xpose.msra.mxu0 %v400
    %1970 = vmatprep.subr.bf16.mxu0 0
    %1971 = vmatpush1.bf16.xpose.msra.mxu0 0
    %1972 = vmatprep.subr.bf16.mxu0 0
    %1973 = vmatpush1.bf16.xpose.msra.mxu0 0
    %1974 = vmatprep.subr.bf16.mxu0 0
    %1975 = vmatpush1.bf16.xpose.msra.mxu0 0
    %1976 = vmatprep.subr.bf16.mxu0 0
    %1977 = vmatpush1.bf16.xpose.msra.mxu0 0
    %1978 = vmatprep.subr.bf16.mxu0 0
    %1979 = vmatpush1.bf16.xpose.msra.mxu0 0
    %1980 = vmatprep.subr.bf16.mxu0 0
    %1981 = vmatpush1.bf16.xpose.msra.mxu0 0
    %1982 = vmatprep.subr.bf16.mxu0 0
    %1983 = vmatpush1.bf16.xpose.msra.mxu0 0
    %1984 = vmatprep.subr.bf16.mxu0 0
    %1985 = vmatpush1.bf16.xpose.msra.mxu0 0
    %1986 = vmatprep.subr.bf16.mxu0 0
    %1987 = vmatpush1.bf16.xpose.msra.mxu0 0
    %1988 = vmatprep.subr.bf16.mxu0 0
    %1989 = vmatpush1.bf16.xpose.msra.mxu0 0
    %1990 = vmatprep.subr.bf16.mxu0 0
    %1991 = vmatpush1.bf16.xpose.msra.mxu0 0
    %1992 = vmatprep.subr.bf16.mxu0 0
    %1993 = vmatpush1.bf16.xpose.msra.mxu0 0
    %1994 = vmatprep.subr.bf16.mxu0 0
    %1995 = vmatpush1.bf16.xpose.msra.mxu0 0
    %1996 = vmatprep.subr.bf16.mxu0 0
    %1997 = vmatpush1.bf16.xpose.msra.mxu0 0
    %1998 = vmatprep.subr.bf16.mxu0 0
    %1999 = vmatpush1.bf16.xpose.msra.mxu0 0
    %2000 = vmatprep.mubr.bf16.mxu0 0
    %2001 = vmatmul.mubr.bf16.gmra.mrb[0].mxu0 %v223
    %v2002 = vpop.f32.mrb[0].mxu0
    %v2003 = vadd.f32 %v1219, %v2002
    %v2004 = vpop.f32.mrb[0].mxu0
    %v2005 = vpop.f32.mrb[0].mxu0
    %v2006 = vadd.f32 %v1222, %v2005
    %v2007 = vpop.f32.mrb[0].mxu0
    %2008 = vmatprep.mubr.bf16.mxu0 0
    %2009 = vmatmul.mubr.bf16.gmra.mrb[0].mxu0 %v224
    %v2010 = vpop.f32.mrb[0].mxu0
    %v2011 = vadd.f32 %v1227, %v2010
    %v2012 = vpop.f32.mrb[0].mxu0
    %v2013 = vpop.f32.mrb[0].mxu0
    %v2014 = vadd.f32 %v1230, %v2013
    %v2015 = vpop.f32.mrb[0].mxu0
    %2016 = vdwg.mxu0
    %2017 = vmatprep.subr.bf16.mxu0 0
    %2018 = vmatpush1.bf16.xpose.msra.mxu0 %v385
    %2019 = vmatprep.subr.bf16.mxu0 0
    %2020 = vmatpush1.bf16.xpose.msra.mxu0 0
    %2021 = vmatprep.subr.bf16.mxu0 0
    %2022 = vmatpush1.bf16.xpose.msra.mxu0 0
    %2023 = vmatprep.subr.bf16.mxu0 0
    %2024 = vmatpush1.bf16.xpose.msra.mxu0 0
    %2025 = vmatprep.subr.bf16.mxu0 0
    %2026 = vmatpush1.bf16.xpose.msra.mxu0 0
    %2027 = vmatprep.subr.bf16.mxu0 0
    %2028 = vmatpush1.bf16.xpose.msra.mxu0 0
    %2029 = vmatprep.subr.bf16.mxu0 0
    %2030 = vmatpush1.bf16.xpose.msra.mxu0 0
    %2031 = vmatprep.subr.bf16.mxu0 0
    %2032 = vmatpush1.bf16.xpose.msra.mxu0 0
    %2033 = vmatprep.subr.bf16.mxu0 0
    %2034 = vmatpush1.bf16.xpose.msra.mxu0 0
    %2035 = vmatprep.subr.bf16.mxu0 0
    %2036 = vmatpush1.bf16.xpose.msra.mxu0 0
    %2037 = vmatprep.subr.bf16.mxu0 0
    %2038 = vmatpush1.bf16.xpose.msra.mxu0 0
    %2039 = vmatprep.subr.bf16.mxu0 0
    %2040 = vmatpush1.bf16.xpose.msra.mxu0 0
    %2041 = vmatprep.subr.bf16.mxu0 0
    %2042 = vmatpush1.bf16.xpose.msra.mxu0 0
    %2043 = vmatprep.subr.bf16.mxu0 0
    %2044 = vmatpush1.bf16.xpose.msra.mxu0 0
    %2045 = vmatprep.subr.bf16.mxu0 0
    %2046 = vmatpush1.bf16.xpose.msra.mxu0 0
    %2047 = vmatprep.subr.bf16.mxu0 0
    %2048 = vmatpush1.bf16.xpose.msra.mxu0 0
    %2049 = vmatprep.mubr.bf16.mxu0 0
    %2050 = vmatmul.mubr.bf16.gmra.mrb[0].mxu0 %v353
    %v2051 = vpop.f32.mrb[0].mxu0
    %v2052 = vadd.f32 0.0, %v2051
    %v2053 = vpop.f32.mrb[0].mxu0
    %v2054 = vpop.f32.mrb[0].mxu0
    %v2055 = vadd.f32 0.0, %v2054
    %v2056 = vpop.f32.mrb[0].mxu0
    %2057 = vmatprep.mubr.bf16.mxu0 0
    %2058 = vmatmul.mubr.bf16.gmra.mrb[0].mxu0 %v354
    %v2059 = vpop.f32.mrb[0].mxu0
    %v2060 = vadd.f32 0.0, %v2059
    %v2061 = vpop.f32.mrb[0].mxu0
    %v2062 = vpop.f32.mrb[0].mxu0
    %v2063 = vadd.f32 0.0, %v2062
    %v2064 = vpop.f32.mrb[0].mxu0
    %2065 = vdwg.mxu0
    %2066 = vmatprep.subr.bf16.mxu0 0
    %2067 = vmatpush1.bf16.xpose.msra.mxu0 %v386
    %2068 = vmatprep.subr.bf16.mxu0 0
    %2069 = vmatpush1.bf16.xpose.msra.mxu0 0
    %2070 = vmatprep.subr.bf16.mxu0 0
    %2071 = vmatpush1.bf16.xpose.msra.mxu0 0
    %2072 = vmatprep.subr.bf16.mxu0 0
    %2073 = vmatpush1.bf16.xpose.msra.mxu0 0
    %2074 = vmatprep.subr.bf16.mxu0 0
    %2075 = vmatpush1.bf16.xpose.msra.mxu0 0
    %2076 = vmatprep.subr.bf16.mxu0 0
    %2077 = vmatpush1.bf16.xpose.msra.mxu0 0
    %2078 = vmatprep.subr.bf16.mxu0 0
    %2079 = vmatpush1.bf16.xpose.msra.mxu0 0
    %2080 = vmatprep.subr.bf16.mxu0 0
    %2081 = vmatpush1.bf16.xpose.msra.mxu0 0
    %2082 = vmatprep.subr.bf16.mxu0 0
    %2083 = vmatpush1.bf16.xpose.msra.mxu0 0
    %2084 = vmatprep.subr.bf16.mxu0 0
    %2085 = vmatpush1.bf16.xpose.msra.mxu0 0
    %2086 = vmatprep.subr.bf16.mxu0 0
    %2087 = vmatpush1.bf16.xpose.msra.mxu0 0
    %2088 = vmatprep.subr.bf16.mxu0 0
    %2089 = vmatpush1.bf16.xpose.msra.mxu0 0
    %2090 = vmatprep.subr.bf16.mxu0 0
    %2091 = vmatpush1.bf16.xpose.msra.mxu0 0
    %2092 = vmatprep.subr.bf16.mxu0 0
    %2093 = vmatpush1.bf16.xpose.msra.mxu0 0
    %2094 = vmatprep.subr.bf16.mxu0 0
    %2095 = vmatpush1.bf16.xpose.msra.mxu0 0
    %2096 = vmatprep.subr.bf16.mxu0 0
    %2097 = vmatpush1.bf16.xpose.msra.mxu0 0
    %2098 = vmatprep.mubr.bf16.mxu0 0
    %2099 = vmatmul.mubr.bf16.gmra.mrb[0].mxu0 %v355
    %v2100 = vpop.f32.mrb[0].mxu0
    %v2101 = vadd.f32 0.0, %v2100
    %v2102 = vpop.f32.mrb[0].mxu0
    %v2103 = vpop.f32.mrb[0].mxu0
    %v2104 = vadd.f32 0.0, %v2103
    %v2105 = vpop.f32.mrb[0].mxu0
    %2106 = vmatprep.mubr.bf16.mxu0 0
    %2107 = vmatmul.mubr.bf16.gmra.mrb[0].mxu0 %v356
    %v2108 = vpop.f32.mrb[0].mxu0
    %v2109 = vadd.f32 0.0, %v2108
    %v2110 = vpop.f32.mrb[0].mxu0
    %v2111 = vpop.f32.mrb[0].mxu0
    %v2112 = vadd.f32 0.0, %v2111
    %v2113 = vpop.f32.mrb[0].mxu0
    %2114 = vdwg.mxu0
    %2115 = vmatprep.subr.bf16.mxu0 0
    %2116 = vmatpush1.bf16.xpose.msra.mxu0 %v387
    %2117 = vmatprep.subr.bf16.mxu0 0
    %2118 = vmatpush1.bf16.xpose.msra.mxu0 0
    %2119 = vmatprep.subr.bf16.mxu0 0
    %2120 = vmatpush1.bf16.xpose.msra.mxu0 0
    %2121 = vmatprep.subr.bf16.mxu0 0
    %2122 = vmatpush1.bf16.xpose.msra.mxu0 0
    %2123 = vmatprep.subr.bf16.mxu0 0
    %2124 = vmatpush1.bf16.xpose.msra.mxu0 0
    %2125 = vmatprep.subr.bf16.mxu0 0
    %2126 = vmatpush1.bf16.xpose.msra.mxu0 0
    %2127 = vmatprep.subr.bf16.mxu0 0
    %2128 = vmatpush1.bf16.xpose.msra.mxu0 0
    %2129 = vmatprep.subr.bf16.mxu0 0
    %2130 = vmatpush1.bf16.xpose.msra.mxu0 0
    %2131 = vmatprep.subr.bf16.mxu0 0
    %2132 = vmatpush1.bf16.xpose.msra.mxu0 0
    %2133 = vmatprep.subr.bf16.mxu0 0
    %2134 = vmatpush1.bf16.xpose.msra.mxu0 0
    %2135 = vmatprep.subr.bf16.mxu0 0
    %2136 = vmatpush1.bf16.xpose.msra.mxu0 0
    %2137 = vmatprep.subr.bf16.mxu0 0
    %2138 = vmatpush1.bf16.xpose.msra.mxu0 0
    %2139 = vmatprep.subr.bf16.mxu0 0
    %2140 = vmatpush1.bf16.xpose.msra.mxu0 0
    %2141 = vmatprep.subr.bf16.mxu0 0
    %2142 = vmatpush1.bf16.xpose.msra.mxu0 0
    %2143 = vmatprep.subr.bf16.mxu0 0
    %2144 = vmatpush1.bf16.xpose.msra.mxu0 0
    %2145 = vmatprep.subr.bf16.mxu0 0
    %2146 = vmatpush1.bf16.xpose.msra.mxu0 0
    %2147 = vmatprep.mubr.bf16.mxu0 0
    %2148 = vmatmul.mubr.bf16.gmra.mrb[0].mxu0 %v357
    %v2149 = vpop.f32.mrb[0].mxu0
    %v2150 = vadd.f32 0.0, %v2149
    %v2151 = vpop.f32.mrb[0].mxu0
    %v2152 = vpop.f32.mrb[0].mxu0
    %v2153 = vadd.f32 0.0, %v2152
    %v2154 = vpop.f32.mrb[0].mxu0
    %2155 = vmatprep.mubr.bf16.mxu0 0
    %2156 = vmatmul.mubr.bf16.gmra.mrb[0].mxu0 %v358
    %v2157 = vpop.f32.mrb[0].mxu0
    %v2158 = vadd.f32 0.0, %v2157
    %v2159 = vpop.f32.mrb[0].mxu0
    %v2160 = vpop.f32.mrb[0].mxu0
    %v2161 = vadd.f32 0.0, %v2160
    %v2162 = vpop.f32.mrb[0].mxu0
    %2163 = vdwg.mxu0
    %2164 = vmatprep.subr.bf16.mxu0 0
    %2165 = vmatpush1.bf16.xpose.msra.mxu0 %v388
    %2166 = vmatprep.subr.bf16.mxu0 0
    %2167 = vmatpush1.bf16.xpose.msra.mxu0 0
    %2168 = vmatprep.subr.bf16.mxu0 0
    %2169 = vmatpush1.bf16.xpose.msra.mxu0 0
    %2170 = vmatprep.subr.bf16.mxu0 0
    %2171 = vmatpush1.bf16.xpose.msra.mxu0 0
    %2172 = vmatprep.subr.bf16.mxu0 0
    %2173 = vmatpush1.bf16.xpose.msra.mxu0 0
    %2174 = vmatprep.subr.bf16.mxu0 0
    %2175 = vmatpush1.bf16.xpose.msra.mxu0 0
    %2176 = vmatprep.subr.bf16.mxu0 0
    %2177 = vmatpush1.bf16.xpose.msra.mxu0 0
    %2178 = vmatprep.subr.bf16.mxu0 0
    %2179 = vmatpush1.bf16.xpose.msra.mxu0 0
    %2180 = vmatprep.subr.bf16.mxu0 0
    %2181 = vmatpush1.bf16.xpose.msra.mxu0 0
    %2182 = vmatprep.subr.bf16.mxu0 0
    %2183 = vmatpush1.bf16.xpose.msra.mxu0 0
    %2184 = vmatprep.subr.bf16.mxu0 0
    %2185 = vmatpush1.bf16.xpose.msra.mxu0 0
    %2186 = vmatprep.subr.bf16.mxu0 0
    %2187 = vmatpush1.bf16.xpose.msra.mxu0 0
    %2188 = vmatprep.subr.bf16.mxu0 0
    %2189 = vmatpush1.bf16.xpose.msra.mxu0 0
    %2190 = vmatprep.subr.bf16.mxu0 0
    %2191 = vmatpush1.bf16.xpose.msra.mxu0 0
    %2192 = vmatprep.subr.bf16.mxu0 0
    %2193 = vmatpush1.bf16.xpose.msra.mxu0 0
    %2194 = vmatprep.subr.bf16.mxu0 0
    %2195 = vmatpush1.bf16.xpose.msra.mxu0 0
    %2196 = vmatprep.mubr.bf16.mxu0 0
    %2197 = vmatmul.mubr.bf16.gmra.mrb[0].mxu0 %v359
    %v2198 = vpop.f32.mrb[0].mxu0
    %v2199 = vadd.f32 0.0, %v2198
    %v2200 = vpop.f32.mrb[0].mxu0
    %v2201 = vpop.f32.mrb[0].mxu0
    %v2202 = vadd.f32 0.0, %v2201
    %v2203 = vpop.f32.mrb[0].mxu0
    %2204 = vmatprep.mubr.bf16.mxu0 0
    %2205 = vmatmul.mubr.bf16.gmra.mrb[0].mxu0 %v360
    %v2206 = vpop.f32.mrb[0].mxu0
    %v2207 = vadd.f32 0.0, %v2206
    %v2208 = vpop.f32.mrb[0].mxu0
    %v2209 = vpop.f32.mrb[0].mxu0
    %v2210 = vadd.f32 0.0, %v2209
    %v2211 = vpop.f32.mrb[0].mxu0
    %2212 = vdwg.mxu0
    %2213 = vmatprep.subr.bf16.mxu0 0
    %2214 = vmatpush1.bf16.xpose.msra.mxu0 %v389
    %2215 = vmatprep.subr.bf16.mxu0 0
    %2216 = vmatpush1.bf16.xpose.msra.mxu0 0
    %2217 = vmatprep.subr.bf16.mxu0 0
    %2218 = vmatpush1.bf16.xpose.msra.mxu0 0
    %2219 = vmatprep.subr.bf16.mxu0 0
    %2220 = vmatpush1.bf16.xpose.msra.mxu0 0
    %2221 = vmatprep.subr.bf16.mxu0 0
    %2222 = vmatpush1.bf16.xpose.msra.mxu0 0
    %2223 = vmatprep.subr.bf16.mxu0 0
    %2224 = vmatpush1.bf16.xpose.msra.mxu0 0
    %2225 = vmatprep.subr.bf16.mxu0 0
    %2226 = vmatpush1.bf16.xpose.msra.mxu0 0
    %2227 = vmatprep.subr.bf16.mxu0 0
    %2228 = vmatpush1.bf16.xpose.msra.mxu0 0
    %2229 = vmatprep.subr.bf16.mxu0 0
    %2230 = vmatpush1.bf16.xpose.msra.mxu0 0
    %2231 = vmatprep.subr.bf16.mxu0 0
    %2232 = vmatpush1.bf16.xpose.msra.mxu0 0
    %2233 = vmatprep.subr.bf16.mxu0 0
    %2234 = vmatpush1.bf16.xpose.msra.mxu0 0
    %2235 = vmatprep.subr.bf16.mxu0 0
    %2236 = vmatpush1.bf16.xpose.msra.mxu0 0
    %2237 = vmatprep.subr.bf16.mxu0 0
    %2238 = vmatpush1.bf16.xpose.msra.mxu0 0
    %2239 = vmatprep.subr.bf16.mxu0 0
    %2240 = vmatpush1.bf16.xpose.msra.mxu0 0
    %2241 = vmatprep.subr.bf16.mxu0 0
    %2242 = vmatpush1.bf16.xpose.msra.mxu0 0
    %2243 = vmatprep.subr.bf16.mxu0 0
    %2244 = vmatpush1.bf16.xpose.msra.mxu0 0
    %2245 = vmatprep.mubr.bf16.mxu0 0
    %2246 = vmatmul.mubr.bf16.gmra.mrb[0].mxu0 %v361
    %v2247 = vpop.f32.mrb[0].mxu0
    %v2248 = vadd.f32 0.0, %v2247
    %v2249 = vpop.f32.mrb[0].mxu0
    %v2250 = vpop.f32.mrb[0].mxu0
    %v2251 = vadd.f32 0.0, %v2250
    %v2252 = vpop.f32.mrb[0].mxu0
    %2253 = vmatprep.mubr.bf16.mxu0 0
    %2254 = vmatmul.mubr.bf16.gmra.mrb[0].mxu0 %v362
    %v2255 = vpop.f32.mrb[0].mxu0
    %v2256 = vadd.f32 0.0, %v2255
    %v2257 = vpop.f32.mrb[0].mxu0
    %v2258 = vpop.f32.mrb[0].mxu0
    %v2259 = vadd.f32 0.0, %v2258
    %v2260 = vpop.f32.mrb[0].mxu0
    %2261 = vdwg.mxu0
    %2262 = vmatprep.subr.bf16.mxu0 0
    %2263 = vmatpush1.bf16.xpose.msra.mxu0 %v390
    %2264 = vmatprep.subr.bf16.mxu0 0
    %2265 = vmatpush1.bf16.xpose.msra.mxu0 0
    %2266 = vmatprep.subr.bf16.mxu0 0
    %2267 = vmatpush1.bf16.xpose.msra.mxu0 0
    %2268 = vmatprep.subr.bf16.mxu0 0
    %2269 = vmatpush1.bf16.xpose.msra.mxu0 0
    %2270 = vmatprep.subr.bf16.mxu0 0
    %2271 = vmatpush1.bf16.xpose.msra.mxu0 0
    %2272 = vmatprep.subr.bf16.mxu0 0
    %2273 = vmatpush1.bf16.xpose.msra.mxu0 0
    %2274 = vmatprep.subr.bf16.mxu0 0
    %2275 = vmatpush1.bf16.xpose.msra.mxu0 0
    %2276 = vmatprep.subr.bf16.mxu0 0
    %2277 = vmatpush1.bf16.xpose.msra.mxu0 0
    %2278 = vmatprep.subr.bf16.mxu0 0
    %2279 = vmatpush1.bf16.xpose.msra.mxu0 0
    %2280 = vmatprep.subr.bf16.mxu0 0
    %2281 = vmatpush1.bf16.xpose.msra.mxu0 0
    %2282 = vmatprep.subr.bf16.mxu0 0
    %2283 = vmatpush1.bf16.xpose.msra.mxu0 0
    %2284 = vmatprep.subr.bf16.mxu0 0
    %2285 = vmatpush1.bf16.xpose.msra.mxu0 0
    %2286 = vmatprep.subr.bf16.mxu0 0
    %2287 = vmatpush1.bf16.xpose.msra.mxu0 0
    %2288 = vmatprep.subr.bf16.mxu0 0
    %2289 = vmatpush1.bf16.xpose.msra.mxu0 0
    %2290 = vmatprep.subr.bf16.mxu0 0
    %2291 = vmatpush1.bf16.xpose.msra.mxu0 0
    %2292 = vmatprep.subr.bf16.mxu0 0
    %2293 = vmatpush1.bf16.xpose.msra.mxu0 0
    %2294 = vmatprep.mubr.bf16.mxu0 0
    %2295 = vmatmul.mubr.bf16.gmra.mrb[0].mxu0 %v363
    %v2296 = vpop.f32.mrb[0].mxu0
    %v2297 = vadd.f32 0.0, %v2296
    %v2298 = vpop.f32.mrb[0].mxu0
    %v2299 = vpop.f32.mrb[0].mxu0
    %v2300 = vadd.f32 0.0, %v2299
    %v2301 = vpop.f32.mrb[0].mxu0
    %2302 = vmatprep.mubr.bf16.mxu0 0
    %2303 = vmatmul.mubr.bf16.gmra.mrb[0].mxu0 %v364
    %v2304 = vpop.f32.mrb[0].mxu0
    %v2305 = vadd.f32 0.0, %v2304
    %v2306 = vpop.f32.mrb[0].mxu0
    %v2307 = vpop.f32.mrb[0].mxu0
    %v2308 = vadd.f32 0.0, %v2307
    %v2309 = vpop.f32.mrb[0].mxu0
    %2310 = vdwg.mxu0
    %2311 = vmatprep.subr.bf16.mxu0 0
    %2312 = vmatpush1.bf16.xpose.msra.mxu0 %v391
    %2313 = vmatprep.subr.bf16.mxu0 0
    %2314 = vmatpush1.bf16.xpose.msra.mxu0 0
    %2315 = vmatprep.subr.bf16.mxu0 0
    %2316 = vmatpush1.bf16.xpose.msra.mxu0 0
    %2317 = vmatprep.subr.bf16.mxu0 0
    %2318 = vmatpush1.bf16.xpose.msra.mxu0 0
    %2319 = vmatprep.subr.bf16.mxu0 0
    %2320 = vmatpush1.bf16.xpose.msra.mxu0 0
    %2321 = vmatprep.subr.bf16.mxu0 0
    %2322 = vmatpush1.bf16.xpose.msra.mxu0 0
    %2323 = vmatprep.subr.bf16.mxu0 0
    %2324 = vmatpush1.bf16.xpose.msra.mxu0 0
    %2325 = vmatprep.subr.bf16.mxu0 0
    %2326 = vmatpush1.bf16.xpose.msra.mxu0 0
    %2327 = vmatprep.subr.bf16.mxu0 0
    %2328 = vmatpush1.bf16.xpose.msra.mxu0 0
    %2329 = vmatprep.subr.bf16.mxu0 0
    %2330 = vmatpush1.bf16.xpose.msra.mxu0 0
    %2331 = vmatprep.subr.bf16.mxu0 0
    %2332 = vmatpush1.bf16.xpose.msra.mxu0 0
    %2333 = vmatprep.subr.bf16.mxu0 0
    %2334 = vmatpush1.bf16.xpose.msra.mxu0 0
    %2335 = vmatprep.subr.bf16.mxu0 0
    %2336 = vmatpush1.bf16.xpose.msra.mxu0 0
    %2337 = vmatprep.subr.bf16.mxu0 0
    %2338 = vmatpush1.bf16.xpose.msra.mxu0 0
    %2339 = vmatprep.subr.bf16.mxu0 0
    %2340 = vmatpush1.bf16.xpose.msra.mxu0 0
    %2341 = vmatprep.subr.bf16.mxu0 0
    %2342 = vmatpush1.bf16.xpose.msra.mxu0 0
    %2343 = vmatprep.mubr.bf16.mxu0 0
    %2344 = vmatmul.mubr.bf16.gmra.mrb[0].mxu0 %v365
    %v2345 = vpop.f32.mrb[0].mxu0
    %v2346 = vadd.f32 0.0, %v2345
    %v2347 = vpop.f32.mrb[0].mxu0
    %v2348 = vpop.f32.mrb[0].mxu0
    %v2349 = vadd.f32 0.0, %v2348
    %v2350 = vpop.f32.mrb[0].mxu0
    %2351 = vmatprep.mubr.bf16.mxu0 0
    %2352 = vmatmul.mubr.bf16.gmra.mrb[0].mxu0 %v366
    %v2353 = vpop.f32.mrb[0].mxu0
    %v2354 = vadd.f32 0.0, %v2353
    %v2355 = vpop.f32.mrb[0].mxu0
    %v2356 = vpop.f32.mrb[0].mxu0
    %v2357 = vadd.f32 0.0, %v2356
    %v2358 = vpop.f32.mrb[0].mxu0
    %2359 = vdwg.mxu0
    %2360 = vmatprep.subr.bf16.mxu0 0
    %2361 = vmatpush1.bf16.xpose.msra.mxu0 %v392
    %2362 = vmatprep.subr.bf16.mxu0 0
    %2363 = vmatpush1.bf16.xpose.msra.mxu0 0
    %2364 = vmatprep.subr.bf16.mxu0 0
    %2365 = vmatpush1.bf16.xpose.msra.mxu0 0
    %2366 = vmatprep.subr.bf16.mxu0 0
    %2367 = vmatpush1.bf16.xpose.msra.mxu0 0
    %2368 = vmatprep.subr.bf16.mxu0 0
    %2369 = vmatpush1.bf16.xpose.msra.mxu0 0
    %2370 = vmatprep.subr.bf16.mxu0 0
    %2371 = vmatpush1.bf16.xpose.msra.mxu0 0
    %2372 = vmatprep.subr.bf16.mxu0 0
    %2373 = vmatpush1.bf16.xpose.msra.mxu0 0
    %2374 = vmatprep.subr.bf16.mxu0 0
    %2375 = vmatpush1.bf16.xpose.msra.mxu0 0
    %2376 = vmatprep.subr.bf16.mxu0 0
    %2377 = vmatpush1.bf16.xpose.msra.mxu0 0
    %2378 = vmatprep.subr.bf16.mxu0 0
    %2379 = vmatpush1.bf16.xpose.msra.mxu0 0
    %2380 = vmatprep.subr.bf16.mxu0 0
    %2381 = vmatpush1.bf16.xpose.msra.mxu0 0
    %2382 = vmatprep.subr.bf16.mxu0 0
    %2383 = vmatpush1.bf16.xpose.msra.mxu0 0
    %2384 = vmatprep.subr.bf16.mxu0 0
    %2385 = vmatpush1.bf16.xpose.msra.mxu0 0
    %2386 = vmatprep.subr.bf16.mxu0 0
    %2387 = vmatpush1.bf16.xpose.msra.mxu0 0
    %2388 = vmatprep.subr.bf16.mxu0 0
    %2389 = vmatpush1.bf16.xpose.msra.mxu0 0
    %2390 = vmatprep.subr.bf16.mxu0 0
    %2391 = vmatpush1.bf16.xpose.msra.mxu0 0
    %2392 = vmatprep.mubr.bf16.mxu0 0
    %2393 = vmatmul.mubr.bf16.gmra.mrb[0].mxu0 %v367
    %v2394 = vpop.f32.mrb[0].mxu0
    %v2395 = vadd.f32 0.0, %v2394
    %v2396 = vpop.f32.mrb[0].mxu0
    %v2397 = vpop.f32.mrb[0].mxu0
    %v2398 = vadd.f32 0.0, %v2397
    %v2399 = vpop.f32.mrb[0].mxu0
    %2400 = vmatprep.mubr.bf16.mxu0 0
    %2401 = vmatmul.mubr.bf16.gmra.mrb[0].mxu0 %v368
    %v2402 = vpop.f32.mrb[0].mxu0
    %v2403 = vadd.f32 0.0, %v2402
    %v2404 = vpop.f32.mrb[0].mxu0
    %v2405 = vpop.f32.mrb[0].mxu0
    %v2406 = vadd.f32 0.0, %v2405
    %v2407 = vpop.f32.mrb[0].mxu0
    %2408 = vdwg.mxu0
    %2409 = vmatprep.subr.bf16.mxu0 0
    %2410 = vmatpush1.bf16.xpose.msra.mxu0 %v393
    %2411 = vmatprep.subr.bf16.mxu0 0
    %2412 = vmatpush1.bf16.xpose.msra.mxu0 0
    %2413 = vmatprep.subr.bf16.mxu0 0
    %2414 = vmatpush1.bf16.xpose.msra.mxu0 0
    %2415 = vmatprep.subr.bf16.mxu0 0
    %2416 = vmatpush1.bf16.xpose.msra.mxu0 0
    %2417 = vmatprep.subr.bf16.mxu0 0
    %2418 = vmatpush1.bf16.xpose.msra.mxu0 0
    %2419 = vmatprep.subr.bf16.mxu0 0
    %2420 = vmatpush1.bf16.xpose.msra.mxu0 0
    %2421 = vmatprep.subr.bf16.mxu0 0
    %2422 = vmatpush1.bf16.xpose.msra.mxu0 0
    %2423 = vmatprep.subr.bf16.mxu0 0
    %2424 = vmatpush1.bf16.xpose.msra.mxu0 0
    %2425 = vmatprep.subr.bf16.mxu0 0
    %2426 = vmatpush1.bf16.xpose.msra.mxu0 0
    %2427 = vmatprep.subr.bf16.mxu0 0
    %2428 = vmatpush1.bf16.xpose.msra.mxu0 0
    %2429 = vmatprep.subr.bf16.mxu0 0
    %2430 = vmatpush1.bf16.xpose.msra.mxu0 0
    %2431 = vmatprep.subr.bf16.mxu0 0
    %2432 = vmatpush1.bf16.xpose.msra.mxu0 0
    %2433 = vmatprep.subr.bf16.mxu0 0
    %2434 = vmatpush1.bf16.xpose.msra.mxu0 0
    %2435 = vmatprep.subr.bf16.mxu0 0
    %2436 = vmatpush1.bf16.xpose.msra.mxu0 0
    %2437 = vmatprep.subr.bf16.mxu0 0
    %2438 = vmatpush1.bf16.xpose.msra.mxu0 0
    %2439 = vmatprep.subr.bf16.mxu0 0
    %2440 = vmatpush1.bf16.xpose.msra.mxu0 0
    %2441 = vmatprep.mubr.bf16.mxu0 0
    %2442 = vmatmul.mubr.bf16.gmra.mrb[0].mxu0 %v369
    %v2443 = vpop.f32.mrb[0].mxu0
    %v2444 = vadd.f32 0.0, %v2443
    %v2445 = vpop.f32.mrb[0].mxu0
    %v2446 = vpop.f32.mrb[0].mxu0
    %v2447 = vadd.f32 0.0, %v2446
    %v2448 = vpop.f32.mrb[0].mxu0
    %2449 = vmatprep.mubr.bf16.mxu0 0
    %2450 = vmatmul.mubr.bf16.gmra.mrb[0].mxu0 %v370
    %v2451 = vpop.f32.mrb[0].mxu0
    %v2452 = vadd.f32 0.0, %v2451
    %v2453 = vpop.f32.mrb[0].mxu0
    %v2454 = vpop.f32.mrb[0].mxu0
    %v2455 = vadd.f32 0.0, %v2454
    %v2456 = vpop.f32.mrb[0].mxu0
    %2457 = vdwg.mxu0
    %2458 = vmatprep.subr.bf16.mxu0 0
    %2459 = vmatpush1.bf16.xpose.msra.mxu0 %v394
    %2460 = vmatprep.subr.bf16.mxu0 0
    %2461 = vmatpush1.bf16.xpose.msra.mxu0 0
    %2462 = vmatprep.subr.bf16.mxu0 0
    %2463 = vmatpush1.bf16.xpose.msra.mxu0 0
    %2464 = vmatprep.subr.bf16.mxu0 0
    %2465 = vmatpush1.bf16.xpose.msra.mxu0 0
    %2466 = vmatprep.subr.bf16.mxu0 0
    %2467 = vmatpush1.bf16.xpose.msra.mxu0 0
    %2468 = vmatprep.subr.bf16.mxu0 0
    %2469 = vmatpush1.bf16.xpose.msra.mxu0 0
    %2470 = vmatprep.subr.bf16.mxu0 0
    %2471 = vmatpush1.bf16.xpose.msra.mxu0 0
    %2472 = vmatprep.subr.bf16.mxu0 0
    %2473 = vmatpush1.bf16.xpose.msra.mxu0 0
    %2474 = vmatprep.subr.bf16.mxu0 0
    %2475 = vmatpush1.bf16.xpose.msra.mxu0 0
    %2476 = vmatprep.subr.bf16.mxu0 0
    %2477 = vmatpush1.bf16.xpose.msra.mxu0 0
    %2478 = vmatprep.subr.bf16.mxu0 0
    %2479 = vmatpush1.bf16.xpose.msra.mxu0 0
    %2480 = vmatprep.subr.bf16.mxu0 0
    %2481 = vmatpush1.bf16.xpose.msra.mxu0 0
    %2482 = vmatprep.subr.bf16.mxu0 0
    %2483 = vmatpush1.bf16.xpose.msra.mxu0 0
    %2484 = vmatprep.subr.bf16.mxu0 0
    %2485 = vmatpush1.bf16.xpose.msra.mxu0 0
    %2486 = vmatprep.subr.bf16.mxu0 0
    %2487 = vmatpush1.bf16.xpose.msra.mxu0 0
    %2488 = vmatprep.subr.bf16.mxu0 0
    %2489 = vmatpush1.bf16.xpose.msra.mxu0 0
    %2490 = vmatprep.mubr.bf16.mxu0 0
    %2491 = vmatmul.mubr.bf16.gmra.mrb[0].mxu0 %v371
    %v2492 = vpop.f32.mrb[0].mxu0
    %v2493 = vadd.f32 0.0, %v2492
    %v2494 = vpop.f32.mrb[0].mxu0
    %v2495 = vpop.f32.mrb[0].mxu0
    %v2496 = vadd.f32 0.0, %v2495
    %v2497 = vpop.f32.mrb[0].mxu0
    %2498 = vmatprep.mubr.bf16.mxu0 0
    %2499 = vmatmul.mubr.bf16.gmra.mrb[0].mxu0 %v372
    %v2500 = vpop.f32.mrb[0].mxu0
    %v2501 = vadd.f32 0.0, %v2500
    %v2502 = vpop.f32.mrb[0].mxu0
    %v2503 = vpop.f32.mrb[0].mxu0
    %v2504 = vadd.f32 0.0, %v2503
    %v2505 = vpop.f32.mrb[0].mxu0
    %2506 = vdwg.mxu0
    %2507 = vmatprep.subr.bf16.mxu0 0
    %2508 = vmatpush1.bf16.xpose.msra.mxu0 %v395
    %2509 = vmatprep.subr.bf16.mxu0 0
    %2510 = vmatpush1.bf16.xpose.msra.mxu0 0
    %2511 = vmatprep.subr.bf16.mxu0 0
    %2512 = vmatpush1.bf16.xpose.msra.mxu0 0
    %2513 = vmatprep.subr.bf16.mxu0 0
    %2514 = vmatpush1.bf16.xpose.msra.mxu0 0
    %2515 = vmatprep.subr.bf16.mxu0 0
    %2516 = vmatpush1.bf16.xpose.msra.mxu0 0
    %2517 = vmatprep.subr.bf16.mxu0 0
    %2518 = vmatpush1.bf16.xpose.msra.mxu0 0
    %2519 = vmatprep.subr.bf16.mxu0 0
    %2520 = vmatpush1.bf16.xpose.msra.mxu0 0
    %2521 = vmatprep.subr.bf16.mxu0 0
    %2522 = vmatpush1.bf16.xpose.msra.mxu0 0
    %2523 = vmatprep.subr.bf16.mxu0 0
    %2524 = vmatpush1.bf16.xpose.msra.mxu0 0
    %2525 = vmatprep.subr.bf16.mxu0 0
    %2526 = vmatpush1.bf16.xpose.msra.mxu0 0
    %2527 = vmatprep.subr.bf16.mxu0 0
    %2528 = vmatpush1.bf16.xpose.msra.mxu0 0
    %2529 = vmatprep.subr.bf16.mxu0 0
    %2530 = vmatpush1.bf16.xpose.msra.mxu0 0
    %2531 = vmatprep.subr.bf16.mxu0 0
    %2532 = vmatpush1.bf16.xpose.msra.mxu0 0
    %2533 = vmatprep.subr.bf16.mxu0 0
    %2534 = vmatpush1.bf16.xpose.msra.mxu0 0
    %2535 = vmatprep.subr.bf16.mxu0 0
    %2536 = vmatpush1.bf16.xpose.msra.mxu0 0
    %2537 = vmatprep.subr.bf16.mxu0 0
    %2538 = vmatpush1.bf16.xpose.msra.mxu0 0
    %2539 = vmatprep.mubr.bf16.mxu0 0
    %2540 = vmatmul.mubr.bf16.gmra.mrb[0].mxu0 %v373
    %v2541 = vpop.f32.mrb[0].mxu0
    %v2542 = vadd.f32 0.0, %v2541
    %v2543 = vpop.f32.mrb[0].mxu0
    %v2544 = vpop.f32.mrb[0].mxu0
    %v2545 = vadd.f32 0.0, %v2544
    %v2546 = vpop.f32.mrb[0].mxu0
    %2547 = vmatprep.mubr.bf16.mxu0 0
    %2548 = vmatmul.mubr.bf16.gmra.mrb[0].mxu0 %v374
    %v2549 = vpop.f32.mrb[0].mxu0
    %v2550 = vadd.f32 0.0, %v2549
    %v2551 = vpop.f32.mrb[0].mxu0
    %v2552 = vpop.f32.mrb[0].mxu0
    %v2553 = vadd.f32 0.0, %v2552
    %v2554 = vpop.f32.mrb[0].mxu0
    %2555 = vdwg.mxu0
    %2556 = vmatprep.subr.bf16.mxu0 0
    %2557 = vmatpush1.bf16.xpose.msra.mxu0 %v396
    %2558 = vmatprep.subr.bf16.mxu0 0
    %2559 = vmatpush1.bf16.xpose.msra.mxu0 0
    %2560 = vmatprep.subr.bf16.mxu0 0
    %2561 = vmatpush1.bf16.xpose.msra.mxu0 0
    %2562 = vmatprep.subr.bf16.mxu0 0
    %2563 = vmatpush1.bf16.xpose.msra.mxu0 0
    %2564 = vmatprep.subr.bf16.mxu0 0
    %2565 = vmatpush1.bf16.xpose.msra.mxu0 0
    %2566 = vmatprep.subr.bf16.mxu0 0
    %2567 = vmatpush1.bf16.xpose.msra.mxu0 0
    %2568 = vmatprep.subr.bf16.mxu0 0
    %2569 = vmatpush1.bf16.xpose.msra.mxu0 0
    %2570 = vmatprep.subr.bf16.mxu0 0
    %2571 = vmatpush1.bf16.xpose.msra.mxu0 0
    %2572 = vmatprep.subr.bf16.mxu0 0
    %2573 = vmatpush1.bf16.xpose.msra.mxu0 0
    %2574 = vmatprep.subr.bf16.mxu0 0
    %2575 = vmatpush1.bf16.xpose.msra.mxu0 0
    %2576 = vmatprep.subr.bf16.mxu0 0
    %2577 = vmatpush1.bf16.xpose.msra.mxu0 0
    %2578 = vmatprep.subr.bf16.mxu0 0
    %2579 = vmatpush1.bf16.xpose.msra.mxu0 0
    %2580 = vmatprep.subr.bf16.mxu0 0
    %2581 = vmatpush1.bf16.xpose.msra.mxu0 0
    %2582 = vmatprep.subr.bf16.mxu0 0
    %2583 = vmatpush1.bf16.xpose.msra.mxu0 0
    %2584 = vmatprep.subr.bf16.mxu0 0
    %2585 = vmatpush1.bf16.xpose.msra.mxu0 0
    %2586 = vmatprep.subr.bf16.mxu0 0
    %2587 = vmatpush1.bf16.xpose.msra.mxu0 0
    %2588 = vmatprep.mubr.bf16.mxu0 0
    %2589 = vmatmul.mubr.bf16.gmra.mrb[0].mxu0 %v375
    %v2590 = vpop.f32.mrb[0].mxu0
    %v2591 = vadd.f32 0.0, %v2590
    %v2592 = vpop.f32.mrb[0].mxu0
    %v2593 = vpop.f32.mrb[0].mxu0
    %v2594 = vadd.f32 0.0, %v2593
    %v2595 = vpop.f32.mrb[0].mxu0
    %2596 = vmatprep.mubr.bf16.mxu0 0
    %2597 = vmatmul.mubr.bf16.gmra.mrb[0].mxu0 %v376
    %v2598 = vpop.f32.mrb[0].mxu0
    %v2599 = vadd.f32 0.0, %v2598
    %v2600 = vpop.f32.mrb[0].mxu0
    %v2601 = vpop.f32.mrb[0].mxu0
    %v2602 = vadd.f32 0.0, %v2601
    %v2603 = vpop.f32.mrb[0].mxu0
    %2604 = vdwg.mxu0
    %2605 = vmatprep.subr.bf16.mxu0 0
    %2606 = vmatpush1.bf16.xpose.msra.mxu0 %v397
    %2607 = vmatprep.subr.bf16.mxu0 0
    %2608 = vmatpush1.bf16.xpose.msra.mxu0 0
    %2609 = vmatprep.subr.bf16.mxu0 0
    %2610 = vmatpush1.bf16.xpose.msra.mxu0 0
    %2611 = vmatprep.subr.bf16.mxu0 0
    %2612 = vmatpush1.bf16.xpose.msra.mxu0 0
    %2613 = vmatprep.subr.bf16.mxu0 0
    %2614 = vmatpush1.bf16.xpose.msra.mxu0 0
    %2615 = vmatprep.subr.bf16.mxu0 0
    %2616 = vmatpush1.bf16.xpose.msra.mxu0 0
    %2617 = vmatprep.subr.bf16.mxu0 0
    %2618 = vmatpush1.bf16.xpose.msra.mxu0 0
    %2619 = vmatprep.subr.bf16.mxu0 0
    %2620 = vmatpush1.bf16.xpose.msra.mxu0 0
    %2621 = vmatprep.subr.bf16.mxu0 0
    %2622 = vmatpush1.bf16.xpose.msra.mxu0 0
    %2623 = vmatprep.subr.bf16.mxu0 0
    %2624 = vmatpush1.bf16.xpose.msra.mxu0 0
    %2625 = vmatprep.subr.bf16.mxu0 0
    %2626 = vmatpush1.bf16.xpose.msra.mxu0 0
    %2627 = vmatprep.subr.bf16.mxu0 0
    %2628 = vmatpush1.bf16.xpose.msra.mxu0 0
    %2629 = vmatprep.subr.bf16.mxu0 0
    %2630 = vmatpush1.bf16.xpose.msra.mxu0 0
    %2631 = vmatprep.subr.bf16.mxu0 0
    %2632 = vmatpush1.bf16.xpose.msra.mxu0 0
    %2633 = vmatprep.subr.bf16.mxu0 0
    %2634 = vmatpush1.bf16.xpose.msra.mxu0 0
    %2635 = vmatprep.subr.bf16.mxu0 0
    %2636 = vmatpush1.bf16.xpose.msra.mxu0 0
    %2637 = vmatprep.mubr.bf16.mxu0 0
    %2638 = vmatmul.mubr.bf16.gmra.mrb[0].mxu0 %v377
    %v2639 = vpop.f32.mrb[0].mxu0
    %v2640 = vadd.f32 0.0, %v2639
    %v2641 = vpop.f32.mrb[0].mxu0
    %v2642 = vpop.f32.mrb[0].mxu0
    %v2643 = vadd.f32 0.0, %v2642
    %v2644 = vpop.f32.mrb[0].mxu0
    %2645 = vmatprep.mubr.bf16.mxu0 0
    %2646 = vmatmul.mubr.bf16.gmra.mrb[0].mxu0 %v378
    %v2647 = vpop.f32.mrb[0].mxu0
    %v2648 = vadd.f32 0.0, %v2647
    %v2649 = vpop.f32.mrb[0].mxu0
    %v2650 = vpop.f32.mrb[0].mxu0
    %v2651 = vadd.f32 0.0, %v2650
    %v2652 = vpop.f32.mrb[0].mxu0
    %2653 = vdwg.mxu0
    %2654 = vmatprep.subr.bf16.mxu0 0
    %2655 = vmatpush1.bf16.xpose.msra.mxu0 %v398
    %2656 = vmatprep.subr.bf16.mxu0 0
    %2657 = vmatpush1.bf16.xpose.msra.mxu0 0
    %2658 = vmatprep.subr.bf16.mxu0 0
    %2659 = vmatpush1.bf16.xpose.msra.mxu0 0
    %2660 = vmatprep.subr.bf16.mxu0 0
    %2661 = vmatpush1.bf16.xpose.msra.mxu0 0
    %2662 = vmatprep.subr.bf16.mxu0 0
    %2663 = vmatpush1.bf16.xpose.msra.mxu0 0
    %2664 = vmatprep.subr.bf16.mxu0 0
    %2665 = vmatpush1.bf16.xpose.msra.mxu0 0
    %2666 = vmatprep.subr.bf16.mxu0 0
    %2667 = vmatpush1.bf16.xpose.msra.mxu0 0
    %2668 = vmatprep.subr.bf16.mxu0 0
    %2669 = vmatpush1.bf16.xpose.msra.mxu0 0
    %2670 = vmatprep.subr.bf16.mxu0 0
    %2671 = vmatpush1.bf16.xpose.msra.mxu0 0
    %2672 = vmatprep.subr.bf16.mxu0 0
    %2673 = vmatpush1.bf16.xpose.msra.mxu0 0
    %2674 = vmatprep.subr.bf16.mxu0 0
    %2675 = vmatpush1.bf16.xpose.msra.mxu0 0
    %2676 = vmatprep.subr.bf16.mxu0 0
    %2677 = vmatpush1.bf16.xpose.msra.mxu0 0
    %2678 = vmatprep.subr.bf16.mxu0 0
    %2679 = vmatpush1.bf16.xpose.msra.mxu0 0
    %2680 = vmatprep.subr.bf16.mxu0 0
    %2681 = vmatpush1.bf16.xpose.msra.mxu0 0
    %2682 = vmatprep.subr.bf16.mxu0 0
    %2683 = vmatpush1.bf16.xpose.msra.mxu0 0
    %2684 = vmatprep.subr.bf16.mxu0 0
    %2685 = vmatpush1.bf16.xpose.msra.mxu0 0
    %2686 = vmatprep.mubr.bf16.mxu0 0
    %2687 = vmatmul.mubr.bf16.gmra.mrb[0].mxu0 %v379
    %v2688 = vpop.f32.mrb[0].mxu0
    %v2689 = vadd.f32 0.0, %v2688
    %v2690 = vpop.f32.mrb[0].mxu0
    %v2691 = vpop.f32.mrb[0].mxu0
    %v2692 = vadd.f32 0.0, %v2691
    %v2693 = vpop.f32.mrb[0].mxu0
    %2694 = vmatprep.mubr.bf16.mxu0 0
    %2695 = vmatmul.mubr.bf16.gmra.mrb[0].mxu0 %v380
    %v2696 = vpop.f32.mrb[0].mxu0
    %v2697 = vadd.f32 0.0, %v2696
    %v2698 = vpop.f32.mrb[0].mxu0
    %v2699 = vpop.f32.mrb[0].mxu0
    %v2700 = vadd.f32 0.0, %v2699
    %v2701 = vpop.f32.mrb[0].mxu0
    %2702 = vdwg.mxu0
    %2703 = vmatprep.subr.bf16.mxu0 0
    %2704 = vmatpush1.bf16.xpose.msra.mxu0 %v399
    %2705 = vmatprep.subr.bf16.mxu0 0
    %2706 = vmatpush1.bf16.xpose.msra.mxu0 0
    %2707 = vmatprep.subr.bf16.mxu0 0
    %2708 = vmatpush1.bf16.xpose.msra.mxu0 0
    %2709 = vmatprep.subr.bf16.mxu0 0
    %2710 = vmatpush1.bf16.xpose.msra.mxu0 0
    %2711 = vmatprep.subr.bf16.mxu0 0
    %2712 = vmatpush1.bf16.xpose.msra.mxu0 0
    %2713 = vmatprep.subr.bf16.mxu0 0
    %2714 = vmatpush1.bf16.xpose.msra.mxu0 0
    %2715 = vmatprep.subr.bf16.mxu0 0
    %2716 = vmatpush1.bf16.xpose.msra.mxu0 0
    %2717 = vmatprep.subr.bf16.mxu0 0
    %2718 = vmatpush1.bf16.xpose.msra.mxu0 0
    %2719 = vmatprep.subr.bf16.mxu0 0
    %2720 = vmatpush1.bf16.xpose.msra.mxu0 0
    %2721 = vmatprep.subr.bf16.mxu0 0
    %2722 = vmatpush1.bf16.xpose.msra.mxu0 0
    %2723 = vmatprep.subr.bf16.mxu0 0
    %2724 = vmatpush1.bf16.xpose.msra.mxu0 0
    %2725 = vmatprep.subr.bf16.mxu0 0
    %2726 = vmatpush1.bf16.xpose.msra.mxu0 0
    %2727 = vmatprep.subr.bf16.mxu0 0
    %2728 = vmatpush1.bf16.xpose.msra.mxu0 0
    %2729 = vmatprep.subr.bf16.mxu0 0
    %2730 = vmatpush1.bf16.xpose.msra.mxu0 0
    %2731 = vmatprep.subr.bf16.mxu0 0
    %2732 = vmatpush1.bf16.xpose.msra.mxu0 0
    %2733 = vmatprep.subr.bf16.mxu0 0
    %2734 = vmatpush1.bf16.xpose.msra.mxu0 0
    %2735 = vmatprep.mubr.bf16.mxu0 0
    %2736 = vmatmul.mubr.bf16.gmra.mrb[0].mxu0 %v381
    %v2737 = vpop.f32.mrb[0].mxu0
    %v2738 = vadd.f32 0.0, %v2737
    %v2739 = vpop.f32.mrb[0].mxu0
    %v2740 = vpop.f32.mrb[0].mxu0
    %v2741 = vadd.f32 0.0, %v2740
    %v2742 = vpop.f32.mrb[0].mxu0
    %2743 = vmatprep.mubr.bf16.mxu0 0
    %2744 = vmatmul.mubr.bf16.gmra.mrb[0].mxu0 %v382
    %v2745 = vpop.f32.mrb[0].mxu0
    %v2746 = vadd.f32 0.0, %v2745
    %v2747 = vpop.f32.mrb[0].mxu0
    %v2748 = vpop.f32.mrb[0].mxu0
    %v2749 = vadd.f32 0.0, %v2748
    %v2750 = vpop.f32.mrb[0].mxu0
    %2751 = vdwg.mxu0
    %2752 = vmatprep.subr.bf16.mxu0 0
    %2753 = vmatpush1.bf16.xpose.msra.mxu0 %v400
    %2754 = vmatprep.subr.bf16.mxu0 0
    %2755 = vmatpush1.bf16.xpose.msra.mxu0 0
    %2756 = vmatprep.subr.bf16.mxu0 0
    %2757 = vmatpush1.bf16.xpose.msra.mxu0 0
    %2758 = vmatprep.subr.bf16.mxu0 0
    %2759 = vmatpush1.bf16.xpose.msra.mxu0 0
    %2760 = vmatprep.subr.bf16.mxu0 0
    %2761 = vmatpush1.bf16.xpose.msra.mxu0 0
    %2762 = vmatprep.subr.bf16.mxu0 0
    %2763 = vmatpush1.bf16.xpose.msra.mxu0 0
    %2764 = vmatprep.subr.bf16.mxu0 0
    %2765 = vmatpush1.bf16.xpose.msra.mxu0 0
    %2766 = vmatprep.subr.bf16.mxu0 0
    %2767 = vmatpush1.bf16.xpose.msra.mxu0 0
    %2768 = vmatprep.subr.bf16.mxu0 0
    %2769 = vmatpush1.bf16.xpose.msra.mxu0 0
    %2770 = vmatprep.subr.bf16.mxu0 0
    %2771 = vmatpush1.bf16.xpose.msra.mxu0 0
    %2772 = vmatprep.subr.bf16.mxu0 0
    %2773 = vmatpush1.bf16.xpose.msra.mxu0 0
    %2774 = vmatprep.subr.bf16.mxu0 0
    %2775 = vmatpush1.bf16.xpose.msra.mxu0 0
    %2776 = vmatprep.subr.bf16.mxu0 0
    %2777 = vmatpush1.bf16.xpose.msra.mxu0 0
    %2778 = vmatprep.subr.bf16.mxu0 0
    %2779 = vmatpush1.bf16.xpose.msra.mxu0 0
    %2780 = vmatprep.subr.bf16.mxu0 0
    %2781 = vmatpush1.bf16.xpose.msra.mxu0 0
    %2782 = vmatprep.subr.bf16.mxu0 0
    %2783 = vmatpush1.bf16.xpose.msra.mxu0 0
    %2784 = vmatprep.mubr.bf16.mxu0 0
    %2785 = vmatmul.mubr.bf16.gmra.mrb[0].mxu0 %v383
    %v2786 = vpop.f32.mrb[0].mxu0
    %v2787 = vadd.f32 0.0, %v2786
    %v2788 = vpop.f32.mrb[0].mxu0
    %v2789 = vpop.f32.mrb[0].mxu0
    %v2790 = vadd.f32 0.0, %v2789
    %v2791 = vpop.f32.mrb[0].mxu0
    %2792 = vmatprep.mubr.bf16.mxu0 0
    %2793 = vmatmul.mubr.bf16.gmra.mrb[0].mxu0 %v384
    %v2794 = vpop.f32.mrb[0].mxu0
    %v2795 = vadd.f32 0.0, %v2794
    %v2796 = vpop.f32.mrb[0].mxu0
    %v2797 = vpop.f32.mrb[0].mxu0
    %v2798 = vadd.f32 0.0, %v2797
    %v2799 = vpop.f32.mrb[0].mxu0
    %2800 = vdwg.mxu0
    %v2801 = vadd.f32 %v1268, %v2052
    %v2802 = vadd.f32 %v1271, %v2055
    %v2803 = vadd.f32 %v1276, %v2060
    %v2804 = vadd.f32 %v1279, %v2063
    %v2805 = vadd.f32 %v1317, %v2101
    %v2806 = vadd.f32 %v1320, %v2104
    %v2807 = vadd.f32 %v1325, %v2109
    %v2808 = vadd.f32 %v1328, %v2112
    %v2809 = vadd.f32 %v1366, %v2150
    %v2810 = vadd.f32 %v1369, %v2153
    %v2811 = vadd.f32 %v1374, %v2158
    %v2812 = vadd.f32 %v1377, %v2161
    %v2813 = vadd.f32 %v1415, %v2199
    %v2814 = vadd.f32 %v1418, %v2202
    %v2815 = vadd.f32 %v1423, %v2207
    %v2816 = vadd.f32 %v1426, %v2210
    %v2817 = vadd.f32 %v1464, %v2248
    %v2818 = vadd.f32 %v1467, %v2251
    %v2819 = vadd.f32 %v1472, %v2256
    %v2820 = vadd.f32 %v1475, %v2259
    %v2821 = vadd.f32 %v1513, %v2297
    %v2822 = vadd.f32 %v1516, %v2300
    %v2823 = vadd.f32 %v1521, %v2305
    %v2824 = vadd.f32 %v1524, %v2308
    %v2825 = vadd.f32 %v1562, %v2346
    %v2826 = vadd.f32 %v1565, %v2349
    %v2827 = vadd.f32 %v1570, %v2354
    %v2828 = vadd.f32 %v1573, %v2357
    %v2829 = vadd.f32 %v1611, %v2395
    %v2830 = vadd.f32 %v1614, %v2398
    %v2831 = vadd.f32 %v1619, %v2403
    %v2832 = vadd.f32 %v1622, %v2406
    %v2833 = vadd.f32 %v1660, %v2444
    %v2834 = vadd.f32 %v1663, %v2447
    %v2835 = vadd.f32 %v1668, %v2452
    %v2836 = vadd.f32 %v1671, %v2455
    %v2837 = vadd.f32 %v1709, %v2493
    %v2838 = vadd.f32 %v1712, %v2496
    %v2839 = vadd.f32 %v1717, %v2501
    %v2840 = vadd.f32 %v1720, %v2504
    %v2841 = vadd.f32 %v1758, %v2542
    %v2842 = vadd.f32 %v1761, %v2545
    %v2843 = vadd.f32 %v1766, %v2550
    %v2844 = vadd.f32 %v1769, %v2553
    %v2845 = vadd.f32 %v1807, %v2591
    %v2846 = vadd.f32 %v1810, %v2594
    %v2847 = vadd.f32 %v1815, %v2599
    %v2848 = vadd.f32 %v1818, %v2602
    %v2849 = vadd.f32 %v1856, %v2640
    %v2850 = vadd.f32 %v1859, %v2643
    %v2851 = vadd.f32 %v1864, %v2648
    %v2852 = vadd.f32 %v1867, %v2651
    %v2853 = vadd.f32 %v1905, %v2689
    %v2854 = vadd.f32 %v1908, %v2692
    %v2855 = vadd.f32 %v1913, %v2697
    %v2856 = vadd.f32 %v1916, %v2700
    %v2857 = vadd.f32 %v1954, %v2738
    %v2858 = vadd.f32 %v1957, %v2741
    %v2859 = vadd.f32 %v1962, %v2746
    %v2860 = vadd.f32 %v1965, %v2749
    %v2861 = vadd.f32 %v2003, %v2787
    %v2862 = vadd.f32 %v2006, %v2790
    %v2863 = vadd.f32 %v2011, %v2795
    %v2864 = vadd.f32 %v2014, %v2798
    %v2865 = vld [vmem:[%s3] sm:$0x3]
    %v2866 = vld [vmem:[%s3 + $0x2] sm:$0x3]
    %v2867 = vld [vmem:[%s3 + $0x4] sm:$0x3]
    %v2868 = vld [vmem:[%s3 + $0x6] sm:$0x3]
    %v2869 = vld [vmem:[%s3 + $0x8] sm:$0x3]
    %v2870 = vld [vmem:[%s3 + $0xa] sm:$0x3]
    %v2871 = vld [vmem:[%s3 + $0xc] sm:$0x3]
    %v2872 = vld [vmem:[%s3 + $0xe] sm:$0x3]
    %v2873 = vld [vmem:[%s3 + $0x10] sm:$0x3]
    %v2874 = vld [vmem:[%s3 + $0x12] sm:$0x3]
    %v2875 = vld [vmem:[%s3 + $0x14] sm:$0x3]
    %v2876 = vld [vmem:[%s3 + $0x16] sm:$0x3]
    %v2877 = vld [vmem:[%s3 + $0x18] sm:$0x3]
    %v2878 = vld [vmem:[%s3 + $0x1a] sm:$0x3]
    %v2879 = vld [vmem:[%s3 + $0x1c] sm:$0x3]
    %v2880 = vld [vmem:[%s3 + $0x1e] sm:$0x3]
    %v2881 = vld [vmem:[%s3 + $0x20] sm:$0x3]
    %v2882 = vld [vmem:[%s3 + $0x22] sm:$0x3]
    %v2883 = vld [vmem:[%s3 + $0x24] sm:$0x3]
    %v2884 = vld [vmem:[%s3 + $0x26] sm:$0x3]
    %v2885 = vld [vmem:[%s3 + $0x28] sm:$0x3]
    %v2886 = vld [vmem:[%s3 + $0x2a] sm:$0x3]
    %v2887 = vld [vmem:[%s3 + $0x2c] sm:$0x3]
    %v2888 = vld [vmem:[%s3 + $0x2e] sm:$0x3]
    %v2889 = vld [vmem:[%s3 + $0x30] sm:$0x3]
    %v2890 = vld [vmem:[%s3 + $0x32] sm:$0x3]
    %v2891 = vld [vmem:[%s3 + $0x34] sm:$0x3]
    %v2892 = vld [vmem:[%s3 + $0x36] sm:$0x3]
    %v2893 = vld [vmem:[%s3 + $0x38] sm:$0x3]
    %v2894 = vld [vmem:[%s3 + $0x3a] sm:$0x3]
    %v2895 = vld [vmem:[%s3 + $0x3c] sm:$0x3]
    %v2896 = vld [vmem:[%s3 + $0x3e] sm:$0x3]
    %v2897 = vld [vmem:[%s3 + $0x40] sm:$0x3]
    %v2898 = vld [vmem:[%s3 + $0x42] sm:$0x3]
    %v2899 = vld [vmem:[%s3 + $0x44] sm:$0x3]
    %v2900 = vld [vmem:[%s3 + $0x46] sm:$0x3]
    %v2901 = vld [vmem:[%s3 + $0x48] sm:$0x3]
    %v2902 = vld [vmem:[%s3 + $0x4a] sm:$0x3]
    %v2903 = vld [vmem:[%s3 + $0x4c] sm:$0x3]
    %v2904 = vld [vmem:[%s3 + $0x4e] sm:$0x3]
    %v2905 = vld [vmem:[%s3 + $0x50] sm:$0x3]
    %v2906 = vld [vmem:[%s3 + $0x52] sm:$0x3]
    %v2907 = vld [vmem:[%s3 + $0x54] sm:$0x3]
    %v2908 = vld [vmem:[%s3 + $0x56] sm:$0x3]
    %v2909 = vld [vmem:[%s3 + $0x58] sm:$0x3]
    %v2910 = vld [vmem:[%s3 + $0x5a] sm:$0x3]
    %v2911 = vld [vmem:[%s3 + $0x5c] sm:$0x3]
    %v2912 = vld [vmem:[%s3 + $0x5e] sm:$0x3]
    %v2913 = vld [vmem:[%s3 + $0x60] sm:$0x3]
    %v2914 = vld [vmem:[%s3 + $0x62] sm:$0x3]
    %v2915 = vld [vmem:[%s3 + $0x64] sm:$0x3]
    %v2916 = vld [vmem:[%s3 + $0x66] sm:$0x3]
    %v2917 = vld [vmem:[%s3 + $0x68] sm:$0x3]
    %v2918 = vld [vmem:[%s3 + $0x6a] sm:$0x3]
    %v2919 = vld [vmem:[%s3 + $0x6c] sm:$0x3]
    %v2920 = vld [vmem:[%s3 + $0x6e] sm:$0x3]
    %v2921 = vld [vmem:[%s3 + $0x70] sm:$0x3]
    %v2922 = vld [vmem:[%s3 + $0x72] sm:$0x3]
    %v2923 = vld [vmem:[%s3 + $0x74] sm:$0x3]
    %v2924 = vld [vmem:[%s3 + $0x76] sm:$0x3]
    %v2925 = vld [vmem:[%s3 + $0x78] sm:$0x3]
    %v2926 = vld [vmem:[%s3 + $0x7a] sm:$0x3]
    %v2927 = vld [vmem:[%s3 + $0x7c] sm:$0x3]
    %v2928 = vld [vmem:[%s3 + $0x7e] sm:$0x3]
    %v2929 = vunpack.c.0.s8 %v2865
    %v2930 = vunpack.c.0.s8 %v2866
    %v2931 = vunpack.c.0.s8 %v2867
    %v2932 = vunpack.c.0.s8 %v2868
    %v2933 = vunpack.c.0.s8 %v2869
    %v2934 = vunpack.c.0.s8 %v2870
    %v2935 = vunpack.c.0.s8 %v2871
    %v2936 = vunpack.c.0.s8 %v2872
    %v2937 = vunpack.c.0.s8 %v2873
    %v2938 = vunpack.c.0.s8 %v2874
    %v2939 = vunpack.c.0.s8 %v2875
    %v2940 = vunpack.c.0.s8 %v2876
    %v2941 = vunpack.c.0.s8 %v2877
    %v2942 = vunpack.c.0.s8 %v2878
    %v2943 = vunpack.c.0.s8 %v2879
    %v2944 = vunpack.c.0.s8 %v2880
    %v2945 = vunpack.c.0.s8 %v2881
    %v2946 = vunpack.c.0.s8 %v2882
    %v2947 = vunpack.c.0.s8 %v2883
    %v2948 = vunpack.c.0.s8 %v2884
    %v2949 = vunpack.c.0.s8 %v2885
    %v2950 = vunpack.c.0.s8 %v2886
    %v2951 = vunpack.c.0.s8 %v2887
    %v2952 = vunpack.c.0.s8 %v2888
    %v2953 = vunpack.c.0.s8 %v2889
    %v2954 = vunpack.c.0.s8 %v2890
    %v2955 = vunpack.c.0.s8 %v2891
    %v2956 = vunpack.c.0.s8 %v2892
    %v2957 = vunpack.c.0.s8 %v2893
    %v2958 = vunpack.c.0.s8 %v2894
    %v2959 = vunpack.c.0.s8 %v2895
    %v2960 = vunpack.c.0.s8 %v2896
    %v2961 = vunpack.c.0.s8 %v2897
    %v2962 = vunpack.c.0.s8 %v2898
    %v2963 = vunpack.c.0.s8 %v2899
    %v2964 = vunpack.c.0.s8 %v2900
    %v2965 = vunpack.c.0.s8 %v2901
    %v2966 = vunpack.c.0.s8 %v2902
    %v2967 = vunpack.c.0.s8 %v2903
    %v2968 = vunpack.c.0.s8 %v2904
    %v2969 = vunpack.c.0.s8 %v2905
    %v2970 = vunpack.c.0.s8 %v2906
    %v2971 = vunpack.c.0.s8 %v2907
    %v2972 = vunpack.c.0.s8 %v2908
    %v2973 = vunpack.c.0.s8 %v2909
    %v2974 = vunpack.c.0.s8 %v2910
    %v2975 = vunpack.c.0.s8 %v2911
    %v2976 = vunpack.c.0.s8 %v2912
    %v2977 = vunpack.c.0.s8 %v2913
    %v2978 = vunpack.c.0.s8 %v2914
    %v2979 = vunpack.c.0.s8 %v2915
    %v2980 = vunpack.c.0.s8 %v2916
    %v2981 = vunpack.c.0.s8 %v2917
    %v2982 = vunpack.c.0.s8 %v2918
    %v2983 = vunpack.c.0.s8 %v2919
    %v2984 = vunpack.c.0.s8 %v2920
    %v2985 = vunpack.c.0.s8 %v2921
    %v2986 = vunpack.c.0.s8 %v2922
    %v2987 = vunpack.c.0.s8 %v2923
    %v2988 = vunpack.c.0.s8 %v2924
    %v2989 = vunpack.c.0.s8 %v2925
    %v2990 = vunpack.c.0.s8 %v2926
    %v2991 = vunpack.c.0.s8 %v2927
    %v2992 = vunpack.c.0.s8 %v2928
    %vm2993 = vcmp.ne.s32.totalorder %v2929, 0
    %vm2994 = vcmp.ne.s32.totalorder %v2930, 0
    %vm2995 = vcmp.ne.s32.totalorder %v2931, 0
    %vm2996 = vcmp.ne.s32.totalorder %v2932, 0
    %vm2997 = vcmp.ne.s32.totalorder %v2933, 0
    %vm2998 = vcmp.ne.s32.totalorder %v2934, 0
    %vm2999 = vcmp.ne.s32.totalorder %v2935, 0
    %vm3000 = vcmp.ne.s32.totalorder %v2936, 0
    %vm3001 = vcmp.ne.s32.totalorder %v2937, 0
    %vm3002 = vcmp.ne.s32.totalorder %v2938, 0
    %vm3003 = vcmp.ne.s32.totalorder %v2939, 0
    %vm3004 = vcmp.ne.s32.totalorder %v2940, 0
    %vm3005 = vcmp.ne.s32.totalorder %v2941, 0
    %vm3006 = vcmp.ne.s32.totalorder %v2942, 0
    %vm3007 = vcmp.ne.s32.totalorder %v2943, 0
    %vm3008 = vcmp.ne.s32.totalorder %v2944, 0
    %vm3009 = vcmp.ne.s32.totalorder %v2945, 0
    %vm3010 = vcmp.ne.s32.totalorder %v2946, 0
    %vm3011 = vcmp.ne.s32.totalorder %v2947, 0
    %vm3012 = vcmp.ne.s32.totalorder %v2948, 0
    %vm3013 = vcmp.ne.s32.totalorder %v2949, 0
    %vm3014 = vcmp.ne.s32.totalorder %v2950, 0
    %vm3015 = vcmp.ne.s32.totalorder %v2951, 0
    %vm3016 = vcmp.ne.s32.totalorder %v2952, 0
    %vm3017 = vcmp.ne.s32.totalorder %v2953, 0
    %vm3018 = vcmp.ne.s32.totalorder %v2954, 0
    %vm3019 = vcmp.ne.s32.totalorder %v2955, 0
    %vm3020 = vcmp.ne.s32.totalorder %v2956, 0
    %vm3021 = vcmp.ne.s32.totalorder %v2957, 0
    %vm3022 = vcmp.ne.s32.totalorder %v2958, 0
    %vm3023 = vcmp.ne.s32.totalorder %v2959, 0
    %vm3024 = vcmp.ne.s32.totalorder %v2960, 0
    %vm3025 = vcmp.ne.s32.totalorder %v2961, 0
    %vm3026 = vcmp.ne.s32.totalorder %v2962, 0
    %vm3027 = vcmp.ne.s32.totalorder %v2963, 0
    %vm3028 = vcmp.ne.s32.totalorder %v2964, 0
    %vm3029 = vcmp.ne.s32.totalorder %v2965, 0
    %vm3030 = vcmp.ne.s32.totalorder %v2966, 0
    %vm3031 = vcmp.ne.s32.totalorder %v2967, 0
    %vm3032 = vcmp.ne.s32.totalorder %v2968, 0
    %vm3033 = vcmp.ne.s32.totalorder %v2969, 0
    %vm3034 = vcmp.ne.s32.totalorder %v2970, 0
    %vm3035 = vcmp.ne.s32.totalorder %v2971, 0
    %vm3036 = vcmp.ne.s32.totalorder %v2972, 0
    %vm3037 = vcmp.ne.s32.totalorder %v2973, 0
    %vm3038 = vcmp.ne.s32.totalorder %v2974, 0
    %vm3039 = vcmp.ne.s32.totalorder %v2975, 0
    %vm3040 = vcmp.ne.s32.totalorder %v2976, 0
    %vm3041 = vcmp.ne.s32.totalorder %v2977, 0
    %vm3042 = vcmp.ne.s32.totalorder %v2978, 0
    %vm3043 = vcmp.ne.s32.totalorder %v2979, 0
    %vm3044 = vcmp.ne.s32.totalorder %v2980, 0
    %vm3045 = vcmp.ne.s32.totalorder %v2981, 0
    %vm3046 = vcmp.ne.s32.totalorder %v2982, 0
    %vm3047 = vcmp.ne.s32.totalorder %v2983, 0
    %vm3048 = vcmp.ne.s32.totalorder %v2984, 0
    %vm3049 = vcmp.ne.s32.totalorder %v2985, 0
    %vm3050 = vcmp.ne.s32.totalorder %v2986, 0
    %vm3051 = vcmp.ne.s32.totalorder %v2987, 0
    %vm3052 = vcmp.ne.s32.totalorder %v2988, 0
    %vm3053 = vcmp.ne.s32.totalorder %v2989, 0
    %vm3054 = vcmp.ne.s32.totalorder %v2990, 0
    %vm3055 = vcmp.ne.s32.totalorder %v2991, 0
    %vm3056 = vcmp.ne.s32.totalorder %v2992, 0
    %v3057 = vsel %vm2993, -1e+09, %v2801
    %v3058 = vsel %vm2994, -1e+09, %v2802
    %v3059 = vsel %vm2995, -1e+09, %v2803
    %v3060 = vsel %vm2996, -1e+09, %v2804
    %v3061 = vsel %vm2997, -1e+09, %v2805
    %v3062 = vsel %vm2998, -1e+09, %v2806
    %v3063 = vsel %vm2999, -1e+09, %v2807
    %v3064 = vsel %vm3000, -1e+09, %v2808
    %v3065 = vsel %vm3001, -1e+09, %v2809
    %v3066 = vsel %vm3002, -1e+09, %v2810
    %v3067 = vsel %vm3003, -1e+09, %v2811
    %v3068 = vsel %vm3004, -1e+09, %v2812
    %v3069 = vsel %vm3005, -1e+09, %v2813
    %v3070 = vsel %vm3006, -1e+09, %v2814
    %v3071 = vsel %vm3007, -1e+09, %v2815
    %v3072 = vsel %vm3008, -1e+09, %v2816
    %v3073 = vsel %vm3009, -1e+09, %v2817
    %v3074 = vsel %vm3010, -1e+09, %v2818
    %v3075 = vsel %vm3011, -1e+09, %v2819
    %v3076 = vsel %vm3012, -1e+09, %v2820
    %v3077 = vsel %vm3013, -1e+09, %v2821
    %v3078 = vsel %vm3014, -1e+09, %v2822
    %v3079 = vsel %vm3015, -1e+09, %v2823
    %v3080 = vsel %vm3016, -1e+09, %v2824
    %v3081 = vsel %vm3017, -1e+09, %v2825
    %v3082 = vsel %vm3018, -1e+09, %v2826
    %v3083 = vsel %vm3019, -1e+09, %v2827
    %v3084 = vsel %vm3020, -1e+09, %v2828
    %v3085 = vsel %vm3021, -1e+09, %v2829
    %v3086 = vsel %vm3022, -1e+09, %v2830
    %v3087 = vsel %vm3023, -1e+09, %v2831
    %v3088 = vsel %vm3024, -1e+09, %v2832
    %v3089 = vsel %vm3025, -1e+09, %v2833
    %v3090 = vsel %vm3026, -1e+09, %v2834
    %v3091 = vsel %vm3027, -1e+09, %v2835
    %v3092 = vsel %vm3028, -1e+09, %v2836
    %v3093 = vsel %vm3029, -1e+09, %v2837
    %v3094 = vsel %vm3030, -1e+09, %v2838
    %v3095 = vsel %vm3031, -1e+09, %v2839
    %v3096 = vsel %vm3032, -1e+09, %v2840
    %v3097 = vsel %vm3033, -1e+09, %v2841
    %v3098 = vsel %vm3034, -1e+09, %v2842
    %v3099 = vsel %vm3035, -1e+09, %v2843
    %v3100 = vsel %vm3036, -1e+09, %v2844
    %v3101 = vsel %vm3037, -1e+09, %v2845
    %v3102 = vsel %vm3038, -1e+09, %v2846
    %v3103 = vsel %vm3039, -1e+09, %v2847
    %v3104 = vsel %vm3040, -1e+09, %v2848
    %v3105 = vsel %vm3041, -1e+09, %v2849
    %v3106 = vsel %vm3042, -1e+09, %v2850
    %v3107 = vsel %vm3043, -1e+09, %v2851
    %v3108 = vsel %vm3044, -1e+09, %v2852
    %v3109 = vsel %vm3045, -1e+09, %v2853
    %v3110 = vsel %vm3046, -1e+09, %v2854
    %v3111 = vsel %vm3047, -1e+09, %v2855
    %v3112 = vsel %vm3048, -1e+09, %v2856
    %v3113 = vsel %vm3049, -1e+09, %v2857
    %v3114 = vsel %vm3050, -1e+09, %v2858
    %v3115 = vsel %vm3051, -1e+09, %v2859
    %v3116 = vsel %vm3052, -1e+09, %v2860
    %v3117 = vsel %vm3053, -1e+09, %v2861
    %v3118 = vsel %vm3054, -1e+09, %v2862
    %v3119 = vsel %vm3055, -1e+09, %v2863
    %v3120 = vsel %vm3056, -1e+09, %v2864
    %vm3121 = vcmask 64512
    %v3122 = vsel %vm3121, %v3057, -inf
    %3123 = vmax.xlane.f32.xlu0 %v3122
    %v3124 = vpop.xlane.xlu0 %3123
    %v3125 = vsel %vm3121, %v3058, -inf
    %3126 = vmax.xlane.f32.xlu0 %v3125
    %v3127 = vpop.xlane.xlu0 %3126
    %v3128 = vsel %vm3121, %v3059, -inf
    %3129 = vmax.xlane.f32.xlu0 %v3128
    %v3130 = vpop.xlane.xlu0 %3129
    %v3131 = vsel %vm3121, %v3060, -inf
    %3132 = vmax.xlane.f32.xlu0 %v3131
    %v3133 = vpop.xlane.xlu0 %3132
    %v3134 = vsel %vm3121, %v3061, -inf
    %3135 = vmax.xlane.f32.xlu0 %v3134
    %v3136 = vpop.xlane.xlu0 %3135
    %v3137 = vsel %vm3121, %v3062, -inf
    %3138 = vmax.xlane.f32.xlu0 %v3137
    %v3139 = vpop.xlane.xlu0 %3138
    %v3140 = vsel %vm3121, %v3063, -inf
    %3141 = vmax.xlane.f32.xlu0 %v3140
    %v3142 = vpop.xlane.xlu0 %3141
    %v3143 = vsel %vm3121, %v3064, -inf
    %3144 = vmax.xlane.f32.xlu0 %v3143
    %v3145 = vpop.xlane.xlu0 %3144
    %v3146 = vsel %vm3121, %v3065, -inf
    %3147 = vmax.xlane.f32.xlu0 %v3146
    %v3148 = vpop.xlane.xlu0 %3147
    %v3149 = vsel %vm3121, %v3066, -inf
    %3150 = vmax.xlane.f32.xlu0 %v3149
    %v3151 = vpop.xlane.xlu0 %3150
    %v3152 = vsel %vm3121, %v3067, -inf
    %3153 = vmax.xlane.f32.xlu0 %v3152
    %v3154 = vpop.xlane.xlu0 %3153
    %v3155 = vsel %vm3121, %v3068, -inf
    %3156 = vmax.xlane.f32.xlu0 %v3155
    %v3157 = vpop.xlane.xlu0 %3156
    %v3158 = vsel %vm3121, %v3069, -inf
    %3159 = vmax.xlane.f32.xlu0 %v3158
    %v3160 = vpop.xlane.xlu0 %3159
    %v3161 = vsel %vm3121, %v3070, -inf
    %3162 = vmax.xlane.f32.xlu0 %v3161
    %v3163 = vpop.xlane.xlu0 %3162
    %v3164 = vsel %vm3121, %v3071, -inf
    %3165 = vmax.xlane.f32.xlu0 %v3164
    %v3166 = vpop.xlane.xlu0 %3165
    %v3167 = vsel %vm3121, %v3072, -inf
    %3168 = vmax.xlane.f32.xlu0 %v3167
    %v3169 = vpop.xlane.xlu0 %3168
    %v3170 = vsel %vm3121, %v3073, -inf
    %3171 = vmax.xlane.f32.xlu0 %v3170
    %v3172 = vpop.xlane.xlu0 %3171
    %v3173 = vsel %vm3121, %v3074, -inf
    %3174 = vmax.xlane.f32.xlu0 %v3173
    %v3175 = vpop.xlane.xlu0 %3174
    %v3176 = vsel %vm3121, %v3075, -inf
    %3177 = vmax.xlane.f32.xlu0 %v3176
    %v3178 = vpop.xlane.xlu0 %3177
    %v3179 = vsel %vm3121, %v3076, -inf
    %3180 = vmax.xlane.f32.xlu0 %v3179
    %v3181 = vpop.xlane.xlu0 %3180
    %v3182 = vsel %vm3121, %v3077, -inf
    %3183 = vmax.xlane.f32.xlu0 %v3182
    %v3184 = vpop.xlane.xlu0 %3183
    %v3185 = vsel %vm3121, %v3078, -inf
    %3186 = vmax.xlane.f32.xlu0 %v3185
    %v3187 = vpop.xlane.xlu0 %3186
    %v3188 = vsel %vm3121, %v3079, -inf
    %3189 = vmax.xlane.f32.xlu0 %v3188
    %v3190 = vpop.xlane.xlu0 %3189
    %v3191 = vsel %vm3121, %v3080, -inf
    %3192 = vmax.xlane.f32.xlu0 %v3191
    %v3193 = vpop.xlane.xlu0 %3192
    %v3194 = vsel %vm3121, %v3081, -inf
    %3195 = vmax.xlane.f32.xlu0 %v3194
    %v3196 = vpop.xlane.xlu0 %3195
    %v3197 = vsel %vm3121, %v3082, -inf
    %3198 = vmax.xlane.f32.xlu0 %v3197
    %v3199 = vpop.xlane.xlu0 %3198
    %v3200 = vsel %vm3121, %v3083, -inf
    %3201 = vmax.xlane.f32.xlu0 %v3200
    %v3202 = vpop.xlane.xlu0 %3201
    %v3203 = vsel %vm3121, %v3084, -inf
    %3204 = vmax.xlane.f32.xlu0 %v3203
    %v3205 = vpop.xlane.xlu0 %3204
    %v3206 = vsel %vm3121, %v3085, -inf
    %3207 = vmax.xlane.f32.xlu0 %v3206
    %v3208 = vpop.xlane.xlu0 %3207
    %v3209 = vsel %vm3121, %v3086, -inf
    %3210 = vmax.xlane.f32.xlu0 %v3209
    %v3211 = vpop.xlane.xlu0 %3210
    %v3212 = vsel %vm3121, %v3087, -inf
    %3213 = vmax.xlane.f32.xlu0 %v3212
    %v3214 = vpop.xlane.xlu0 %3213
    %v3215 = vsel %vm3121, %v3088, -inf
    %3216 = vmax.xlane.f32.xlu0 %v3215
    %v3217 = vpop.xlane.xlu0 %3216
    %v3218 = vsel %vm3121, %v3089, -inf
    %3219 = vmax.xlane.f32.xlu0 %v3218
    %v3220 = vpop.xlane.xlu0 %3219
    %v3221 = vsel %vm3121, %v3090, -inf
    %3222 = vmax.xlane.f32.xlu0 %v3221
    %v3223 = vpop.xlane.xlu0 %3222
    %v3224 = vsel %vm3121, %v3091, -inf
    %3225 = vmax.xlane.f32.xlu0 %v3224
    %v3226 = vpop.xlane.xlu0 %3225
    %v3227 = vsel %vm3121, %v3092, -inf
    %3228 = vmax.xlane.f32.xlu0 %v3227
    %v3229 = vpop.xlane.xlu0 %3228
    %v3230 = vsel %vm3121, %v3093, -inf
    %3231 = vmax.xlane.f32.xlu0 %v3230
    %v3232 = vpop.xlane.xlu0 %3231
    %v3233 = vsel %vm3121, %v3094, -inf
    %3234 = vmax.xlane.f32.xlu0 %v3233
    %v3235 = vpop.xlane.xlu0 %3234
    %v3236 = vsel %vm3121, %v3095, -inf
    %3237 = vmax.xlane.f32.xlu0 %v3236
    %v3238 = vpop.xlane.xlu0 %3237
    %v3239 = vsel %vm3121, %v3096, -inf
    %3240 = vmax.xlane.f32.xlu0 %v3239
    %v3241 = vpop.xlane.xlu0 %3240
    %v3242 = vsel %vm3121, %v3097, -inf
    %3243 = vmax.xlane.f32.xlu0 %v3242
    %v3244 = vpop.xlane.xlu0 %3243
    %v3245 = vsel %vm3121, %v3098, -inf
    %3246 = vmax.xlane.f32.xlu0 %v3245
    %v3247 = vpop.xlane.xlu0 %3246
    %v3248 = vsel %vm3121, %v3099, -inf
    %3249 = vmax.xlane.f32.xlu0 %v3248
    %v3250 = vpop.xlane.xlu0 %3249
    %v3251 = vsel %vm3121, %v3100, -inf
    %3252 = vmax.xlane.f32.xlu0 %v3251
    %v3253 = vpop.xlane.xlu0 %3252
    %v3254 = vsel %vm3121, %v3101, -inf
    %3255 = vmax.xlane.f32.xlu0 %v3254
    %v3256 = vpop.xlane.xlu0 %3255
    %v3257 = vsel %vm3121, %v3102, -inf
    %3258 = vmax.xlane.f32.xlu0 %v3257
    %v3259 = vpop.xlane.xlu0 %3258
    %v3260 = vsel %vm3121, %v3103, -inf
    %3261 = vmax.xlane.f32.xlu0 %v3260
    %v3262 = vpop.xlane.xlu0 %3261
    %v3263 = vsel %vm3121, %v3104, -inf
    %3264 = vmax.xlane.f32.xlu0 %v3263
    %v3265 = vpop.xlane.xlu0 %3264
    %v3266 = vsel %vm3121, %v3105, -inf
    %3267 = vmax.xlane.f32.xlu0 %v3266
    %v3268 = vpop.xlane.xlu0 %3267
    %v3269 = vsel %vm3121, %v3106, -inf
    %3270 = vmax.xlane.f32.xlu0 %v3269
    %v3271 = vpop.xlane.xlu0 %3270
    %v3272 = vsel %vm3121, %v3107, -inf
    %3273 = vmax.xlane.f32.xlu0 %v3272
    %v3274 = vpop.xlane.xlu0 %3273
    %v3275 = vsel %vm3121, %v3108, -inf
    %3276 = vmax.xlane.f32.xlu0 %v3275
    %v3277 = vpop.xlane.xlu0 %3276
    %v3278 = vsel %vm3121, %v3109, -inf
    %3279 = vmax.xlane.f32.xlu0 %v3278
    %v3280 = vpop.xlane.xlu0 %3279
    %v3281 = vsel %vm3121, %v3110, -inf
    %3282 = vmax.xlane.f32.xlu0 %v3281
    %v3283 = vpop.xlane.xlu0 %3282
    %v3284 = vsel %vm3121, %v3111, -inf
    %3285 = vmax.xlane.f32.xlu0 %v3284
    %v3286 = vpop.xlane.xlu0 %3285
    %v3287 = vsel %vm3121, %v3112, -inf
    %3288 = vmax.xlane.f32.xlu0 %v3287
    %v3289 = vpop.xlane.xlu0 %3288
    %v3290 = vsel %vm3121, %v3113, -inf
    %3291 = vmax.xlane.f32.xlu0 %v3290
    %v3292 = vpop.xlane.xlu0 %3291
    %v3293 = vsel %vm3121, %v3114, -inf
    %3294 = vmax.xlane.f32.xlu0 %v3293
    %v3295 = vpop.xlane.xlu0 %3294
    %v3296 = vsel %vm3121, %v3115, -inf
    %3297 = vmax.xlane.f32.xlu0 %v3296
    %v3298 = vpop.xlane.xlu0 %3297
    %v3299 = vsel %vm3121, %v3116, -inf
    %3300 = vmax.xlane.f32.xlu0 %v3299
    %v3301 = vpop.xlane.xlu0 %3300
    %v3302 = vsel %vm3121, %v3117, -inf
    %3303 = vmax.xlane.f32.xlu0 %v3302
    %v3304 = vpop.xlane.xlu0 %3303
    %v3305 = vsel %vm3121, %v3118, -inf
    %3306 = vmax.xlane.f32.xlu0 %v3305
    %v3307 = vpop.xlane.xlu0 %3306
    %v3308 = vsel %vm3121, %v3119, -inf
    %3309 = vmax.xlane.f32.xlu0 %v3308
    %v3310 = vpop.xlane.xlu0 %3309
    %v3311 = vsel %vm3121, %v3120, -inf
    %3312 = vmax.xlane.f32.xlu0 %v3311
    %v3313 = vpop.xlane.xlu0 %3312
    %v3314 = vsub.f32 %v3057, %v3124
    %v3315 = vsub.f32 %v3058, %v3127
    %v3316 = vsub.f32 %v3059, %v3130
    %v3317 = vsub.f32 %v3060, %v3133
    %v3318 = vsub.f32 %v3061, %v3136
    %v3319 = vsub.f32 %v3062, %v3139
    %v3320 = vsub.f32 %v3063, %v3142
    %v3321 = vsub.f32 %v3064, %v3145
    %v3322 = vsub.f32 %v3065, %v3148
    %v3323 = vsub.f32 %v3066, %v3151
    %v3324 = vsub.f32 %v3067, %v3154
    %v3325 = vsub.f32 %v3068, %v3157
    %v3326 = vsub.f32 %v3069, %v3160
    %v3327 = vsub.f32 %v3070, %v3163
    %v3328 = vsub.f32 %v3071, %v3166
    %v3329 = vsub.f32 %v3072, %v3169
    %v3330 = vsub.f32 %v3073, %v3172
    %v3331 = vsub.f32 %v3074, %v3175
    %v3332 = vsub.f32 %v3075, %v3178
    %v3333 = vsub.f32 %v3076, %v3181
    %v3334 = vsub.f32 %v3077, %v3184
    %v3335 = vsub.f32 %v3078, %v3187
    %v3336 = vsub.f32 %v3079, %v3190
    %v3337 = vsub.f32 %v3080, %v3193
    %v3338 = vsub.f32 %v3081, %v3196
    %v3339 = vsub.f32 %v3082, %v3199
    %v3340 = vsub.f32 %v3083, %v3202
    %v3341 = vsub.f32 %v3084, %v3205
    %v3342 = vsub.f32 %v3085, %v3208
    %v3343 = vsub.f32 %v3086, %v3211
    %v3344 = vsub.f32 %v3087, %v3214
    %v3345 = vsub.f32 %v3088, %v3217
    %v3346 = vsub.f32 %v3089, %v3220
    %v3347 = vsub.f32 %v3090, %v3223
    %v3348 = vsub.f32 %v3091, %v3226
    %v3349 = vsub.f32 %v3092, %v3229
    %v3350 = vsub.f32 %v3093, %v3232
    %v3351 = vsub.f32 %v3094, %v3235
    %v3352 = vsub.f32 %v3095, %v3238
    %v3353 = vsub.f32 %v3096, %v3241
    %v3354 = vsub.f32 %v3097, %v3244
    %v3355 = vsub.f32 %v3098, %v3247
    %v3356 = vsub.f32 %v3099, %v3250
    %v3357 = vsub.f32 %v3100, %v3253
    %v3358 = vsub.f32 %v3101, %v3256
    %v3359 = vsub.f32 %v3102, %v3259
    %v3360 = vsub.f32 %v3103, %v3262
    %v3361 = vsub.f32 %v3104, %v3265
    %v3362 = vsub.f32 %v3105, %v3268
    %v3363 = vsub.f32 %v3106, %v3271
    %v3364 = vsub.f32 %v3107, %v3274
    %v3365 = vsub.f32 %v3108, %v3277
    %v3366 = vsub.f32 %v3109, %v3280
    %v3367 = vsub.f32 %v3110, %v3283
    %v3368 = vsub.f32 %v3111, %v3286
    %v3369 = vsub.f32 %v3112, %v3289
    %v3370 = vsub.f32 %v3113, %v3292
    %v3371 = vsub.f32 %v3114, %v3295
    %v3372 = vsub.f32 %v3115, %v3298
    %v3373 = vsub.f32 %v3116, %v3301
    %v3374 = vsub.f32 %v3117, %v3304
    %v3375 = vsub.f32 %v3118, %v3307
    %v3376 = vsub.f32 %v3119, %v3310
    %v3377 = vsub.f32 %v3120, %v3313
    %v3378 = vmul.f32 %v3314, 1.442695
    %v3379 = vpow.pop %v3378
    %v3380 = vmul.f32 %v3315, 1.442695
    %v3381 = vpow.pop %v3380
    %v3382 = vmul.f32 %v3316, 1.442695
    %v3383 = vpow.pop %v3382
    %v3384 = vmul.f32 %v3317, 1.442695
    %v3385 = vpow.pop %v3384
    %v3386 = vmul.f32 %v3318, 1.442695
    %v3387 = vpow.pop %v3386
    %v3388 = vmul.f32 %v3319, 1.442695
    %v3389 = vpow.pop %v3388
    %v3390 = vmul.f32 %v3320, 1.442695
    %v3391 = vpow.pop %v3390
    %v3392 = vmul.f32 %v3321, 1.442695
    %v3393 = vpow.pop %v3392
    %v3394 = vmul.f32 %v3322, 1.442695
    %v3395 = vpow.pop %v3394
    %v3396 = vmul.f32 %v3323, 1.442695
    %v3397 = vpow.pop %v3396
    %v3398 = vmul.f32 %v3324, 1.442695
    %v3399 = vpow.pop %v3398
    %v3400 = vmul.f32 %v3325, 1.442695
    %v3401 = vpow.pop %v3400
    %v3402 = vmul.f32 %v3326, 1.442695
    %v3403 = vpow.pop %v3402
    %v3404 = vmul.f32 %v3327, 1.442695
    %v3405 = vpow.pop %v3404
    %v3406 = vmul.f32 %v3328, 1.442695
    %v3407 = vpow.pop %v3406
    %v3408 = vmul.f32 %v3329, 1.442695
    %v3409 = vpow.pop %v3408
    %v3410 = vmul.f32 %v3330, 1.442695
    %v3411 = vpow.pop %v3410
    %v3412 = vmul.f32 %v3331, 1.442695
    %v3413 = vpow.pop %v3412
    %v3414 = vmul.f32 %v3332, 1.442695
    %v3415 = vpow.pop %v3414
    %v3416 = vmul.f32 %v3333, 1.442695
    %v3417 = vpow.pop %v3416
    %v3418 = vmul.f32 %v3334, 1.442695
    %v3419 = vpow.pop %v3418
    %v3420 = vmul.f32 %v3335, 1.442695
    %v3421 = vpow.pop %v3420
    %v3422 = vmul.f32 %v3336, 1.442695
    %v3423 = vpow.pop %v3422
    %v3424 = vmul.f32 %v3337, 1.442695
    %v3425 = vpow.pop %v3424
    %v3426 = vmul.f32 %v3338, 1.442695
    %v3427 = vpow.pop %v3426
    %v3428 = vmul.f32 %v3339, 1.442695
    %v3429 = vpow.pop %v3428
    %v3430 = vmul.f32 %v3340, 1.442695
    %v3431 = vpow.pop %v3430
    %v3432 = vmul.f32 %v3341, 1.442695
    %v3433 = vpow.pop %v3432
    %v3434 = vmul.f32 %v3342, 1.442695
    %v3435 = vpow.pop %v3434
    %v3436 = vmul.f32 %v3343, 1.442695
    %v3437 = vpow.pop %v3436
    %v3438 = vmul.f32 %v3344, 1.442695
    %v3439 = vpow.pop %v3438
    %v3440 = vmul.f32 %v3345, 1.442695
    %v3441 = vpow.pop %v3440
    %v3442 = vmul.f32 %v3346, 1.442695
    %v3443 = vpow.pop %v3442
    %v3444 = vmul.f32 %v3347, 1.442695
    %v3445 = vpow.pop %v3444
    %v3446 = vmul.f32 %v3348, 1.442695
    %v3447 = vpow.pop %v3446
    %v3448 = vmul.f32 %v3349, 1.442695
    %v3449 = vpow.pop %v3448
    %v3450 = vmul.f32 %v3350, 1.442695
    %v3451 = vpow.pop %v3450
    %v3452 = vmul.f32 %v3351, 1.442695
    %v3453 = vpow.pop %v3452
    %v3454 = vmul.f32 %v3352, 1.442695
    %v3455 = vpow.pop %v3454
    %v3456 = vmul.f32 %v3353, 1.442695
    %v3457 = vpow.pop %v3456
    %v3458 = vmul.f32 %v3354, 1.442695
    %v3459 = vpow.pop %v3458
    %v3460 = vmul.f32 %v3355, 1.442695
    %v3461 = vpow.pop %v3460
    %v3462 = vmul.f32 %v3356, 1.442695
    %v3463 = vpow.pop %v3462
    %v3464 = vmul.f32 %v3357, 1.442695
    %v3465 = vpow.pop %v3464
    %v3466 = vmul.f32 %v3358, 1.442695
    %v3467 = vpow.pop %v3466
    %v3468 = vmul.f32 %v3359, 1.442695
    %v3469 = vpow.pop %v3468
    %v3470 = vmul.f32 %v3360, 1.442695
    %v3471 = vpow.pop %v3470
    %v3472 = vmul.f32 %v3361, 1.442695
    %v3473 = vpow.pop %v3472
    %v3474 = vmul.f32 %v3362, 1.442695
    %v3475 = vpow.pop %v3474
    %v3476 = vmul.f32 %v3363, 1.442695
    %v3477 = vpow.pop %v3476
    %v3478 = vmul.f32 %v3364, 1.442695
    %v3479 = vpow.pop %v3478
    %v3480 = vmul.f32 %v3365, 1.442695
    %v3481 = vpow.pop %v3480
    %v3482 = vmul.f32 %v3366, 1.442695
    %v3483 = vpow.pop %v3482
    %v3484 = vmul.f32 %v3367, 1.442695
    %v3485 = vpow.pop %v3484
    %v3486 = vmul.f32 %v3368, 1.442695
    %v3487 = vpow.pop %v3486
    %v3488 = vmul.f32 %v3369, 1.442695
    %v3489 = vpow.pop %v3488
    %v3490 = vmul.f32 %v3370, 1.442695
    %v3491 = vpow.pop %v3490
    %v3492 = vmul.f32 %v3371, 1.442695
    %v3493 = vpow.pop %v3492
    %v3494 = vmul.f32 %v3372, 1.442695
    %v3495 = vpow.pop %v3494
    %v3496 = vmul.f32 %v3373, 1.442695
    %v3497 = vpow.pop %v3496
    %v3498 = vmul.f32 %v3374, 1.442695
    %v3499 = vpow.pop %v3498
    %v3500 = vmul.f32 %v3375, 1.442695
    %v3501 = vpow.pop %v3500
    %v3502 = vmul.f32 %v3376, 1.442695
    %v3503 = vpow.pop %v3502
    %v3504 = vmul.f32 %v3377, 1.442695
    %v3505 = vpow.pop %v3504
    %v3506 = vsel %vm3121, %v3379, 0.0
    %3507 = vadd.xlane.f32.xlu0 %v3506
    %v3508 = vpop.xlane.xlu0 %3507
    %v3509 = vsel %vm3121, %v3381, 0.0
    %3510 = vadd.xlane.f32.xlu0 %v3509
    %v3511 = vpop.xlane.xlu0 %3510
    %v3512 = vsel %vm3121, %v3383, 0.0
    %3513 = vadd.xlane.f32.xlu0 %v3512
    %v3514 = vpop.xlane.xlu0 %3513
    %v3515 = vsel %vm3121, %v3385, 0.0
    %3516 = vadd.xlane.f32.xlu0 %v3515
    %v3517 = vpop.xlane.xlu0 %3516
    %v3518 = vsel %vm3121, %v3387, 0.0
    %3519 = vadd.xlane.f32.xlu0 %v3518
    %v3520 = vpop.xlane.xlu0 %3519
    %v3521 = vsel %vm3121, %v3389, 0.0
    %3522 = vadd.xlane.f32.xlu0 %v3521
    %v3523 = vpop.xlane.xlu0 %3522
    %v3524 = vsel %vm3121, %v3391, 0.0
    %3525 = vadd.xlane.f32.xlu0 %v3524
    %v3526 = vpop.xlane.xlu0 %3525
    %v3527 = vsel %vm3121, %v3393, 0.0
    %3528 = vadd.xlane.f32.xlu0 %v3527
    %v3529 = vpop.xlane.xlu0 %3528
    %v3530 = vsel %vm3121, %v3395, 0.0
    %3531 = vadd.xlane.f32.xlu0 %v3530
    %v3532 = vpop.xlane.xlu0 %3531
    %v3533 = vsel %vm3121, %v3397, 0.0
    %3534 = vadd.xlane.f32.xlu0 %v3533
    %v3535 = vpop.xlane.xlu0 %3534
    %v3536 = vsel %vm3121, %v3399, 0.0
    %3537 = vadd.xlane.f32.xlu0 %v3536
    %v3538 = vpop.xlane.xlu0 %3537
    %v3539 = vsel %vm3121, %v3401, 0.0
    %3540 = vadd.xlane.f32.xlu0 %v3539
    %v3541 = vpop.xlane.xlu0 %3540
    %v3542 = vsel %vm3121, %v3403, 0.0
    %3543 = vadd.xlane.f32.xlu0 %v3542
    %v3544 = vpop.xlane.xlu0 %3543
    %v3545 = vsel %vm3121, %v3405, 0.0
    %3546 = vadd.xlane.f32.xlu0 %v3545
    %v3547 = vpop.xlane.xlu0 %3546
    %v3548 = vsel %vm3121, %v3407, 0.0
    %3549 = vadd.xlane.f32.xlu0 %v3548
    %v3550 = vpop.xlane.xlu0 %3549
    %v3551 = vsel %vm3121, %v3409, 0.0
    %3552 = vadd.xlane.f32.xlu0 %v3551
    %v3553 = vpop.xlane.xlu0 %3552
    %v3554 = vsel %vm3121, %v3411, 0.0
    %3555 = vadd.xlane.f32.xlu0 %v3554
    %v3556 = vpop.xlane.xlu0 %3555
    %v3557 = vsel %vm3121, %v3413, 0.0
    %3558 = vadd.xlane.f32.xlu0 %v3557
    %v3559 = vpop.xlane.xlu0 %3558
    %v3560 = vsel %vm3121, %v3415, 0.0
    %3561 = vadd.xlane.f32.xlu0 %v3560
    %v3562 = vpop.xlane.xlu0 %3561
    %v3563 = vsel %vm3121, %v3417, 0.0
    %3564 = vadd.xlane.f32.xlu0 %v3563
    %v3565 = vpop.xlane.xlu0 %3564
    %v3566 = vsel %vm3121, %v3419, 0.0
    %3567 = vadd.xlane.f32.xlu0 %v3566
    %v3568 = vpop.xlane.xlu0 %3567
    %v3569 = vsel %vm3121, %v3421, 0.0
    %3570 = vadd.xlane.f32.xlu0 %v3569
    %v3571 = vpop.xlane.xlu0 %3570
    %v3572 = vsel %vm3121, %v3423, 0.0
    %3573 = vadd.xlane.f32.xlu0 %v3572
    %v3574 = vpop.xlane.xlu0 %3573
    %v3575 = vsel %vm3121, %v3425, 0.0
    %3576 = vadd.xlane.f32.xlu0 %v3575
    %v3577 = vpop.xlane.xlu0 %3576
    %v3578 = vsel %vm3121, %v3427, 0.0
    %3579 = vadd.xlane.f32.xlu0 %v3578
    %v3580 = vpop.xlane.xlu0 %3579
    %v3581 = vsel %vm3121, %v3429, 0.0
    %3582 = vadd.xlane.f32.xlu0 %v3581
    %v3583 = vpop.xlane.xlu0 %3582
    %v3584 = vsel %vm3121, %v3431, 0.0
    %3585 = vadd.xlane.f32.xlu0 %v3584
    %v3586 = vpop.xlane.xlu0 %3585
    %v3587 = vsel %vm3121, %v3433, 0.0
    %3588 = vadd.xlane.f32.xlu0 %v3587
    %v3589 = vpop.xlane.xlu0 %3588
    %v3590 = vsel %vm3121, %v3435, 0.0
    %3591 = vadd.xlane.f32.xlu0 %v3590
    %v3592 = vpop.xlane.xlu0 %3591
    %v3593 = vsel %vm3121, %v3437, 0.0
    %3594 = vadd.xlane.f32.xlu0 %v3593
    %v3595 = vpop.xlane.xlu0 %3594
    %v3596 = vsel %vm3121, %v3439, 0.0
    %3597 = vadd.xlane.f32.xlu0 %v3596
    %v3598 = vpop.xlane.xlu0 %3597
    %v3599 = vsel %vm3121, %v3441, 0.0
    %3600 = vadd.xlane.f32.xlu0 %v3599
    %v3601 = vpop.xlane.xlu0 %3600
    %v3602 = vsel %vm3121, %v3443, 0.0
    %3603 = vadd.xlane.f32.xlu0 %v3602
    %v3604 = vpop.xlane.xlu0 %3603
    %v3605 = vsel %vm3121, %v3445, 0.0
    %3606 = vadd.xlane.f32.xlu0 %v3605
    %v3607 = vpop.xlane.xlu0 %3606
    %v3608 = vsel %vm3121, %v3447, 0.0
    %3609 = vadd.xlane.f32.xlu0 %v3608
    %v3610 = vpop.xlane.xlu0 %3609
    %v3611 = vsel %vm3121, %v3449, 0.0
    %3612 = vadd.xlane.f32.xlu0 %v3611
    %v3613 = vpop.xlane.xlu0 %3612
    %v3614 = vsel %vm3121, %v3451, 0.0
    %3615 = vadd.xlane.f32.xlu0 %v3614
    %v3616 = vpop.xlane.xlu0 %3615
    %v3617 = vsel %vm3121, %v3453, 0.0
    %3618 = vadd.xlane.f32.xlu0 %v3617
    %v3619 = vpop.xlane.xlu0 %3618
    %v3620 = vsel %vm3121, %v3455, 0.0
    %3621 = vadd.xlane.f32.xlu0 %v3620
    %v3622 = vpop.xlane.xlu0 %3621
    %v3623 = vsel %vm3121, %v3457, 0.0
    %3624 = vadd.xlane.f32.xlu0 %v3623
    %v3625 = vpop.xlane.xlu0 %3624
    %v3626 = vsel %vm3121, %v3459, 0.0
    %3627 = vadd.xlane.f32.xlu0 %v3626
    %v3628 = vpop.xlane.xlu0 %3627
    %v3629 = vsel %vm3121, %v3461, 0.0
    %3630 = vadd.xlane.f32.xlu0 %v3629
    %v3631 = vpop.xlane.xlu0 %3630
    %v3632 = vsel %vm3121, %v3463, 0.0
    %3633 = vadd.xlane.f32.xlu0 %v3632
    %v3634 = vpop.xlane.xlu0 %3633
    %v3635 = vsel %vm3121, %v3465, 0.0
    %3636 = vadd.xlane.f32.xlu0 %v3635
    %v3637 = vpop.xlane.xlu0 %3636
    %v3638 = vsel %vm3121, %v3467, 0.0
    %3639 = vadd.xlane.f32.xlu0 %v3638
    %v3640 = vpop.xlane.xlu0 %3639
    %v3641 = vsel %vm3121, %v3469, 0.0
    %3642 = vadd.xlane.f32.xlu0 %v3641
    %v3643 = vpop.xlane.xlu0 %3642
    %v3644 = vsel %vm3121, %v3471, 0.0
    %3645 = vadd.xlane.f32.xlu0 %v3644
    %v3646 = vpop.xlane.xlu0 %3645
    %v3647 = vsel %vm3121, %v3473, 0.0
    %3648 = vadd.xlane.f32.xlu0 %v3647
    %v3649 = vpop.xlane.xlu0 %3648
    %v3650 = vsel %vm3121, %v3475, 0.0
    %3651 = vadd.xlane.f32.xlu0 %v3650
    %v3652 = vpop.xlane.xlu0 %3651
    %v3653 = vsel %vm3121, %v3477, 0.0
    %3654 = vadd.xlane.f32.xlu0 %v3653
    %v3655 = vpop.xlane.xlu0 %3654
    %v3656 = vsel %vm3121, %v3479, 0.0
    %3657 = vadd.xlane.f32.xlu0 %v3656
    %v3658 = vpop.xlane.xlu0 %3657
    %v3659 = vsel %vm3121, %v3481, 0.0
    %3660 = vadd.xlane.f32.xlu0 %v3659
    %v3661 = vpop.xlane.xlu0 %3660
    %v3662 = vsel %vm3121, %v3483, 0.0
    %3663 = vadd.xlane.f32.xlu0 %v3662
    %v3664 = vpop.xlane.xlu0 %3663
    %v3665 = vsel %vm3121, %v3485, 0.0
    %3666 = vadd.xlane.f32.xlu0 %v3665
    %v3667 = vpop.xlane.xlu0 %3666
    %v3668 = vsel %vm3121, %v3487, 0.0
    %3669 = vadd.xlane.f32.xlu0 %v3668
    %v3670 = vpop.xlane.xlu0 %3669
    %v3671 = vsel %vm3121, %v3489, 0.0
    %3672 = vadd.xlane.f32.xlu0 %v3671
    %v3673 = vpop.xlane.xlu0 %3672
    %v3674 = vsel %vm3121, %v3491, 0.0
    %3675 = vadd.xlane.f32.xlu0 %v3674
    %v3676 = vpop.xlane.xlu0 %3675
    %v3677 = vsel %vm3121, %v3493, 0.0
    %3678 = vadd.xlane.f32.xlu0 %v3677
    %v3679 = vpop.xlane.xlu0 %3678
    %v3680 = vsel %vm3121, %v3495, 0.0
    %3681 = vadd.xlane.f32.xlu0 %v3680
    %v3682 = vpop.xlane.xlu0 %3681
    %v3683 = vsel %vm3121, %v3497, 0.0
    %3684 = vadd.xlane.f32.xlu0 %v3683
    %v3685 = vpop.xlane.xlu0 %3684
    %v3686 = vsel %vm3121, %v3499, 0.0
    %3687 = vadd.xlane.f32.xlu0 %v3686
    %v3688 = vpop.xlane.xlu0 %3687
    %v3689 = vsel %vm3121, %v3501, 0.0
    %3690 = vadd.xlane.f32.xlu0 %v3689
    %v3691 = vpop.xlane.xlu0 %3690
    %v3692 = vsel %vm3121, %v3503, 0.0
    %3693 = vadd.xlane.f32.xlu0 %v3692
    %v3694 = vpop.xlane.xlu0 %3693
    %v3695 = vsel %vm3121, %v3505, 0.0
    %3696 = vadd.xlane.f32.xlu0 %v3695
    %v3697 = vpop.xlane.xlu0 %3696
    %v3698 = vrcp.pop %v3508
    %v3699 = vmul.f32 1.0, %v3698
    %v3700 = vrcp.pop %v3511
    %v3701 = vmul.f32 1.0, %v3700
    %v3702 = vrcp.pop %v3514
    %v3703 = vmul.f32 1.0, %v3702
    %v3704 = vrcp.pop %v3517
    %v3705 = vmul.f32 1.0, %v3704
    %v3706 = vrcp.pop %v3520
    %v3707 = vmul.f32 1.0, %v3706
    %v3708 = vrcp.pop %v3523
    %v3709 = vmul.f32 1.0, %v3708
    %v3710 = vrcp.pop %v3526
    %v3711 = vmul.f32 1.0, %v3710
    %v3712 = vrcp.pop %v3529
    %v3713 = vmul.f32 1.0, %v3712
    %v3714 = vrcp.pop %v3532
    %v3715 = vmul.f32 1.0, %v3714
    %v3716 = vrcp.pop %v3535
    %v3717 = vmul.f32 1.0, %v3716
    %v3718 = vrcp.pop %v3538
    %v3719 = vmul.f32 1.0, %v3718
    %v3720 = vrcp.pop %v3541
    %v3721 = vmul.f32 1.0, %v3720
    %v3722 = vrcp.pop %v3544
    %v3723 = vmul.f32 1.0, %v3722
    %v3724 = vrcp.pop %v3547
    %v3725 = vmul.f32 1.0, %v3724
    %v3726 = vrcp.pop %v3550
    %v3727 = vmul.f32 1.0, %v3726
    %v3728 = vrcp.pop %v3553
    %v3729 = vmul.f32 1.0, %v3728
    %v3730 = vrcp.pop %v3556
    %v3731 = vmul.f32 1.0, %v3730
    %v3732 = vrcp.pop %v3559
    %v3733 = vmul.f32 1.0, %v3732
    %v3734 = vrcp.pop %v3562
    %v3735 = vmul.f32 1.0, %v3734
    %v3736 = vrcp.pop %v3565
    %v3737 = vmul.f32 1.0, %v3736
    %v3738 = vrcp.pop %v3568
    %v3739 = vmul.f32 1.0, %v3738
    %v3740 = vrcp.pop %v3571
    %v3741 = vmul.f32 1.0, %v3740
    %v3742 = vrcp.pop %v3574
    %v3743 = vmul.f32 1.0, %v3742
    %v3744 = vrcp.pop %v3577
    %v3745 = vmul.f32 1.0, %v3744
    %v3746 = vrcp.pop %v3580
    %v3747 = vmul.f32 1.0, %v3746
    %v3748 = vrcp.pop %v3583
    %v3749 = vmul.f32 1.0, %v3748
    %v3750 = vrcp.pop %v3586
    %v3751 = vmul.f32 1.0, %v3750
    %v3752 = vrcp.pop %v3589
    %v3753 = vmul.f32 1.0, %v3752
    %v3754 = vrcp.pop %v3592
    %v3755 = vmul.f32 1.0, %v3754
    %v3756 = vrcp.pop %v3595
    %v3757 = vmul.f32 1.0, %v3756
    %v3758 = vrcp.pop %v3598
    %v3759 = vmul.f32 1.0, %v3758
    %v3760 = vrcp.pop %v3601
    %v3761 = vmul.f32 1.0, %v3760
    %v3762 = vrcp.pop %v3604
    %v3763 = vmul.f32 1.0, %v3762
    %v3764 = vrcp.pop %v3607
    %v3765 = vmul.f32 1.0, %v3764
    %v3766 = vrcp.pop %v3610
    %v3767 = vmul.f32 1.0, %v3766
    %v3768 = vrcp.pop %v3613
    %v3769 = vmul.f32 1.0, %v3768
    %v3770 = vrcp.pop %v3616
    %v3771 = vmul.f32 1.0, %v3770
    %v3772 = vrcp.pop %v3619
    %v3773 = vmul.f32 1.0, %v3772
    %v3774 = vrcp.pop %v3622
    %v3775 = vmul.f32 1.0, %v3774
    %v3776 = vrcp.pop %v3625
    %v3777 = vmul.f32 1.0, %v3776
    %v3778 = vrcp.pop %v3628
    %v3779 = vmul.f32 1.0, %v3778
    %v3780 = vrcp.pop %v3631
    %v3781 = vmul.f32 1.0, %v3780
    %v3782 = vrcp.pop %v3634
    %v3783 = vmul.f32 1.0, %v3782
    %v3784 = vrcp.pop %v3637
    %v3785 = vmul.f32 1.0, %v3784
    %v3786 = vrcp.pop %v3640
    %v3787 = vmul.f32 1.0, %v3786
    %v3788 = vrcp.pop %v3643
    %v3789 = vmul.f32 1.0, %v3788
    %v3790 = vrcp.pop %v3646
    %v3791 = vmul.f32 1.0, %v3790
    %v3792 = vrcp.pop %v3649
    %v3793 = vmul.f32 1.0, %v3792
    %v3794 = vrcp.pop %v3652
    %v3795 = vmul.f32 1.0, %v3794
    %v3796 = vrcp.pop %v3655
    %v3797 = vmul.f32 1.0, %v3796
    %v3798 = vrcp.pop %v3658
    %v3799 = vmul.f32 1.0, %v3798
    %v3800 = vrcp.pop %v3661
    %v3801 = vmul.f32 1.0, %v3800
    %v3802 = vrcp.pop %v3664
    %v3803 = vmul.f32 1.0, %v3802
    %v3804 = vrcp.pop %v3667
    %v3805 = vmul.f32 1.0, %v3804
    %v3806 = vrcp.pop %v3670
    %v3807 = vmul.f32 1.0, %v3806
    %v3808 = vrcp.pop %v3673
    %v3809 = vmul.f32 1.0, %v3808
    %v3810 = vrcp.pop %v3676
    %v3811 = vmul.f32 1.0, %v3810
    %v3812 = vrcp.pop %v3679
    %v3813 = vmul.f32 1.0, %v3812
    %v3814 = vrcp.pop %v3682
    %v3815 = vmul.f32 1.0, %v3814
    %v3816 = vrcp.pop %v3685
    %v3817 = vmul.f32 1.0, %v3816
    %v3818 = vrcp.pop %v3688
    %v3819 = vmul.f32 1.0, %v3818
    %v3820 = vrcp.pop %v3691
    %v3821 = vmul.f32 1.0, %v3820
    %v3822 = vrcp.pop %v3694
    %v3823 = vmul.f32 1.0, %v3822
    %v3824 = vrcp.pop %v3697
    %v3825 = vmul.f32 1.0, %v3824
    %v3826 = vmul.f32 %v3379, %v3699
    %v3827 = vmul.f32 %v3381, %v3701
    %v3828 = vmul.f32 %v3383, %v3703
    %v3829 = vmul.f32 %v3385, %v3705
    %v3830 = vmul.f32 %v3387, %v3707
    %v3831 = vmul.f32 %v3389, %v3709
    %v3832 = vmul.f32 %v3391, %v3711
    %v3833 = vmul.f32 %v3393, %v3713
    %v3834 = vmul.f32 %v3395, %v3715
    %v3835 = vmul.f32 %v3397, %v3717
    %v3836 = vmul.f32 %v3399, %v3719
    %v3837 = vmul.f32 %v3401, %v3721
    %v3838 = vmul.f32 %v3403, %v3723
    %v3839 = vmul.f32 %v3405, %v3725
    %v3840 = vmul.f32 %v3407, %v3727
    %v3841 = vmul.f32 %v3409, %v3729
    %v3842 = vmul.f32 %v3411, %v3731
    %v3843 = vmul.f32 %v3413, %v3733
    %v3844 = vmul.f32 %v3415, %v3735
    %v3845 = vmul.f32 %v3417, %v3737
    %v3846 = vmul.f32 %v3419, %v3739
    %v3847 = vmul.f32 %v3421, %v3741
    %v3848 = vmul.f32 %v3423, %v3743
    %v3849 = vmul.f32 %v3425, %v3745
    %v3850 = vmul.f32 %v3427, %v3747
    %v3851 = vmul.f32 %v3429, %v3749
    %v3852 = vmul.f32 %v3431, %v3751
    %v3853 = vmul.f32 %v3433, %v3753
    %v3854 = vmul.f32 %v3435, %v3755
    %v3855 = vmul.f32 %v3437, %v3757
    %v3856 = vmul.f32 %v3439, %v3759
    %v3857 = vmul.f32 %v3441, %v3761
    %v3858 = vmul.f32 %v3443, %v3763
    %v3859 = vmul.f32 %v3445, %v3765
    %v3860 = vmul.f32 %v3447, %v3767
    %v3861 = vmul.f32 %v3449, %v3769
    %v3862 = vmul.f32 %v3451, %v3771
    %v3863 = vmul.f32 %v3453, %v3773
    %v3864 = vmul.f32 %v3455, %v3775
    %v3865 = vmul.f32 %v3457, %v3777
    %v3866 = vmul.f32 %v3459, %v3779
    %v3867 = vmul.f32 %v3461, %v3781
    %v3868 = vmul.f32 %v3463, %v3783
    %v3869 = vmul.f32 %v3465, %v3785
    %v3870 = vmul.f32 %v3467, %v3787
    %v3871 = vmul.f32 %v3469, %v3789
    %v3872 = vmul.f32 %v3471, %v3791
    %v3873 = vmul.f32 %v3473, %v3793
    %v3874 = vmul.f32 %v3475, %v3795
    %v3875 = vmul.f32 %v3477, %v3797
    %v3876 = vmul.f32 %v3479, %v3799
    %v3877 = vmul.f32 %v3481, %v3801
    %v3878 = vmul.f32 %v3483, %v3803
    %v3879 = vmul.f32 %v3485, %v3805
    %v3880 = vmul.f32 %v3487, %v3807
    %v3881 = vmul.f32 %v3489, %v3809
    %v3882 = vmul.f32 %v3491, %v3811
    %v3883 = vmul.f32 %v3493, %v3813
    %v3884 = vmul.f32 %v3495, %v3815
    %v3885 = vmul.f32 %v3497, %v3817
    %v3886 = vmul.f32 %v3499, %v3819
    %v3887 = vmul.f32 %v3501, %v3821
    %v3888 = vmul.f32 %v3503, %v3823
    %v3889 = vmul.f32 %v3505, %v3825
    %v3890 = vld [vmem:[#allocation5] sm:$0xff]
    %v3891 = vld [vmem:[#allocation5 + $0x8] sm:$0xff]
    %v3892 = vld [vmem:[#allocation5 + $0x10] sm:$0xff]
    %v3893 = vld [vmem:[#allocation5 + $0x18] sm:$0xff]
    %v3894 = vld [vmem:[#allocation5 + $0x20] sm:$0xff]
    %v3895 = vld [vmem:[#allocation5 + $0x28] sm:$0xff]
    %v3896 = vld [vmem:[#allocation5 + $0x30] sm:$0xff]
    %v3897 = vld [vmem:[#allocation5 + $0x38] sm:$0xff]
    %v3898 = vld [vmem:[#allocation5 + $0x40] sm:$0xff]
    %v3899 = vld [vmem:[#allocation5 + $0x48] sm:$0xff]
    %v3900 = vld [vmem:[#allocation5 + $0x50] sm:$0xff]
    %v3901 = vld [vmem:[#allocation5 + $0x58] sm:$0xff]
    %v3902 = vld [vmem:[#allocation5 + $0x60] sm:$0xff]
    %v3903 = vld [vmem:[#allocation5 + $0x68] sm:$0xff]
    %v3904 = vld [vmem:[#allocation5 + $0x70] sm:$0xff]
    %v3905 = vld [vmem:[#allocation5 + $0x78] sm:$0xff]
    %v3906 = vpack.c.bf16 %v3827, %v3826
    %v3907 = vpack.c.bf16 %v3829, %v3828
    %v3908 = vpack.c.bf16 %v3831, %v3830
    %v3909 = vpack.c.bf16 %v3833, %v3832
    %v3910 = vpack.c.bf16 %v3835, %v3834
    %v3911 = vpack.c.bf16 %v3837, %v3836
    %v3912 = vpack.c.bf16 %v3839, %v3838
    %v3913 = vpack.c.bf16 %v3841, %v3840
    %v3914 = vpack.c.bf16 %v3843, %v3842
    %v3915 = vpack.c.bf16 %v3845, %v3844
    %v3916 = vpack.c.bf16 %v3847, %v3846
    %v3917 = vpack.c.bf16 %v3849, %v3848
    %v3918 = vpack.c.bf16 %v3851, %v3850
    %v3919 = vpack.c.bf16 %v3853, %v3852
    %v3920 = vpack.c.bf16 %v3855, %v3854
    %v3921 = vpack.c.bf16 %v3857, %v3856
    %v3922 = vpack.c.bf16 %v3859, %v3858
    %v3923 = vpack.c.bf16 %v3861, %v3860
    %v3924 = vpack.c.bf16 %v3863, %v3862
    %v3925 = vpack.c.bf16 %v3865, %v3864
    %v3926 = vpack.c.bf16 %v3867, %v3866
    %v3927 = vpack.c.bf16 %v3869, %v3868
    %v3928 = vpack.c.bf16 %v3871, %v3870
    %v3929 = vpack.c.bf16 %v3873, %v3872
    %v3930 = vpack.c.bf16 %v3875, %v3874
    %v3931 = vpack.c.bf16 %v3877, %v3876
    %v3932 = vpack.c.bf16 %v3879, %v3878
    %v3933 = vpack.c.bf16 %v3881, %v3880
    %v3934 = vpack.c.bf16 %v3883, %v3882
    %v3935 = vpack.c.bf16 %v3885, %v3884
    %v3936 = vpack.c.bf16 %v3887, %v3886
    %v3937 = vpack.c.bf16 %v3889, %v3888
    %v3938 = vunpack.c.l.bf16 %v3906
    %v3939 = vunpack.c.h.bf16 %v3906
    %v3940 = vunpack.c.l.bf16 %v3907
    %v3941 = vunpack.c.h.bf16 %v3907
    %v3942 = vunpack.c.l.bf16 %v3908
    %v3943 = vunpack.c.h.bf16 %v3908
    %v3944 = vunpack.c.l.bf16 %v3909
    %v3945 = vunpack.c.h.bf16 %v3909
    %v3946 = vunpack.c.l.bf16 %v3910
    %v3947 = vunpack.c.h.bf16 %v3910
    %v3948 = vunpack.c.l.bf16 %v3911
    %v3949 = vunpack.c.h.bf16 %v3911
    %v3950 = vunpack.c.l.bf16 %v3912
    %v3951 = vunpack.c.h.bf16 %v3912
    %v3952 = vunpack.c.l.bf16 %v3913
    %v3953 = vunpack.c.h.bf16 %v3913
    %v3954 = vunpack.c.l.bf16 %v3914
    %v3955 = vunpack.c.h.bf16 %v3914
    %v3956 = vunpack.c.l.bf16 %v3915
    %v3957 = vunpack.c.h.bf16 %v3915
    %v3958 = vunpack.c.l.bf16 %v3916
    %v3959 = vunpack.c.h.bf16 %v3916
    %v3960 = vunpack.c.l.bf16 %v3917
    %v3961 = vunpack.c.h.bf16 %v3917
    %v3962 = vunpack.c.l.bf16 %v3918
    %v3963 = vunpack.c.h.bf16 %v3918
    %v3964 = vunpack.c.l.bf16 %v3919
    %v3965 = vunpack.c.h.bf16 %v3919
    %v3966 = vunpack.c.l.bf16 %v3920
    %v3967 = vunpack.c.h.bf16 %v3920
    %v3968 = vunpack.c.l.bf16 %v3921
    %v3969 = vunpack.c.h.bf16 %v3921
    %v3970 = vunpack.c.l.bf16 %v3922
    %v3971 = vunpack.c.h.bf16 %v3922
    %v3972 = vunpack.c.l.bf16 %v3923
    %v3973 = vunpack.c.h.bf16 %v3923
    %v3974 = vunpack.c.l.bf16 %v3924
    %v3975 = vunpack.c.h.bf16 %v3924
    %v3976 = vunpack.c.l.bf16 %v3925
    %v3977 = vunpack.c.h.bf16 %v3925
    %v3978 = vunpack.c.l.bf16 %v3926
    %v3979 = vunpack.c.h.bf16 %v3926
    %v3980 = vunpack.c.l.bf16 %v3927
    %v3981 = vunpack.c.h.bf16 %v3927
    %v3982 = vunpack.c.l.bf16 %v3928
    %v3983 = vunpack.c.h.bf16 %v3928
    %v3984 = vunpack.c.l.bf16 %v3929
    %v3985 = vunpack.c.h.bf16 %v3929
    %v3986 = vunpack.c.l.bf16 %v3930
    %v3987 = vunpack.c.h.bf16 %v3930
    %v3988 = vunpack.c.l.bf16 %v3931
    %v3989 = vunpack.c.h.bf16 %v3931
    %v3990 = vunpack.c.l.bf16 %v3932
    %v3991 = vunpack.c.h.bf16 %v3932
    %v3992 = vunpack.c.l.bf16 %v3933
    %v3993 = vunpack.c.h.bf16 %v3933
    %v3994 = vunpack.c.l.bf16 %v3934
    %v3995 = vunpack.c.h.bf16 %v3934
    %v3996 = vunpack.c.l.bf16 %v3935
    %v3997 = vunpack.c.h.bf16 %v3935
    %v3998 = vunpack.c.l.bf16 %v3936
    %v3999 = vunpack.c.h.bf16 %v3936
    %v4000 = vunpack.c.l.bf16 %v3937
    %v4001 = vunpack.c.h.bf16 %v3937
    %v4002 = vsub.f32 %v3826, %v3938
    %v4003 = vsub.f32 %v3827, %v3939
    %v4004 = vsub.f32 %v3828, %v3940
    %v4005 = vsub.f32 %v3829, %v3941
    %v4006 = vsub.f32 %v3830, %v3942
    %v4007 = vsub.f32 %v3831, %v3943
    %v4008 = vsub.f32 %v3832, %v3944
    %v4009 = vsub.f32 %v3833, %v3945
    %v4010 = vsub.f32 %v3834, %v3946
    %v4011 = vsub.f32 %v3835, %v3947
    %v4012 = vsub.f32 %v3836, %v3948
    %v4013 = vsub.f32 %v3837, %v3949
    %v4014 = vsub.f32 %v3838, %v3950
    %v4015 = vsub.f32 %v3839, %v3951
    %v4016 = vsub.f32 %v3840, %v3952
    %v4017 = vsub.f32 %v3841, %v3953
    %v4018 = vsub.f32 %v3842, %v3954
    %v4019 = vsub.f32 %v3843, %v3955
    %v4020 = vsub.f32 %v3844, %v3956
    %v4021 = vsub.f32 %v3845, %v3957
    %v4022 = vsub.f32 %v3846, %v3958
    %v4023 = vsub.f32 %v3847, %v3959
    %v4024 = vsub.f32 %v3848, %v3960
    %v4025 = vsub.f32 %v3849, %v3961
    %v4026 = vsub.f32 %v3850, %v3962
    %v4027 = vsub.f32 %v3851, %v3963
    %v4028 = vsub.f32 %v3852, %v3964
    %v4029 = vsub.f32 %v3853, %v3965
    %v4030 = vsub.f32 %v3854, %v3966
    %v4031 = vsub.f32 %v3855, %v3967
    %v4032 = vsub.f32 %v3856, %v3968
    %v4033 = vsub.f32 %v3857, %v3969
    %v4034 = vsub.f32 %v3858, %v3970
    %v4035 = vsub.f32 %v3859, %v3971
    %v4036 = vsub.f32 %v3860, %v3972
    %v4037 = vsub.f32 %v3861, %v3973
    %v4038 = vsub.f32 %v3862, %v3974
    %v4039 = vsub.f32 %v3863, %v3975
    %v4040 = vsub.f32 %v3864, %v3976
    %v4041 = vsub.f32 %v3865, %v3977
    %v4042 = vsub.f32 %v3866, %v3978
    %v4043 = vsub.f32 %v3867, %v3979
    %v4044 = vsub.f32 %v3868, %v3980
    %v4045 = vsub.f32 %v3869, %v3981
    %v4046 = vsub.f32 %v3870, %v3982
    %v4047 = vsub.f32 %v3871, %v3983
    %v4048 = vsub.f32 %v3872, %v3984
    %v4049 = vsub.f32 %v3873, %v3985
    %v4050 = vsub.f32 %v3874, %v3986
    %v4051 = vsub.f32 %v3875, %v3987
    %v4052 = vsub.f32 %v3876, %v3988
    %v4053 = vsub.f32 %v3877, %v3989
    %v4054 = vsub.f32 %v3878, %v3990
    %v4055 = vsub.f32 %v3879, %v3991
    %v4056 = vsub.f32 %v3880, %v3992
    %v4057 = vsub.f32 %v3881, %v3993
    %v4058 = vsub.f32 %v3882, %v3994
    %v4059 = vsub.f32 %v3883, %v3995
    %v4060 = vsub.f32 %v3884, %v3996
    %v4061 = vsub.f32 %v3885, %v3997
    %v4062 = vsub.f32 %v3886, %v3998
    %v4063 = vsub.f32 %v3887, %v3999
    %v4064 = vsub.f32 %v3888, %v4000
    %v4065 = vsub.f32 %v3889, %v4001
    %v4066 = vpack.c.bf16 %v4003, %v4002
    %v4067 = vpack.c.bf16 %v4005, %v4004
    %v4068 = vpack.c.bf16 %v4007, %v4006
    %v4069 = vpack.c.bf16 %v4009, %v4008
    %v4070 = vpack.c.bf16 %v4011, %v4010
    %v4071 = vpack.c.bf16 %v4013, %v4012
    %v4072 = vpack.c.bf16 %v4015, %v4014
    %v4073 = vpack.c.bf16 %v4017, %v4016
    %v4074 = vpack.c.bf16 %v4019, %v4018
    %v4075 = vpack.c.bf16 %v4021, %v4020
    %v4076 = vpack.c.bf16 %v4023, %v4022
    %v4077 = vpack.c.bf16 %v4025, %v4024
    %v4078 = vpack.c.bf16 %v4027, %v4026
    %v4079 = vpack.c.bf16 %v4029, %v4028
    %v4080 = vpack.c.bf16 %v4031, %v4030
    %v4081 = vpack.c.bf16 %v4033, %v4032
    %v4082 = vpack.c.bf16 %v4035, %v4034
    %v4083 = vpack.c.bf16 %v4037, %v4036
    %v4084 = vpack.c.bf16 %v4039, %v4038
    %v4085 = vpack.c.bf16 %v4041, %v4040
    %v4086 = vpack.c.bf16 %v4043, %v4042
    %v4087 = vpack.c.bf16 %v4045, %v4044
    %v4088 = vpack.c.bf16 %v4047, %v4046
    %v4089 = vpack.c.bf16 %v4049, %v4048
    %v4090 = vpack.c.bf16 %v4051, %v4050
    %v4091 = vpack.c.bf16 %v4053, %v4052
    %v4092 = vpack.c.bf16 %v4055, %v4054
    %v4093 = vpack.c.bf16 %v4057, %v4056
    %v4094 = vpack.c.bf16 %v4059, %v4058
    %v4095 = vpack.c.bf16 %v4061, %v4060
    %v4096 = vpack.c.bf16 %v4063, %v4062
    %v4097 = vpack.c.bf16 %v4065, %v4064
    %v4098 = vpack.c.bf16 %v3890, %v3890
    %v4099 = vpack.c.bf16 %v3891, %v3891
    %v4100 = vpack.c.bf16 %v3892, %v3892
    %v4101 = vpack.c.bf16 %v3893, %v3893
    %v4102 = vpack.c.bf16 %v3894, %v3894
    %v4103 = vpack.c.bf16 %v3895, %v3895
    %v4104 = vpack.c.bf16 %v3896, %v3896
    %v4105 = vpack.c.bf16 %v3897, %v3897
    %v4106 = vpack.c.bf16 %v3898, %v3898
    %v4107 = vpack.c.bf16 %v3899, %v3899
    %v4108 = vpack.c.bf16 %v3900, %v3900
    %v4109 = vpack.c.bf16 %v3901, %v3901
    %v4110 = vpack.c.bf16 %v3902, %v3902
    %v4111 = vpack.c.bf16 %v3903, %v3903
    %v4112 = vpack.c.bf16 %v3904, %v3904
    %v4113 = vpack.c.bf16 %v3905, %v3905
    %v4114 = vunpack.c.l.bf16 %v4098
    %v4115 = vunpack.c.l.bf16 %v4099
    %v4116 = vunpack.c.l.bf16 %v4100
    %v4117 = vunpack.c.l.bf16 %v4101
    %v4118 = vunpack.c.l.bf16 %v4102
    %v4119 = vunpack.c.l.bf16 %v4103
    %v4120 = vunpack.c.l.bf16 %v4104
    %v4121 = vunpack.c.l.bf16 %v4105
    %v4122 = vunpack.c.l.bf16 %v4106
    %v4123 = vunpack.c.l.bf16 %v4107
    %v4124 = vunpack.c.l.bf16 %v4108
    %v4125 = vunpack.c.l.bf16 %v4109
    %v4126 = vunpack.c.l.bf16 %v4110
    %v4127 = vunpack.c.l.bf16 %v4111
    %v4128 = vunpack.c.l.bf16 %v4112
    %v4129 = vunpack.c.l.bf16 %v4113
    %v4130 = vsub.f32 %v3890, %v4114
    %v4131 = vsub.f32 %v3891, %v4115
    %v4132 = vsub.f32 %v3892, %v4116
    %v4133 = vsub.f32 %v3893, %v4117
    %v4134 = vsub.f32 %v3894, %v4118
    %v4135 = vsub.f32 %v3895, %v4119
    %v4136 = vsub.f32 %v3896, %v4120
    %v4137 = vsub.f32 %v3897, %v4121
    %v4138 = vsub.f32 %v3898, %v4122
    %v4139 = vsub.f32 %v3899, %v4123
    %v4140 = vsub.f32 %v3900, %v4124
    %v4141 = vsub.f32 %v3901, %v4125
    %v4142 = vsub.f32 %v3902, %v4126
    %v4143 = vsub.f32 %v3903, %v4127
    %v4144 = vsub.f32 %v3904, %v4128
    %v4145 = vsub.f32 %v3905, %v4129
    %v4146 = vpack.c.bf16 %v4130, %v4130
    %v4147 = vpack.c.bf16 %v4131, %v4131
    %v4148 = vpack.c.bf16 %v4132, %v4132
    %v4149 = vpack.c.bf16 %v4133, %v4133
    %v4150 = vpack.c.bf16 %v4134, %v4134
    %v4151 = vpack.c.bf16 %v4135, %v4135
    %v4152 = vpack.c.bf16 %v4136, %v4136
    %v4153 = vpack.c.bf16 %v4137, %v4137
    %v4154 = vpack.c.bf16 %v4138, %v4138
    %v4155 = vpack.c.bf16 %v4139, %v4139
    %v4156 = vpack.c.bf16 %v4140, %v4140
    %v4157 = vpack.c.bf16 %v4141, %v4141
    %v4158 = vpack.c.bf16 %v4142, %v4142
    %v4159 = vpack.c.bf16 %v4143, %v4143
    %v4160 = vpack.c.bf16 %v4144, %v4144
    %v4161 = vpack.c.bf16 %v4145, %v4145
    %v4163 = vsel %vm3121, %v3906, 0
    %v4166 = vsel %vm3121, %v3907, 0
    %vm4168 = vcmask 1043456
    %v4170 = vsel %vm4168, %v4146, 0
    %4172 = vmatprep.subr.bf16.mxu0 0
    %4173 = vmatpush1.bf16.msra.mxu0 %v4170
    %4174 = vmatprep.subr.bf16.mxu0 0
    %4175 = vmatpush1.bf16.msra.mxu0 0
    %4176 = vmatprep.subr.bf16.mxu0 0
    %4177 = vmatpush1.bf16.msra.mxu0 0
    %4178 = vmatprep.subr.bf16.mxu0 0
    %4179 = vmatpush1.bf16.msra.mxu0 0
    %4180 = vmatprep.subr.bf16.mxu0 0
    %4181 = vmatpush1.bf16.msra.mxu0 0
    %4182 = vmatprep.subr.bf16.mxu0 0
    %4183 = vmatpush1.bf16.msra.mxu0 0
    %4184 = vmatprep.subr.bf16.mxu0 0
    %4185 = vmatpush1.bf16.msra.mxu0 0
    %4186 = vmatprep.subr.bf16.mxu0 0
    %4187 = vmatpush1.bf16.msra.mxu0 0
    %4188 = vmatprep.subr.bf16.mxu0 0
    %4189 = vmatpush1.bf16.msra.mxu0 0
    %4190 = vmatprep.subr.bf16.mxu0 0
    %4191 = vmatpush1.bf16.msra.mxu0 0
    %4192 = vmatprep.subr.bf16.mxu0 0
    %4193 = vmatpush1.bf16.msra.mxu0 0
    %4194 = vmatprep.subr.bf16.mxu0 0
    %4195 = vmatpush1.bf16.msra.mxu0 0
    %4196 = vmatprep.subr.bf16.mxu0 0
    %4197 = vmatpush1.bf16.msra.mxu0 0
    %4198 = vmatprep.subr.bf16.mxu0 0
    %4199 = vmatpush1.bf16.msra.mxu0 0
    %4200 = vmatprep.subr.bf16.mxu0 0
    %4201 = vmatpush1.bf16.msra.mxu0 0
    %4202 = vmatprep.subr.bf16.mxu0 0
    %4203 = vmatpush1.bf16.msra.mxu0 0
    %4204 = vmatprep.mubr.bf16.mxu0 0
    %4205 = vmatmul.mubr.bf16.gmra.mrb[0].mxu0 %v4163
    %v4206 = vpop.f32.mrb[0].mxu0
    %v4207 = vadd.f32 0.0, %v4206
    %v4208 = vpop.f32.mrb[0].mxu0
    %v4209 = vpop.f32.mrb[0].mxu0
    %v4210 = vadd.f32 0.0, %v4209
    %v4211 = vpop.f32.mrb[0].mxu0
    %4212 = vmatprep.mubr.bf16.mxu0 0
    %4213 = vmatmul.mubr.bf16.gmra.mrb[0].mxu0 %v4166
    %v4214 = vpop.f32.mrb[0].mxu0
    %v4215 = vadd.f32 0.0, %v4214
    %v4216 = vpop.f32.mrb[0].mxu0
    %v4217 = vpop.f32.mrb[0].mxu0
    %v4218 = vadd.f32 0.0, %v4217
    %v4219 = vpop.f32.mrb[0].mxu0
    %4220 = vdwg.mxu0
    %v4222 = vsel %vm3121, %v3908, 0
    %v4225 = vsel %vm3121, %v3909, 0
    %v4228 = vsel %vm4168, %v4147, 0
    %4230 = vmatprep.subr.bf16.mxu0 0
    %4231 = vmatpush1.bf16.msra.mxu0 %v4228
    %4232 = vmatprep.subr.bf16.mxu0 0
    %4233 = vmatpush1.bf16.msra.mxu0 0
    %4234 = vmatprep.subr.bf16.mxu0 0
    %4235 = vmatpush1.bf16.msra.mxu0 0
    %4236 = vmatprep.subr.bf16.mxu0 0
    %4237 = vmatpush1.bf16.msra.mxu0 0
    %4238 = vmatprep.subr.bf16.mxu0 0
    %4239 = vmatpush1.bf16.msra.mxu0 0
    %4240 = vmatprep.subr.bf16.mxu0 0
    %4241 = vmatpush1.bf16.msra.mxu0 0
    %4242 = vmatprep.subr.bf16.mxu0 0
    %4243 = vmatpush1.bf16.msra.mxu0 0
    %4244 = vmatprep.subr.bf16.mxu0 0
    %4245 = vmatpush1.bf16.msra.mxu0 0
    %4246 = vmatprep.subr.bf16.mxu0 0
    %4247 = vmatpush1.bf16.msra.mxu0 0
    %4248 = vmatprep.subr.bf16.mxu0 0
    %4249 = vmatpush1.bf16.msra.mxu0 0
    %4250 = vmatprep.subr.bf16.mxu0 0
    %4251 = vmatpush1.bf16.msra.mxu0 0
    %4252 = vmatprep.subr.bf16.mxu0 0
    %4253 = vmatpush1.bf16.msra.mxu0 0
    %4254 = vmatprep.subr.bf16.mxu0 0
    %4255 = vmatpush1.bf16.msra.mxu0 0
    %4256 = vmatprep.subr.bf16.mxu0 0
    %4257 = vmatpush1.bf16.msra.mxu0 0
    %4258 = vmatprep.subr.bf16.mxu0 0
    %4259 = vmatpush1.bf16.msra.mxu0 0
    %4260 = vmatprep.subr.bf16.mxu0 0
    %4261 = vmatpush1.bf16.msra.mxu0 0
    %4262 = vmatprep.mubr.bf16.mxu0 0
    %4263 = vmatmul.mubr.bf16.gmra.mrb[0].mxu0 %v4222
    %v4264 = vpop.f32.mrb[0].mxu0
    %v4265 = vadd.f32 0.0, %v4264
    %v4266 = vpop.f32.mrb[0].mxu0
    %v4267 = vpop.f32.mrb[0].mxu0
    %v4268 = vadd.f32 0.0, %v4267
    %v4269 = vpop.f32.mrb[0].mxu0
    %4270 = vmatprep.mubr.bf16.mxu0 0
    %4271 = vmatmul.mubr.bf16.gmra.mrb[0].mxu0 %v4225
    %v4272 = vpop.f32.mrb[0].mxu0
    %v4273 = vadd.f32 0.0, %v4272
    %v4274 = vpop.f32.mrb[0].mxu0
    %v4275 = vpop.f32.mrb[0].mxu0
    %v4276 = vadd.f32 0.0, %v4275
    %v4277 = vpop.f32.mrb[0].mxu0
    %4278 = vdwg.mxu0
    %v4280 = vsel %vm3121, %v3910, 0
    %v4283 = vsel %vm3121, %v3911, 0
    %v4286 = vsel %vm4168, %v4148, 0
    %4288 = vmatprep.subr.bf16.mxu0 0
    %4289 = vmatpush1.bf16.msra.mxu0 %v4286
    %4290 = vmatprep.subr.bf16.mxu0 0
    %4291 = vmatpush1.bf16.msra.mxu0 0
    %4292 = vmatprep.subr.bf16.mxu0 0
    %4293 = vmatpush1.bf16.msra.mxu0 0
    %4294 = vmatprep.subr.bf16.mxu0 0
    %4295 = vmatpush1.bf16.msra.mxu0 0
    %4296 = vmatprep.subr.bf16.mxu0 0
    %4297 = vmatpush1.bf16.msra.mxu0 0
    %4298 = vmatprep.subr.bf16.mxu0 0
    %4299 = vmatpush1.bf16.msra.mxu0 0
    %4300 = vmatprep.subr.bf16.mxu0 0
    %4301 = vmatpush1.bf16.msra.mxu0 0
    %4302 = vmatprep.subr.bf16.mxu0 0
    %4303 = vmatpush1.bf16.msra.mxu0 0
    %4304 = vmatprep.subr.bf16.mxu0 0
    %4305 = vmatpush1.bf16.msra.mxu0 0
    %4306 = vmatprep.subr.bf16.mxu0 0
    %4307 = vmatpush1.bf16.msra.mxu0 0
    %4308 = vmatprep.subr.bf16.mxu0 0
    %4309 = vmatpush1.bf16.msra.mxu0 0
    %4310 = vmatprep.subr.bf16.mxu0 0
    %4311 = vmatpush1.bf16.msra.mxu0 0
    %4312 = vmatprep.subr.bf16.mxu0 0
    %4313 = vmatpush1.bf16.msra.mxu0 0
    %4314 = vmatprep.subr.bf16.mxu0 0
    %4315 = vmatpush1.bf16.msra.mxu0 0
    %4316 = vmatprep.subr.bf16.mxu0 0
    %4317 = vmatpush1.bf16.msra.mxu0 0
    %4318 = vmatprep.subr.bf16.mxu0 0
    %4319 = vmatpush1.bf16.msra.mxu0 0
    %4320 = vmatprep.mubr.bf16.mxu0 0
    %4321 = vmatmul.mubr.bf16.gmra.mrb[0].mxu0 %v4280
    %v4322 = vpop.f32.mrb[0].mxu0
    %v4323 = vadd.f32 0.0, %v4322
    %v4324 = vpop.f32.mrb[0].mxu0
    %v4325 = vpop.f32.mrb[0].mxu0
    %v4326 = vadd.f32 0.0, %v4325
    %v4327 = vpop.f32.mrb[0].mxu0
    %4328 = vmatprep.mubr.bf16.mxu0 0
    %4329 = vmatmul.mubr.bf16.gmra.mrb[0].mxu0 %v4283
    %v4330 = vpop.f32.mrb[0].mxu0
    %v4331 = vadd.f32 0.0, %v4330
    %v4332 = vpop.f32.mrb[0].mxu0
    %v4333 = vpop.f32.mrb[0].mxu0
    %v4334 = vadd.f32 0.0, %v4333
    %v4335 = vpop.f32.mrb[0].mxu0
    %4336 = vdwg.mxu0
    %v4338 = vsel %vm3121, %v3912, 0
    %v4341 = vsel %vm3121, %v3913, 0
    %v4344 = vsel %vm4168, %v4149, 0
    %4346 = vmatprep.subr.bf16.mxu0 0
    %4347 = vmatpush1.bf16.msra.mxu0 %v4344
    %4348 = vmatprep.subr.bf16.mxu0 0
    %4349 = vmatpush1.bf16.msra.mxu0 0
    %4350 = vmatprep.subr.bf16.mxu0 0
    %4351 = vmatpush1.bf16.msra.mxu0 0
    %4352 = vmatprep.subr.bf16.mxu0 0
    %4353 = vmatpush1.bf16.msra.mxu0 0
    %4354 = vmatprep.subr.bf16.mxu0 0
    %4355 = vmatpush1.bf16.msra.mxu0 0
    %4356 = vmatprep.subr.bf16.mxu0 0
    %4357 = vmatpush1.bf16.msra.mxu0 0
    %4358 = vmatprep.subr.bf16.mxu0 0
    %4359 = vmatpush1.bf16.msra.mxu0 0
    %4360 = vmatprep.subr.bf16.mxu0 0
    %4361 = vmatpush1.bf16.msra.mxu0 0
    %4362 = vmatprep.subr.bf16.mxu0 0
    %4363 = vmatpush1.bf16.msra.mxu0 0
    %4364 = vmatprep.subr.bf16.mxu0 0
    %4365 = vmatpush1.bf16.msra.mxu0 0
    %4366 = vmatprep.subr.bf16.mxu0 0
    %4367 = vmatpush1.bf16.msra.mxu0 0
    %4368 = vmatprep.subr.bf16.mxu0 0
    %4369 = vmatpush1.bf16.msra.mxu0 0
    %4370 = vmatprep.subr.bf16.mxu0 0
    %4371 = vmatpush1.bf16.msra.mxu0 0
    %4372 = vmatprep.subr.bf16.mxu0 0
    %4373 = vmatpush1.bf16.msra.mxu0 0
    %4374 = vmatprep.subr.bf16.mxu0 0
    %4375 = vmatpush1.bf16.msra.mxu0 0
    %4376 = vmatprep.subr.bf16.mxu0 0
    %4377 = vmatpush1.bf16.msra.mxu0 0
    %4378 = vmatprep.mubr.bf16.mxu0 0
    %4379 = vmatmul.mubr.bf16.gmra.mrb[0].mxu0 %v4338
    %v4380 = vpop.f32.mrb[0].mxu0
    %v4381 = vadd.f32 0.0, %v4380
    %v4382 = vpop.f32.mrb[0].mxu0
    %v4383 = vpop.f32.mrb[0].mxu0
    %v4384 = vadd.f32 0.0, %v4383
    %v4385 = vpop.f32.mrb[0].mxu0
    %4386 = vmatprep.mubr.bf16.mxu0 0
    %4387 = vmatmul.mubr.bf16.gmra.mrb[0].mxu0 %v4341
    %v4388 = vpop.f32.mrb[0].mxu0
    %v4389 = vadd.f32 0.0, %v4388
    %v4390 = vpop.f32.mrb[0].mxu0
    %v4391 = vpop.f32.mrb[0].mxu0
    %v4392 = vadd.f32 0.0, %v4391
    %v4393 = vpop.f32.mrb[0].mxu0
    %4394 = vdwg.mxu0
    %v4396 = vsel %vm3121, %v3914, 0
    %v4399 = vsel %vm3121, %v3915, 0
    %v4402 = vsel %vm4168, %v4150, 0
    %4404 = vmatprep.subr.bf16.mxu0 0
    %4405 = vmatpush1.bf16.msra.mxu0 %v4402
    %4406 = vmatprep.subr.bf16.mxu0 0
    %4407 = vmatpush1.bf16.msra.mxu0 0
    %4408 = vmatprep.subr.bf16.mxu0 0
    %4409 = vmatpush1.bf16.msra.mxu0 0
    %4410 = vmatprep.subr.bf16.mxu0 0
    %4411 = vmatpush1.bf16.msra.mxu0 0
    %4412 = vmatprep.subr.bf16.mxu0 0
    %4413 = vmatpush1.bf16.msra.mxu0 0
    %4414 = vmatprep.subr.bf16.mxu0 0
    %4415 = vmatpush1.bf16.msra.mxu0 0
    %4416 = vmatprep.subr.bf16.mxu0 0
    %4417 = vmatpush1.bf16.msra.mxu0 0
    %4418 = vmatprep.subr.bf16.mxu0 0
    %4419 = vmatpush1.bf16.msra.mxu0 0
    %4420 = vmatprep.subr.bf16.mxu0 0
    %4421 = vmatpush1.bf16.msra.mxu0 0
    %4422 = vmatprep.subr.bf16.mxu0 0
    %4423 = vmatpush1.bf16.msra.mxu0 0
    %4424 = vmatprep.subr.bf16.mxu0 0
    %4425 = vmatpush1.bf16.msra.mxu0 0
    %4426 = vmatprep.subr.bf16.mxu0 0
    %4427 = vmatpush1.bf16.msra.mxu0 0
    %4428 = vmatprep.subr.bf16.mxu0 0
    %4429 = vmatpush1.bf16.msra.mxu0 0
    %4430 = vmatprep.subr.bf16.mxu0 0
    %4431 = vmatpush1.bf16.msra.mxu0 0
    %4432 = vmatprep.subr.bf16.mxu0 0
    %4433 = vmatpush1.bf16.msra.mxu0 0
    %4434 = vmatprep.subr.bf16.mxu0 0
    %4435 = vmatpush1.bf16.msra.mxu0 0
    %4436 = vmatprep.mubr.bf16.mxu0 0
    %4437 = vmatmul.mubr.bf16.gmra.mrb[0].mxu0 %v4396
    %v4438 = vpop.f32.mrb[0].mxu0
    %v4439 = vadd.f32 0.0, %v4438
    %v4440 = vpop.f32.mrb[0].mxu0
    %v4441 = vpop.f32.mrb[0].mxu0
    %v4442 = vadd.f32 0.0, %v4441
    %v4443 = vpop.f32.mrb[0].mxu0
    %4444 = vmatprep.mubr.bf16.mxu0 0
    %4445 = vmatmul.mubr.bf16.gmra.mrb[0].mxu0 %v4399
    %v4446 = vpop.f32.mrb[0].mxu0
    %v4447 = vadd.f32 0.0, %v4446
    %v4448 = vpop.f32.mrb[0].mxu0
    %v4449 = vpop.f32.mrb[0].mxu0
    %v4450 = vadd.f32 0.0, %v4449
    %v4451 = vpop.f32.mrb[0].mxu0
    %4452 = vdwg.mxu0
    %v4454 = vsel %vm3121, %v3916, 0
    %v4457 = vsel %vm3121, %v3917, 0
    %v4460 = vsel %vm4168, %v4151, 0
    %4462 = vmatprep.subr.bf16.mxu0 0
    %4463 = vmatpush1.bf16.msra.mxu0 %v4460
    %4464 = vmatprep.subr.bf16.mxu0 0
    %4465 = vmatpush1.bf16.msra.mxu0 0
    %4466 = vmatprep.subr.bf16.mxu0 0
    %4467 = vmatpush1.bf16.msra.mxu0 0
    %4468 = vmatprep.subr.bf16.mxu0 0
    %4469 = vmatpush1.bf16.msra.mxu0 0
    %4470 = vmatprep.subr.bf16.mxu0 0
    %4471 = vmatpush1.bf16.msra.mxu0 0
    %4472 = vmatprep.subr.bf16.mxu0 0
    %4473 = vmatpush1.bf16.msra.mxu0 0
    %4474 = vmatprep.subr.bf16.mxu0 0
    %4475 = vmatpush1.bf16.msra.mxu0 0
    %4476 = vmatprep.subr.bf16.mxu0 0
    %4477 = vmatpush1.bf16.msra.mxu0 0
    %4478 = vmatprep.subr.bf16.mxu0 0
    %4479 = vmatpush1.bf16.msra.mxu0 0
    %4480 = vmatprep.subr.bf16.mxu0 0
    %4481 = vmatpush1.bf16.msra.mxu0 0
    %4482 = vmatprep.subr.bf16.mxu0 0
    %4483 = vmatpush1.bf16.msra.mxu0 0
    %4484 = vmatprep.subr.bf16.mxu0 0
    %4485 = vmatpush1.bf16.msra.mxu0 0
    %4486 = vmatprep.subr.bf16.mxu0 0
    %4487 = vmatpush1.bf16.msra.mxu0 0
    %4488 = vmatprep.subr.bf16.mxu0 0
    %4489 = vmatpush1.bf16.msra.mxu0 0
    %4490 = vmatprep.subr.bf16.mxu0 0
    %4491 = vmatpush1.bf16.msra.mxu0 0
    %4492 = vmatprep.subr.bf16.mxu0 0
    %4493 = vmatpush1.bf16.msra.mxu0 0
    %4494 = vmatprep.mubr.bf16.mxu0 0
    %4495 = vmatmul.mubr.bf16.gmra.mrb[0].mxu0 %v4454
    %v4496 = vpop.f32.mrb[0].mxu0
    %v4497 = vadd.f32 0.0, %v4496
    %v4498 = vpop.f32.mrb[0].mxu0
    %v4499 = vpop.f32.mrb[0].mxu0
    %v4500 = vadd.f32 0.0, %v4499
    %v4501 = vpop.f32.mrb[0].mxu0
    %4502 = vmatprep.mubr.bf16.mxu0 0
    %4503 = vmatmul.mubr.bf16.gmra.mrb[0].mxu0 %v4457
    %v4504 = vpop.f32.mrb[0].mxu0
    %v4505 = vadd.f32 0.0, %v4504
    %v4506 = vpop.f32.mrb[0].mxu0
    %v4507 = vpop.f32.mrb[0].mxu0
    %v4508 = vadd.f32 0.0, %v4507
    %v4509 = vpop.f32.mrb[0].mxu0
    %4510 = vdwg.mxu0
    %v4512 = vsel %vm3121, %v3918, 0
    %v4515 = vsel %vm3121, %v3919, 0
    %v4518 = vsel %vm4168, %v4152, 0
    %4520 = vmatprep.subr.bf16.mxu0 0
    %4521 = vmatpush1.bf16.msra.mxu0 %v4518
    %4522 = vmatprep.subr.bf16.mxu0 0
    %4523 = vmatpush1.bf16.msra.mxu0 0
    %4524 = vmatprep.subr.bf16.mxu0 0
    %4525 = vmatpush1.bf16.msra.mxu0 0
    %4526 = vmatprep.subr.bf16.mxu0 0
    %4527 = vmatpush1.bf16.msra.mxu0 0
    %4528 = vmatprep.subr.bf16.mxu0 0
    %4529 = vmatpush1.bf16.msra.mxu0 0
    %4530 = vmatprep.subr.bf16.mxu0 0
    %4531 = vmatpush1.bf16.msra.mxu0 0
    %4532 = vmatprep.subr.bf16.mxu0 0
    %4533 = vmatpush1.bf16.msra.mxu0 0
    %4534 = vmatprep.subr.bf16.mxu0 0
    %4535 = vmatpush1.bf16.msra.mxu0 0
    %4536 = vmatprep.subr.bf16.mxu0 0
    %4537 = vmatpush1.bf16.msra.mxu0 0
    %4538 = vmatprep.subr.bf16.mxu0 0
    %4539 = vmatpush1.bf16.msra.mxu0 0
    %4540 = vmatprep.subr.bf16.mxu0 0
    %4541 = vmatpush1.bf16.msra.mxu0 0
    %4542 = vmatprep.subr.bf16.mxu0 0
    %4543 = vmatpush1.bf16.msra.mxu0 0
    %4544 = vmatprep.subr.bf16.mxu0 0
    %4545 = vmatpush1.bf16.msra.mxu0 0
    %4546 = vmatprep.subr.bf16.mxu0 0
    %4547 = vmatpush1.bf16.msra.mxu0 0
    %4548 = vmatprep.subr.bf16.mxu0 0
    %4549 = vmatpush1.bf16.msra.mxu0 0
    %4550 = vmatprep.subr.bf16.mxu0 0
    %4551 = vmatpush1.bf16.msra.mxu0 0
    %4552 = vmatprep.mubr.bf16.mxu0 0
    %4553 = vmatmul.mubr.bf16.gmra.mrb[0].mxu0 %v4512
    %v4554 = vpop.f32.mrb[0].mxu0
    %v4555 = vadd.f32 0.0, %v4554
    %v4556 = vpop.f32.mrb[0].mxu0
    %v4557 = vpop.f32.mrb[0].mxu0
    %v4558 = vadd.f32 0.0, %v4557
    %v4559 = vpop.f32.mrb[0].mxu0
    %4560 = vmatprep.mubr.bf16.mxu0 0
    %4561 = vmatmul.mubr.bf16.gmra.mrb[0].mxu0 %v4515
    %v4562 = vpop.f32.mrb[0].mxu0
    %v4563 = vadd.f32 0.0, %v4562
    %v4564 = vpop.f32.mrb[0].mxu0
    %v4565 = vpop.f32.mrb[0].mxu0
    %v4566 = vadd.f32 0.0, %v4565
    %v4567 = vpop.f32.mrb[0].mxu0
    %4568 = vdwg.mxu0
    %v4570 = vsel %vm3121, %v3920, 0
    %v4573 = vsel %vm3121, %v3921, 0
    %v4576 = vsel %vm4168, %v4153, 0
    %4578 = vmatprep.subr.bf16.mxu0 0
    %4579 = vmatpush1.bf16.msra.mxu0 %v4576
    %4580 = vmatprep.subr.bf16.mxu0 0
    %4581 = vmatpush1.bf16.msra.mxu0 0
    %4582 = vmatprep.subr.bf16.mxu0 0
    %4583 = vmatpush1.bf16.msra.mxu0 0
    %4584 = vmatprep.subr.bf16.mxu0 0
    %4585 = vmatpush1.bf16.msra.mxu0 0
    %4586 = vmatprep.subr.bf16.mxu0 0
    %4587 = vmatpush1.bf16.msra.mxu0 0
    %4588 = vmatprep.subr.bf16.mxu0 0
    %4589 = vmatpush1.bf16.msra.mxu0 0
    %4590 = vmatprep.subr.bf16.mxu0 0
    %4591 = vmatpush1.bf16.msra.mxu0 0
    %4592 = vmatprep.subr.bf16.mxu0 0
    %4593 = vmatpush1.bf16.msra.mxu0 0
    %4594 = vmatprep.subr.bf16.mxu0 0
    %4595 = vmatpush1.bf16.msra.mxu0 0
    %4596 = vmatprep.subr.bf16.mxu0 0
    %4597 = vmatpush1.bf16.msra.mxu0 0
    %4598 = vmatprep.subr.bf16.mxu0 0
    %4599 = vmatpush1.bf16.msra.mxu0 0
    %4600 = vmatprep.subr.bf16.mxu0 0
    %4601 = vmatpush1.bf16.msra.mxu0 0
    %4602 = vmatprep.subr.bf16.mxu0 0
    %4603 = vmatpush1.bf16.msra.mxu0 0
    %4604 = vmatprep.subr.bf16.mxu0 0
    %4605 = vmatpush1.bf16.msra.mxu0 0
    %4606 = vmatprep.subr.bf16.mxu0 0
    %4607 = vmatpush1.bf16.msra.mxu0 0
    %4608 = vmatprep.subr.bf16.mxu0 0
    %4609 = vmatpush1.bf16.msra.mxu0 0
    %4610 = vmatprep.mubr.bf16.mxu0 0
    %4611 = vmatmul.mubr.bf16.gmra.mrb[0].mxu0 %v4570
    %v4612 = vpop.f32.mrb[0].mxu0
    %v4613 = vadd.f32 0.0, %v4612
    %v4614 = vpop.f32.mrb[0].mxu0
    %v4615 = vpop.f32.mrb[0].mxu0
    %v4616 = vadd.f32 0.0, %v4615
    %v4617 = vpop.f32.mrb[0].mxu0
    %4618 = vmatprep.mubr.bf16.mxu0 0
    %4619 = vmatmul.mubr.bf16.gmra.mrb[0].mxu0 %v4573
    %v4620 = vpop.f32.mrb[0].mxu0
    %v4621 = vadd.f32 0.0, %v4620
    %v4622 = vpop.f32.mrb[0].mxu0
    %v4623 = vpop.f32.mrb[0].mxu0
    %v4624 = vadd.f32 0.0, %v4623
    %v4625 = vpop.f32.mrb[0].mxu0
    %4626 = vdwg.mxu0
    %v4628 = vsel %vm3121, %v3922, 0
    %v4631 = vsel %vm3121, %v3923, 0
    %v4634 = vsel %vm4168, %v4154, 0
    %4636 = vmatprep.subr.bf16.mxu0 0
    %4637 = vmatpush1.bf16.msra.mxu0 %v4634
    %4638 = vmatprep.subr.bf16.mxu0 0
    %4639 = vmatpush1.bf16.msra.mxu0 0
    %4640 = vmatprep.subr.bf16.mxu0 0
    %4641 = vmatpush1.bf16.msra.mxu0 0
    %4642 = vmatprep.subr.bf16.mxu0 0
    %4643 = vmatpush1.bf16.msra.mxu0 0
    %4644 = vmatprep.subr.bf16.mxu0 0
    %4645 = vmatpush1.bf16.msra.mxu0 0
    %4646 = vmatprep.subr.bf16.mxu0 0
    %4647 = vmatpush1.bf16.msra.mxu0 0
    %4648 = vmatprep.subr.bf16.mxu0 0
    %4649 = vmatpush1.bf16.msra.mxu0 0
    %4650 = vmatprep.subr.bf16.mxu0 0
    %4651 = vmatpush1.bf16.msra.mxu0 0
    %4652 = vmatprep.subr.bf16.mxu0 0
    %4653 = vmatpush1.bf16.msra.mxu0 0
    %4654 = vmatprep.subr.bf16.mxu0 0
    %4655 = vmatpush1.bf16.msra.mxu0 0
    %4656 = vmatprep.subr.bf16.mxu0 0
    %4657 = vmatpush1.bf16.msra.mxu0 0
    %4658 = vmatprep.subr.bf16.mxu0 0
    %4659 = vmatpush1.bf16.msra.mxu0 0
    %4660 = vmatprep.subr.bf16.mxu0 0
    %4661 = vmatpush1.bf16.msra.mxu0 0
    %4662 = vmatprep.subr.bf16.mxu0 0
    %4663 = vmatpush1.bf16.msra.mxu0 0
    %4664 = vmatprep.subr.bf16.mxu0 0
    %4665 = vmatpush1.bf16.msra.mxu0 0
    %4666 = vmatprep.subr.bf16.mxu0 0
    %4667 = vmatpush1.bf16.msra.mxu0 0
    %4668 = vmatprep.mubr.bf16.mxu0 0
    %4669 = vmatmul.mubr.bf16.gmra.mrb[0].mxu0 %v4628
    %v4670 = vpop.f32.mrb[0].mxu0
    %v4671 = vadd.f32 0.0, %v4670
    %v4672 = vpop.f32.mrb[0].mxu0
    %v4673 = vpop.f32.mrb[0].mxu0
    %v4674 = vadd.f32 0.0, %v4673
    %v4675 = vpop.f32.mrb[0].mxu0
    %4676 = vmatprep.mubr.bf16.mxu0 0
    %4677 = vmatmul.mubr.bf16.gmra.mrb[0].mxu0 %v4631
    %v4678 = vpop.f32.mrb[0].mxu0
    %v4679 = vadd.f32 0.0, %v4678
    %v4680 = vpop.f32.mrb[0].mxu0
    %v4681 = vpop.f32.mrb[0].mxu0
    %v4682 = vadd.f32 0.0, %v4681
    %v4683 = vpop.f32.mrb[0].mxu0
    %4684 = vdwg.mxu0
    %v4686 = vsel %vm3121, %v3924, 0
    %v4689 = vsel %vm3121, %v3925, 0
    %v4692 = vsel %vm4168, %v4155, 0
    %4694 = vmatprep.subr.bf16.mxu0 0
    %4695 = vmatpush1.bf16.msra.mxu0 %v4692
    %4696 = vmatprep.subr.bf16.mxu0 0
    %4697 = vmatpush1.bf16.msra.mxu0 0
    %4698 = vmatprep.subr.bf16.mxu0 0
    %4699 = vmatpush1.bf16.msra.mxu0 0
    %4700 = vmatprep.subr.bf16.mxu0 0
    %4701 = vmatpush1.bf16.msra.mxu0 0
    %4702 = vmatprep.subr.bf16.mxu0 0
    %4703 = vmatpush1.bf16.msra.mxu0 0
    %4704 = vmatprep.subr.bf16.mxu0 0
    %4705 = vmatpush1.bf16.msra.mxu0 0
    %4706 = vmatprep.subr.bf16.mxu0 0
    %4707 = vmatpush1.bf16.msra.mxu0 0
    %4708 = vmatprep.subr.bf16.mxu0 0
    %4709 = vmatpush1.bf16.msra.mxu0 0
    %4710 = vmatprep.subr.bf16.mxu0 0
    %4711 = vmatpush1.bf16.msra.mxu0 0
    %4712 = vmatprep.subr.bf16.mxu0 0
    %4713 = vmatpush1.bf16.msra.mxu0 0
    %4714 = vmatprep.subr.bf16.mxu0 0
    %4715 = vmatpush1.bf16.msra.mxu0 0
    %4716 = vmatprep.subr.bf16.mxu0 0
    %4717 = vmatpush1.bf16.msra.mxu0 0
    %4718 = vmatprep.subr.bf16.mxu0 0
    %4719 = vmatpush1.bf16.msra.mxu0 0
    %4720 = vmatprep.subr.bf16.mxu0 0
    %4721 = vmatpush1.bf16.msra.mxu0 0
    %4722 = vmatprep.subr.bf16.mxu0 0
    %4723 = vmatpush1.bf16.msra.mxu0 0
    %4724 = vmatprep.subr.bf16.mxu0 0
    %4725 = vmatpush1.bf16.msra.mxu0 0
    %4726 = vmatprep.mubr.bf16.mxu0 0
    %4727 = vmatmul.mubr.bf16.gmra.mrb[0].mxu0 %v4686
    %v4728 = vpop.f32.mrb[0].mxu0
    %v4729 = vadd.f32 0.0, %v4728
    %v4730 = vpop.f32.mrb[0].mxu0
    %v4731 = vpop.f32.mrb[0].mxu0
    %v4732 = vadd.f32 0.0, %v4731
    %v4733 = vpop.f32.mrb[0].mxu0
    %4734 = vmatprep.mubr.bf16.mxu0 0
    %4735 = vmatmul.mubr.bf16.gmra.mrb[0].mxu0 %v4689
    %v4736 = vpop.f32.mrb[0].mxu0
    %v4737 = vadd.f32 0.0, %v4736
    %v4738 = vpop.f32.mrb[0].mxu0
    %v4739 = vpop.f32.mrb[0].mxu0
    %v4740 = vadd.f32 0.0, %v4739
    %v4741 = vpop.f32.mrb[0].mxu0
    %4742 = vdwg.mxu0
    %v4744 = vsel %vm3121, %v3926, 0
    %v4747 = vsel %vm3121, %v3927, 0
    %v4750 = vsel %vm4168, %v4156, 0
    %4752 = vmatprep.subr.bf16.mxu0 0
    %4753 = vmatpush1.bf16.msra.mxu0 %v4750
    %4754 = vmatprep.subr.bf16.mxu0 0
    %4755 = vmatpush1.bf16.msra.mxu0 0
    %4756 = vmatprep.subr.bf16.mxu0 0
    %4757 = vmatpush1.bf16.msra.mxu0 0
    %4758 = vmatprep.subr.bf16.mxu0 0
    %4759 = vmatpush1.bf16.msra.mxu0 0
    %4760 = vmatprep.subr.bf16.mxu0 0
    %4761 = vmatpush1.bf16.msra.mxu0 0
    %4762 = vmatprep.subr.bf16.mxu0 0
    %4763 = vmatpush1.bf16.msra.mxu0 0
    %4764 = vmatprep.subr.bf16.mxu0 0
    %4765 = vmatpush1.bf16.msra.mxu0 0
    %4766 = vmatprep.subr.bf16.mxu0 0
    %4767 = vmatpush1.bf16.msra.mxu0 0
    %4768 = vmatprep.subr.bf16.mxu0 0
    %4769 = vmatpush1.bf16.msra.mxu0 0
    %4770 = vmatprep.subr.bf16.mxu0 0
    %4771 = vmatpush1.bf16.msra.mxu0 0
    %4772 = vmatprep.subr.bf16.mxu0 0
    %4773 = vmatpush1.bf16.msra.mxu0 0
    %4774 = vmatprep.subr.bf16.mxu0 0
    %4775 = vmatpush1.bf16.msra.mxu0 0
    %4776 = vmatprep.subr.bf16.mxu0 0
    %4777 = vmatpush1.bf16.msra.mxu0 0
    %4778 = vmatprep.subr.bf16.mxu0 0
    %4779 = vmatpush1.bf16.msra.mxu0 0
    %4780 = vmatprep.subr.bf16.mxu0 0
    %4781 = vmatpush1.bf16.msra.mxu0 0
    %4782 = vmatprep.subr.bf16.mxu0 0
    %4783 = vmatpush1.bf16.msra.mxu0 0
    %4784 = vmatprep.mubr.bf16.mxu0 0
    %4785 = vmatmul.mubr.bf16.gmra.mrb[0].mxu0 %v4744
    %v4786 = vpop.f32.mrb[0].mxu0
    %v4787 = vadd.f32 0.0, %v4786
    %v4788 = vpop.f32.mrb[0].mxu0
    %v4789 = vpop.f32.mrb[0].mxu0
    %v4790 = vadd.f32 0.0, %v4789
    %v4791 = vpop.f32.mrb[0].mxu0
    %4792 = vmatprep.mubr.bf16.mxu0 0
    %4793 = vmatmul.mubr.bf16.gmra.mrb[0].mxu0 %v4747
    %v4794 = vpop.f32.mrb[0].mxu0
    %v4795 = vadd.f32 0.0, %v4794
    %v4796 = vpop.f32.mrb[0].mxu0
    %v4797 = vpop.f32.mrb[0].mxu0
    %v4798 = vadd.f32 0.0, %v4797
    %v4799 = vpop.f32.mrb[0].mxu0
    %4800 = vdwg.mxu0
    %v4802 = vsel %vm3121, %v3928, 0
    %v4805 = vsel %vm3121, %v3929, 0
    %v4808 = vsel %vm4168, %v4157, 0
    %4810 = vmatprep.subr.bf16.mxu0 0
    %4811 = vmatpush1.bf16.msra.mxu0 %v4808
    %4812 = vmatprep.subr.bf16.mxu0 0
    %4813 = vmatpush1.bf16.msra.mxu0 0
    %4814 = vmatprep.subr.bf16.mxu0 0
    %4815 = vmatpush1.bf16.msra.mxu0 0
    %4816 = vmatprep.subr.bf16.mxu0 0
    %4817 = vmatpush1.bf16.msra.mxu0 0
    %4818 = vmatprep.subr.bf16.mxu0 0
    %4819 = vmatpush1.bf16.msra.mxu0 0
    %4820 = vmatprep.subr.bf16.mxu0 0
    %4821 = vmatpush1.bf16.msra.mxu0 0
    %4822 = vmatprep.subr.bf16.mxu0 0
    %4823 = vmatpush1.bf16.msra.mxu0 0
    %4824 = vmatprep.subr.bf16.mxu0 0
    %4825 = vmatpush1.bf16.msra.mxu0 0
    %4826 = vmatprep.subr.bf16.mxu0 0
    %4827 = vmatpush1.bf16.msra.mxu0 0
    %4828 = vmatprep.subr.bf16.mxu0 0
    %4829 = vmatpush1.bf16.msra.mxu0 0
    %4830 = vmatprep.subr.bf16.mxu0 0
    %4831 = vmatpush1.bf16.msra.mxu0 0
    %4832 = vmatprep.subr.bf16.mxu0 0
    %4833 = vmatpush1.bf16.msra.mxu0 0
    %4834 = vmatprep.subr.bf16.mxu0 0
    %4835 = vmatpush1.bf16.msra.mxu0 0
    %4836 = vmatprep.subr.bf16.mxu0 0
    %4837 = vmatpush1.bf16.msra.mxu0 0
    %4838 = vmatprep.subr.bf16.mxu0 0
    %4839 = vmatpush1.bf16.msra.mxu0 0
    %4840 = vmatprep.subr.bf16.mxu0 0
    %4841 = vmatpush1.bf16.msra.mxu0 0
    %4842 = vmatprep.mubr.bf16.mxu0 0
    %4843 = vmatmul.mubr.bf16.gmra.mrb[0].mxu0 %v4802
    %v4844 = vpop.f32.mrb[0].mxu0
    %v4845 = vadd.f32 0.0, %v4844
    %v4846 = vpop.f32.mrb[0].mxu0
    %v4847 = vpop.f32.mrb[0].mxu0
    %v4848 = vadd.f32 0.0, %v4847
    %v4849 = vpop.f32.mrb[0].mxu0
    %4850 = vmatprep.mubr.bf16.mxu0 0
    %4851 = vmatmul.mubr.bf16.gmra.mrb[0].mxu0 %v4805
    %v4852 = vpop.f32.mrb[0].mxu0
    %v4853 = vadd.f32 0.0, %v4852
    %v4854 = vpop.f32.mrb[0].mxu0
    %v4855 = vpop.f32.mrb[0].mxu0
    %v4856 = vadd.f32 0.0, %v4855
    %v4857 = vpop.f32.mrb[0].mxu0
    %4858 = vdwg.mxu0
    %v4860 = vsel %vm3121, %v3930, 0
    %v4863 = vsel %vm3121, %v3931, 0
    %v4866 = vsel %vm4168, %v4158, 0
    %4868 = vmatprep.subr.bf16.mxu0 0
    %4869 = vmatpush1.bf16.msra.mxu0 %v4866
    %4870 = vmatprep.subr.bf16.mxu0 0
    %4871 = vmatpush1.bf16.msra.mxu0 0
    %4872 = vmatprep.subr.bf16.mxu0 0
    %4873 = vmatpush1.bf16.msra.mxu0 0
    %4874 = vmatprep.subr.bf16.mxu0 0
    %4875 = vmatpush1.bf16.msra.mxu0 0
    %4876 = vmatprep.subr.bf16.mxu0 0
    %4877 = vmatpush1.bf16.msra.mxu0 0
    %4878 = vmatprep.subr.bf16.mxu0 0
    %4879 = vmatpush1.bf16.msra.mxu0 0
    %4880 = vmatprep.subr.bf16.mxu0 0
    %4881 = vmatpush1.bf16.msra.mxu0 0
    %4882 = vmatprep.subr.bf16.mxu0 0
    %4883 = vmatpush1.bf16.msra.mxu0 0
    %4884 = vmatprep.subr.bf16.mxu0 0
    %4885 = vmatpush1.bf16.msra.mxu0 0
    %4886 = vmatprep.subr.bf16.mxu0 0
    %4887 = vmatpush1.bf16.msra.mxu0 0
    %4888 = vmatprep.subr.bf16.mxu0 0
    %4889 = vmatpush1.bf16.msra.mxu0 0
    %4890 = vmatprep.subr.bf16.mxu0 0
    %4891 = vmatpush1.bf16.msra.mxu0 0
    %4892 = vmatprep.subr.bf16.mxu0 0
    %4893 = vmatpush1.bf16.msra.mxu0 0
    %4894 = vmatprep.subr.bf16.mxu0 0
    %4895 = vmatpush1.bf16.msra.mxu0 0
    %4896 = vmatprep.subr.bf16.mxu0 0
    %4897 = vmatpush1.bf16.msra.mxu0 0
    %4898 = vmatprep.subr.bf16.mxu0 0
    %4899 = vmatpush1.bf16.msra.mxu0 0
    %4900 = vmatprep.mubr.bf16.mxu0 0
    %4901 = vmatmul.mubr.bf16.gmra.mrb[0].mxu0 %v4860
    %v4902 = vpop.f32.mrb[0].mxu0
    %v4903 = vadd.f32 0.0, %v4902
    %v4904 = vpop.f32.mrb[0].mxu0
    %v4905 = vpop.f32.mrb[0].mxu0
    %v4906 = vadd.f32 0.0, %v4905
    %v4907 = vpop.f32.mrb[0].mxu0
    %4908 = vmatprep.mubr.bf16.mxu0 0
    %4909 = vmatmul.mubr.bf16.gmra.mrb[0].mxu0 %v4863
    %v4910 = vpop.f32.mrb[0].mxu0
    %v4911 = vadd.f32 0.0, %v4910
    %v4912 = vpop.f32.mrb[0].mxu0
    %v4913 = vpop.f32.mrb[0].mxu0
    %v4914 = vadd.f32 0.0, %v4913
    %v4915 = vpop.f32.mrb[0].mxu0
    %4916 = vdwg.mxu0
    %v4918 = vsel %vm3121, %v3932, 0
    %v4921 = vsel %vm3121, %v3933, 0
    %v4924 = vsel %vm4168, %v4159, 0
    %4926 = vmatprep.subr.bf16.mxu0 0
    %4927 = vmatpush1.bf16.msra.mxu0 %v4924
    %4928 = vmatprep.subr.bf16.mxu0 0
    %4929 = vmatpush1.bf16.msra.mxu0 0
    %4930 = vmatprep.subr.bf16.mxu0 0
    %4931 = vmatpush1.bf16.msra.mxu0 0
    %4932 = vmatprep.subr.bf16.mxu0 0
    %4933 = vmatpush1.bf16.msra.mxu0 0
    %4934 = vmatprep.subr.bf16.mxu0 0
    %4935 = vmatpush1.bf16.msra.mxu0 0
    %4936 = vmatprep.subr.bf16.mxu0 0
    %4937 = vmatpush1.bf16.msra.mxu0 0
    %4938 = vmatprep.subr.bf16.mxu0 0
    %4939 = vmatpush1.bf16.msra.mxu0 0
    %4940 = vmatprep.subr.bf16.mxu0 0
    %4941 = vmatpush1.bf16.msra.mxu0 0
    %4942 = vmatprep.subr.bf16.mxu0 0
    %4943 = vmatpush1.bf16.msra.mxu0 0
    %4944 = vmatprep.subr.bf16.mxu0 0
    %4945 = vmatpush1.bf16.msra.mxu0 0
    %4946 = vmatprep.subr.bf16.mxu0 0
    %4947 = vmatpush1.bf16.msra.mxu0 0
    %4948 = vmatprep.subr.bf16.mxu0 0
    %4949 = vmatpush1.bf16.msra.mxu0 0
    %4950 = vmatprep.subr.bf16.mxu0 0
    %4951 = vmatpush1.bf16.msra.mxu0 0
    %4952 = vmatprep.subr.bf16.mxu0 0
    %4953 = vmatpush1.bf16.msra.mxu0 0
    %4954 = vmatprep.subr.bf16.mxu0 0
    %4955 = vmatpush1.bf16.msra.mxu0 0
    %4956 = vmatprep.subr.bf16.mxu0 0
    %4957 = vmatpush1.bf16.msra.mxu0 0
    %4958 = vmatprep.mubr.bf16.mxu0 0
    %4959 = vmatmul.mubr.bf16.gmra.mrb[0].mxu0 %v4918
    %v4960 = vpop.f32.mrb[0].mxu0
    %v4961 = vadd.f32 0.0, %v4960
    %v4962 = vpop.f32.mrb[0].mxu0
    %v4963 = vpop.f32.mrb[0].mxu0
    %v4964 = vadd.f32 0.0, %v4963
    %v4965 = vpop.f32.mrb[0].mxu0
    %4966 = vmatprep.mubr.bf16.mxu0 0
    %4967 = vmatmul.mubr.bf16.gmra.mrb[0].mxu0 %v4921
    %v4968 = vpop.f32.mrb[0].mxu0
    %v4969 = vadd.f32 0.0, %v4968
    %v4970 = vpop.f32.mrb[0].mxu0
    %v4971 = vpop.f32.mrb[0].mxu0
    %v4972 = vadd.f32 0.0, %v4971
    %v4973 = vpop.f32.mrb[0].mxu0
    %4974 = vdwg.mxu0
    %v4976 = vsel %vm3121, %v3934, 0
    %v4979 = vsel %vm3121, %v3935, 0
    %v4982 = vsel %vm4168, %v4160, 0
    %4984 = vmatprep.subr.bf16.mxu0 0
    %4985 = vmatpush1.bf16.msra.mxu0 %v4982
    %4986 = vmatprep.subr.bf16.mxu0 0
    %4987 = vmatpush1.bf16.msra.mxu0 0
    %4988 = vmatprep.subr.bf16.mxu0 0
    %4989 = vmatpush1.bf16.msra.mxu0 0
    %4990 = vmatprep.subr.bf16.mxu0 0
    %4991 = vmatpush1.bf16.msra.mxu0 0
    %4992 = vmatprep.subr.bf16.mxu0 0
    %4993 = vmatpush1.bf16.msra.mxu0 0
    %4994 = vmatprep.subr.bf16.mxu0 0
    %4995 = vmatpush1.bf16.msra.mxu0 0
    %4996 = vmatprep.subr.bf16.mxu0 0
    %4997 = vmatpush1.bf16.msra.mxu0 0
    %4998 = vmatprep.subr.bf16.mxu0 0
    %4999 = vmatpush1.bf16.msra.mxu0 0
    %5000 = vmatprep.subr.bf16.mxu0 0
    %5001 = vmatpush1.bf16.msra.mxu0 0
    %5002 = vmatprep.subr.bf16.mxu0 0
    %5003 = vmatpush1.bf16.msra.mxu0 0
    %5004 = vmatprep.subr.bf16.mxu0 0
    %5005 = vmatpush1.bf16.msra.mxu0 0
    %5006 = vmatprep.subr.bf16.mxu0 0
    %5007 = vmatpush1.bf16.msra.mxu0 0
    %5008 = vmatprep.subr.bf16.mxu0 0
    %5009 = vmatpush1.bf16.msra.mxu0 0
    %5010 = vmatprep.subr.bf16.mxu0 0
    %5011 = vmatpush1.bf16.msra.mxu0 0
    %5012 = vmatprep.subr.bf16.mxu0 0
    %5013 = vmatpush1.bf16.msra.mxu0 0
    %5014 = vmatprep.subr.bf16.mxu0 0
    %5015 = vmatpush1.bf16.msra.mxu0 0
    %5016 = vmatprep.mubr.bf16.mxu0 0
    %5017 = vmatmul.mubr.bf16.gmra.mrb[0].mxu0 %v4976
    %v5018 = vpop.f32.mrb[0].mxu0
    %v5019 = vadd.f32 0.0, %v5018
    %v5020 = vpop.f32.mrb[0].mxu0
    %v5021 = vpop.f32.mrb[0].mxu0
    %v5022 = vadd.f32 0.0, %v5021
    %v5023 = vpop.f32.mrb[0].mxu0
    %5024 = vmatprep.mubr.bf16.mxu0 0
    %5025 = vmatmul.mubr.bf16.gmra.mrb[0].mxu0 %v4979
    %v5026 = vpop.f32.mrb[0].mxu0
    %v5027 = vadd.f32 0.0, %v5026
    %v5028 = vpop.f32.mrb[0].mxu0
    %v5029 = vpop.f32.mrb[0].mxu0
    %v5030 = vadd.f32 0.0, %v5029
    %v5031 = vpop.f32.mrb[0].mxu0
    %5032 = vdwg.mxu0
    %v5034 = vsel %vm3121, %v3936, 0
    %v5037 = vsel %vm3121, %v3937, 0
    %v5040 = vsel %vm4168, %v4161, 0
    %5042 = vmatprep.subr.bf16.mxu0 0
    %5043 = vmatpush1.bf16.msra.mxu0 %v5040
    %5044 = vmatprep.subr.bf16.mxu0 0
    %5045 = vmatpush1.bf16.msra.mxu0 0
    %5046 = vmatprep.subr.bf16.mxu0 0
    %5047 = vmatpush1.bf16.msra.mxu0 0
    %5048 = vmatprep.subr.bf16.mxu0 0
    %5049 = vmatpush1.bf16.msra.mxu0 0
    %5050 = vmatprep.subr.bf16.mxu0 0
    %5051 = vmatpush1.bf16.msra.mxu0 0
    %5052 = vmatprep.subr.bf16.mxu0 0
    %5053 = vmatpush1.bf16.msra.mxu0 0
    %5054 = vmatprep.subr.bf16.mxu0 0
    %5055 = vmatpush1.bf16.msra.mxu0 0
    %5056 = vmatprep.subr.bf16.mxu0 0
    %5057 = vmatpush1.bf16.msra.mxu0 0
    %5058 = vmatprep.subr.bf16.mxu0 0
    %5059 = vmatpush1.bf16.msra.mxu0 0
    %5060 = vmatprep.subr.bf16.mxu0 0
    %5061 = vmatpush1.bf16.msra.mxu0 0
    %5062 = vmatprep.subr.bf16.mxu0 0
    %5063 = vmatpush1.bf16.msra.mxu0 0
    %5064 = vmatprep.subr.bf16.mxu0 0
    %5065 = vmatpush1.bf16.msra.mxu0 0
    %5066 = vmatprep.subr.bf16.mxu0 0
    %5067 = vmatpush1.bf16.msra.mxu0 0
    %5068 = vmatprep.subr.bf16.mxu0 0
    %5069 = vmatpush1.bf16.msra.mxu0 0
    %5070 = vmatprep.subr.bf16.mxu0 0
    %5071 = vmatpush1.bf16.msra.mxu0 0
    %5072 = vmatprep.subr.bf16.mxu0 0
    %5073 = vmatpush1.bf16.msra.mxu0 0
    %5074 = vmatprep.mubr.bf16.mxu0 0
    %5075 = vmatmul.mubr.bf16.gmra.mrb[0].mxu0 %v5034
    %v5076 = vpop.f32.mrb[0].mxu0
    %v5077 = vadd.f32 0.0, %v5076
    %v5078 = vpop.f32.mrb[0].mxu0
    %v5079 = vpop.f32.mrb[0].mxu0
    %v5080 = vadd.f32 0.0, %v5079
    %v5081 = vpop.f32.mrb[0].mxu0
    %5082 = vmatprep.mubr.bf16.mxu0 0
    %5083 = vmatmul.mubr.bf16.gmra.mrb[0].mxu0 %v5037
    %v5084 = vpop.f32.mrb[0].mxu0
    %v5085 = vadd.f32 0.0, %v5084
    %v5086 = vpop.f32.mrb[0].mxu0
    %v5087 = vpop.f32.mrb[0].mxu0
    %v5088 = vadd.f32 0.0, %v5087
    %v5089 = vpop.f32.mrb[0].mxu0
    %5090 = vdwg.mxu0
    %v5092 = vsel %vm4168, %v4098, 0
    %5094 = vmatprep.subr.bf16.mxu0 0
    %5095 = vmatpush1.bf16.msra.mxu0 %v5092
    %5096 = vmatprep.subr.bf16.mxu0 0
    %5097 = vmatpush1.bf16.msra.mxu0 0
    %5098 = vmatprep.subr.bf16.mxu0 0
    %5099 = vmatpush1.bf16.msra.mxu0 0
    %5100 = vmatprep.subr.bf16.mxu0 0
    %5101 = vmatpush1.bf16.msra.mxu0 0
    %5102 = vmatprep.subr.bf16.mxu0 0
    %5103 = vmatpush1.bf16.msra.mxu0 0
    %5104 = vmatprep.subr.bf16.mxu0 0
    %5105 = vmatpush1.bf16.msra.mxu0 0
    %5106 = vmatprep.subr.bf16.mxu0 0
    %5107 = vmatpush1.bf16.msra.mxu0 0
    %5108 = vmatprep.subr.bf16.mxu0 0
    %5109 = vmatpush1.bf16.msra.mxu0 0
    %5110 = vmatprep.subr.bf16.mxu0 0
    %5111 = vmatpush1.bf16.msra.mxu0 0
    %5112 = vmatprep.subr.bf16.mxu0 0
    %5113 = vmatpush1.bf16.msra.mxu0 0
    %5114 = vmatprep.subr.bf16.mxu0 0
    %5115 = vmatpush1.bf16.msra.mxu0 0
    %5116 = vmatprep.subr.bf16.mxu0 0
    %5117 = vmatpush1.bf16.msra.mxu0 0
    %5118 = vmatprep.subr.bf16.mxu0 0
    %5119 = vmatpush1.bf16.msra.mxu0 0
    %5120 = vmatprep.subr.bf16.mxu0 0
    %5121 = vmatpush1.bf16.msra.mxu0 0
    %5122 = vmatprep.subr.bf16.mxu0 0
    %5123 = vmatpush1.bf16.msra.mxu0 0
    %5124 = vmatprep.subr.bf16.mxu0 0
    %5125 = vmatpush1.bf16.msra.mxu0 0
    %5126 = vmatprep.mubr.bf16.mxu0 0
    %5127 = vmatmul.mubr.bf16.gmra.mrb[0].mxu0 %v4163
    %v5128 = vpop.f32.mrb[0].mxu0
    %v5129 = vadd.f32 %v4207, %v5128
    %v5130 = vpop.f32.mrb[0].mxu0
    %v5131 = vpop.f32.mrb[0].mxu0
    %v5132 = vadd.f32 %v4210, %v5131
    %v5133 = vpop.f32.mrb[0].mxu0
    %5134 = vmatprep.mubr.bf16.mxu0 0
    %5135 = vmatmul.mubr.bf16.gmra.mrb[0].mxu0 %v4166
    %v5136 = vpop.f32.mrb[0].mxu0
    %v5137 = vadd.f32 %v4215, %v5136
    %v5138 = vpop.f32.mrb[0].mxu0
    %v5139 = vpop.f32.mrb[0].mxu0
    %v5140 = vadd.f32 %v4218, %v5139
    %v5141 = vpop.f32.mrb[0].mxu0
    %5142 = vdwg.mxu0
    %v5144 = vsel %vm4168, %v4099, 0
    %5146 = vmatprep.subr.bf16.mxu0 0
    %5147 = vmatpush1.bf16.msra.mxu0 %v5144
    %5148 = vmatprep.subr.bf16.mxu0 0
    %5149 = vmatpush1.bf16.msra.mxu0 0
    %5150 = vmatprep.subr.bf16.mxu0 0
    %5151 = vmatpush1.bf16.msra.mxu0 0
    %5152 = vmatprep.subr.bf16.mxu0 0
    %5153 = vmatpush1.bf16.msra.mxu0 0
    %5154 = vmatprep.subr.bf16.mxu0 0
    %5155 = vmatpush1.bf16.msra.mxu0 0
    %5156 = vmatprep.subr.bf16.mxu0 0
    %5157 = vmatpush1.bf16.msra.mxu0 0
    %5158 = vmatprep.subr.bf16.mxu0 0
    %5159 = vmatpush1.bf16.msra.mxu0 0
    %5160 = vmatprep.subr.bf16.mxu0 0
    %5161 = vmatpush1.bf16.msra.mxu0 0
    %5162 = vmatprep.subr.bf16.mxu0 0
    %5163 = vmatpush1.bf16.msra.mxu0 0
    %5164 = vmatprep.subr.bf16.mxu0 0
    %5165 = vmatpush1.bf16.msra.mxu0 0
    %5166 = vmatprep.subr.bf16.mxu0 0
    %5167 = vmatpush1.bf16.msra.mxu0 0
    %5168 = vmatprep.subr.bf16.mxu0 0
    %5169 = vmatpush1.bf16.msra.mxu0 0
    %5170 = vmatprep.subr.bf16.mxu0 0
    %5171 = vmatpush1.bf16.msra.mxu0 0
    %5172 = vmatprep.subr.bf16.mxu0 0
    %5173 = vmatpush1.bf16.msra.mxu0 0
    %5174 = vmatprep.subr.bf16.mxu0 0
    %5175 = vmatpush1.bf16.msra.mxu0 0
    %5176 = vmatprep.subr.bf16.mxu0 0
    %5177 = vmatpush1.bf16.msra.mxu0 0
    %5178 = vmatprep.mubr.bf16.mxu0 0
    %5179 = vmatmul.mubr.bf16.gmra.mrb[0].mxu0 %v4222
    %v5180 = vpop.f32.mrb[0].mxu0
    %v5181 = vadd.f32 %v4265, %v5180
    %v5182 = vpop.f32.mrb[0].mxu0
    %v5183 = vpop.f32.mrb[0].mxu0
    %v5184 = vadd.f32 %v4268, %v5183
    %v5185 = vpop.f32.mrb[0].mxu0
    %5186 = vmatprep.mubr.bf16.mxu0 0
    %5187 = vmatmul.mubr.bf16.gmra.mrb[0].mxu0 %v4225
    %v5188 = vpop.f32.mrb[0].mxu0
    %v5189 = vadd.f32 %v4273, %v5188
    %v5190 = vpop.f32.mrb[0].mxu0
    %v5191 = vpop.f32.mrb[0].mxu0
    %v5192 = vadd.f32 %v4276, %v5191
    %v5193 = vpop.f32.mrb[0].mxu0
    %5194 = vdwg.mxu0
    %v5196 = vsel %vm4168, %v4100, 0
    %5198 = vmatprep.subr.bf16.mxu0 0
    %5199 = vmatpush1.bf16.msra.mxu0 %v5196
    %5200 = vmatprep.subr.bf16.mxu0 0
    %5201 = vmatpush1.bf16.msra.mxu0 0
    %5202 = vmatprep.subr.bf16.mxu0 0
    %5203 = vmatpush1.bf16.msra.mxu0 0
    %5204 = vmatprep.subr.bf16.mxu0 0
    %5205 = vmatpush1.bf16.msra.mxu0 0
    %5206 = vmatprep.subr.bf16.mxu0 0
    %5207 = vmatpush1.bf16.msra.mxu0 0
    %5208 = vmatprep.subr.bf16.mxu0 0
    %5209 = vmatpush1.bf16.msra.mxu0 0
    %5210 = vmatprep.subr.bf16.mxu0 0
    %5211 = vmatpush1.bf16.msra.mxu0 0
    %5212 = vmatprep.subr.bf16.mxu0 0
    %5213 = vmatpush1.bf16.msra.mxu0 0
    %5214 = vmatprep.subr.bf16.mxu0 0
    %5215 = vmatpush1.bf16.msra.mxu0 0
    %5216 = vmatprep.subr.bf16.mxu0 0
    %5217 = vmatpush1.bf16.msra.mxu0 0
    %5218 = vmatprep.subr.bf16.mxu0 0
    %5219 = vmatpush1.bf16.msra.mxu0 0
    %5220 = vmatprep.subr.bf16.mxu0 0
    %5221 = vmatpush1.bf16.msra.mxu0 0
    %5222 = vmatprep.subr.bf16.mxu0 0
    %5223 = vmatpush1.bf16.msra.mxu0 0
    %5224 = vmatprep.subr.bf16.mxu0 0
    %5225 = vmatpush1.bf16.msra.mxu0 0
    %5226 = vmatprep.subr.bf16.mxu0 0
    %5227 = vmatpush1.bf16.msra.mxu0 0
    %5228 = vmatprep.subr.bf16.mxu0 0
    %5229 = vmatpush1.bf16.msra.mxu0 0
    %5230 = vmatprep.mubr.bf16.mxu0 0
    %5231 = vmatmul.mubr.bf16.gmra.mrb[0].mxu0 %v4280
    %v5232 = vpop.f32.mrb[0].mxu0
    %v5233 = vadd.f32 %v4323, %v5232
    %v5234 = vpop.f32.mrb[0].mxu0
    %v5235 = vpop.f32.mrb[0].mxu0
    %v5236 = vadd.f32 %v4326, %v5235
    %v5237 = vpop.f32.mrb[0].mxu0
    %5238 = vmatprep.mubr.bf16.mxu0 0
    %5239 = vmatmul.mubr.bf16.gmra.mrb[0].mxu0 %v4283
    %v5240 = vpop.f32.mrb[0].mxu0
    %v5241 = vadd.f32 %v4331, %v5240
    %v5242 = vpop.f32.mrb[0].mxu0
    %v5243 = vpop.f32.mrb[0].mxu0
    %v5244 = vadd.f32 %v4334, %v5243
    %v5245 = vpop.f32.mrb[0].mxu0
    %5246 = vdwg.mxu0
    %v5248 = vsel %vm4168, %v4101, 0
    %5250 = vmatprep.subr.bf16.mxu0 0
    %5251 = vmatpush1.bf16.msra.mxu0 %v5248
    %5252 = vmatprep.subr.bf16.mxu0 0
    %5253 = vmatpush1.bf16.msra.mxu0 0
    %5254 = vmatprep.subr.bf16.mxu0 0
    %5255 = vmatpush1.bf16.msra.mxu0 0
    %5256 = vmatprep.subr.bf16.mxu0 0
    %5257 = vmatpush1.bf16.msra.mxu0 0
    %5258 = vmatprep.subr.bf16.mxu0 0
    %5259 = vmatpush1.bf16.msra.mxu0 0
    %5260 = vmatprep.subr.bf16.mxu0 0
    %5261 = vmatpush1.bf16.msra.mxu0 0
    %5262 = vmatprep.subr.bf16.mxu0 0
    %5263 = vmatpush1.bf16.msra.mxu0 0
    %5264 = vmatprep.subr.bf16.mxu0 0
    %5265 = vmatpush1.bf16.msra.mxu0 0
    %5266 = vmatprep.subr.bf16.mxu0 0
    %5267 = vmatpush1.bf16.msra.mxu0 0
    %5268 = vmatprep.subr.bf16.mxu0 0
    %5269 = vmatpush1.bf16.msra.mxu0 0
    %5270 = vmatprep.subr.bf16.mxu0 0
    %5271 = vmatpush1.bf16.msra.mxu0 0
    %5272 = vmatprep.subr.bf16.mxu0 0
    %5273 = vmatpush1.bf16.msra.mxu0 0
    %5274 = vmatprep.subr.bf16.mxu0 0
    %5275 = vmatpush1.bf16.msra.mxu0 0
    %5276 = vmatprep.subr.bf16.mxu0 0
    %5277 = vmatpush1.bf16.msra.mxu0 0
    %5278 = vmatprep.subr.bf16.mxu0 0
    %5279 = vmatpush1.bf16.msra.mxu0 0
    %5280 = vmatprep.subr.bf16.mxu0 0
    %5281 = vmatpush1.bf16.msra.mxu0 0
    %5282 = vmatprep.mubr.bf16.mxu0 0
    %5283 = vmatmul.mubr.bf16.gmra.mrb[0].mxu0 %v4338
    %v5284 = vpop.f32.mrb[0].mxu0
    %v5285 = vadd.f32 %v4381, %v5284
    %v5286 = vpop.f32.mrb[0].mxu0
    %v5287 = vpop.f32.mrb[0].mxu0
    %v5288 = vadd.f32 %v4384, %v5287
    %v5289 = vpop.f32.mrb[0].mxu0
    %5290 = vmatprep.mubr.bf16.mxu0 0
    %5291 = vmatmul.mubr.bf16.gmra.mrb[0].mxu0 %v4341
    %v5292 = vpop.f32.mrb[0].mxu0
    %v5293 = vadd.f32 %v4389, %v5292
    %v5294 = vpop.f32.mrb[0].mxu0
    %v5295 = vpop.f32.mrb[0].mxu0
    %v5296 = vadd.f32 %v4392, %v5295
    %v5297 = vpop.f32.mrb[0].mxu0
    %5298 = vdwg.mxu0
    %v5300 = vsel %vm4168, %v4102, 0
    %5302 = vmatprep.subr.bf16.mxu0 0
    %5303 = vmatpush1.bf16.msra.mxu0 %v5300
    %5304 = vmatprep.subr.bf16.mxu0 0
    %5305 = vmatpush1.bf16.msra.mxu0 0
    %5306 = vmatprep.subr.bf16.mxu0 0
    %5307 = vmatpush1.bf16.msra.mxu0 0
    %5308 = vmatprep.subr.bf16.mxu0 0
    %5309 = vmatpush1.bf16.msra.mxu0 0
    %5310 = vmatprep.subr.bf16.mxu0 0
    %5311 = vmatpush1.bf16.msra.mxu0 0
    %5312 = vmatprep.subr.bf16.mxu0 0
    %5313 = vmatpush1.bf16.msra.mxu0 0
    %5314 = vmatprep.subr.bf16.mxu0 0
    %5315 = vmatpush1.bf16.msra.mxu0 0
    %5316 = vmatprep.subr.bf16.mxu0 0
    %5317 = vmatpush1.bf16.msra.mxu0 0
    %5318 = vmatprep.subr.bf16.mxu0 0
    %5319 = vmatpush1.bf16.msra.mxu0 0
    %5320 = vmatprep.subr.bf16.mxu0 0
    %5321 = vmatpush1.bf16.msra.mxu0 0
    %5322 = vmatprep.subr.bf16.mxu0 0
    %5323 = vmatpush1.bf16.msra.mxu0 0
    %5324 = vmatprep.subr.bf16.mxu0 0
    %5325 = vmatpush1.bf16.msra.mxu0 0
    %5326 = vmatprep.subr.bf16.mxu0 0
    %5327 = vmatpush1.bf16.msra.mxu0 0
    %5328 = vmatprep.subr.bf16.mxu0 0
    %5329 = vmatpush1.bf16.msra.mxu0 0
    %5330 = vmatprep.subr.bf16.mxu0 0
    %5331 = vmatpush1.bf16.msra.mxu0 0
    %5332 = vmatprep.subr.bf16.mxu0 0
    %5333 = vmatpush1.bf16.msra.mxu0 0
    %5334 = vmatprep.mubr.bf16.mxu0 0
    %5335 = vmatmul.mubr.bf16.gmra.mrb[0].mxu0 %v4396
    %v5336 = vpop.f32.mrb[0].mxu0
    %v5337 = vadd.f32 %v4439, %v5336
    %v5338 = vpop.f32.mrb[0].mxu0
    %v5339 = vpop.f32.mrb[0].mxu0
    %v5340 = vadd.f32 %v4442, %v5339
    %v5341 = vpop.f32.mrb[0].mxu0
    %5342 = vmatprep.mubr.bf16.mxu0 0
    %5343 = vmatmul.mubr.bf16.gmra.mrb[0].mxu0 %v4399
    %v5344 = vpop.f32.mrb[0].mxu0
    %v5345 = vadd.f32 %v4447, %v5344
    %v5346 = vpop.f32.mrb[0].mxu0
    %v5347 = vpop.f32.mrb[0].mxu0
    %v5348 = vadd.f32 %v4450, %v5347
    %v5349 = vpop.f32.mrb[0].mxu0
    %5350 = vdwg.mxu0
    %v5352 = vsel %vm4168, %v4103, 0
    %5354 = vmatprep.subr.bf16.mxu0 0
    %5355 = vmatpush1.bf16.msra.mxu0 %v5352
    %5356 = vmatprep.subr.bf16.mxu0 0
    %5357 = vmatpush1.bf16.msra.mxu0 0
    %5358 = vmatprep.subr.bf16.mxu0 0
    %5359 = vmatpush1.bf16.msra.mxu0 0
    %5360 = vmatprep.subr.bf16.mxu0 0
    %5361 = vmatpush1.bf16.msra.mxu0 0
    %5362 = vmatprep.subr.bf16.mxu0 0
    %5363 = vmatpush1.bf16.msra.mxu0 0
    %5364 = vmatprep.subr.bf16.mxu0 0
    %5365 = vmatpush1.bf16.msra.mxu0 0
    %5366 = vmatprep.subr.bf16.mxu0 0
    %5367 = vmatpush1.bf16.msra.mxu0 0
    %5368 = vmatprep.subr.bf16.mxu0 0
    %5369 = vmatpush1.bf16.msra.mxu0 0
    %5370 = vmatprep.subr.bf16.mxu0 0
    %5371 = vmatpush1.bf16.msra.mxu0 0
    %5372 = vmatprep.subr.bf16.mxu0 0
    %5373 = vmatpush1.bf16.msra.mxu0 0
    %5374 = vmatprep.subr.bf16.mxu0 0
    %5375 = vmatpush1.bf16.msra.mxu0 0
    %5376 = vmatprep.subr.bf16.mxu0 0
    %5377 = vmatpush1.bf16.msra.mxu0 0
    %5378 = vmatprep.subr.bf16.mxu0 0
    %5379 = vmatpush1.bf16.msra.mxu0 0
    %5380 = vmatprep.subr.bf16.mxu0 0
    %5381 = vmatpush1.bf16.msra.mxu0 0
    %5382 = vmatprep.subr.bf16.mxu0 0
    %5383 = vmatpush1.bf16.msra.mxu0 0
    %5384 = vmatprep.subr.bf16.mxu0 0
    %5385 = vmatpush1.bf16.msra.mxu0 0
    %5386 = vmatprep.mubr.bf16.mxu0 0
    %5387 = vmatmul.mubr.bf16.gmra.mrb[0].mxu0 %v4454
    %v5388 = vpop.f32.mrb[0].mxu0
    %v5389 = vadd.f32 %v4497, %v5388
    %v5390 = vpop.f32.mrb[0].mxu0
    %v5391 = vpop.f32.mrb[0].mxu0
    %v5392 = vadd.f32 %v4500, %v5391
    %v5393 = vpop.f32.mrb[0].mxu0
    %5394 = vmatprep.mubr.bf16.mxu0 0
    %5395 = vmatmul.mubr.bf16.gmra.mrb[0].mxu0 %v4457
    %v5396 = vpop.f32.mrb[0].mxu0
    %v5397 = vadd.f32 %v4505, %v5396
    %v5398 = vpop.f32.mrb[0].mxu0
    %v5399 = vpop.f32.mrb[0].mxu0
    %v5400 = vadd.f32 %v4508, %v5399
    %v5401 = vpop.f32.mrb[0].mxu0
    %5402 = vdwg.mxu0
    %v5404 = vsel %vm4168, %v4104, 0
    %5406 = vmatprep.subr.bf16.mxu0 0
    %5407 = vmatpush1.bf16.msra.mxu0 %v5404
    %5408 = vmatprep.subr.bf16.mxu0 0
    %5409 = vmatpush1.bf16.msra.mxu0 0
    %5410 = vmatprep.subr.bf16.mxu0 0
    %5411 = vmatpush1.bf16.msra.mxu0 0
    %5412 = vmatprep.subr.bf16.mxu0 0
    %5413 = vmatpush1.bf16.msra.mxu0 0
    %5414 = vmatprep.subr.bf16.mxu0 0
    %5415 = vmatpush1.bf16.msra.mxu0 0
    %5416 = vmatprep.subr.bf16.mxu0 0
    %5417 = vmatpush1.bf16.msra.mxu0 0
    %5418 = vmatprep.subr.bf16.mxu0 0
    %5419 = vmatpush1.bf16.msra.mxu0 0
    %5420 = vmatprep.subr.bf16.mxu0 0
    %5421 = vmatpush1.bf16.msra.mxu0 0
    %5422 = vmatprep.subr.bf16.mxu0 0
    %5423 = vmatpush1.bf16.msra.mxu0 0
    %5424 = vmatprep.subr.bf16.mxu0 0
    %5425 = vmatpush1.bf16.msra.mxu0 0
    %5426 = vmatprep.subr.bf16.mxu0 0
    %5427 = vmatpush1.bf16.msra.mxu0 0
    %5428 = vmatprep.subr.bf16.mxu0 0
    %5429 = vmatpush1.bf16.msra.mxu0 0
    %5430 = vmatprep.subr.bf16.mxu0 0
    %5431 = vmatpush1.bf16.msra.mxu0 0
    %5432 = vmatprep.subr.bf16.mxu0 0
    %5433 = vmatpush1.bf16.msra.mxu0 0
    %5434 = vmatprep.subr.bf16.mxu0 0
    %5435 = vmatpush1.bf16.msra.mxu0 0
    %5436 = vmatprep.subr.bf16.mxu0 0
    %5437 = vmatpush1.bf16.msra.mxu0 0
    %5438 = vmatprep.mubr.bf16.mxu0 0
    %5439 = vmatmul.mubr.bf16.gmra.mrb[0].mxu0 %v4512
    %v5440 = vpop.f32.mrb[0].mxu0
    %v5441 = vadd.f32 %v4555, %v5440
    %v5442 = vpop.f32.mrb[0].mxu0
    %v5443 = vpop.f32.mrb[0].mxu0
    %v5444 = vadd.f32 %v4558, %v5443
    %v5445 = vpop.f32.mrb[0].mxu0
    %5446 = vmatprep.mubr.bf16.mxu0 0
    %5447 = vmatmul.mubr.bf16.gmra.mrb[0].mxu0 %v4515
    %v5448 = vpop.f32.mrb[0].mxu0
    %v5449 = vadd.f32 %v4563, %v5448
    %v5450 = vpop.f32.mrb[0].mxu0
    %v5451 = vpop.f32.mrb[0].mxu0
    %v5452 = vadd.f32 %v4566, %v5451
    %v5453 = vpop.f32.mrb[0].mxu0
    %5454 = vdwg.mxu0
    %v5456 = vsel %vm4168, %v4105, 0
    %5458 = vmatprep.subr.bf16.mxu0 0
    %5459 = vmatpush1.bf16.msra.mxu0 %v5456
    %5460 = vmatprep.subr.bf16.mxu0 0
    %5461 = vmatpush1.bf16.msra.mxu0 0
    %5462 = vmatprep.subr.bf16.mxu0 0
    %5463 = vmatpush1.bf16.msra.mxu0 0
    %5464 = vmatprep.subr.bf16.mxu0 0
    %5465 = vmatpush1.bf16.msra.mxu0 0
    %5466 = vmatprep.subr.bf16.mxu0 0
    %5467 = vmatpush1.bf16.msra.mxu0 0
    %5468 = vmatprep.subr.bf16.mxu0 0
    %5469 = vmatpush1.bf16.msra.mxu0 0
    %5470 = vmatprep.subr.bf16.mxu0 0
    %5471 = vmatpush1.bf16.msra.mxu0 0
    %5472 = vmatprep.subr.bf16.mxu0 0
    %5473 = vmatpush1.bf16.msra.mxu0 0
    %5474 = vmatprep.subr.bf16.mxu0 0
    %5475 = vmatpush1.bf16.msra.mxu0 0
    %5476 = vmatprep.subr.bf16.mxu0 0
    %5477 = vmatpush1.bf16.msra.mxu0 0
    %5478 = vmatprep.subr.bf16.mxu0 0
    %5479 = vmatpush1.bf16.msra.mxu0 0
    %5480 = vmatprep.subr.bf16.mxu0 0
    %5481 = vmatpush1.bf16.msra.mxu0 0
    %5482 = vmatprep.subr.bf16.mxu0 0
    %5483 = vmatpush1.bf16.msra.mxu0 0
    %5484 = vmatprep.subr.bf16.mxu0 0
    %5485 = vmatpush1.bf16.msra.mxu0 0
    %5486 = vmatprep.subr.bf16.mxu0 0
    %5487 = vmatpush1.bf16.msra.mxu0 0
    %5488 = vmatprep.subr.bf16.mxu0 0
    %5489 = vmatpush1.bf16.msra.mxu0 0
    %5490 = vmatprep.mubr.bf16.mxu0 0
    %5491 = vmatmul.mubr.bf16.gmra.mrb[0].mxu0 %v4570
    %v5492 = vpop.f32.mrb[0].mxu0
    %v5493 = vadd.f32 %v4613, %v5492
    %v5494 = vpop.f32.mrb[0].mxu0
    %v5495 = vpop.f32.mrb[0].mxu0
    %v5496 = vadd.f32 %v4616, %v5495
    %v5497 = vpop.f32.mrb[0].mxu0
    %5498 = vmatprep.mubr.bf16.mxu0 0
    %5499 = vmatmul.mubr.bf16.gmra.mrb[0].mxu0 %v4573
    %v5500 = vpop.f32.mrb[0].mxu0
    %v5501 = vadd.f32 %v4621, %v5500
    %v5502 = vpop.f32.mrb[0].mxu0
    %v5503 = vpop.f32.mrb[0].mxu0
    %v5504 = vadd.f32 %v4624, %v5503
    %v5505 = vpop.f32.mrb[0].mxu0
    %5506 = vdwg.mxu0
    %v5508 = vsel %vm4168, %v4106, 0
    %5510 = vmatprep.subr.bf16.mxu0 0
    %5511 = vmatpush1.bf16.msra.mxu0 %v5508
    %5512 = vmatprep.subr.bf16.mxu0 0
    %5513 = vmatpush1.bf16.msra.mxu0 0
    %5514 = vmatprep.subr.bf16.mxu0 0
    %5515 = vmatpush1.bf16.msra.mxu0 0
    %5516 = vmatprep.subr.bf16.mxu0 0
    %5517 = vmatpush1.bf16.msra.mxu0 0
    %5518 = vmatprep.subr.bf16.mxu0 0
    %5519 = vmatpush1.bf16.msra.mxu0 0
    %5520 = vmatprep.subr.bf16.mxu0 0
    %5521 = vmatpush1.bf16.msra.mxu0 0
    %5522 = vmatprep.subr.bf16.mxu0 0
    %5523 = vmatpush1.bf16.msra.mxu0 0
    %5524 = vmatprep.subr.bf16.mxu0 0
    %5525 = vmatpush1.bf16.msra.mxu0 0
    %5526 = vmatprep.subr.bf16.mxu0 0
    %5527 = vmatpush1.bf16.msra.mxu0 0
    %5528 = vmatprep.subr.bf16.mxu0 0
    %5529 = vmatpush1.bf16.msra.mxu0 0
    %5530 = vmatprep.subr.bf16.mxu0 0
    %5531 = vmatpush1.bf16.msra.mxu0 0
    %5532 = vmatprep.subr.bf16.mxu0 0
    %5533 = vmatpush1.bf16.msra.mxu0 0
    %5534 = vmatprep.subr.bf16.mxu0 0
    %5535 = vmatpush1.bf16.msra.mxu0 0
    %5536 = vmatprep.subr.bf16.mxu0 0
    %5537 = vmatpush1.bf16.msra.mxu0 0
    %5538 = vmatprep.subr.bf16.mxu0 0
    %5539 = vmatpush1.bf16.msra.mxu0 0
    %5540 = vmatprep.subr.bf16.mxu0 0
    %5541 = vmatpush1.bf16.msra.mxu0 0
    %5542 = vmatprep.mubr.bf16.mxu0 0
    %5543 = vmatmul.mubr.bf16.gmra.mrb[0].mxu0 %v4628
    %v5544 = vpop.f32.mrb[0].mxu0
    %v5545 = vadd.f32 %v4671, %v5544
    %v5546 = vpop.f32.mrb[0].mxu0
    %v5547 = vpop.f32.mrb[0].mxu0
    %v5548 = vadd.f32 %v4674, %v5547
    %v5549 = vpop.f32.mrb[0].mxu0
    %5550 = vmatprep.mubr.bf16.mxu0 0
    %5551 = vmatmul.mubr.bf16.gmra.mrb[0].mxu0 %v4631
    %v5552 = vpop.f32.mrb[0].mxu0
    %v5553 = vadd.f32 %v4679, %v5552
    %v5554 = vpop.f32.mrb[0].mxu0
    %v5555 = vpop.f32.mrb[0].mxu0
    %v5556 = vadd.f32 %v4682, %v5555
    %v5557 = vpop.f32.mrb[0].mxu0
    %5558 = vdwg.mxu0
    %v5560 = vsel %vm4168, %v4107, 0
    %5562 = vmatprep.subr.bf16.mxu0 0
    %5563 = vmatpush1.bf16.msra.mxu0 %v5560
    %5564 = vmatprep.subr.bf16.mxu0 0
    %5565 = vmatpush1.bf16.msra.mxu0 0
    %5566 = vmatprep.subr.bf16.mxu0 0
    %5567 = vmatpush1.bf16.msra.mxu0 0
    %5568 = vmatprep.subr.bf16.mxu0 0
    %5569 = vmatpush1.bf16.msra.mxu0 0
    %5570 = vmatprep.subr.bf16.mxu0 0
    %5571 = vmatpush1.bf16.msra.mxu0 0
    %5572 = vmatprep.subr.bf16.mxu0 0
    %5573 = vmatpush1.bf16.msra.mxu0 0
    %5574 = vmatprep.subr.bf16.mxu0 0
    %5575 = vmatpush1.bf16.msra.mxu0 0
    %5576 = vmatprep.subr.bf16.mxu0 0
    %5577 = vmatpush1.bf16.msra.mxu0 0
    %5578 = vmatprep.subr.bf16.mxu0 0
    %5579 = vmatpush1.bf16.msra.mxu0 0
    %5580 = vmatprep.subr.bf16.mxu0 0
    %5581 = vmatpush1.bf16.msra.mxu0 0
    %5582 = vmatprep.subr.bf16.mxu0 0
    %5583 = vmatpush1.bf16.msra.mxu0 0
    %5584 = vmatprep.subr.bf16.mxu0 0
    %5585 = vmatpush1.bf16.msra.mxu0 0
    %5586 = vmatprep.subr.bf16.mxu0 0
    %5587 = vmatpush1.bf16.msra.mxu0 0
    %5588 = vmatprep.subr.bf16.mxu0 0
    %5589 = vmatpush1.bf16.msra.mxu0 0
    %5590 = vmatprep.subr.bf16.mxu0 0
    %5591 = vmatpush1.bf16.msra.mxu0 0
    %5592 = vmatprep.subr.bf16.mxu0 0
    %5593 = vmatpush1.bf16.msra.mxu0 0
    %5594 = vmatprep.mubr.bf16.mxu0 0
    %5595 = vmatmul.mubr.bf16.gmra.mrb[0].mxu0 %v4686
    %v5596 = vpop.f32.mrb[0].mxu0
    %v5597 = vadd.f32 %v4729, %v5596
    %v5598 = vpop.f32.mrb[0].mxu0
    %v5599 = vpop.f32.mrb[0].mxu0
    %v5600 = vadd.f32 %v4732, %v5599
    %v5601 = vpop.f32.mrb[0].mxu0
    %5602 = vmatprep.mubr.bf16.mxu0 0
    %5603 = vmatmul.mubr.bf16.gmra.mrb[0].mxu0 %v4689
    %v5604 = vpop.f32.mrb[0].mxu0
    %v5605 = vadd.f32 %v4737, %v5604
    %v5606 = vpop.f32.mrb[0].mxu0
    %v5607 = vpop.f32.mrb[0].mxu0
    %v5608 = vadd.f32 %v4740, %v5607
    %v5609 = vpop.f32.mrb[0].mxu0
    %5610 = vdwg.mxu0
    %v5612 = vsel %vm4168, %v4108, 0
    %5614 = vmatprep.subr.bf16.mxu0 0
    %5615 = vmatpush1.bf16.msra.mxu0 %v5612
    %5616 = vmatprep.subr.bf16.mxu0 0
    %5617 = vmatpush1.bf16.msra.mxu0 0
    %5618 = vmatprep.subr.bf16.mxu0 0
    %5619 = vmatpush1.bf16.msra.mxu0 0
    %5620 = vmatprep.subr.bf16.mxu0 0
    %5621 = vmatpush1.bf16.msra.mxu0 0
    %5622 = vmatprep.subr.bf16.mxu0 0
    %5623 = vmatpush1.bf16.msra.mxu0 0
    %5624 = vmatprep.subr.bf16.mxu0 0
    %5625 = vmatpush1.bf16.msra.mxu0 0
    %5626 = vmatprep.subr.bf16.mxu0 0
    %5627 = vmatpush1.bf16.msra.mxu0 0
    %5628 = vmatprep.subr.bf16.mxu0 0
    %5629 = vmatpush1.bf16.msra.mxu0 0
    %5630 = vmatprep.subr.bf16.mxu0 0
    %5631 = vmatpush1.bf16.msra.mxu0 0
    %5632 = vmatprep.subr.bf16.mxu0 0
    %5633 = vmatpush1.bf16.msra.mxu0 0
    %5634 = vmatprep.subr.bf16.mxu0 0
    %5635 = vmatpush1.bf16.msra.mxu0 0
    %5636 = vmatprep.subr.bf16.mxu0 0
    %5637 = vmatpush1.bf16.msra.mxu0 0
    %5638 = vmatprep.subr.bf16.mxu0 0
    %5639 = vmatpush1.bf16.msra.mxu0 0
    %5640 = vmatprep.subr.bf16.mxu0 0
    %5641 = vmatpush1.bf16.msra.mxu0 0
    %5642 = vmatprep.subr.bf16.mxu0 0
    %5643 = vmatpush1.bf16.msra.mxu0 0
    %5644 = vmatprep.subr.bf16.mxu0 0
    %5645 = vmatpush1.bf16.msra.mxu0 0
    %5646 = vmatprep.mubr.bf16.mxu0 0
    %5647 = vmatmul.mubr.bf16.gmra.mrb[0].mxu0 %v4744
    %v5648 = vpop.f32.mrb[0].mxu0
    %v5649 = vadd.f32 %v4787, %v5648
    %v5650 = vpop.f32.mrb[0].mxu0
    %v5651 = vpop.f32.mrb[0].mxu0
    %v5652 = vadd.f32 %v4790, %v5651
    %v5653 = vpop.f32.mrb[0].mxu0
    %5654 = vmatprep.mubr.bf16.mxu0 0
    %5655 = vmatmul.mubr.bf16.gmra.mrb[0].mxu0 %v4747
    %v5656 = vpop.f32.mrb[0].mxu0
    %v5657 = vadd.f32 %v4795, %v5656
    %v5658 = vpop.f32.mrb[0].mxu0
    %v5659 = vpop.f32.mrb[0].mxu0
    %v5660 = vadd.f32 %v4798, %v5659
    %v5661 = vpop.f32.mrb[0].mxu0
    %5662 = vdwg.mxu0
    %v5664 = vsel %vm4168, %v4109, 0
    %5666 = vmatprep.subr.bf16.mxu0 0
    %5667 = vmatpush1.bf16.msra.mxu0 %v5664
    %5668 = vmatprep.subr.bf16.mxu0 0
    %5669 = vmatpush1.bf16.msra.mxu0 0
    %5670 = vmatprep.subr.bf16.mxu0 0
    %5671 = vmatpush1.bf16.msra.mxu0 0
    %5672 = vmatprep.subr.bf16.mxu0 0
    %5673 = vmatpush1.bf16.msra.mxu0 0
    %5674 = vmatprep.subr.bf16.mxu0 0
    %5675 = vmatpush1.bf16.msra.mxu0 0
    %5676 = vmatprep.subr.bf16.mxu0 0
    %5677 = vmatpush1.bf16.msra.mxu0 0
    %5678 = vmatprep.subr.bf16.mxu0 0
    %5679 = vmatpush1.bf16.msra.mxu0 0
    %5680 = vmatprep.subr.bf16.mxu0 0
    %5681 = vmatpush1.bf16.msra.mxu0 0
    %5682 = vmatprep.subr.bf16.mxu0 0
    %5683 = vmatpush1.bf16.msra.mxu0 0
    %5684 = vmatprep.subr.bf16.mxu0 0
    %5685 = vmatpush1.bf16.msra.mxu0 0
    %5686 = vmatprep.subr.bf16.mxu0 0
    %5687 = vmatpush1.bf16.msra.mxu0 0
    %5688 = vmatprep.subr.bf16.mxu0 0
    %5689 = vmatpush1.bf16.msra.mxu0 0
    %5690 = vmatprep.subr.bf16.mxu0 0
    %5691 = vmatpush1.bf16.msra.mxu0 0
    %5692 = vmatprep.subr.bf16.mxu0 0
    %5693 = vmatpush1.bf16.msra.mxu0 0
    %5694 = vmatprep.subr.bf16.mxu0 0
    %5695 = vmatpush1.bf16.msra.mxu0 0
    %5696 = vmatprep.subr.bf16.mxu0 0
    %5697 = vmatpush1.bf16.msra.mxu0 0
    %5698 = vmatprep.mubr.bf16.mxu0 0
    %5699 = vmatmul.mubr.bf16.gmra.mrb[0].mxu0 %v4802
    %v5700 = vpop.f32.mrb[0].mxu0
    %v5701 = vadd.f32 %v4845, %v5700
    %v5702 = vpop.f32.mrb[0].mxu0
    %v5703 = vpop.f32.mrb[0].mxu0
    %v5704 = vadd.f32 %v4848, %v5703
    %v5705 = vpop.f32.mrb[0].mxu0
    %5706 = vmatprep.mubr.bf16.mxu0 0
    %5707 = vmatmul.mubr.bf16.gmra.mrb[0].mxu0 %v4805
    %v5708 = vpop.f32.mrb[0].mxu0
    %v5709 = vadd.f32 %v4853, %v5708
    %v5710 = vpop.f32.mrb[0].mxu0
    %v5711 = vpop.f32.mrb[0].mxu0
    %v5712 = vadd.f32 %v4856, %v5711
    %v5713 = vpop.f32.mrb[0].mxu0
    %5714 = vdwg.mxu0
    %v5716 = vsel %vm4168, %v4110, 0
    %5718 = vmatprep.subr.bf16.mxu0 0
    %5719 = vmatpush1.bf16.msra.mxu0 %v5716
    %5720 = vmatprep.subr.bf16.mxu0 0
    %5721 = vmatpush1.bf16.msra.mxu0 0
    %5722 = vmatprep.subr.bf16.mxu0 0
    %5723 = vmatpush1.bf16.msra.mxu0 0
    %5724 = vmatprep.subr.bf16.mxu0 0
    %5725 = vmatpush1.bf16.msra.mxu0 0
    %5726 = vmatprep.subr.bf16.mxu0 0
    %5727 = vmatpush1.bf16.msra.mxu0 0
    %5728 = vmatprep.subr.bf16.mxu0 0
    %5729 = vmatpush1.bf16.msra.mxu0 0
    %5730 = vmatprep.subr.bf16.mxu0 0
    %5731 = vmatpush1.bf16.msra.mxu0 0
    %5732 = vmatprep.subr.bf16.mxu0 0
    %5733 = vmatpush1.bf16.msra.mxu0 0
    %5734 = vmatprep.subr.bf16.mxu0 0
    %5735 = vmatpush1.bf16.msra.mxu0 0
    %5736 = vmatprep.subr.bf16.mxu0 0
    %5737 = vmatpush1.bf16.msra.mxu0 0
    %5738 = vmatprep.subr.bf16.mxu0 0
    %5739 = vmatpush1.bf16.msra.mxu0 0
    %5740 = vmatprep.subr.bf16.mxu0 0
    %5741 = vmatpush1.bf16.msra.mxu0 0
    %5742 = vmatprep.subr.bf16.mxu0 0
    %5743 = vmatpush1.bf16.msra.mxu0 0
    %5744 = vmatprep.subr.bf16.mxu0 0
    %5745 = vmatpush1.bf16.msra.mxu0 0
    %5746 = vmatprep.subr.bf16.mxu0 0
    %5747 = vmatpush1.bf16.msra.mxu0 0
    %5748 = vmatprep.subr.bf16.mxu0 0
    %5749 = vmatpush1.bf16.msra.mxu0 0
    %5750 = vmatprep.mubr.bf16.mxu0 0
    %5751 = vmatmul.mubr.bf16.gmra.mrb[0].mxu0 %v4860
    %v5752 = vpop.f32.mrb[0].mxu0
    %v5753 = vadd.f32 %v4903, %v5752
    %v5754 = vpop.f32.mrb[0].mxu0
    %v5755 = vpop.f32.mrb[0].mxu0
    %v5756 = vadd.f32 %v4906, %v5755
    %v5757 = vpop.f32.mrb[0].mxu0
    %5758 = vmatprep.mubr.bf16.mxu0 0
    %5759 = vmatmul.mubr.bf16.gmra.mrb[0].mxu0 %v4863
    %v5760 = vpop.f32.mrb[0].mxu0
    %v5761 = vadd.f32 %v4911, %v5760
    %v5762 = vpop.f32.mrb[0].mxu0
    %v5763 = vpop.f32.mrb[0].mxu0
    %v5764 = vadd.f32 %v4914, %v5763
    %v5765 = vpop.f32.mrb[0].mxu0
    %5766 = vdwg.mxu0
    %v5768 = vsel %vm4168, %v4111, 0
    %5770 = vmatprep.subr.bf16.mxu0 0
    %5771 = vmatpush1.bf16.msra.mxu0 %v5768
    %5772 = vmatprep.subr.bf16.mxu0 0
    %5773 = vmatpush1.bf16.msra.mxu0 0
    %5774 = vmatprep.subr.bf16.mxu0 0
    %5775 = vmatpush1.bf16.msra.mxu0 0
    %5776 = vmatprep.subr.bf16.mxu0 0
    %5777 = vmatpush1.bf16.msra.mxu0 0
    %5778 = vmatprep.subr.bf16.mxu0 0
    %5779 = vmatpush1.bf16.msra.mxu0 0
    %5780 = vmatprep.subr.bf16.mxu0 0
    %5781 = vmatpush1.bf16.msra.mxu0 0
    %5782 = vmatprep.subr.bf16.mxu0 0
    %5783 = vmatpush1.bf16.msra.mxu0 0
    %5784 = vmatprep.subr.bf16.mxu0 0
    %5785 = vmatpush1.bf16.msra.mxu0 0
    %5786 = vmatprep.subr.bf16.mxu0 0
    %5787 = vmatpush1.bf16.msra.mxu0 0
    %5788 = vmatprep.subr.bf16.mxu0 0
    %5789 = vmatpush1.bf16.msra.mxu0 0
    %5790 = vmatprep.subr.bf16.mxu0 0
    %5791 = vmatpush1.bf16.msra.mxu0 0
    %5792 = vmatprep.subr.bf16.mxu0 0
    %5793 = vmatpush1.bf16.msra.mxu0 0
    %5794 = vmatprep.subr.bf16.mxu0 0
    %5795 = vmatpush1.bf16.msra.mxu0 0
    %5796 = vmatprep.subr.bf16.mxu0 0
    %5797 = vmatpush1.bf16.msra.mxu0 0
    %5798 = vmatprep.subr.bf16.mxu0 0
    %5799 = vmatpush1.bf16.msra.mxu0 0
    %5800 = vmatprep.subr.bf16.mxu0 0
    %5801 = vmatpush1.bf16.msra.mxu0 0
    %5802 = vmatprep.mubr.bf16.mxu0 0
    %5803 = vmatmul.mubr.bf16.gmra.mrb[0].mxu0 %v4918
    %v5804 = vpop.f32.mrb[0].mxu0
    %v5805 = vadd.f32 %v4961, %v5804
    %v5806 = vpop.f32.mrb[0].mxu0
    %v5807 = vpop.f32.mrb[0].mxu0
    %v5808 = vadd.f32 %v4964, %v5807
    %v5809 = vpop.f32.mrb[0].mxu0
    %5810 = vmatprep.mubr.bf16.mxu0 0
    %5811 = vmatmul.mubr.bf16.gmra.mrb[0].mxu0 %v4921
    %v5812 = vpop.f32.mrb[0].mxu0
    %v5813 = vadd.f32 %v4969, %v5812
    %v5814 = vpop.f32.mrb[0].mxu0
    %v5815 = vpop.f32.mrb[0].mxu0
    %v5816 = vadd.f32 %v4972, %v5815
    %v5817 = vpop.f32.mrb[0].mxu0
    %5818 = vdwg.mxu0
    %v5820 = vsel %vm4168, %v4112, 0
    %5822 = vmatprep.subr.bf16.mxu0 0
    %5823 = vmatpush1.bf16.msra.mxu0 %v5820
    %5824 = vmatprep.subr.bf16.mxu0 0
    %5825 = vmatpush1.bf16.msra.mxu0 0
    %5826 = vmatprep.subr.bf16.mxu0 0
    %5827 = vmatpush1.bf16.msra.mxu0 0
    %5828 = vmatprep.subr.bf16.mxu0 0
    %5829 = vmatpush1.bf16.msra.mxu0 0
    %5830 = vmatprep.subr.bf16.mxu0 0
    %5831 = vmatpush1.bf16.msra.mxu0 0
    %5832 = vmatprep.subr.bf16.mxu0 0
    %5833 = vmatpush1.bf16.msra.mxu0 0
    %5834 = vmatprep.subr.bf16.mxu0 0
    %5835 = vmatpush1.bf16.msra.mxu0 0
    %5836 = vmatprep.subr.bf16.mxu0 0
    %5837 = vmatpush1.bf16.msra.mxu0 0
    %5838 = vmatprep.subr.bf16.mxu0 0
    %5839 = vmatpush1.bf16.msra.mxu0 0
    %5840 = vmatprep.subr.bf16.mxu0 0
    %5841 = vmatpush1.bf16.msra.mxu0 0
    %5842 = vmatprep.subr.bf16.mxu0 0
    %5843 = vmatpush1.bf16.msra.mxu0 0
    %5844 = vmatprep.subr.bf16.mxu0 0
    %5845 = vmatpush1.bf16.msra.mxu0 0
    %5846 = vmatprep.subr.bf16.mxu0 0
    %5847 = vmatpush1.bf16.msra.mxu0 0
    %5848 = vmatprep.subr.bf16.mxu0 0
    %5849 = vmatpush1.bf16.msra.mxu0 0
    %5850 = vmatprep.subr.bf16.mxu0 0
    %5851 = vmatpush1.bf16.msra.mxu0 0
    %5852 = vmatprep.subr.bf16.mxu0 0
    %5853 = vmatpush1.bf16.msra.mxu0 0
    %5854 = vmatprep.mubr.bf16.mxu0 0
    %5855 = vmatmul.mubr.bf16.gmra.mrb[0].mxu0 %v4976
    %v5856 = vpop.f32.mrb[0].mxu0
    %v5857 = vadd.f32 %v5019, %v5856
    %v5858 = vpop.f32.mrb[0].mxu0
    %v5859 = vpop.f32.mrb[0].mxu0
    %v5860 = vadd.f32 %v5022, %v5859
    %v5861 = vpop.f32.mrb[0].mxu0
    %5862 = vmatprep.mubr.bf16.mxu0 0
    %5863 = vmatmul.mubr.bf16.gmra.mrb[0].mxu0 %v4979
    %v5864 = vpop.f32.mrb[0].mxu0
    %v5865 = vadd.f32 %v5027, %v5864
    %v5866 = vpop.f32.mrb[0].mxu0
    %v5867 = vpop.f32.mrb[0].mxu0
    %v5868 = vadd.f32 %v5030, %v5867
    %v5869 = vpop.f32.mrb[0].mxu0
    %5870 = vdwg.mxu0
    %v5872 = vsel %vm4168, %v4113, 0
    %5874 = vmatprep.subr.bf16.mxu0 0
    %5875 = vmatpush1.bf16.msra.mxu0 %v5872
    %5876 = vmatprep.subr.bf16.mxu0 0
    %5877 = vmatpush1.bf16.msra.mxu0 0
    %5878 = vmatprep.subr.bf16.mxu0 0
    %5879 = vmatpush1.bf16.msra.mxu0 0
    %5880 = vmatprep.subr.bf16.mxu0 0
    %5881 = vmatpush1.bf16.msra.mxu0 0
    %5882 = vmatprep.subr.bf16.mxu0 0
    %5883 = vmatpush1.bf16.msra.mxu0 0
    %5884 = vmatprep.subr.bf16.mxu0 0
    %5885 = vmatpush1.bf16.msra.mxu0 0
    %5886 = vmatprep.subr.bf16.mxu0 0
    %5887 = vmatpush1.bf16.msra.mxu0 0
    %5888 = vmatprep.subr.bf16.mxu0 0
    %5889 = vmatpush1.bf16.msra.mxu0 0
    %5890 = vmatprep.subr.bf16.mxu0 0
    %5891 = vmatpush1.bf16.msra.mxu0 0
    %5892 = vmatprep.subr.bf16.mxu0 0
    %5893 = vmatpush1.bf16.msra.mxu0 0
    %5894 = vmatprep.subr.bf16.mxu0 0
    %5895 = vmatpush1.bf16.msra.mxu0 0
    %5896 = vmatprep.subr.bf16.mxu0 0
    %5897 = vmatpush1.bf16.msra.mxu0 0
    %5898 = vmatprep.subr.bf16.mxu0 0
    %5899 = vmatpush1.bf16.msra.mxu0 0
    %5900 = vmatprep.subr.bf16.mxu0 0
    %5901 = vmatpush1.bf16.msra.mxu0 0
    %5902 = vmatprep.subr.bf16.mxu0 0
    %5903 = vmatpush1.bf16.msra.mxu0 0
    %5904 = vmatprep.subr.bf16.mxu0 0
    %5905 = vmatpush1.bf16.msra.mxu0 0
    %5906 = vmatprep.mubr.bf16.mxu0 0
    %5907 = vmatmul.mubr.bf16.gmra.mrb[0].mxu0 %v5034
    %v5908 = vpop.f32.mrb[0].mxu0
    %v5909 = vadd.f32 %v5077, %v5908
    %v5910 = vpop.f32.mrb[0].mxu0
    %v5911 = vpop.f32.mrb[0].mxu0
    %v5912 = vadd.f32 %v5080, %v5911
    %v5913 = vpop.f32.mrb[0].mxu0
    %5914 = vmatprep.mubr.bf16.mxu0 0
    %5915 = vmatmul.mubr.bf16.gmra.mrb[0].mxu0 %v5037
    %v5916 = vpop.f32.mrb[0].mxu0
    %v5917 = vadd.f32 %v5085, %v5916
    %v5918 = vpop.f32.mrb[0].mxu0
    %v5919 = vpop.f32.mrb[0].mxu0
    %v5920 = vadd.f32 %v5088, %v5919
    %v5921 = vpop.f32.mrb[0].mxu0
    %5922 = vdwg.mxu0
    %v5924 = vsel %vm3121, %v4066, 0
    %v5927 = vsel %vm3121, %v4067, 0
    %5929 = vmatprep.subr.bf16.mxu0 0
    %5930 = vmatpush1.bf16.msra.mxu0 %v5092
    %5931 = vmatprep.subr.bf16.mxu0 0
    %5932 = vmatpush1.bf16.msra.mxu0 0
    %5933 = vmatprep.subr.bf16.mxu0 0
    %5934 = vmatpush1.bf16.msra.mxu0 0
    %5935 = vmatprep.subr.bf16.mxu0 0
    %5936 = vmatpush1.bf16.msra.mxu0 0
    %5937 = vmatprep.subr.bf16.mxu0 0
    %5938 = vmatpush1.bf16.msra.mxu0 0
    %5939 = vmatprep.subr.bf16.mxu0 0
    %5940 = vmatpush1.bf16.msra.mxu0 0
    %5941 = vmatprep.subr.bf16.mxu0 0
    %5942 = vmatpush1.bf16.msra.mxu0 0
    %5943 = vmatprep.subr.bf16.mxu0 0
    %5944 = vmatpush1.bf16.msra.mxu0 0
    %5945 = vmatprep.subr.bf16.mxu0 0
    %5946 = vmatpush1.bf16.msra.mxu0 0
    %5947 = vmatprep.subr.bf16.mxu0 0
    %5948 = vmatpush1.bf16.msra.mxu0 0
    %5949 = vmatprep.subr.bf16.mxu0 0
    %5950 = vmatpush1.bf16.msra.mxu0 0
    %5951 = vmatprep.subr.bf16.mxu0 0
    %5952 = vmatpush1.bf16.msra.mxu0 0
    %5953 = vmatprep.subr.bf16.mxu0 0
    %5954 = vmatpush1.bf16.msra.mxu0 0
    %5955 = vmatprep.subr.bf16.mxu0 0
    %5956 = vmatpush1.bf16.msra.mxu0 0
    %5957 = vmatprep.subr.bf16.mxu0 0
    %5958 = vmatpush1.bf16.msra.mxu0 0
    %5959 = vmatprep.subr.bf16.mxu0 0
    %5960 = vmatpush1.bf16.msra.mxu0 0
    %5961 = vmatprep.mubr.bf16.mxu0 0
    %5962 = vmatmul.mubr.bf16.gmra.mrb[0].mxu0 %v5924
    %v5963 = vpop.f32.mrb[0].mxu0
    %v5964 = vadd.f32 0.0, %v5963
    %v5965 = vpop.f32.mrb[0].mxu0
    %v5966 = vpop.f32.mrb[0].mxu0
    %v5967 = vadd.f32 0.0, %v5966
    %v5968 = vpop.f32.mrb[0].mxu0
    %5969 = vmatprep.mubr.bf16.mxu0 0
    %5970 = vmatmul.mubr.bf16.gmra.mrb[0].mxu0 %v5927
    %v5971 = vpop.f32.mrb[0].mxu0
    %v5972 = vadd.f32 0.0, %v5971
    %v5973 = vpop.f32.mrb[0].mxu0
    %v5974 = vpop.f32.mrb[0].mxu0
    %v5975 = vadd.f32 0.0, %v5974
    %v5976 = vpop.f32.mrb[0].mxu0
    %5977 = vdwg.mxu0
    %v5979 = vsel %vm3121, %v4068, 0
    %v5982 = vsel %vm3121, %v4069, 0
    %5984 = vmatprep.subr.bf16.mxu0 0
    %5985 = vmatpush1.bf16.msra.mxu0 %v5144
    %5986 = vmatprep.subr.bf16.mxu0 0
    %5987 = vmatpush1.bf16.msra.mxu0 0
    %5988 = vmatprep.subr.bf16.mxu0 0
    %5989 = vmatpush1.bf16.msra.mxu0 0
    %5990 = vmatprep.subr.bf16.mxu0 0
    %5991 = vmatpush1.bf16.msra.mxu0 0
    %5992 = vmatprep.subr.bf16.mxu0 0
    %5993 = vmatpush1.bf16.msra.mxu0 0
    %5994 = vmatprep.subr.bf16.mxu0 0
    %5995 = vmatpush1.bf16.msra.mxu0 0
    %5996 = vmatprep.subr.bf16.mxu0 0
    %5997 = vmatpush1.bf16.msra.mxu0 0
    %5998 = vmatprep.subr.bf16.mxu0 0
    %5999 = vmatpush1.bf16.msra.mxu0 0
    %6000 = vmatprep.subr.bf16.mxu0 0
    %6001 = vmatpush1.bf16.msra.mxu0 0
    %6002 = vmatprep.subr.bf16.mxu0 0
    %6003 = vmatpush1.bf16.msra.mxu0 0
    %6004 = vmatprep.subr.bf16.mxu0 0
    %6005 = vmatpush1.bf16.msra.mxu0 0
    %6006 = vmatprep.subr.bf16.mxu0 0
    %6007 = vmatpush1.bf16.msra.mxu0 0
    %6008 = vmatprep.subr.bf16.mxu0 0
    %6009 = vmatpush1.bf16.msra.mxu0 0
    %6010 = vmatprep.subr.bf16.mxu0 0
    %6011 = vmatpush1.bf16.msra.mxu0 0
    %6012 = vmatprep.subr.bf16.mxu0 0
    %6013 = vmatpush1.bf16.msra.mxu0 0
    %6014 = vmatprep.subr.bf16.mxu0 0
    %6015 = vmatpush1.bf16.msra.mxu0 0
    %6016 = vmatprep.mubr.bf16.mxu0 0
    %6017 = vmatmul.mubr.bf16.gmra.mrb[0].mxu0 %v5979
    %v6018 = vpop.f32.mrb[0].mxu0
    %v6019 = vadd.f32 0.0, %v6018
    %v6020 = vpop.f32.mrb[0].mxu0
    %v6021 = vpop.f32.mrb[0].mxu0
    %v6022 = vadd.f32 0.0, %v6021
    %v6023 = vpop.f32.mrb[0].mxu0
    %6024 = vmatprep.mubr.bf16.mxu0 0
    %6025 = vmatmul.mubr.bf16.gmra.mrb[0].mxu0 %v5982
    %v6026 = vpop.f32.mrb[0].mxu0
    %v6027 = vadd.f32 0.0, %v6026
    %v6028 = vpop.f32.mrb[0].mxu0
    %v6029 = vpop.f32.mrb[0].mxu0
    %v6030 = vadd.f32 0.0, %v6029
    %v6031 = vpop.f32.mrb[0].mxu0
    %6032 = vdwg.mxu0
    %v6034 = vsel %vm3121, %v4070, 0
    %v6037 = vsel %vm3121, %v4071, 0
    %6039 = vmatprep.subr.bf16.mxu0 0
    %6040 = vmatpush1.bf16.msra.mxu0 %v5196
    %6041 = vmatprep.subr.bf16.mxu0 0
    %6042 = vmatpush1.bf16.msra.mxu0 0
    %6043 = vmatprep.subr.bf16.mxu0 0
    %6044 = vmatpush1.bf16.msra.mxu0 0
    %6045 = vmatprep.subr.bf16.mxu0 0
    %6046 = vmatpush1.bf16.msra.mxu0 0
    %6047 = vmatprep.subr.bf16.mxu0 0
    %6048 = vmatpush1.bf16.msra.mxu0 0
    %6049 = vmatprep.subr.bf16.mxu0 0
    %6050 = vmatpush1.bf16.msra.mxu0 0
    %6051 = vmatprep.subr.bf16.mxu0 0
    %6052 = vmatpush1.bf16.msra.mxu0 0
    %6053 = vmatprep.subr.bf16.mxu0 0
    %6054 = vmatpush1.bf16.msra.mxu0 0
    %6055 = vmatprep.subr.bf16.mxu0 0
    %6056 = vmatpush1.bf16.msra.mxu0 0
    %6057 = vmatprep.subr.bf16.mxu0 0
    %6058 = vmatpush1.bf16.msra.mxu0 0
    %6059 = vmatprep.subr.bf16.mxu0 0
    %6060 = vmatpush1.bf16.msra.mxu0 0
    %6061 = vmatprep.subr.bf16.mxu0 0
    %6062 = vmatpush1.bf16.msra.mxu0 0
    %6063 = vmatprep.subr.bf16.mxu0 0
    %6064 = vmatpush1.bf16.msra.mxu0 0
    %6065 = vmatprep.subr.bf16.mxu0 0
    %6066 = vmatpush1.bf16.msra.mxu0 0
    %6067 = vmatprep.subr.bf16.mxu0 0
    %6068 = vmatpush1.bf16.msra.mxu0 0
    %6069 = vmatprep.subr.bf16.mxu0 0
    %6070 = vmatpush1.bf16.msra.mxu0 0
    %6071 = vmatprep.mubr.bf16.mxu0 0
    %6072 = vmatmul.mubr.bf16.gmra.mrb[0].mxu0 %v6034
    %v6073 = vpop.f32.mrb[0].mxu0
    %v6074 = vadd.f32 0.0, %v6073
    %v6075 = vpop.f32.mrb[0].mxu0
    %v6076 = vpop.f32.mrb[0].mxu0
    %v6077 = vadd.f32 0.0, %v6076
    %v6078 = vpop.f32.mrb[0].mxu0
    %6079 = vmatprep.mubr.bf16.mxu0 0
    %6080 = vmatmul.mubr.bf16.gmra.mrb[0].mxu0 %v6037
    %v6081 = vpop.f32.mrb[0].mxu0
    %v6082 = vadd.f32 0.0, %v6081
    %v6083 = vpop.f32.mrb[0].mxu0
    %v6084 = vpop.f32.mrb[0].mxu0
    %v6085 = vadd.f32 0.0, %v6084
    %v6086 = vpop.f32.mrb[0].mxu0
    %6087 = vdwg.mxu0
    %v6089 = vsel %vm3121, %v4072, 0
    %v6092 = vsel %vm3121, %v4073, 0
    %6094 = vmatprep.subr.bf16.mxu0 0
    %6095 = vmatpush1.bf16.msra.mxu0 %v5248
    %6096 = vmatprep.subr.bf16.mxu0 0
    %6097 = vmatpush1.bf16.msra.mxu0 0
    %6098 = vmatprep.subr.bf16.mxu0 0
    %6099 = vmatpush1.bf16.msra.mxu0 0
    %6100 = vmatprep.subr.bf16.mxu0 0
    %6101 = vmatpush1.bf16.msra.mxu0 0
    %6102 = vmatprep.subr.bf16.mxu0 0
    %6103 = vmatpush1.bf16.msra.mxu0 0
    %6104 = vmatprep.subr.bf16.mxu0 0
    %6105 = vmatpush1.bf16.msra.mxu0 0
    %6106 = vmatprep.subr.bf16.mxu0 0
    %6107 = vmatpush1.bf16.msra.mxu0 0
    %6108 = vmatprep.subr.bf16.mxu0 0
    %6109 = vmatpush1.bf16.msra.mxu0 0
    %6110 = vmatprep.subr.bf16.mxu0 0
    %6111 = vmatpush1.bf16.msra.mxu0 0
    %6112 = vmatprep.subr.bf16.mxu0 0
    %6113 = vmatpush1.bf16.msra.mxu0 0
    %6114 = vmatprep.subr.bf16.mxu0 0
    %6115 = vmatpush1.bf16.msra.mxu0 0
    %6116 = vmatprep.subr.bf16.mxu0 0
    %6117 = vmatpush1.bf16.msra.mxu0 0
    %6118 = vmatprep.subr.bf16.mxu0 0
    %6119 = vmatpush1.bf16.msra.mxu0 0
    %6120 = vmatprep.subr.bf16.mxu0 0
    %6121 = vmatpush1.bf16.msra.mxu0 0
    %6122 = vmatprep.subr.bf16.mxu0 0
    %6123 = vmatpush1.bf16.msra.mxu0 0
    %6124 = vmatprep.subr.bf16.mxu0 0
    %6125 = vmatpush1.bf16.msra.mxu0 0
    %6126 = vmatprep.mubr.bf16.mxu0 0
    %6127 = vmatmul.mubr.bf16.gmra.mrb[0].mxu0 %v6089
    %v6128 = vpop.f32.mrb[0].mxu0
    %v6129 = vadd.f32 0.0, %v6128
    %v6130 = vpop.f32.mrb[0].mxu0
    %v6131 = vpop.f32.mrb[0].mxu0
    %v6132 = vadd.f32 0.0, %v6131
    %v6133 = vpop.f32.mrb[0].mxu0
    %6134 = vmatprep.mubr.bf16.mxu0 0
    %6135 = vmatmul.mubr.bf16.gmra.mrb[0].mxu0 %v6092
    %v6136 = vpop.f32.mrb[0].mxu0
    %v6137 = vadd.f32 0.0, %v6136
    %v6138 = vpop.f32.mrb[0].mxu0
    %v6139 = vpop.f32.mrb[0].mxu0
    %v6140 = vadd.f32 0.0, %v6139
    %v6141 = vpop.f32.mrb[0].mxu0
    %6142 = vdwg.mxu0
    %v6144 = vsel %vm3121, %v4074, 0
    %v6147 = vsel %vm3121, %v4075, 0
    %6149 = vmatprep.subr.bf16.mxu0 0
    %6150 = vmatpush1.bf16.msra.mxu0 %v5300
    %6151 = vmatprep.subr.bf16.mxu0 0
    %6152 = vmatpush1.bf16.msra.mxu0 0
    %6153 = vmatprep.subr.bf16.mxu0 0
    %6154 = vmatpush1.bf16.msra.mxu0 0
    %6155 = vmatprep.subr.bf16.mxu0 0
    %6156 = vmatpush1.bf16.msra.mxu0 0
    %6157 = vmatprep.subr.bf16.mxu0 0
    %6158 = vmatpush1.bf16.msra.mxu0 0
    %6159 = vmatprep.subr.bf16.mxu0 0
    %6160 = vmatpush1.bf16.msra.mxu0 0
    %6161 = vmatprep.subr.bf16.mxu0 0
    %6162 = vmatpush1.bf16.msra.mxu0 0
    %6163 = vmatprep.subr.bf16.mxu0 0
    %6164 = vmatpush1.bf16.msra.mxu0 0
    %6165 = vmatprep.subr.bf16.mxu0 0
    %6166 = vmatpush1.bf16.msra.mxu0 0
    %6167 = vmatprep.subr.bf16.mxu0 0
    %6168 = vmatpush1.bf16.msra.mxu0 0
    %6169 = vmatprep.subr.bf16.mxu0 0
    %6170 = vmatpush1.bf16.msra.mxu0 0
    %6171 = vmatprep.subr.bf16.mxu0 0
    %6172 = vmatpush1.bf16.msra.mxu0 0
    %6173 = vmatprep.subr.bf16.mxu0 0
    %6174 = vmatpush1.bf16.msra.mxu0 0
    %6175 = vmatprep.subr.bf16.mxu0 0
    %6176 = vmatpush1.bf16.msra.mxu0 0
    %6177 = vmatprep.subr.bf16.mxu0 0
    %6178 = vmatpush1.bf16.msra.mxu0 0
    %6179 = vmatprep.subr.bf16.mxu0 0
    %6180 = vmatpush1.bf16.msra.mxu0 0
    %6181 = vmatprep.mubr.bf16.mxu0 0
    %6182 = vmatmul.mubr.bf16.gmra.mrb[0].mxu0 %v6144
    %v6183 = vpop.f32.mrb[0].mxu0
    %v6184 = vadd.f32 0.0, %v6183
    %v6185 = vpop.f32.mrb[0].mxu0
    %v6186 = vpop.f32.mrb[0].mxu0
    %v6187 = vadd.f32 0.0, %v6186
    %v6188 = vpop.f32.mrb[0].mxu0
    %6189 = vmatprep.mubr.bf16.mxu0 0
    %6190 = vmatmul.mubr.bf16.gmra.mrb[0].mxu0 %v6147
    %v6191 = vpop.f32.mrb[0].mxu0
    %v6192 = vadd.f32 0.0, %v6191
    %v6193 = vpop.f32.mrb[0].mxu0
    %v6194 = vpop.f32.mrb[0].mxu0
    %v6195 = vadd.f32 0.0, %v6194
    %v6196 = vpop.f32.mrb[0].mxu0
    %6197 = vdwg.mxu0
    %v6199 = vsel %vm3121, %v4076, 0
    %v6202 = vsel %vm3121, %v4077, 0
    %6204 = vmatprep.subr.bf16.mxu0 0
    %6205 = vmatpush1.bf16.msra.mxu0 %v5352
    %6206 = vmatprep.subr.bf16.mxu0 0
    %6207 = vmatpush1.bf16.msra.mxu0 0
    %6208 = vmatprep.subr.bf16.mxu0 0
    %6209 = vmatpush1.bf16.msra.mxu0 0
    %6210 = vmatprep.subr.bf16.mxu0 0
    %6211 = vmatpush1.bf16.msra.mxu0 0
    %6212 = vmatprep.subr.bf16.mxu0 0
    %6213 = vmatpush1.bf16.msra.mxu0 0
    %6214 = vmatprep.subr.bf16.mxu0 0
    %6215 = vmatpush1.bf16.msra.mxu0 0
    %6216 = vmatprep.subr.bf16.mxu0 0
    %6217 = vmatpush1.bf16.msra.mxu0 0
    %6218 = vmatprep.subr.bf16.mxu0 0
    %6219 = vmatpush1.bf16.msra.mxu0 0
    %6220 = vmatprep.subr.bf16.mxu0 0
    %6221 = vmatpush1.bf16.msra.mxu0 0
    %6222 = vmatprep.subr.bf16.mxu0 0
    %6223 = vmatpush1.bf16.msra.mxu0 0
    %6224 = vmatprep.subr.bf16.mxu0 0
    %6225 = vmatpush1.bf16.msra.mxu0 0
    %6226 = vmatprep.subr.bf16.mxu0 0
    %6227 = vmatpush1.bf16.msra.mxu0 0
    %6228 = vmatprep.subr.bf16.mxu0 0
    %6229 = vmatpush1.bf16.msra.mxu0 0
    %6230 = vmatprep.subr.bf16.mxu0 0
    %6231 = vmatpush1.bf16.msra.mxu0 0
    %6232 = vmatprep.subr.bf16.mxu0 0
    %6233 = vmatpush1.bf16.msra.mxu0 0
    %6234 = vmatprep.subr.bf16.mxu0 0
    %6235 = vmatpush1.bf16.msra.mxu0 0
    %6236 = vmatprep.mubr.bf16.mxu0 0
    %6237 = vmatmul.mubr.bf16.gmra.mrb[0].mxu0 %v6199
    %v6238 = vpop.f32.mrb[0].mxu0
    %v6239 = vadd.f32 0.0, %v6238
    %v6240 = vpop.f32.mrb[0].mxu0
    %v6241 = vpop.f32.mrb[0].mxu0
    %v6242 = vadd.f32 0.0, %v6241
    %v6243 = vpop.f32.mrb[0].mxu0
    %6244 = vmatprep.mubr.bf16.mxu0 0
    %6245 = vmatmul.mubr.bf16.gmra.mrb[0].mxu0 %v6202
    %v6246 = vpop.f32.mrb[0].mxu0
    %v6247 = vadd.f32 0.0, %v6246
    %v6248 = vpop.f32.mrb[0].mxu0
    %v6249 = vpop.f32.mrb[0].mxu0
    %v6250 = vadd.f32 0.0, %v6249
    %v6251 = vpop.f32.mrb[0].mxu0
    %6252 = vdwg.mxu0
    %v6254 = vsel %vm3121, %v4078, 0
    %v6257 = vsel %vm3121, %v4079, 0
    %6259 = vmatprep.subr.bf16.mxu0 0
    %6260 = vmatpush1.bf16.msra.mxu0 %v5404
    %6261 = vmatprep.subr.bf16.mxu0 0
    %6262 = vmatpush1.bf16.msra.mxu0 0
    %6263 = vmatprep.subr.bf16.mxu0 0
    %6264 = vmatpush1.bf16.msra.mxu0 0
    %6265 = vmatprep.subr.bf16.mxu0 0
    %6266 = vmatpush1.bf16.msra.mxu0 0
    %6267 = vmatprep.subr.bf16.mxu0 0
    %6268 = vmatpush1.bf16.msra.mxu0 0
    %6269 = vmatprep.subr.bf16.mxu0 0
    %6270 = vmatpush1.bf16.msra.mxu0 0
    %6271 = vmatprep.subr.bf16.mxu0 0
    %6272 = vmatpush1.bf16.msra.mxu0 0
    %6273 = vmatprep.subr.bf16.mxu0 0
    %6274 = vmatpush1.bf16.msra.mxu0 0
    %6275 = vmatprep.subr.bf16.mxu0 0
    %6276 = vmatpush1.bf16.msra.mxu0 0
    %6277 = vmatprep.subr.bf16.mxu0 0
    %6278 = vmatpush1.bf16.msra.mxu0 0
    %6279 = vmatprep.subr.bf16.mxu0 0
    %6280 = vmatpush1.bf16.msra.mxu0 0
    %6281 = vmatprep.subr.bf16.mxu0 0
    %6282 = vmatpush1.bf16.msra.mxu0 0
    %6283 = vmatprep.subr.bf16.mxu0 0
    %6284 = vmatpush1.bf16.msra.mxu0 0
    %6285 = vmatprep.subr.bf16.mxu0 0
    %6286 = vmatpush1.bf16.msra.mxu0 0
    %6287 = vmatprep.subr.bf16.mxu0 0
    %6288 = vmatpush1.bf16.msra.mxu0 0
    %6289 = vmatprep.subr.bf16.mxu0 0
    %6290 = vmatpush1.bf16.msra.mxu0 0
    %6291 = vmatprep.mubr.bf16.mxu0 0
    %6292 = vmatmul.mubr.bf16.gmra.mrb[0].mxu0 %v6254
    %v6293 = vpop.f32.mrb[0].mxu0
    %v6294 = vadd.f32 0.0, %v6293
    %v6295 = vpop.f32.mrb[0].mxu0
    %v6296 = vpop.f32.mrb[0].mxu0
    %v6297 = vadd.f32 0.0, %v6296
    %v6298 = vpop.f32.mrb[0].mxu0
    %6299 = vmatprep.mubr.bf16.mxu0 0
    %6300 = vmatmul.mubr.bf16.gmra.mrb[0].mxu0 %v6257
    %v6301 = vpop.f32.mrb[0].mxu0
    %v6302 = vadd.f32 0.0, %v6301
    %v6303 = vpop.f32.mrb[0].mxu0
    %v6304 = vpop.f32.mrb[0].mxu0
    %v6305 = vadd.f32 0.0, %v6304
    %v6306 = vpop.f32.mrb[0].mxu0
    %6307 = vdwg.mxu0
    %v6309 = vsel %vm3121, %v4080, 0
    %v6312 = vsel %vm3121, %v4081, 0
    %6314 = vmatprep.subr.bf16.mxu0 0
    %6315 = vmatpush1.bf16.msra.mxu0 %v5456
    %6316 = vmatprep.subr.bf16.mxu0 0
    %6317 = vmatpush1.bf16.msra.mxu0 0
    %6318 = vmatprep.subr.bf16.mxu0 0
    %6319 = vmatpush1.bf16.msra.mxu0 0
    %6320 = vmatprep.subr.bf16.mxu0 0
    %6321 = vmatpush1.bf16.msra.mxu0 0
    %6322 = vmatprep.subr.bf16.mxu0 0
    %6323 = vmatpush1.bf16.msra.mxu0 0
    %6324 = vmatprep.subr.bf16.mxu0 0
    %6325 = vmatpush1.bf16.msra.mxu0 0
    %6326 = vmatprep.subr.bf16.mxu0 0
    %6327 = vmatpush1.bf16.msra.mxu0 0
    %6328 = vmatprep.subr.bf16.mxu0 0
    %6329 = vmatpush1.bf16.msra.mxu0 0
    %6330 = vmatprep.subr.bf16.mxu0 0
    %6331 = vmatpush1.bf16.msra.mxu0 0
    %6332 = vmatprep.subr.bf16.mxu0 0
    %6333 = vmatpush1.bf16.msra.mxu0 0
    %6334 = vmatprep.subr.bf16.mxu0 0
    %6335 = vmatpush1.bf16.msra.mxu0 0
    %6336 = vmatprep.subr.bf16.mxu0 0
    %6337 = vmatpush1.bf16.msra.mxu0 0
    %6338 = vmatprep.subr.bf16.mxu0 0
    %6339 = vmatpush1.bf16.msra.mxu0 0
    %6340 = vmatprep.subr.bf16.mxu0 0
    %6341 = vmatpush1.bf16.msra.mxu0 0
    %6342 = vmatprep.subr.bf16.mxu0 0
    %6343 = vmatpush1.bf16.msra.mxu0 0
    %6344 = vmatprep.subr.bf16.mxu0 0
    %6345 = vmatpush1.bf16.msra.mxu0 0
    %6346 = vmatprep.mubr.bf16.mxu0 0
    %6347 = vmatmul.mubr.bf16.gmra.mrb[0].mxu0 %v6309
    %v6348 = vpop.f32.mrb[0].mxu0
    %v6349 = vadd.f32 0.0, %v6348
    %v6350 = vpop.f32.mrb[0].mxu0
    %v6351 = vpop.f32.mrb[0].mxu0
    %v6352 = vadd.f32 0.0, %v6351
    %v6353 = vpop.f32.mrb[0].mxu0
    %6354 = vmatprep.mubr.bf16.mxu0 0
    %6355 = vmatmul.mubr.bf16.gmra.mrb[0].mxu0 %v6312
    %v6356 = vpop.f32.mrb[0].mxu0
    %v6357 = vadd.f32 0.0, %v6356
    %v6358 = vpop.f32.mrb[0].mxu0
    %v6359 = vpop.f32.mrb[0].mxu0
    %v6360 = vadd.f32 0.0, %v6359
    %v6361 = vpop.f32.mrb[0].mxu0
    %6362 = vdwg.mxu0
    %v6364 = vsel %vm3121, %v4082, 0
    %v6367 = vsel %vm3121, %v4083, 0
    %6369 = vmatprep.subr.bf16.mxu0 0
    %6370 = vmatpush1.bf16.msra.mxu0 %v5508
    %6371 = vmatprep.subr.bf16.mxu0 0
    %6372 = vmatpush1.bf16.msra.mxu0 0
    %6373 = vmatprep.subr.bf16.mxu0 0
    %6374 = vmatpush1.bf16.msra.mxu0 0
    %6375 = vmatprep.subr.bf16.mxu0 0
    %6376 = vmatpush1.bf16.msra.mxu0 0
    %6377 = vmatprep.subr.bf16.mxu0 0
    %6378 = vmatpush1.bf16.msra.mxu0 0
    %6379 = vmatprep.subr.bf16.mxu0 0
    %6380 = vmatpush1.bf16.msra.mxu0 0
    %6381 = vmatprep.subr.bf16.mxu0 0
    %6382 = vmatpush1.bf16.msra.mxu0 0
    %6383 = vmatprep.subr.bf16.mxu0 0
    %6384 = vmatpush1.bf16.msra.mxu0 0
    %6385 = vmatprep.subr.bf16.mxu0 0
    %6386 = vmatpush1.bf16.msra.mxu0 0
    %6387 = vmatprep.subr.bf16.mxu0 0
    %6388 = vmatpush1.bf16.msra.mxu0 0
    %6389 = vmatprep.subr.bf16.mxu0 0
    %6390 = vmatpush1.bf16.msra.mxu0 0
    %6391 = vmatprep.subr.bf16.mxu0 0
    %6392 = vmatpush1.bf16.msra.mxu0 0
    %6393 = vmatprep.subr.bf16.mxu0 0
    %6394 = vmatpush1.bf16.msra.mxu0 0
    %6395 = vmatprep.subr.bf16.mxu0 0
    %6396 = vmatpush1.bf16.msra.mxu0 0
    %6397 = vmatprep.subr.bf16.mxu0 0
    %6398 = vmatpush1.bf16.msra.mxu0 0
    %6399 = vmatprep.subr.bf16.mxu0 0
    %6400 = vmatpush1.bf16.msra.mxu0 0
    %6401 = vmatprep.mubr.bf16.mxu0 0
    %6402 = vmatmul.mubr.bf16.gmra.mrb[0].mxu0 %v6364
    %v6403 = vpop.f32.mrb[0].mxu0
    %v6404 = vadd.f32 0.0, %v6403
    %v6405 = vpop.f32.mrb[0].mxu0
    %v6406 = vpop.f32.mrb[0].mxu0
    %v6407 = vadd.f32 0.0, %v6406
    %v6408 = vpop.f32.mrb[0].mxu0
    %6409 = vmatprep.mubr.bf16.mxu0 0
    %6410 = vmatmul.mubr.bf16.gmra.mrb[0].mxu0 %v6367
    %v6411 = vpop.f32.mrb[0].mxu0
    %v6412 = vadd.f32 0.0, %v6411
    %v6413 = vpop.f32.mrb[0].mxu0
    %v6414 = vpop.f32.mrb[0].mxu0
    %v6415 = vadd.f32 0.0, %v6414
    %v6416 = vpop.f32.mrb[0].mxu0
    %6417 = vdwg.mxu0
    %v6419 = vsel %vm3121, %v4084, 0
    %v6422 = vsel %vm3121, %v4085, 0
    %6424 = vmatprep.subr.bf16.mxu0 0
    %6425 = vmatpush1.bf16.msra.mxu0 %v5560
    %6426 = vmatprep.subr.bf16.mxu0 0
    %6427 = vmatpush1.bf16.msra.mxu0 0
    %6428 = vmatprep.subr.bf16.mxu0 0
    %6429 = vmatpush1.bf16.msra.mxu0 0
    %6430 = vmatprep.subr.bf16.mxu0 0
    %6431 = vmatpush1.bf16.msra.mxu0 0
    %6432 = vmatprep.subr.bf16.mxu0 0
    %6433 = vmatpush1.bf16.msra.mxu0 0
    %6434 = vmatprep.subr.bf16.mxu0 0
    %6435 = vmatpush1.bf16.msra.mxu0 0
    %6436 = vmatprep.subr.bf16.mxu0 0
    %6437 = vmatpush1.bf16.msra.mxu0 0
    %6438 = vmatprep.subr.bf16.mxu0 0
    %6439 = vmatpush1.bf16.msra.mxu0 0
    %6440 = vmatprep.subr.bf16.mxu0 0
    %6441 = vmatpush1.bf16.msra.mxu0 0
    %6442 = vmatprep.subr.bf16.mxu0 0
    %6443 = vmatpush1.bf16.msra.mxu0 0
    %6444 = vmatprep.subr.bf16.mxu0 0
    %6445 = vmatpush1.bf16.msra.mxu0 0
    %6446 = vmatprep.subr.bf16.mxu0 0
    %6447 = vmatpush1.bf16.msra.mxu0 0
    %6448 = vmatprep.subr.bf16.mxu0 0
    %6449 = vmatpush1.bf16.msra.mxu0 0
    %6450 = vmatprep.subr.bf16.mxu0 0
    %6451 = vmatpush1.bf16.msra.mxu0 0
    %6452 = vmatprep.subr.bf16.mxu0 0
    %6453 = vmatpush1.bf16.msra.mxu0 0
    %6454 = vmatprep.subr.bf16.mxu0 0
    %6455 = vmatpush1.bf16.msra.mxu0 0
    %6456 = vmatprep.mubr.bf16.mxu0 0
    %6457 = vmatmul.mubr.bf16.gmra.mrb[0].mxu0 %v6419
    %v6458 = vpop.f32.mrb[0].mxu0
    %v6459 = vadd.f32 0.0, %v6458
    %v6460 = vpop.f32.mrb[0].mxu0
    %v6461 = vpop.f32.mrb[0].mxu0
    %v6462 = vadd.f32 0.0, %v6461
    %v6463 = vpop.f32.mrb[0].mxu0
    %6464 = vmatprep.mubr.bf16.mxu0 0
    %6465 = vmatmul.mubr.bf16.gmra.mrb[0].mxu0 %v6422
    %v6466 = vpop.f32.mrb[0].mxu0
    %v6467 = vadd.f32 0.0, %v6466
    %v6468 = vpop.f32.mrb[0].mxu0
    %v6469 = vpop.f32.mrb[0].mxu0
    %v6470 = vadd.f32 0.0, %v6469
    %v6471 = vpop.f32.mrb[0].mxu0
    %6472 = vdwg.mxu0
    %v6474 = vsel %vm3121, %v4086, 0
    %v6477 = vsel %vm3121, %v4087, 0
    %6479 = vmatprep.subr.bf16.mxu0 0
    %6480 = vmatpush1.bf16.msra.mxu0 %v5612
    %6481 = vmatprep.subr.bf16.mxu0 0
    %6482 = vmatpush1.bf16.msra.mxu0 0
    %6483 = vmatprep.subr.bf16.mxu0 0
    %6484 = vmatpush1.bf16.msra.mxu0 0
    %6485 = vmatprep.subr.bf16.mxu0 0
    %6486 = vmatpush1.bf16.msra.mxu0 0
    %6487 = vmatprep.subr.bf16.mxu0 0
    %6488 = vmatpush1.bf16.msra.mxu0 0
    %6489 = vmatprep.subr.bf16.mxu0 0
    %6490 = vmatpush1.bf16.msra.mxu0 0
    %6491 = vmatprep.subr.bf16.mxu0 0
    %6492 = vmatpush1.bf16.msra.mxu0 0
    %6493 = vmatprep.subr.bf16.mxu0 0
    %6494 = vmatpush1.bf16.msra.mxu0 0
    %6495 = vmatprep.subr.bf16.mxu0 0
    %6496 = vmatpush1.bf16.msra.mxu0 0
    %6497 = vmatprep.subr.bf16.mxu0 0
    %6498 = vmatpush1.bf16.msra.mxu0 0
    %6499 = vmatprep.subr.bf16.mxu0 0
    %6500 = vmatpush1.bf16.msra.mxu0 0
    %6501 = vmatprep.subr.bf16.mxu0 0
    %6502 = vmatpush1.bf16.msra.mxu0 0
    %6503 = vmatprep.subr.bf16.mxu0 0
    %6504 = vmatpush1.bf16.msra.mxu0 0
    %6505 = vmatprep.subr.bf16.mxu0 0
    %6506 = vmatpush1.bf16.msra.mxu0 0
    %6507 = vmatprep.subr.bf16.mxu0 0
    %6508 = vmatpush1.bf16.msra.mxu0 0
    %6509 = vmatprep.subr.bf16.mxu0 0
    %6510 = vmatpush1.bf16.msra.mxu0 0
    %6511 = vmatprep.mubr.bf16.mxu0 0
    %6512 = vmatmul.mubr.bf16.gmra.mrb[0].mxu0 %v6474
    %v6513 = vpop.f32.mrb[0].mxu0
    %v6514 = vadd.f32 0.0, %v6513
    %v6515 = vpop.f32.mrb[0].mxu0
    %v6516 = vpop.f32.mrb[0].mxu0
    %v6517 = vadd.f32 0.0, %v6516
    %v6518 = vpop.f32.mrb[0].mxu0
    %6519 = vmatprep.mubr.bf16.mxu0 0
    %6520 = vmatmul.mubr.bf16.gmra.mrb[0].mxu0 %v6477
    %v6521 = vpop.f32.mrb[0].mxu0
    %v6522 = vadd.f32 0.0, %v6521
    %v6523 = vpop.f32.mrb[0].mxu0
    %v6524 = vpop.f32.mrb[0].mxu0
    %v6525 = vadd.f32 0.0, %v6524
    %v6526 = vpop.f32.mrb[0].mxu0
    %6527 = vdwg.mxu0
    %v6529 = vsel %vm3121, %v4088, 0
    %v6532 = vsel %vm3121, %v4089, 0
    %6534 = vmatprep.subr.bf16.mxu0 0
    %6535 = vmatpush1.bf16.msra.mxu0 %v5664
    %6536 = vmatprep.subr.bf16.mxu0 0
    %6537 = vmatpush1.bf16.msra.mxu0 0
    %6538 = vmatprep.subr.bf16.mxu0 0
    %6539 = vmatpush1.bf16.msra.mxu0 0
    %6540 = vmatprep.subr.bf16.mxu0 0
    %6541 = vmatpush1.bf16.msra.mxu0 0
    %6542 = vmatprep.subr.bf16.mxu0 0
    %6543 = vmatpush1.bf16.msra.mxu0 0
    %6544 = vmatprep.subr.bf16.mxu0 0
    %6545 = vmatpush1.bf16.msra.mxu0 0
    %6546 = vmatprep.subr.bf16.mxu0 0
    %6547 = vmatpush1.bf16.msra.mxu0 0
    %6548 = vmatprep.subr.bf16.mxu0 0
    %6549 = vmatpush1.bf16.msra.mxu0 0
    %6550 = vmatprep.subr.bf16.mxu0 0
    %6551 = vmatpush1.bf16.msra.mxu0 0
    %6552 = vmatprep.subr.bf16.mxu0 0
    %6553 = vmatpush1.bf16.msra.mxu0 0
    %6554 = vmatprep.subr.bf16.mxu0 0
    %6555 = vmatpush1.bf16.msra.mxu0 0
    %6556 = vmatprep.subr.bf16.mxu0 0
    %6557 = vmatpush1.bf16.msra.mxu0 0
    %6558 = vmatprep.subr.bf16.mxu0 0
    %6559 = vmatpush1.bf16.msra.mxu0 0
    %6560 = vmatprep.subr.bf16.mxu0 0
    %6561 = vmatpush1.bf16.msra.mxu0 0
    %6562 = vmatprep.subr.bf16.mxu0 0
    %6563 = vmatpush1.bf16.msra.mxu0 0
    %6564 = vmatprep.subr.bf16.mxu0 0
    %6565 = vmatpush1.bf16.msra.mxu0 0
    %6566 = vmatprep.mubr.bf16.mxu0 0
    %6567 = vmatmul.mubr.bf16.gmra.mrb[0].mxu0 %v6529
    %v6568 = vpop.f32.mrb[0].mxu0
    %v6569 = vadd.f32 0.0, %v6568
    %v6570 = vpop.f32.mrb[0].mxu0
    %v6571 = vpop.f32.mrb[0].mxu0
    %v6572 = vadd.f32 0.0, %v6571
    %v6573 = vpop.f32.mrb[0].mxu0
    %6574 = vmatprep.mubr.bf16.mxu0 0
    %6575 = vmatmul.mubr.bf16.gmra.mrb[0].mxu0 %v6532
    %v6576 = vpop.f32.mrb[0].mxu0
    %v6577 = vadd.f32 0.0, %v6576
    %v6578 = vpop.f32.mrb[0].mxu0
    %v6579 = vpop.f32.mrb[0].mxu0
    %v6580 = vadd.f32 0.0, %v6579
    %v6581 = vpop.f32.mrb[0].mxu0
    %6582 = vdwg.mxu0
    %v6584 = vsel %vm3121, %v4090, 0
    %v6587 = vsel %vm3121, %v4091, 0
    %6589 = vmatprep.subr.bf16.mxu0 0
    %6590 = vmatpush1.bf16.msra.mxu0 %v5716
    %6591 = vmatprep.subr.bf16.mxu0 0
    %6592 = vmatpush1.bf16.msra.mxu0 0
    %6593 = vmatprep.subr.bf16.mxu0 0
    %6594 = vmatpush1.bf16.msra.mxu0 0
    %6595 = vmatprep.subr.bf16.mxu0 0
    %6596 = vmatpush1.bf16.msra.mxu0 0
    %6597 = vmatprep.subr.bf16.mxu0 0
    %6598 = vmatpush1.bf16.msra.mxu0 0
    %6599 = vmatprep.subr.bf16.mxu0 0
    %6600 = vmatpush1.bf16.msra.mxu0 0
    %6601 = vmatprep.subr.bf16.mxu0 0
    %6602 = vmatpush1.bf16.msra.mxu0 0
    %6603 = vmatprep.subr.bf16.mxu0 0
    %6604 = vmatpush1.bf16.msra.mxu0 0
    %6605 = vmatprep.subr.bf16.mxu0 0
    %6606 = vmatpush1.bf16.msra.mxu0 0
    %6607 = vmatprep.subr.bf16.mxu0 0
    %6608 = vmatpush1.bf16.msra.mxu0 0
    %6609 = vmatprep.subr.bf16.mxu0 0
    %6610 = vmatpush1.bf16.msra.mxu0 0
    %6611 = vmatprep.subr.bf16.mxu0 0
    %6612 = vmatpush1.bf16.msra.mxu0 0
    %6613 = vmatprep.subr.bf16.mxu0 0
    %6614 = vmatpush1.bf16.msra.mxu0 0
    %6615 = vmatprep.subr.bf16.mxu0 0
    %6616 = vmatpush1.bf16.msra.mxu0 0
    %6617 = vmatprep.subr.bf16.mxu0 0
    %6618 = vmatpush1.bf16.msra.mxu0 0
    %6619 = vmatprep.subr.bf16.mxu0 0
    %6620 = vmatpush1.bf16.msra.mxu0 0
    %6621 = vmatprep.mubr.bf16.mxu0 0
    %6622 = vmatmul.mubr.bf16.gmra.mrb[0].mxu0 %v6584
    %v6623 = vpop.f32.mrb[0].mxu0
    %v6624 = vadd.f32 0.0, %v6623
    %v6625 = vpop.f32.mrb[0].mxu0
    %v6626 = vpop.f32.mrb[0].mxu0
    %v6627 = vadd.f32 0.0, %v6626
    %v6628 = vpop.f32.mrb[0].mxu0
    %6629 = vmatprep.mubr.bf16.mxu0 0
    %6630 = vmatmul.mubr.bf16.gmra.mrb[0].mxu0 %v6587
    %v6631 = vpop.f32.mrb[0].mxu0
    %v6632 = vadd.f32 0.0, %v6631
    %v6633 = vpop.f32.mrb[0].mxu0
    %v6634 = vpop.f32.mrb[0].mxu0
    %v6635 = vadd.f32 0.0, %v6634
    %v6636 = vpop.f32.mrb[0].mxu0
    %6637 = vdwg.mxu0
    %v6639 = vsel %vm3121, %v4092, 0
    %v6642 = vsel %vm3121, %v4093, 0
    %6644 = vmatprep.subr.bf16.mxu0 0
    %6645 = vmatpush1.bf16.msra.mxu0 %v5768
    %6646 = vmatprep.subr.bf16.mxu0 0
    %6647 = vmatpush1.bf16.msra.mxu0 0
    %6648 = vmatprep.subr.bf16.mxu0 0
    %6649 = vmatpush1.bf16.msra.mxu0 0
    %6650 = vmatprep.subr.bf16.mxu0 0
    %6651 = vmatpush1.bf16.msra.mxu0 0
    %6652 = vmatprep.subr.bf16.mxu0 0
    %6653 = vmatpush1.bf16.msra.mxu0 0
    %6654 = vmatprep.subr.bf16.mxu0 0
    %6655 = vmatpush1.bf16.msra.mxu0 0
    %6656 = vmatprep.subr.bf16.mxu0 0
    %6657 = vmatpush1.bf16.msra.mxu0 0
    %6658 = vmatprep.subr.bf16.mxu0 0
    %6659 = vmatpush1.bf16.msra.mxu0 0
    %6660 = vmatprep.subr.bf16.mxu0 0
    %6661 = vmatpush1.bf16.msra.mxu0 0
    %6662 = vmatprep.subr.bf16.mxu0 0
    %6663 = vmatpush1.bf16.msra.mxu0 0
    %6664 = vmatprep.subr.bf16.mxu0 0
    %6665 = vmatpush1.bf16.msra.mxu0 0
    %6666 = vmatprep.subr.bf16.mxu0 0
    %6667 = vmatpush1.bf16.msra.mxu0 0
    %6668 = vmatprep.subr.bf16.mxu0 0
    %6669 = vmatpush1.bf16.msra.mxu0 0
    %6670 = vmatprep.subr.bf16.mxu0 0
    %6671 = vmatpush1.bf16.msra.mxu0 0
    %6672 = vmatprep.subr.bf16.mxu0 0
    %6673 = vmatpush1.bf16.msra.mxu0 0
    %6674 = vmatprep.subr.bf16.mxu0 0
    %6675 = vmatpush1.bf16.msra.mxu0 0
    %6676 = vmatprep.mubr.bf16.mxu0 0
    %6677 = vmatmul.mubr.bf16.gmra.mrb[0].mxu0 %v6639
    %v6678 = vpop.f32.mrb[0].mxu0
    %v6679 = vadd.f32 0.0, %v6678
    %v6680 = vpop.f32.mrb[0].mxu0
    %v6681 = vpop.f32.mrb[0].mxu0
    %v6682 = vadd.f32 0.0, %v6681
    %v6683 = vpop.f32.mrb[0].mxu0
    %6684 = vmatprep.mubr.bf16.mxu0 0
    %6685 = vmatmul.mubr.bf16.gmra.mrb[0].mxu0 %v6642
    %v6686 = vpop.f32.mrb[0].mxu0
    %v6687 = vadd.f32 0.0, %v6686
    %v6688 = vpop.f32.mrb[0].mxu0
    %v6689 = vpop.f32.mrb[0].mxu0
    %v6690 = vadd.f32 0.0, %v6689
    %v6691 = vpop.f32.mrb[0].mxu0
    %6692 = vdwg.mxu0
    %v6694 = vsel %vm3121, %v4094, 0
    %v6697 = vsel %vm3121, %v4095, 0
    %6699 = vmatprep.subr.bf16.mxu0 0
    %6700 = vmatpush1.bf16.msra.mxu0 %v5820
    %6701 = vmatprep.subr.bf16.mxu0 0
    %6702 = vmatpush1.bf16.msra.mxu0 0
    %6703 = vmatprep.subr.bf16.mxu0 0
    %6704 = vmatpush1.bf16.msra.mxu0 0
    %6705 = vmatprep.subr.bf16.mxu0 0
    %6706 = vmatpush1.bf16.msra.mxu0 0
    %6707 = vmatprep.subr.bf16.mxu0 0
    %6708 = vmatpush1.bf16.msra.mxu0 0
    %6709 = vmatprep.subr.bf16.mxu0 0
    %6710 = vmatpush1.bf16.msra.mxu0 0
    %6711 = vmatprep.subr.bf16.mxu0 0
    %6712 = vmatpush1.bf16.msra.mxu0 0
    %6713 = vmatprep.subr.bf16.mxu0 0
    %6714 = vmatpush1.bf16.msra.mxu0 0
    %6715 = vmatprep.subr.bf16.mxu0 0
    %6716 = vmatpush1.bf16.msra.mxu0 0
    %6717 = vmatprep.subr.bf16.mxu0 0
    %6718 = vmatpush1.bf16.msra.mxu0 0
    %6719 = vmatprep.subr.bf16.mxu0 0
    %6720 = vmatpush1.bf16.msra.mxu0 0
    %6721 = vmatprep.subr.bf16.mxu0 0
    %6722 = vmatpush1.bf16.msra.mxu0 0
    %6723 = vmatprep.subr.bf16.mxu0 0
    %6724 = vmatpush1.bf16.msra.mxu0 0
    %6725 = vmatprep.subr.bf16.mxu0 0
    %6726 = vmatpush1.bf16.msra.mxu0 0
    %6727 = vmatprep.subr.bf16.mxu0 0
    %6728 = vmatpush1.bf16.msra.mxu0 0
    %6729 = vmatprep.subr.bf16.mxu0 0
    %6730 = vmatpush1.bf16.msra.mxu0 0
    %6731 = vmatprep.mubr.bf16.mxu0 0
    %6732 = vmatmul.mubr.bf16.gmra.mrb[0].mxu0 %v6694
    %v6733 = vpop.f32.mrb[0].mxu0
    %v6734 = vadd.f32 0.0, %v6733
    %v6735 = vpop.f32.mrb[0].mxu0
    %v6736 = vpop.f32.mrb[0].mxu0
    %v6737 = vadd.f32 0.0, %v6736
    %v6738 = vpop.f32.mrb[0].mxu0
    %6739 = vmatprep.mubr.bf16.mxu0 0
    %6740 = vmatmul.mubr.bf16.gmra.mrb[0].mxu0 %v6697
    %v6741 = vpop.f32.mrb[0].mxu0
    %v6742 = vadd.f32 0.0, %v6741
    %v6743 = vpop.f32.mrb[0].mxu0
    %v6744 = vpop.f32.mrb[0].mxu0
    %v6745 = vadd.f32 0.0, %v6744
    %v6746 = vpop.f32.mrb[0].mxu0
    %6747 = vdwg.mxu0
    %v6749 = vsel %vm3121, %v4096, 0
    %v6752 = vsel %vm3121, %v4097, 0
    %6754 = vmatprep.subr.bf16.mxu0 0
    %6755 = vmatpush1.bf16.msra.mxu0 %v5872
    %6756 = vmatprep.subr.bf16.mxu0 0
    %6757 = vmatpush1.bf16.msra.mxu0 0
    %6758 = vmatprep.subr.bf16.mxu0 0
    %6759 = vmatpush1.bf16.msra.mxu0 0
    %6760 = vmatprep.subr.bf16.mxu0 0
    %6761 = vmatpush1.bf16.msra.mxu0 0
    %6762 = vmatprep.subr.bf16.mxu0 0
    %6763 = vmatpush1.bf16.msra.mxu0 0
    %6764 = vmatprep.subr.bf16.mxu0 0
    %6765 = vmatpush1.bf16.msra.mxu0 0
    %6766 = vmatprep.subr.bf16.mxu0 0
    %6767 = vmatpush1.bf16.msra.mxu0 0
    %6768 = vmatprep.subr.bf16.mxu0 0
    %6769 = vmatpush1.bf16.msra.mxu0 0
    %6770 = vmatprep.subr.bf16.mxu0 0
    %6771 = vmatpush1.bf16.msra.mxu0 0
    %6772 = vmatprep.subr.bf16.mxu0 0
    %6773 = vmatpush1.bf16.msra.mxu0 0
    %6774 = vmatprep.subr.bf16.mxu0 0
    %6775 = vmatpush1.bf16.msra.mxu0 0
    %6776 = vmatprep.subr.bf16.mxu0 0
    %6777 = vmatpush1.bf16.msra.mxu0 0
    %6778 = vmatprep.subr.bf16.mxu0 0
    %6779 = vmatpush1.bf16.msra.mxu0 0
    %6780 = vmatprep.subr.bf16.mxu0 0
    %6781 = vmatpush1.bf16.msra.mxu0 0
    %6782 = vmatprep.subr.bf16.mxu0 0
    %6783 = vmatpush1.bf16.msra.mxu0 0
    %6784 = vmatprep.subr.bf16.mxu0 0
    %6785 = vmatpush1.bf16.msra.mxu0 0
    %6786 = vmatprep.mubr.bf16.mxu0 0
    %6787 = vmatmul.mubr.bf16.gmra.mrb[0].mxu0 %v6749
    %v6788 = vpop.f32.mrb[0].mxu0
    %v6789 = vadd.f32 0.0, %v6788
    %v6790 = vpop.f32.mrb[0].mxu0
    %v6791 = vpop.f32.mrb[0].mxu0
    %v6792 = vadd.f32 0.0, %v6791
    %v6793 = vpop.f32.mrb[0].mxu0
    %6794 = vmatprep.mubr.bf16.mxu0 0
    %6795 = vmatmul.mubr.bf16.gmra.mrb[0].mxu0 %v6752
    %v6796 = vpop.f32.mrb[0].mxu0
    %v6797 = vadd.f32 0.0, %v6796
    %v6798 = vpop.f32.mrb[0].mxu0
    %v6799 = vpop.f32.mrb[0].mxu0
    %v6800 = vadd.f32 0.0, %v6799
    %v6801 = vpop.f32.mrb[0].mxu0
    %6802 = vdwg.mxu0
    %v6803 = vadd.f32 %v5129, %v5964
    %v6804 = vadd.f32 %v5132, %v5967
    %v6805 = vadd.f32 %v5137, %v5972
    %v6806 = vadd.f32 %v5140, %v5975
    %v6807 = vadd.f32 %v5181, %v6019
    %v6808 = vadd.f32 %v5184, %v6022
    %v6809 = vadd.f32 %v5189, %v6027
    %v6810 = vadd.f32 %v5192, %v6030
    %v6811 = vadd.f32 %v5233, %v6074
    %v6812 = vadd.f32 %v5236, %v6077
    %v6813 = vadd.f32 %v5241, %v6082
    %v6814 = vadd.f32 %v5244, %v6085
    %v6815 = vadd.f32 %v5285, %v6129
    %v6816 = vadd.f32 %v5288, %v6132
    %v6817 = vadd.f32 %v5293, %v6137
    %v6818 = vadd.f32 %v5296, %v6140
    %v6819 = vadd.f32 %v5337, %v6184
    %v6820 = vadd.f32 %v5340, %v6187
    %v6821 = vadd.f32 %v5345, %v6192
    %v6822 = vadd.f32 %v5348, %v6195
    %v6823 = vadd.f32 %v5389, %v6239
    %v6824 = vadd.f32 %v5392, %v6242
    %v6825 = vadd.f32 %v5397, %v6247
    %v6826 = vadd.f32 %v5400, %v6250
    %v6827 = vadd.f32 %v5441, %v6294
    %v6828 = vadd.f32 %v5444, %v6297
    %v6829 = vadd.f32 %v5449, %v6302
    %v6830 = vadd.f32 %v5452, %v6305
    %v6831 = vadd.f32 %v5493, %v6349
    %v6832 = vadd.f32 %v5496, %v6352
    %v6833 = vadd.f32 %v5501, %v6357
    %v6834 = vadd.f32 %v5504, %v6360
    %v6835 = vadd.f32 %v5545, %v6404
    %v6836 = vadd.f32 %v5548, %v6407
    %v6837 = vadd.f32 %v5553, %v6412
    %v6838 = vadd.f32 %v5556, %v6415
    %v6839 = vadd.f32 %v5597, %v6459
    %v6840 = vadd.f32 %v5600, %v6462
    %v6841 = vadd.f32 %v5605, %v6467
    %v6842 = vadd.f32 %v5608, %v6470
    %v6843 = vadd.f32 %v5649, %v6514
    %v6844 = vadd.f32 %v5652, %v6517
    %v6845 = vadd.f32 %v5657, %v6522
    %v6846 = vadd.f32 %v5660, %v6525
    %v6847 = vadd.f32 %v5701, %v6569
    %v6848 = vadd.f32 %v5704, %v6572
    %v6849 = vadd.f32 %v5709, %v6577
    %v6850 = vadd.f32 %v5712, %v6580
    %v6851 = vadd.f32 %v5753, %v6624
    %v6852 = vadd.f32 %v5756, %v6627
    %v6853 = vadd.f32 %v5761, %v6632
    %v6854 = vadd.f32 %v5764, %v6635
    %v6855 = vadd.f32 %v5805, %v6679
    %v6856 = vadd.f32 %v5808, %v6682
    %v6857 = vadd.f32 %v5813, %v6687
    %v6858 = vadd.f32 %v5816, %v6690
    %v6859 = vadd.f32 %v5857, %v6734
    %v6860 = vadd.f32 %v5860, %v6737
    %v6861 = vadd.f32 %v5865, %v6742
    %v6862 = vadd.f32 %v5868, %v6745
    %v6863 = vadd.f32 %v5909, %v6789
    %v6864 = vadd.f32 %v5912, %v6792
    %v6865 = vadd.f32 %v5917, %v6797
    %v6866 = vadd.f32 %v5920, %v6800
    %6867 = vst [vmem:[#allocation7] sm:$0xff] %v6803
    %6868 = vst [vmem:[#allocation7 + $0x8] sm:$0xff] %v6804
    %6869 = vst [vmem:[#allocation7 + $0x10] sm:$0xff] %v6805
    %6870 = vst [vmem:[#allocation7 + $0x18] sm:$0xff] %v6806
    %6871 = vst [vmem:[#allocation7 + $0x20] sm:$0xff] %v6807
    %6872 = vst [vmem:[#allocation7 + $0x28] sm:$0xff] %v6808
    %6873 = vst [vmem:[#allocation7 + $0x30] sm:$0xff] %v6809
    %6874 = vst [vmem:[#allocation7 + $0x38] sm:$0xff] %v6810
    %6875 = vst [vmem:[#allocation7 + $0x40] sm:$0xff] %v6811
    %6876 = vst [vmem:[#allocation7 + $0x48] sm:$0xff] %v6812
    %6877 = vst [vmem:[#allocation7 + $0x50] sm:$0xff] %v6813
    %6878 = vst [vmem:[#allocation7 + $0x58] sm:$0xff] %v6814
    %6879 = vst [vmem:[#allocation7 + $0x60] sm:$0xff] %v6815
    %6880 = vst [vmem:[#allocation7 + $0x68] sm:$0xff] %v6816
    %6881 = vst [vmem:[#allocation7 + $0x70] sm:$0xff] %v6817
    %6882 = vst [vmem:[#allocation7 + $0x78] sm:$0xff] %v6818
    %6883 = vst [vmem:[#allocation7 + $0x80] sm:$0xff] %v6819
    %6884 = vst [vmem:[#allocation7 + $0x88] sm:$0xff] %v6820
    %6885 = vst [vmem:[#allocation7 + $0x90] sm:$0xff] %v6821
    %6886 = vst [vmem:[#allocation7 + $0x98] sm:$0xff] %v6822
    %6887 = vst [vmem:[#allocation7 + $0xa0] sm:$0xff] %v6823
    %6888 = vst [vmem:[#allocation7 + $0xa8] sm:$0xff] %v6824
    %6889 = vst [vmem:[#allocation7 + $0xb0] sm:$0xff] %v6825
    %6890 = vst [vmem:[#allocation7 + $0xb8] sm:$0xff] %v6826
    %6891 = vst [vmem:[#allocation7 + $0xc0] sm:$0xff] %v6827
    %6892 = vst [vmem:[#allocation7 + $0xc8] sm:$0xff] %v6828
    %6893 = vst [vmem:[#allocation7 + $0xd0] sm:$0xff] %v6829
    %6894 = vst [vmem:[#allocation7 + $0xd8] sm:$0xff] %v6830
    %6895 = vst [vmem:[#allocation7 + $0xe0] sm:$0xff] %v6831
    %6896 = vst [vmem:[#allocation7 + $0xe8] sm:$0xff] %v6832
    %6897 = vst [vmem:[#allocation7 + $0xf0] sm:$0xff] %v6833
    %6898 = vst [vmem:[#allocation7 + $0xf8] sm:$0xff] %v6834
    %6899 = vst [vmem:[#allocation7 + $0x100] sm:$0xff] %v6835
    %6900 = vst [vmem:[#allocation7 + $0x108] sm:$0xff] %v6836
    %6901 = vst [vmem:[#allocation7 + $0x110] sm:$0xff] %v6837
    %6902 = vst [vmem:[#allocation7 + $0x118] sm:$0xff] %v6838
    %6903 = vst [vmem:[#allocation7 + $0x120] sm:$0xff] %v6839
    %6904 = vst [vmem:[#allocation7 + $0x128] sm:$0xff] %v6840
    %6905 = vst [vmem:[#allocation7 + $0x130] sm:$0xff] %v6841
    %6906 = vst [vmem:[#allocation7 + $0x138] sm:$0xff] %v6842
    %6907 = vst [vmem:[#allocation7 + $0x140] sm:$0xff] %v6843
    %6908 = vst [vmem:[#allocation7 + $0x148] sm:$0xff] %v6844
    %6909 = vst [vmem:[#allocation7 + $0x150] sm:$0xff] %v6845
    %6910 = vst [vmem:[#allocation7 + $0x158] sm:$0xff] %v6846
    %6911 = vst [vmem:[#allocation7 + $0x160] sm:$0xff] %v6847
    %6912 = vst [vmem:[#allocation7 + $0x168] sm:$0xff] %v6848
    %6913 = vst [vmem:[#allocation7 + $0x170] sm:$0xff] %v6849
    %6914 = vst [vmem:[#allocation7 + $0x178] sm:$0xff] %v6850
    %6915 = vst [vmem:[#allocation7 + $0x180] sm:$0xff] %v6851
    %6916 = vst [vmem:[#allocation7 + $0x188] sm:$0xff] %v6852
    %6917 = vst [vmem:[#allocation7 + $0x190] sm:$0xff] %v6853
    %6918 = vst [vmem:[#allocation7 + $0x198] sm:$0xff] %v6854
    %6919 = vst [vmem:[#allocation7 + $0x1a0] sm:$0xff] %v6855
    %6920 = vst [vmem:[#allocation7 + $0x1a8] sm:$0xff] %v6856
    %6921 = vst [vmem:[#allocation7 + $0x1b0] sm:$0xff] %v6857
    %6922 = vst [vmem:[#allocation7 + $0x1b8] sm:$0xff] %v6858
    %6923 = vst [vmem:[#allocation7 + $0x1c0] sm:$0xff] %v6859
    %6924 = vst [vmem:[#allocation7 + $0x1c8] sm:$0xff] %v6860
    %6925 = vst [vmem:[#allocation7 + $0x1d0] sm:$0xff] %v6861
    %6926 = vst [vmem:[#allocation7 + $0x1d8] sm:$0xff] %v6862
    %6927 = vst [vmem:[#allocation7 + $0x1e0] sm:$0xff] %v6863
    %6928 = vst [vmem:[#allocation7 + $0x1e8] sm:$0xff] %v6864
    %6929 = vst [vmem:[#allocation7 + $0x1f0] sm:$0xff] %v6865
    %6930 = vst [vmem:[#allocation7 + $0x1f8] sm:$0xff] %v6866
    %6931 = vst.msk [vmem:[%s5] sm:$0xff] %vm3121, %v3826
    %6932 = vst.msk [vmem:[%s5 + $0x8] sm:$0xff] %vm3121, %v3827
    %6933 = vst.msk [vmem:[%s5 + $0x10] sm:$0xff] %vm3121, %v3828
    %6934 = vst.msk [vmem:[%s5 + $0x18] sm:$0xff] %vm3121, %v3829
    %6935 = vst.msk [vmem:[%s5 + $0x20] sm:$0xff] %vm3121, %v3830
    %6936 = vst.msk [vmem:[%s5 + $0x28] sm:$0xff] %vm3121, %v3831
    %6937 = vst.msk [vmem:[%s5 + $0x30] sm:$0xff] %vm3121, %v3832
    %6938 = vst.msk [vmem:[%s5 + $0x38] sm:$0xff] %vm3121, %v3833
    %6939 = vst.msk [vmem:[%s5 + $0x40] sm:$0xff] %vm3121, %v3834
    %6940 = vst.msk [vmem:[%s5 + $0x48] sm:$0xff] %vm3121, %v3835
    %6941 = vst.msk [vmem:[%s5 + $0x50] sm:$0xff] %vm3121, %v3836
    %6942 = vst.msk [vmem:[%s5 + $0x58] sm:$0xff] %vm3121, %v3837
    %6943 = vst.msk [vmem:[%s5 + $0x60] sm:$0xff] %vm3121, %v3838
    %6944 = vst.msk [vmem:[%s5 + $0x68] sm:$0xff] %vm3121, %v3839
    %6945 = vst.msk [vmem:[%s5 + $0x70] sm:$0xff] %vm3121, %v3840
    %6946 = vst.msk [vmem:[%s5 + $0x78] sm:$0xff] %vm3121, %v3841
    %6947 = vst.msk [vmem:[%s5 + $0x80] sm:$0xff] %vm3121, %v3842
    %6948 = vst.msk [vmem:[%s5 + $0x88] sm:$0xff] %vm3121, %v3843
    %6949 = vst.msk [vmem:[%s5 + $0x90] sm:$0xff] %vm3121, %v3844
    %6950 = vst.msk [vmem:[%s5 + $0x98] sm:$0xff] %vm3121, %v3845
    %6951 = vst.msk [vmem:[%s5 + $0xa0] sm:$0xff] %vm3121, %v3846
    %6952 = vst.msk [vmem:[%s5 + $0xa8] sm:$0xff] %vm3121, %v3847
    %6953 = vst.msk [vmem:[%s5 + $0xb0] sm:$0xff] %vm3121, %v3848
    %6954 = vst.msk [vmem:[%s5 + $0xb8] sm:$0xff] %vm3121, %v3849
    %6955 = vst.msk [vmem:[%s5 + $0xc0] sm:$0xff] %vm3121, %v3850
    %6956 = vst.msk [vmem:[%s5 + $0xc8] sm:$0xff] %vm3121, %v3851
    %6957 = vst.msk [vmem:[%s5 + $0xd0] sm:$0xff] %vm3121, %v3852
    %6958 = vst.msk [vmem:[%s5 + $0xd8] sm:$0xff] %vm3121, %v3853
    %6959 = vst.msk [vmem:[%s5 + $0xe0] sm:$0xff] %vm3121, %v3854
    %6960 = vst.msk [vmem:[%s5 + $0xe8] sm:$0xff] %vm3121, %v3855
    %6961 = vst.msk [vmem:[%s5 + $0xf0] sm:$0xff] %vm3121, %v3856
    %6962 = vst.msk [vmem:[%s5 + $0xf8] sm:$0xff] %vm3121, %v3857
    %6963 = vst.msk [vmem:[%s5 + $0x100] sm:$0xff] %vm3121, %v3858
    %6964 = vst.msk [vmem:[%s5 + $0x108] sm:$0xff] %vm3121, %v3859
    %6965 = vst.msk [vmem:[%s5 + $0x110] sm:$0xff] %vm3121, %v3860
    %6966 = vst.msk [vmem:[%s5 + $0x118] sm:$0xff] %vm3121, %v3861
    %6967 = vst.msk [vmem:[%s5 + $0x120] sm:$0xff] %vm3121, %v3862
    %6968 = vst.msk [vmem:[%s5 + $0x128] sm:$0xff] %vm3121, %v3863
    %6969 = vst.msk [vmem:[%s5 + $0x130] sm:$0xff] %vm3121, %v3864
    %6970 = vst.msk [vmem:[%s5 + $0x138] sm:$0xff] %vm3121, %v3865
    %6971 = vst.msk [vmem:[%s5 + $0x140] sm:$0xff] %vm3121, %v3866
    %6972 = vst.msk [vmem:[%s5 + $0x148] sm:$0xff] %vm3121, %v3867
    %6973 = vst.msk [vmem:[%s5 + $0x150] sm:$0xff] %vm3121, %v3868
    %6974 = vst.msk [vmem:[%s5 + $0x158] sm:$0xff] %vm3121, %v3869
    %6975 = vst.msk [vmem:[%s5 + $0x160] sm:$0xff] %vm3121, %v3870
    %6976 = vst.msk [vmem:[%s5 + $0x168] sm:$0xff] %vm3121, %v3871
    %6977 = vst.msk [vmem:[%s5 + $0x170] sm:$0xff] %vm3121, %v3872
    %6978 = vst.msk [vmem:[%s5 + $0x178] sm:$0xff] %vm3121, %v3873
    %6979 = vst.msk [vmem:[%s5 + $0x180] sm:$0xff] %vm3121, %v3874
    %6980 = vst.msk [vmem:[%s5 + $0x188] sm:$0xff] %vm3121, %v3875
    %6981 = vst.msk [vmem:[%s5 + $0x190] sm:$0xff] %vm3121, %v3876
    %6982 = vst.msk [vmem:[%s5 + $0x198] sm:$0xff] %vm3121, %v3877
    %6983 = vst.msk [vmem:[%s5 + $0x1a0] sm:$0xff] %vm3121, %v3878
    %6984 = vst.msk [vmem:[%s5 + $0x1a8] sm:$0xff] %vm3121, %v3879
    %6985 = vst.msk [vmem:[%s5 + $0x1b0] sm:$0xff] %vm3121, %v3880
    %6986 = vst.msk [vmem:[%s5 + $0x1b8] sm:$0xff] %vm3121, %v3881
    %6987 = vst.msk [vmem:[%s5 + $0x1c0] sm:$0xff] %vm3121, %v3882
    %6988 = vst.msk [vmem:[%s5 + $0x1c8] sm:$0xff] %vm3121, %v3883
    %6989 = vst.msk [vmem:[%s5 + $0x1d0] sm:$0xff] %vm3121, %v3884
    %6990 = vst.msk [vmem:[%s5 + $0x1d8] sm:$0xff] %vm3121, %v3885
    %6991 = vst.msk [vmem:[%s5 + $0x1e0] sm:$0xff] %vm3121, %v3886
    %6992 = vst.msk [vmem:[%s5 + $0x1e8] sm:$0xff] %vm3121, %v3887
    %6993 = vst.msk [vmem:[%s5 + $0x1f0] sm:$0xff] %vm3121, %v3888
    %6994 = vst.msk [vmem:[%s5 + $0x1f8] sm:$0xff] %vm3121, %v3889
    // Predicated region
    $region26: #{tpu_custom_call.1} parent=1 // pred_check
      _
    $region27: #{tpu_custom_call.1} parent=1 // pred_check_branch
      %6996 = sbr.rel (0) target = $region29
    $region28: #{tpu_custom_call.1} parent=1 // pred_region
      %s6998 = ssub.s32 8192, 8192
      %6999 = vsyncadd [#allocation4], %s6998
      %s7000 = sshll.u32 [#allocation7], 4
      %s7001 = int_to_ptr.vmem [resolvable:$true] %s7000
      %7006 = dma.vmem_to_hbm [thread:$0]  %s7001, 8192, %s4, [#allocation4], 128, 128, 8
    $region29: #{tpu_custom_call.1} parent=1 // pred_fallthru
      _
    // Predicated region
    $region30: #{tpu_custom_call.1} parent=1 // pred_check
      _
    $region31: #{tpu_custom_call.1} parent=1 // pred_check_branch
      %7008 = sbr.rel (0) target = $region33
    $region32: #{tpu_custom_call.1} parent=1 // pred_region
      _
    $region33: #{tpu_custom_call.1} parent=1 // pred_fallthru
      _
    // Predicated region
    $region34: #{tpu_custom_call.1} parent=1 // pred_check
      _
    $region35: #{tpu_custom_call.1} parent=1 // pred_check_branch
      %7010 = sbr.rel (0) target = $region37
    $region36: #{tpu_custom_call.1} parent=1 // pred_region
      %7011 = dma.done [#allocation4], 8192
    $region37: #{tpu_custom_call.1} parent=1 // pred_fallthru
      _
    // Predicated region
    $region38: #{tpu_custom_call.1} parent=1 // pred_check
      _
    $region39: #{tpu_custom_call.1} parent=1 // pred_check_branch
      %7013 = sbr.rel (0) target = $region41
    $region40: #{tpu_custom_call.1} parent=1 // pred_region
      _
    $region41: #{tpu_custom_call.1} parent=1 // pred_fallthru
      _
    %7014 = vsyncpa [#allocation3], 1
    %7015 = vsyncpa [#allocation6], 1
    %7016 = vsyncpa [#allocation4], 1

</llo_original>
